<compile_context>
chip_gen: v7x
topology: tpu7x:2x2x1
jax: 0.10.0
libtpu: 0.0.40
codegen_flags: <defaults>
</compile_context>

<pallas_src>
import math

import numpy as np
import jax
import jax.numpy as jnp
from jax import lax
from jax.experimental import pallas as pl
from jax.experimental.pallas import tpu as pltpu


# ----------------------------------------------------------------------------
# helpers
# ----------------------------------------------------------------------------
def _layer_norm(x, w, b, eps=1e-5):
    mu = jnp.mean(x, axis=-1, keepdims=True)
    xc = x - mu
    var = jnp.mean(xc * xc, axis=-1, keepdims=True)
    return xc * lax.rsqrt(var + eps) * w + b


def _const_spec(shape):
    n = len(shape)
    return pl.BlockSpec(shape, lambda *_: (0,) * n)


def _head_mask(num_heads, num_tokens, d_model):
    """(H*N, D) block mask: row h*N+i selects head h's feature columns."""
    hd = d_model // num_heads
    m = np.zeros((num_heads * num_tokens, d_model), np.float32)
    for h in range(num_heads):
        m[h * num_tokens:(h + 1) * num_tokens, h * hd:(h + 1) * hd] = 1.0
    return jnp.asarray(m)


# ----------------------------------------------------------------------------
# fused kernel: conv stack + folded pool/proj + transformer + detection head
# ----------------------------------------------------------------------------
def _make_fused_kernel(num_signals, signal_length, d_model, num_heads, num_layers):
    N, L, D, H = num_signals, signal_length, d_model, num_heads
    hd = D // H
    scale = 1.0 / math.sqrt(hd)

    def kernel(x_ref,
               w1_ref, b1_ref, w2_ref, b2_ref, w3_ref, b3_ref, pw_ref, bp_ref,
               pos_ref, hmask_ref,
               wqkv_ref, bqkv_ref, wo_ref, bo_ref, ln1w_ref, ln1b_ref,
               wf1_ref, bf1_ref, wf2_ref, bf2_ref, ln2w_ref, ln2b_ref,
               wd1_ref, bd1_ref, wd2_ref, bd2_ref,
               out_ref, feat_ref):
        # ----------------- multi-scale conv stack, one signal per iter --------
        def conv_one_signal(n, carry):
            xs = x_ref[0, pl.ds(n, 1), :]                              # (1, L)

            # Conv1d(1->32,k=3,p=1)+BN+ReLU : C_in=1 -> 3 VPU broadcast FMAs
            z1 = jnp.zeros((1, 1), jnp.float32)
            xp = jnp.concatenate([z1, xs, z1], axis=1)                 # (1, L+2)
            acc = jnp.zeros((32, L), jnp.float32)
            for j in range(3):
                acc = acc + w1_ref[j] * xp[:, j:j + L]                 # (32,1)*(1,L)
            h1 = jnp.maximum(acc + b1_ref[...], 0.0)                   # (32, L)

            # Conv1d(32->64,k=7,p=3)+BN+ReLU : im2col -> ONE MXU matmul (K=224)
            h1b = h1.astype(jnp.bfloat16)
            z2 = jnp.zeros((32, 3), jnp.bfloat16)
            h1p = jnp.concatenate([z2, h1b, z2], axis=1)               # (32, L+6)
            cols2 = jnp.concatenate([h1p[:, j:j + L] for j in range(7)], axis=0)
            h2 = jnp.maximum(
                jnp.dot(w2_ref[...], cols2, preferred_element_type=jnp.float32)
                + b2_ref[...], 0.0)                                    # (64, L)

            # Conv1d(64->64,k=15,p=7)+BN+ReLU : im2col -> ONE MXU matmul (K=960)
            h2b = h2.astype(jnp.bfloat16)
            z3 = jnp.zeros((64, 7), jnp.bfloat16)
            h2p = jnp.concatenate([z3, h2b, z3], axis=1)               # (64, L+14)
            cols3 = jnp.concatenate([h2p[:, j:j + L] for j in range(15)], axis=0)
            h3 = jnp.maximum(
                jnp.dot(w3_ref[...], cols3, preferred_element_type=jnp.float32)
                + b3_ref[...], 0.0)                                    # (64, L)

            # channel mean only; pool + projection are folded into pw below
            feat_ref[pl.ds(n, 1), :] = jnp.mean(h3, axis=0, keepdims=True)
            return carry

        lax.fori_loop(0, N, conv_one_signal, 0)

        # ---- AdaptiveAvgPool1d(128) + mean(channels) + Linear + ReLU, folded --
        # mean_c(pool(h)) @ Wp == mean_c(h) @ (Pt @ Wp)  (all linear); pw = Pt@Wp
        tokens = jnp.maximum(
            jnp.dot(feat_ref[...].astype(jnp.bfloat16), pw_ref[...],
                    preferred_element_type=jnp.float32) + bp_ref[...], 0.0)   # (N, D)

        # --------------------------- transformer -------------------------------
        x = tokens + pos_ref[...]                                      # (N, D)
        hmask = hmask_ref[...]                                         # (H*N, D)

        for layer in range(num_layers):
            # multi-head self-attention (block-diagonal mask, no per-head slices)
            qkv = jnp.dot(x.astype(jnp.bfloat16), wqkv_ref[layer],
                          preferred_element_type=jnp.float32) + bqkv_ref[layer]   # (N, 3D)
            q = qkv[:, :D] * scale
            k = qkv[:, D:2 * D]
            v = qkv[:, 2 * D:]

            # row h*N+i of aq = q[i] restricted to head h's columns
            aq = jnp.concatenate([q] * H, axis=0) * hmask              # (H*N, D)
            s = lax.dot_general(aq, k, (((1,), (1,)), ((), ())),
                                preferred_element_type=jnp.float32)    # (H*N, N)
            s = s - jnp.max(s, axis=-1, keepdims=True)
            p = jnp.exp(s)
            p = p / jnp.sum(p, axis=-1, keepdims=True)
            o = jnp.dot(p, v, preferred_element_type=jnp.float32)      # (H*N, D)
            attn = jnp.sum((o * hmask).reshape(H, N, D), axis=0)       # (N, D)
            attn = jnp.dot(attn.astype(jnp.bfloat16), wo_ref[layer],
                           preferred_element_type=jnp.float32) + bo_ref[layer]
            x = _layer_norm(x + attn, ln1w_ref[layer], ln1b_ref[layer])

            # feed-forward (ReLU), post-norm
            ff = jnp.maximum(
                jnp.dot(x.astype(jnp.bfloat16), wf1_ref[layer],
                        preferred_element_type=jnp.float32) + bf1_ref[layer], 0.0)
            ff = jnp.dot(ff.astype(jnp.bfloat16), wf2_ref[layer],
                         preferred_element_type=jnp.float32) + bf2_ref[layer]
            x = _layer_norm(x + ff, ln2w_ref[layer], ln2b_ref[layer])

        # --------------------------- detection head ----------------------------
        hidden = jnp.maximum(
            jnp.dot(x.astype(jnp.bfloat16), wd1_ref[...],
                    preferred_element_type=jnp.float32) + bd1_ref[...], 0.0)   # (N, D/2)
        # final Linear(D/2 -> 1) as a VPU broadcast-multiply + lane reduce
        logits = jnp.sum(hidden * wd2_ref[...], axis=-1, keepdims=True) + bd2_ref[...]
        out_ref[0] = jax.nn.sigmoid(logits)                            # (N, 1)

    return kernel


# ----------------------------------------------------------------------------
# wrapper
# ----------------------------------------------------------------------------
def complex_detection_forward(x, params, *, num_heads=8):
    B, N, L = x.shape
    D = params["pw"].shape[1]
    num_layers = params["wqkv"].shape[0]

    pos = params["pos"][:N]                       # positional_encoding[:seq_len]
    hmask = _head_mask(num_heads, N, D)

    consts = ([params[k] for k in ("w1", "b1", "w2", "b2", "w3", "b3", "pw", "bp")]
              + [pos, hmask]
              + [params[k] for k in ("wqkv", "bqkv", "wo", "bo", "ln1w", "ln1b",
                                     "wf1", "bf1", "wf2", "bf2", "ln2w", "ln2b",
                                     "wd1", "bd1", "wd2", "bd2")])

    kernel = _make_fused_kernel(N, L, D, num_heads, num_layers)
    probs = pl.pallas_call(
        kernel,
        out_shape=jax.ShapeDtypeStruct((B, N, 1), jnp.float32),
        grid=(B,),
        in_specs=[pl.BlockSpec((1, N, L), lambda b: (b, 0, 0))]
                 + [_const_spec(a.shape) for a in consts],
        out_specs=pl.BlockSpec((1, N, 1), lambda b: (b, 0, 0)),
        scratch_shapes=[pltpu.VMEM((N, L), jnp.float32)],
        compiler_params=pltpu.CompilerParams(
            dimension_semantics=("parallel",),
            vmem_limit_bytes=32 * 1024 * 1024),
    )(x.astype(jnp.float32), *consts)
    return probs[..., 0]                          # (B, N) detection probabilities


# ----------------------------------------------------------------------------
# parameter construction (BN folded, conv weights in im2col layout, pool folded)
# ----------------------------------------------------------------------------
def init_params(key, *, d_model=64, num_heads=8, num_layers=4,
                signal_length=256, pos_len=300, pool_out=128):
    D = d_model
    ks = iter(jax.random.split(key, 64))

    def nrm(shape, s=0.1):
        return s * jax.random.normal(next(ks), shape, jnp.float32)

    def conv_bn(cin, cout, k, eps=1e-5):
        # Conv1d(cin, cout, k) + BatchNorm1d(cout) in eval mode, folded together.
        W = nrm((cout, cin, k))
        b = nrm((cout,))
        gamma = 1.0 + nrm((cout,))
        beta = nrm((cout,))
        mean = nrm((cout,))
        var = 1.0 + 0.1 * jnp.abs(jax.random.normal(next(ks), (cout,), jnp.float32))
        sc = gamma / jnp.sqrt(var + eps)
        return W * sc[:, None, None], (b - mean) * sc + beta           # (cout,cin,k),(cout,)

    W1, bv1 = conv_bn(1, 32, 3)
    W2, bv2 = conv_bn(32, 64, 7)
    W3, bv3 = conv_bn(64, 64, 15)

    # layer 1 kept in per-tap form for the VPU path: (k, cout, 1)
    w1 = jnp.transpose(W1, (2, 0, 1))
    b1 = bv1[:, None]
    # layers 2/3 in im2col layout: (cout, k*cin), row index = j*cin + cin_idx
    w2 = jnp.transpose(W2, (0, 2, 1)).reshape(64, 7 * 32).astype(jnp.bfloat16)
    b2 = bv2[:, None]
    w3 = jnp.transpose(W3, (0, 2, 1)).reshape(64, 15 * 64).astype(jnp.bfloat16)
    b3 = bv3[:, None]

    # AdaptiveAvgPool1d(pool_out) as an (L, pool_out) averaging matrix (PyTorch
    # floor/ceil bucket rule), folded with the feature projection: pw = Pt @ Wp.
    pt = np.zeros((signal_length, pool_out), np.float32)
    for i in range(pool_out):
        s = (i * signal_length) // pool_out
        e = -(-((i + 1) * signal_length) // pool_out)                  # ceil
        pt[s:e, i] = 1.0 / (e - s)
    pt = jnp.asarray(pt)
    wp = nrm((pool_out, D))
    bp = nrm((1, D))
    pw = (pt @ wp).astype(jnp.bfloat16)                                # (L, D)

    pos = nrm((pos_len, D), 1.0)                                       # torch.randn-like

    LN = num_layers
    bf = jnp.bfloat16
    params = dict(
        w1=w1, b1=b1, w2=w2, b2=b2, w3=w3, b3=b3, pw=pw, bp=bp, pos=pos,
        wqkv=nrm((LN, D, 3 * D)).astype(bf), bqkv=nrm((LN, 1, 3 * D)),
        wo=nrm((LN, D, D)).astype(bf), bo=nrm((LN, 1, D)),
        ln1w=1.0 + nrm((LN, 1, D)), ln1b=nrm((LN, 1, D)),
        wf1=nrm((LN, D, 2 * D)).astype(bf), bf1=nrm((LN, 1, 2 * D)),
        wf2=nrm((LN, 2 * D, D)).astype(bf), bf2=nrm((LN, 1, D)),
        ln2w=1.0 + nrm((LN, 1, D)), ln2b=nrm((LN, 1, D)),
        wd1=nrm((D, D // 2)).astype(bf), bd1=nrm((1, D // 2)),
        wd2=nrm((1, D // 2)), bd2=nrm((1, 1)),     # final Linear stored as a row
    )
    return params


if __name__ == "__main__":
    B, N, L = 2, 8, 256          # batch, num_signals, signal_length
    d_model, num_heads, num_layers = 64, 8, 4

    x = jax.random.normal(jax.random.PRNGKey(0), (B, N, L), jnp.float32)
    params = init_params(jax.random.PRNGKey(1), d_model=d_model,
                         num_heads=num_heads, num_layers=num_layers,
                         signal_length=L)

    probs = complex_detection_forward(x, params, num_heads=num_heads)
    probs = jax.block_until_ready(probs)

    assert probs.shape == (B, N), probs.shape
    assert bool(jnp.all(jnp.isfinite(probs)))
    assert bool(jnp.all((probs >= 0.0) & (probs <= 1.0)))
    print("KERNEL_OK")
</pallas_src>

<mosaic_0001>
module attributes {stable_mosaic.version = 11 : i64} {
  func.func @kernel(%arg0: i32, %arg1: memref<1x8x256xf32, #tpu.memory_space<vmem>>, %arg2: memref<3x32x1xf32, #tpu.memory_space<vmem>>, %arg3: memref<32x1xf32, #tpu.memory_space<vmem>>, %arg4: memref<64x224xbf16, #tpu.memory_space<vmem>>, %arg5: memref<64x1xf32, #tpu.memory_space<vmem>>, %arg6: memref<64x960xbf16, #tpu.memory_space<vmem>>, %arg7: memref<64x1xf32, #tpu.memory_space<vmem>>, %arg8: memref<256x64xbf16, #tpu.memory_space<vmem>>, %arg9: memref<1x64xf32, #tpu.memory_space<vmem>>, %arg10: memref<8x64xf32, #tpu.memory_space<vmem>>, %arg11: memref<64x64xf32, #tpu.memory_space<vmem>>, %arg12: memref<4x64x192xbf16, #tpu.memory_space<vmem>>, %arg13: memref<4x1x192xf32, #tpu.memory_space<vmem>>, %arg14: memref<4x64x64xbf16, #tpu.memory_space<vmem>>, %arg15: memref<4x1x64xf32, #tpu.memory_space<vmem>>, %arg16: memref<4x1x64xf32, #tpu.memory_space<vmem>>, %arg17: memref<4x1x64xf32, #tpu.memory_space<vmem>>, %arg18: memref<4x64x128xbf16, #tpu.memory_space<vmem>>, %arg19: memref<4x1x128xf32, #tpu.memory_space<vmem>>, %arg20: memref<4x128x64xbf16, #tpu.memory_space<vmem>>, %arg21: memref<4x1x64xf32, #tpu.memory_space<vmem>>, %arg22: memref<4x1x64xf32, #tpu.memory_space<vmem>>, %arg23: memref<4x1x64xf32, #tpu.memory_space<vmem>>, %arg24: memref<64x32xbf16, #tpu.memory_space<vmem>>, %arg25: memref<1x32xf32, #tpu.memory_space<vmem>>, %arg26: memref<1x32xf32, #tpu.memory_space<vmem>>, %arg27: memref<1x1xf32, #tpu.memory_space<vmem>>, %arg28: memref<1x8x1xf32, #tpu.memory_space<vmem>>, %arg29: memref<8x256xf32, #tpu.memory_space<vmem>>) attributes {dimension_semantics = [#tpu.dimension_semantics<parallel>], iteration_bounds = array<i64: 2>, scalar_prefetch = 0 : i64, scratch_operands = 1 : i64, tpu.core_type = #tpu.core_type<tc>, window_params = [{transform_indices = @transform_0, window_bounds = array<i64: 1, 8, 256>}, {pipeline_mode = #tpu.pipeline_mode<synchronous>, transform_indices = @transform_1, window_bounds = array<i64: 3, 32, 1>}, {pipeline_mode = #tpu.pipeline_mode<synchronous>, transform_indices = @transform_2, window_bounds = array<i64: 32, 1>}, {pipeline_mode = #tpu.pipeline_mode<synchronous>, transform_indices = @transform_3, window_bounds = array<i64: 64, 224>}, {pipeline_mode = #tpu.pipeline_mode<synchronous>, transform_indices = @transform_4, window_bounds = array<i64: 64, 1>}, {pipeline_mode = #tpu.pipeline_mode<synchronous>, transform_indices = @transform_5, window_bounds = array<i64: 64, 960>}, {pipeline_mode = #tpu.pipeline_mode<synchronous>, transform_indices = @transform_6, window_bounds = array<i64: 64, 1>}, {pipeline_mode = #tpu.pipeline_mode<synchronous>, transform_indices = @transform_7, window_bounds = array<i64: 256, 64>}, {pipeline_mode = #tpu.pipeline_mode<synchronous>, transform_indices = @transform_8, window_bounds = array<i64: 1, 64>}, {pipeline_mode = #tpu.pipeline_mode<synchronous>, transform_indices = @transform_9, window_bounds = array<i64: 8, 64>}, {pipeline_mode = #tpu.pipeline_mode<synchronous>, transform_indices = @transform_10, window_bounds = array<i64: 64, 64>}, {pipeline_mode = #tpu.pipeline_mode<synchronous>, transform_indices = @transform_11, window_bounds = array<i64: 4, 64, 192>}, {pipeline_mode = #tpu.pipeline_mode<synchronous>, transform_indices = @transform_12, window_bounds = array<i64: 4, 1, 192>}, {pipeline_mode = #tpu.pipeline_mode<synchronous>, transform_indices = @transform_13, window_bounds = array<i64: 4, 64, 64>}, {pipeline_mode = #tpu.pipeline_mode<synchronous>, transform_indices = @transform_14, window_bounds = array<i64: 4, 1, 64>}, {pipeline_mode = #tpu.pipeline_mode<synchronous>, transform_indices = @transform_15, window_bounds = array<i64: 4, 1, 64>}, {pipeline_mode = #tpu.pipeline_mode<synchronous>, transform_indices = @transform_16, window_bounds = array<i64: 4, 1, 64>}, {pipeline_mode = #tpu.pipeline_mode<synchronous>, transform_indices = @transform_17, window_bounds = array<i64: 4, 64, 128>}, {pipeline_mode = #tpu.pipeline_mode<synchronous>, transform_indices = @transform_18, window_bounds = array<i64: 4, 1, 128>}, {pipeline_mode = #tpu.pipeline_mode<synchronous>, transform_indices = @transform_19, window_bounds = array<i64: 4, 128, 64>}, {pipeline_mode = #tpu.pipeline_mode<synchronous>, transform_indices = @transform_20, window_bounds = array<i64: 4, 1, 64>}, {pipeline_mode = #tpu.pipeline_mode<synchronous>, transform_indices = @transform_21, window_bounds = array<i64: 4, 1, 64>}, {pipeline_mode = #tpu.pipeline_mode<synchronous>, transform_indices = @transform_22, window_bounds = array<i64: 4, 1, 64>}, {pipeline_mode = #tpu.pipeline_mode<synchronous>, transform_indices = @transform_23, window_bounds = array<i64: 64, 32>}, {pipeline_mode = #tpu.pipeline_mode<synchronous>, transform_indices = @transform_24, window_bounds = array<i64: 1, 32>}, {pipeline_mode = #tpu.pipeline_mode<synchronous>, transform_indices = @transform_25, window_bounds = array<i64: 1, 32>}, {pipeline_mode = #tpu.pipeline_mode<synchronous>, transform_indices = @transform_26, window_bounds = array<i64: 1, 1>}, {transform_indices = @transform_27, window_bounds = array<i64: 1, 8, 1>}]} {
    %c0_i32 = arith.constant 0 : i32
    %c8_i32 = arith.constant 8 : i32
    %0 = arith.addi %c0_i32, %c8_i32 : i32
    %c1_i32 = arith.constant 1 : i32
    scf.for %arg30 = %c0_i32 to %0 step %c1_i32  : i32 {
      %c0_251 = arith.constant 0 : index
      %457 = arith.index_cast %arg30 : i32 to index
      %c0_252 = arith.constant 0 : index
      %458 = vector.load %arg1[%c0_251, %457, %c0_252] : memref<1x8x256xf32, #tpu.memory_space<vmem>>, vector<1x1x256xf32>
      %459 = vector.shape_cast %458 : vector<1x1x256xf32> to vector<1x256xf32>
      %cst_253 = arith.constant 0.000000e+00 : f32
      %460 = vector.broadcast %cst_253 : f32 to vector<1x1xf32>
      %461 = tpu.concatenate %460, %459, %460 in 1 : vector<1x1xf32>, vector<1x256xf32>, vector<1x1xf32> -> vector<1x258xf32>
      %cst_254 = arith.constant 0.000000e+00 : f32
      %462 = vector.broadcast %cst_254 : f32 to vector<32x256xf32>
      %c0_255 = arith.constant 0 : index
      %c0_256 = arith.constant 0 : index
      %c0_257 = arith.constant 0 : index
      %463 = vector.load %arg2[%c0_255, %c0_256, %c0_257] : memref<3x32x1xf32, #tpu.memory_space<vmem>>, vector<1x32x1xf32>
      %464 = vector.shape_cast %463 : vector<1x32x1xf32> to vector<32x1xf32>
      %465 = vector.extract_strided_slice %461 {offsets = [0, 0], sizes = [1, 256], strides = [1, 1]} : vector<1x258xf32> to vector<1x256xf32>
      %466 = vector.broadcast %464 : vector<32x1xf32> to vector<32x256xf32>
      %467 = vector.broadcast %465 : vector<1x256xf32> to vector<32x256xf32>
      %468 = arith.mulf %466, %467 : vector<32x256xf32>
      %469 = arith.addf %462, %468 : vector<32x256xf32>
      %c1_258 = arith.constant 1 : index
      %c0_259 = arith.constant 0 : index
      %c0_260 = arith.constant 0 : index
      %470 = vector.load %arg2[%c1_258, %c0_259, %c0_260] : memref<3x32x1xf32, #tpu.memory_space<vmem>>, vector<1x32x1xf32>
      %471 = vector.shape_cast %470 : vector<1x32x1xf32> to vector<32x1xf32>
      %472 = vector.extract_strided_slice %461 {offsets = [0, 1], sizes = [1, 256], strides = [1, 1]} : vector<1x258xf32> to vector<1x256xf32>
      %473 = vector.broadcast %471 : vector<32x1xf32> to vector<32x256xf32>
      %474 = vector.broadcast %472 : vector<1x256xf32> to vector<32x256xf32>
      %475 = arith.mulf %473, %474 : vector<32x256xf32>
      %476 = arith.addf %469, %475 : vector<32x256xf32>
      %c2_261 = arith.constant 2 : index
      %c0_262 = arith.constant 0 : index
      %c0_263 = arith.constant 0 : index
      %477 = vector.load %arg2[%c2_261, %c0_262, %c0_263] : memref<3x32x1xf32, #tpu.memory_space<vmem>>, vector<1x32x1xf32>
      %478 = vector.shape_cast %477 : vector<1x32x1xf32> to vector<32x1xf32>
      %479 = vector.extract_strided_slice %461 {offsets = [0, 2], sizes = [1, 256], strides = [1, 1]} : vector<1x258xf32> to vector<1x256xf32>
      %480 = vector.broadcast %478 : vector<32x1xf32> to vector<32x256xf32>
      %481 = vector.broadcast %479 : vector<1x256xf32> to vector<32x256xf32>
      %482 = arith.mulf %480, %481 : vector<32x256xf32>
      %483 = arith.addf %476, %482 : vector<32x256xf32>
      %c0_264 = arith.constant 0 : index
      %c0_265 = arith.constant 0 : index
      %484 = vector.load %arg3[%c0_264, %c0_265] : memref<32x1xf32, #tpu.memory_space<vmem>>, vector<32x1xf32>
      %485 = vector.broadcast %484 : vector<32x1xf32> to vector<32x256xf32>
      %486 = arith.addf %483, %485 : vector<32x256xf32>
      %cst_266 = arith.constant 0.000000e+00 : f32
      %487 = vector.broadcast %cst_266 : f32 to vector<32x256xf32>
      %488 = arith.maximumf %486, %487 : vector<32x256xf32>
      %489 = arith.truncf %488 : vector<32x256xf32> to vector<32x256xbf16>
      %cst_267 = arith.constant 0.000000e+00 : bf16
      %490 = vector.broadcast %cst_267 : bf16 to vector<32x3xbf16>
      %491 = tpu.concatenate %490, %489, %490 in 1 : vector<32x3xbf16>, vector<32x256xbf16>, vector<32x3xbf16> -> vector<32x262xbf16>
      %492 = vector.extract_strided_slice %491 {offsets = [0, 0], sizes = [32, 256], strides = [1, 1]} : vector<32x262xbf16> to vector<32x256xbf16>
      %493 = vector.extract_strided_slice %491 {offsets = [0, 1], sizes = [32, 256], strides = [1, 1]} : vector<32x262xbf16> to vector<32x256xbf16>
      %494 = vector.extract_strided_slice %491 {offsets = [0, 2], sizes = [32, 256], strides = [1, 1]} : vector<32x262xbf16> to vector<32x256xbf16>
      %495 = vector.extract_strided_slice %491 {offsets = [0, 3], sizes = [32, 256], strides = [1, 1]} : vector<32x262xbf16> to vector<32x256xbf16>
      %496 = vector.extract_strided_slice %491 {offsets = [0, 4], sizes = [32, 256], strides = [1, 1]} : vector<32x262xbf16> to vector<32x256xbf16>
      %497 = vector.extract_strided_slice %491 {offsets = [0, 5], sizes = [32, 256], strides = [1, 1]} : vector<32x262xbf16> to vector<32x256xbf16>
      %498 = vector.extract_strided_slice %491 {offsets = [0, 6], sizes = [32, 256], strides = [1, 1]} : vector<32x262xbf16> to vector<32x256xbf16>
      %499 = tpu.concatenate %492, %493, %494, %495, %496, %497, %498 in 0 : vector<32x256xbf16>, vector<32x256xbf16>, vector<32x256xbf16>, vector<32x256xbf16>, vector<32x256xbf16>, vector<32x256xbf16>, vector<32x256xbf16> -> vector<224x256xbf16>
      %c0_268 = arith.constant 0 : index
      %c0_269 = arith.constant 0 : index
      %500 = vector.load %arg4[%c0_268, %c0_269] : memref<64x224xbf16, #tpu.memory_space<vmem>>, vector<64x224xbf16>
      %cst_270 = arith.constant dense<0.000000e+00> : vector<64x256xf32>
      %501 = tpu.matmul %500, %499, %cst_270 {dimension_numbers = #tpu.dot_dimension_numbers<[1], [0], [0], [1], [0, 0, 1, 1], [], []>} : vector<64x224xbf16>, vector<224x256xbf16>, vector<64x256xf32> -> vector<64x256xf32>
      %c0_271 = arith.constant 0 : index
      %c0_272 = arith.constant 0 : index
      %502 = vector.load %arg5[%c0_271, %c0_272] : memref<64x1xf32, #tpu.memory_space<vmem>>, vector<64x1xf32>
      %503 = vector.broadcast %502 : vector<64x1xf32> to vector<64x256xf32>
      %504 = arith.addf %501, %503 : vector<64x256xf32>
      %cst_273 = arith.constant 0.000000e+00 : f32
      %505 = vector.broadcast %cst_273 : f32 to vector<64x256xf32>
      %506 = arith.maximumf %504, %505 : vector<64x256xf32>
      %507 = arith.truncf %506 : vector<64x256xf32> to vector<64x256xbf16>
      %cst_274 = arith.constant 0.000000e+00 : bf16
      %508 = vector.broadcast %cst_274 : bf16 to vector<64x7xbf16>
      %509 = tpu.concatenate %508, %507, %508 in 1 : vector<64x7xbf16>, vector<64x256xbf16>, vector<64x7xbf16> -> vector<64x270xbf16>
      %510 = vector.extract_strided_slice %509 {offsets = [0, 0], sizes = [64, 256], strides = [1, 1]} : vector<64x270xbf16> to vector<64x256xbf16>
      %511 = vector.extract_strided_slice %509 {offsets = [0, 1], sizes = [64, 256], strides = [1, 1]} : vector<64x270xbf16> to vector<64x256xbf16>
      %512 = vector.extract_strided_slice %509 {offsets = [0, 2], sizes = [64, 256], strides = [1, 1]} : vector<64x270xbf16> to vector<64x256xbf16>
      %513 = vector.extract_strided_slice %509 {offsets = [0, 3], sizes = [64, 256], strides = [1, 1]} : vector<64x270xbf16> to vector<64x256xbf16>
      %514 = vector.extract_strided_slice %509 {offsets = [0, 4], sizes = [64, 256], strides = [1, 1]} : vector<64x270xbf16> to vector<64x256xbf16>
      %515 = vector.extract_strided_slice %509 {offsets = [0, 5], sizes = [64, 256], strides = [1, 1]} : vector<64x270xbf16> to vector<64x256xbf16>
      %516 = vector.extract_strided_slice %509 {offsets = [0, 6], sizes = [64, 256], strides = [1, 1]} : vector<64x270xbf16> to vector<64x256xbf16>
      %517 = vector.extract_strided_slice %509 {offsets = [0, 7], sizes = [64, 256], strides = [1, 1]} : vector<64x270xbf16> to vector<64x256xbf16>
      %518 = vector.extract_strided_slice %509 {offsets = [0, 8], sizes = [64, 256], strides = [1, 1]} : vector<64x270xbf16> to vector<64x256xbf16>
      %519 = vector.extract_strided_slice %509 {offsets = [0, 9], sizes = [64, 256], strides = [1, 1]} : vector<64x270xbf16> to vector<64x256xbf16>
      %520 = vector.extract_strided_slice %509 {offsets = [0, 10], sizes = [64, 256], strides = [1, 1]} : vector<64x270xbf16> to vector<64x256xbf16>
      %521 = vector.extract_strided_slice %509 {offsets = [0, 11], sizes = [64, 256], strides = [1, 1]} : vector<64x270xbf16> to vector<64x256xbf16>
      %522 = vector.extract_strided_slice %509 {offsets = [0, 12], sizes = [64, 256], strides = [1, 1]} : vector<64x270xbf16> to vector<64x256xbf16>
      %523 = vector.extract_strided_slice %509 {offsets = [0, 13], sizes = [64, 256], strides = [1, 1]} : vector<64x270xbf16> to vector<64x256xbf16>
      %524 = vector.extract_strided_slice %509 {offsets = [0, 14], sizes = [64, 256], strides = [1, 1]} : vector<64x270xbf16> to vector<64x256xbf16>
      %525 = tpu.concatenate %510, %511, %512, %513, %514, %515, %516, %517, %518, %519, %520, %521, %522, %523, %524 in 0 : vector<64x256xbf16>, vector<64x256xbf16>, vector<64x256xbf16>, vector<64x256xbf16>, vector<64x256xbf16>, vector<64x256xbf16>, vector<64x256xbf16>, vector<64x256xbf16>, vector<64x256xbf16>, vector<64x256xbf16>, vector<64x256xbf16>, vector<64x256xbf16>, vector<64x256xbf16>, vector<64x256xbf16>, vector<64x256xbf16> -> vector<960x256xbf16>
      %c0_275 = arith.constant 0 : index
      %c0_276 = arith.constant 0 : index
      %526 = vector.load %arg6[%c0_275, %c0_276] : memref<64x960xbf16, #tpu.memory_space<vmem>>, vector<64x960xbf16>
      %cst_277 = arith.constant dense<0.000000e+00> : vector<64x256xf32>
      %527 = tpu.matmul %526, %525, %cst_277 {dimension_numbers = #tpu.dot_dimension_numbers<[1], [0], [0], [1], [0, 0, 1, 1], [], []>} : vector<64x960xbf16>, vector<960x256xbf16>, vector<64x256xf32> -> vector<64x256xf32>
      %c0_278 = arith.constant 0 : index
      %c0_279 = arith.constant 0 : index
      %528 = vector.load %arg7[%c0_278, %c0_279] : memref<64x1xf32, #tpu.memory_space<vmem>>, vector<64x1xf32>
      %529 = vector.broadcast %528 : vector<64x1xf32> to vector<64x256xf32>
      %530 = arith.addf %527, %529 : vector<64x256xf32>
      %cst_280 = arith.constant 0.000000e+00 : f32
      %531 = vector.broadcast %cst_280 : f32 to vector<64x256xf32>
      %532 = arith.maximumf %530, %531 : vector<64x256xf32>
      %cst_281 = arith.constant dense<0.000000e+00> : vector<256xf32>
      %533 = vector.multi_reduction <add>, %532, %cst_281 [0] : vector<64x256xf32> to vector<256xf32>
      %534 = vector.shape_cast %533 : vector<256xf32> to vector<1x256xf32>
      %cst_282 = arith.constant 6.400000e+01 : f32
      %535 = vector.broadcast %cst_282 : f32 to vector<1x256xf32>
      %536 = arith.divf %534, %535 : vector<1x256xf32>
      %537 = arith.index_cast %arg30 : i32 to index
      %c0_283 = arith.constant 0 : index
      %538 = vector.load %arg29[%537, %c0_283] : memref<8x256xf32, #tpu.memory_space<vmem>>, vector<1x256xf32>
      tpu.vector_store %arg29[%537, %c0_283], %536 {strides = array<i32>} : memref<8x256xf32, #tpu.memory_space<vmem>>, vector<1x256xf32>,
    }
    %c8_i32_0 = arith.constant 8 : i32
    %c0 = arith.constant 0 : index
    %c0_1 = arith.constant 0 : index
    %1 = vector.load %arg29[%c0, %c0_1] : memref<8x256xf32, #tpu.memory_space<vmem>>, vector<8x256xf32>
    %2 = arith.truncf %1 : vector<8x256xf32> to vector<8x256xbf16>
    %c0_2 = arith.constant 0 : index
    %c0_3 = arith.constant 0 : index
    %3 = vector.load %arg8[%c0_2, %c0_3] : memref<256x64xbf16, #tpu.memory_space<vmem>>, vector<256x64xbf16>
    %cst = arith.constant dense<0.000000e+00> : vector<8x64xf32>
    %4 = tpu.matmul %2, %3, %cst {dimension_numbers = #tpu.dot_dimension_numbers<[1], [0], [0], [1], [0, 0, 1, 1], [], []>} : vector<8x256xbf16>, vector<256x64xbf16>, vector<8x64xf32> -> vector<8x64xf32>
    %c0_4 = arith.constant 0 : index
    %c0_5 = arith.constant 0 : index
    %5 = vector.load %arg9[%c0_4, %c0_5] : memref<1x64xf32, #tpu.memory_space<vmem>>, vector<1x64xf32>
    %6 = vector.broadcast %5 : vector<1x64xf32> to vector<8x64xf32>
    %7 = arith.addf %4, %6 : vector<8x64xf32>
    %cst_6 = arith.constant 0.000000e+00 : f32
    %8 = vector.broadcast %cst_6 : f32 to vector<8x64xf32>
    %9 = arith.maximumf %7, %8 : vector<8x64xf32>
    %c0_7 = arith.constant 0 : index
    %c0_8 = arith.constant 0 : index
    %10 = vector.load %arg10[%c0_7, %c0_8] : memref<8x64xf32, #tpu.memory_space<vmem>>, vector<8x64xf32>
    %11 = arith.addf %9, %10 : vector<8x64xf32>
    %c0_9 = arith.constant 0 : index
    %c0_10 = arith.constant 0 : index
    %12 = vector.load %arg11[%c0_9, %c0_10] : memref<64x64xf32, #tpu.memory_space<vmem>>, vector<64x64xf32>
    %13 = arith.truncf %11 : vector<8x64xf32> to vector<8x64xbf16>
    %c0_11 = arith.constant 0 : index
    %c0_12 = arith.constant 0 : index
    %c0_13 = arith.constant 0 : index
    %14 = vector.load %arg12[%c0_11, %c0_12, %c0_13] : memref<4x64x192xbf16, #tpu.memory_space<vmem>>, vector<1x64x192xbf16>
    %15 = vector.shape_cast %14 : vector<1x64x192xbf16> to vector<64x192xbf16>
    %cst_14 = arith.constant dense<0.000000e+00> : vector<8x192xf32>
    %16 = tpu.matmul %13, %15, %cst_14 {dimension_numbers = #tpu.dot_dimension_numbers<[1], [0], [0], [1], [0, 0, 1, 1], [], []>} : vector<8x64xbf16>, vector<64x192xbf16>, vector<8x192xf32> -> vector<8x192xf32>
    %c0_15 = arith.constant 0 : index
    %c0_16 = arith.constant 0 : index
    %c0_17 = arith.constant 0 : index
    %17 = vector.load %arg13[%c0_15, %c0_16, %c0_17] : memref<4x1x192xf32, #tpu.memory_space<vmem>>, vector<1x1x192xf32>
    %18 = vector.shape_cast %17 : vector<1x1x192xf32> to vector<1x192xf32>
    %19 = vector.broadcast %18 : vector<1x192xf32> to vector<8x192xf32>
    %20 = arith.addf %16, %19 : vector<8x192xf32>
    %21 = vector.extract_strided_slice %20 {offsets = [0, 0], sizes = [8, 64], strides = [1, 1]} : vector<8x192xf32> to vector<8x64xf32>
    %cst_18 = arith.constant 0.353553385 : f32
    %22 = vector.broadcast %cst_18 : f32 to vector<8x64xf32>
    %23 = arith.mulf %21, %22 : vector<8x64xf32>
    %24 = vector.extract_strided_slice %20 {offsets = [0, 64], sizes = [8, 64], strides = [1, 1]} : vector<8x192xf32> to vector<8x64xf32>
    %25 = vector.extract_strided_slice %20 {offsets = [0, 128], sizes = [8, 64], strides = [1, 1]} : vector<8x192xf32> to vector<8x64xf32>
    %26 = tpu.concatenate %23, %23, %23, %23, %23, %23, %23, %23 in 0 : vector<8x64xf32>, vector<8x64xf32>, vector<8x64xf32>, vector<8x64xf32>, vector<8x64xf32>, vector<8x64xf32>, vector<8x64xf32>, vector<8x64xf32> -> vector<64x64xf32>
    %27 = arith.mulf %26, %12 : vector<64x64xf32>
    %cst_19 = arith.constant dense<0.000000e+00> : vector<64x8xf32>
    %28 = tpu.matmul %27, %24, %cst_19 {dimension_numbers = #tpu.dot_dimension_numbers<[1], [1], [0], [0], [0, 0, 1, 0], [], []>} : vector<64x64xf32>, vector<8x64xf32>, vector<64x8xf32> -> vector<64x8xf32>
    %cst_20 = arith.constant dense<0xFF800000> : vector<64xf32>
    %29 = vector.multi_reduction <maximumf>, %28, %cst_20 [1] : vector<64x8xf32> to vector<64xf32>
    %30 = vector.shape_cast %29 : vector<64xf32> to vector<64x1xf32>
    %31 = vector.broadcast %30 : vector<64x1xf32> to vector<64x8xf32>
    %32 = arith.subf %28, %31 : vector<64x8xf32>
    %33 = math.exp %32 : vector<64x8xf32>
    %cst_21 = arith.constant dense<0.000000e+00> : vector<64xf32>
    %34 = vector.multi_reduction <add>, %33, %cst_21 [1] : vector<64x8xf32> to vector<64xf32>
    %35 = vector.shape_cast %34 : vector<64xf32> to vector<64x1xf32>
    %36 = vector.broadcast %35 : vector<64x1xf32> to vector<64x8xf32>
    %37 = arith.divf %33, %36 : vector<64x8xf32>
    %cst_22 = arith.constant dense<0.000000e+00> : vector<64x64xf32>
    %38 = tpu.matmul %37, %25, %cst_22 {dimension_numbers = #tpu.dot_dimension_numbers<[1], [0], [0], [1], [0, 0, 1, 1], [], []>} : vector<64x8xf32>, vector<8x64xf32>, vector<64x64xf32> -> vector<64x64xf32>
    %39 = arith.mulf %38, %12 : vector<64x64xf32>
    %40 = vector.shape_cast %39 : vector<64x64xf32> to vector<8x8x64xf32>
    %cst_23 = arith.constant dense<0.000000e+00> : vector<8x64xf32>
    %41 = vector.multi_reduction <add>, %40, %cst_23 [0] : vector<8x8x64xf32> to vector<8x64xf32>
    %42 = arith.truncf %41 : vector<8x64xf32> to vector<8x64xbf16>
    %c0_24 = arith.constant 0 : index
    %c0_25 = arith.constant 0 : index
    %c0_26 = arith.constant 0 : index
    %43 = vector.load %arg14[%c0_24, %c0_25, %c0_26] : memref<4x64x64xbf16, #tpu.memory_space<vmem>>, vector<1x64x64xbf16>
    %44 = vector.shape_cast %43 : vector<1x64x64xbf16> to vector<64x64xbf16>
    %cst_27 = arith.constant dense<0.000000e+00> : vector<8x64xf32>
    %45 = tpu.matmul %42, %44, %cst_27 {dimension_numbers = #tpu.dot_dimension_numbers<[1], [0], [0], [1], [0, 0, 1, 1], [], []>} : vector<8x64xbf16>, vector<64x64xbf16>, vector<8x64xf32> -> vector<8x64xf32>
    %c0_28 = arith.constant 0 : index
    %c0_29 = arith.constant 0 : index
    %c0_30 = arith.constant 0 : index
    %46 = vector.load %arg15[%c0_28, %c0_29, %c0_30] : memref<4x1x64xf32, #tpu.memory_space<vmem>>, vector<1x1x64xf32>
    %47 = vector.shape_cast %46 : vector<1x1x64xf32> to vector<1x64xf32>
    %48 = vector.broadcast %47 : vector<1x64xf32> to vector<8x64xf32>
    %49 = arith.addf %45, %48 : vector<8x64xf32>
    %50 = arith.addf %11, %49 : vector<8x64xf32>
    %c0_31 = arith.constant 0 : index
    %c0_32 = arith.constant 0 : index
    %c0_33 = arith.constant 0 : index
    %51 = vector.load %arg16[%c0_31, %c0_32, %c0_33] : memref<4x1x64xf32, #tpu.memory_space<vmem>>, vector<1x1x64xf32>
    %52 = vector.shape_cast %51 : vector<1x1x64xf32> to vector<1x64xf32>
    %c0_34 = arith.constant 0 : index
    %c0_35 = arith.constant 0 : index
    %c0_36 = arith.constant 0 : index
    %53 = vector.load %arg17[%c0_34, %c0_35, %c0_36] : memref<4x1x64xf32, #tpu.memory_space<vmem>>, vector<1x1x64xf32>
    %54 = vector.shape_cast %53 : vector<1x1x64xf32> to vector<1x64xf32>
    %cst_37 = arith.constant dense<0.000000e+00> : vector<8xf32>
    %55 = vector.multi_reduction <add>, %50, %cst_37 [1] : vector<8x64xf32> to vector<8xf32>
    %56 = vector.shape_cast %55 : vector<8xf32> to vector<8x1xf32>
    %cst_38 = arith.constant 6.400000e+01 : f32
    %57 = vector.broadcast %cst_38 : f32 to vector<8x1xf32>
    %58 = arith.divf %56, %57 : vector<8x1xf32>
    %59 = vector.broadcast %58 : vector<8x1xf32> to vector<8x64xf32>
    %60 = arith.subf %50, %59 : vector<8x64xf32>
    %61 = arith.mulf %60, %60 : vector<8x64xf32>
    %cst_39 = arith.constant dense<0.000000e+00> : vector<8xf32>
    %62 = vector.multi_reduction <add>, %61, %cst_39 [1] : vector<8x64xf32> to vector<8xf32>
    %63 = vector.shape_cast %62 : vector<8xf32> to vector<8x1xf32>
    %cst_40 = arith.constant 6.400000e+01 : f32
    %64 = vector.broadcast %cst_40 : f32 to vector<8x1xf32>
    %65 = arith.divf %63, %64 : vector<8x1xf32>
    %cst_41 = arith.constant 9.99999974E-6 : f32
    %66 = vector.broadcast %cst_41 : f32 to vector<8x1xf32>
    %67 = arith.addf %65, %66 : vector<8x1xf32>
    %68 = math.rsqrt %67 : vector<8x1xf32>
    %69 = vector.broadcast %68 : vector<8x1xf32> to vector<8x64xf32>
    %70 = arith.mulf %60, %69 : vector<8x64xf32>
    %71 = vector.broadcast %52 : vector<1x64xf32> to vector<8x64xf32>
    %72 = arith.mulf %70, %71 : vector<8x64xf32>
    %73 = vector.broadcast %54 : vector<1x64xf32> to vector<8x64xf32>
    %74 = arith.addf %72, %73 : vector<8x64xf32>
    %75 = arith.truncf %74 : vector<8x64xf32> to vector<8x64xbf16>
    %c0_42 = arith.constant 0 : index
    %c0_43 = arith.constant 0 : index
    %c0_44 = arith.constant 0 : index
    %76 = vector.load %arg18[%c0_42, %c0_43, %c0_44] : memref<4x64x128xbf16, #tpu.memory_space<vmem>>, vector<1x64x128xbf16>
    %77 = vector.shape_cast %76 : vector<1x64x128xbf16> to vector<64x128xbf16>
    %cst_45 = arith.constant dense<0.000000e+00> : vector<8x128xf32>
    %78 = tpu.matmul %75, %77, %cst_45 {dimension_numbers = #tpu.dot_dimension_numbers<[1], [0], [0], [1], [0, 0, 1, 1], [], []>} : vector<8x64xbf16>, vector<64x128xbf16>, vector<8x128xf32> -> vector<8x128xf32>
    %c0_46 = arith.constant 0 : index
    %c0_47 = arith.constant 0 : index
    %c0_48 = arith.constant 0 : index
    %79 = vector.load %arg19[%c0_46, %c0_47, %c0_48] : memref<4x1x128xf32, #tpu.memory_space<vmem>>, vector<1x1x128xf32>
    %80 = vector.shape_cast %79 : vector<1x1x128xf32> to vector<1x128xf32>
    %81 = vector.broadcast %80 : vector<1x128xf32> to vector<8x128xf32>
    %82 = arith.addf %78, %81 : vector<8x128xf32>
    %cst_49 = arith.constant 0.000000e+00 : f32
    %83 = vector.broadcast %cst_49 : f32 to vector<8x128xf32>
    %84 = arith.maximumf %82, %83 : vector<8x128xf32>
    %85 = arith.truncf %84 : vector<8x128xf32> to vector<8x128xbf16>
    %c0_50 = arith.constant 0 : index
    %c0_51 = arith.constant 0 : index
    %c0_52 = arith.constant 0 : index
    %86 = vector.load %arg20[%c0_50, %c0_51, %c0_52] : memref<4x128x64xbf16, #tpu.memory_space<vmem>>, vector<1x128x64xbf16>
    %87 = vector.shape_cast %86 : vector<1x128x64xbf16> to vector<128x64xbf16>
    %cst_53 = arith.constant dense<0.000000e+00> : vector<8x64xf32>
    %88 = tpu.matmul %85, %87, %cst_53 {dimension_numbers = #tpu.dot_dimension_numbers<[1], [0], [0], [1], [0, 0, 1, 1], [], []>} : vector<8x128xbf16>, vector<128x64xbf16>, vector<8x64xf32> -> vector<8x64xf32>
    %c0_54 = arith.constant 0 : index
    %c0_55 = arith.constant 0 : index
    %c0_56 = arith.constant 0 : index
    %89 = vector.load %arg21[%c0_54, %c0_55, %c0_56] : memref<4x1x64xf32, #tpu.memory_space<vmem>>, vector<1x1x64xf32>
    %90 = vector.shape_cast %89 : vector<1x1x64xf32> to vector<1x64xf32>
    %91 = vector.broadcast %90 : vector<1x64xf32> to vector<8x64xf32>
    %92 = arith.addf %88, %91 : vector<8x64xf32>
    %93 = arith.addf %74, %92 : vector<8x64xf32>
    %c0_57 = arith.constant 0 : index
    %c0_58 = arith.constant 0 : index
    %c0_59 = arith.constant 0 : index
    %94 = vector.load %arg22[%c0_57, %c0_58, %c0_59] : memref<4x1x64xf32, #tpu.memory_space<vmem>>, vector<1x1x64xf32>
    %95 = vector.shape_cast %94 : vector<1x1x64xf32> to vector<1x64xf32>
    %c0_60 = arith.constant 0 : index
    %c0_61 = arith.constant 0 : index
    %c0_62 = arith.constant 0 : index
    %96 = vector.load %arg23[%c0_60, %c0_61, %c0_62] : memref<4x1x64xf32, #tpu.memory_space<vmem>>, vector<1x1x64xf32>
    %97 = vector.shape_cast %96 : vector<1x1x64xf32> to vector<1x64xf32>
    %cst_63 = arith.constant dense<0.000000e+00> : vector<8xf32>
    %98 = vector.multi_reduction <add>, %93, %cst_63 [1] : vector<8x64xf32> to vector<8xf32>
    %99 = vector.shape_cast %98 : vector<8xf32> to vector<8x1xf32>
    %cst_64 = arith.constant 6.400000e+01 : f32
    %100 = vector.broadcast %cst_64 : f32 to vector<8x1xf32>
    %101 = arith.divf %99, %100 : vector<8x1xf32>
    %102 = vector.broadcast %101 : vector<8x1xf32> to vector<8x64xf32>
    %103 = arith.subf %93, %102 : vector<8x64xf32>
    %104 = arith.mulf %103, %103 : vector<8x64xf32>
    %cst_65 = arith.constant dense<0.000000e+00> : vector<8xf32>
    %105 = vector.multi_reduction <add>, %104, %cst_65 [1] : vector<8x64xf32> to vector<8xf32>
    %106 = vector.shape_cast %105 : vector<8xf32> to vector<8x1xf32>
    %cst_66 = arith.constant 6.400000e+01 : f32
    %107 = vector.broadcast %cst_66 : f32 to vector<8x1xf32>
    %108 = arith.divf %106, %107 : vector<8x1xf32>
    %cst_67 = arith.constant 9.99999974E-6 : f32
    %109 = vector.broadcast %cst_67 : f32 to vector<8x1xf32>
    %110 = arith.addf %108, %109 : vector<8x1xf32>
    %111 = math.rsqrt %110 : vector<8x1xf32>
    %112 = vector.broadcast %111 : vector<8x1xf32> to vector<8x64xf32>
    %113 = arith.mulf %103, %112 : vector<8x64xf32>
    %114 = vector.broadcast %95 : vector<1x64xf32> to vector<8x64xf32>
    %115 = arith.mulf %113, %114 : vector<8x64xf32>
    %116 = vector.broadcast %97 : vector<1x64xf32> to vector<8x64xf32>
    %117 = arith.addf %115, %116 : vector<8x64xf32>
    %118 = arith.truncf %117 : vector<8x64xf32> to vector<8x64xbf16>
    %c1 = arith.constant 1 : index
    %c0_68 = arith.constant 0 : index
    %c0_69 = arith.constant 0 : index
    %119 = vector.load %arg12[%c1, %c0_68, %c0_69] : memref<4x64x192xbf16, #tpu.memory_space<vmem>>, vector<1x64x192xbf16>
    %120 = vector.shape_cast %119 : vector<1x64x192xbf16> to vector<64x192xbf16>
    %cst_70 = arith.constant dense<0.000000e+00> : vector<8x192xf32>
    %121 = tpu.matmul %118, %120, %cst_70 {dimension_numbers = #tpu.dot_dimension_numbers<[1], [0], [0], [1], [0, 0, 1, 1], [], []>} : vector<8x64xbf16>, vector<64x192xbf16>, vector<8x192xf32> -> vector<8x192xf32>
    %c1_71 = arith.constant 1 : index
    %c0_72 = arith.constant 0 : index
    %c0_73 = arith.constant 0 : index
    %122 = vector.load %arg13[%c1_71, %c0_72, %c0_73] : memref<4x1x192xf32, #tpu.memory_space<vmem>>, vector<1x1x192xf32>
    %123 = vector.shape_cast %122 : vector<1x1x192xf32> to vector<1x192xf32>
    %124 = vector.broadcast %123 : vector<1x192xf32> to vector<8x192xf32>
    %125 = arith.addf %121, %124 : vector<8x192xf32>
    %126 = vector.extract_strided_slice %125 {offsets = [0, 0], sizes = [8, 64], strides = [1, 1]} : vector<8x192xf32> to vector<8x64xf32>
    %cst_74 = arith.constant 0.353553385 : f32
    %127 = vector.broadcast %cst_74 : f32 to vector<8x64xf32>
    %128 = arith.mulf %126, %127 : vector<8x64xf32>
    %129 = vector.extract_strided_slice %125 {offsets = [0, 64], sizes = [8, 64], strides = [1, 1]} : vector<8x192xf32> to vector<8x64xf32>
    %130 = vector.extract_strided_slice %125 {offsets = [0, 128], sizes = [8, 64], strides = [1, 1]} : vector<8x192xf32> to vector<8x64xf32>
    %131 = tpu.concatenate %128, %128, %128, %128, %128, %128, %128, %128 in 0 : vector<8x64xf32>, vector<8x64xf32>, vector<8x64xf32>, vector<8x64xf32>, vector<8x64xf32>, vector<8x64xf32>, vector<8x64xf32>, vector<8x64xf32> -> vector<64x64xf32>
    %132 = arith.mulf %131, %12 : vector<64x64xf32>
    %cst_75 = arith.constant dense<0.000000e+00> : vector<64x8xf32>
    %133 = tpu.matmul %132, %129, %cst_75 {dimension_numbers = #tpu.dot_dimension_numbers<[1], [1], [0], [0], [0, 0, 1, 0], [], []>} : vector<64x64xf32>, vector<8x64xf32>, vector<64x8xf32> -> vector<64x8xf32>
    %cst_76 = arith.constant dense<0xFF800000> : vector<64xf32>
    %134 = vector.multi_reduction <maximumf>, %133, %cst_76 [1] : vector<64x8xf32> to vector<64xf32>
    %135 = vector.shape_cast %134 : vector<64xf32> to vector<64x1xf32>
    %136 = vector.broadcast %135 : vector<64x1xf32> to vector<64x8xf32>
    %137 = arith.subf %133, %136 : vector<64x8xf32>
    %138 = math.exp %137 : vector<64x8xf32>
    %cst_77 = arith.constant dense<0.000000e+00> : vector<64xf32>
    %139 = vector.multi_reduction <add>, %138, %cst_77 [1] : vector<64x8xf32> to vector<64xf32>
    %140 = vector.shape_cast %139 : vector<64xf32> to vector<64x1xf32>
    %141 = vector.broadcast %140 : vector<64x1xf32> to vector<64x8xf32>
    %142 = arith.divf %138, %141 : vector<64x8xf32>
    %cst_78 = arith.constant dense<0.000000e+00> : vector<64x64xf32>
    %143 = tpu.matmul %142, %130, %cst_78 {dimension_numbers = #tpu.dot_dimension_numbers<[1], [0], [0], [1], [0, 0, 1, 1], [], []>} : vector<64x8xf32>, vector<8x64xf32>, vector<64x64xf32> -> vector<64x64xf32>
    %144 = arith.mulf %143, %12 : vector<64x64xf32>
    %145 = vector.shape_cast %144 : vector<64x64xf32> to vector<8x8x64xf32>
    %cst_79 = arith.constant dense<0.000000e+00> : vector<8x64xf32>
    %146 = vector.multi_reduction <add>, %145, %cst_79 [0] : vector<8x8x64xf32> to vector<8x64xf32>
    %147 = arith.truncf %146 : vector<8x64xf32> to vector<8x64xbf16>
    %c1_80 = arith.constant 1 : index
    %c0_81 = arith.constant 0 : index
    %c0_82 = arith.constant 0 : index
    %148 = vector.load %arg14[%c1_80, %c0_81, %c0_82] : memref<4x64x64xbf16, #tpu.memory_space<vmem>>, vector<1x64x64xbf16>
    %149 = vector.shape_cast %148 : vector<1x64x64xbf16> to vector<64x64xbf16>
    %cst_83 = arith.constant dense<0.000000e+00> : vector<8x64xf32>
    %150 = tpu.matmul %147, %149, %cst_83 {dimension_numbers = #tpu.dot_dimension_numbers<[1], [0], [0], [1], [0, 0, 1, 1], [], []>} : vector<8x64xbf16>, vector<64x64xbf16>, vector<8x64xf32> -> vector<8x64xf32>
    %c1_84 = arith.constant 1 : index
    %c0_85 = arith.constant 0 : index
    %c0_86 = arith.constant 0 : index
    %151 = vector.load %arg15[%c1_84, %c0_85, %c0_86] : memref<4x1x64xf32, #tpu.memory_space<vmem>>, vector<1x1x64xf32>
    %152 = vector.shape_cast %151 : vector<1x1x64xf32> to vector<1x64xf32>
    %153 = vector.broadcast %152 : vector<1x64xf32> to vector<8x64xf32>
    %154 = arith.addf %150, %153 : vector<8x64xf32>
    %155 = arith.addf %117, %154 : vector<8x64xf32>
    %c1_87 = arith.constant 1 : index
    %c0_88 = arith.constant 0 : index
    %c0_89 = arith.constant 0 : index
    %156 = vector.load %arg16[%c1_87, %c0_88, %c0_89] : memref<4x1x64xf32, #tpu.memory_space<vmem>>, vector<1x1x64xf32>
    %157 = vector.shape_cast %156 : vector<1x1x64xf32> to vector<1x64xf32>
    %c1_90 = arith.constant 1 : index
    %c0_91 = arith.constant 0 : index
    %c0_92 = arith.constant 0 : index
    %158 = vector.load %arg17[%c1_90, %c0_91, %c0_92] : memref<4x1x64xf32, #tpu.memory_space<vmem>>, vector<1x1x64xf32>
    %159 = vector.shape_cast %158 : vector<1x1x64xf32> to vector<1x64xf32>
    %cst_93 = arith.constant dense<0.000000e+00> : vector<8xf32>
    %160 = vector.multi_reduction <add>, %155, %cst_93 [1] : vector<8x64xf32> to vector<8xf32>
    %161 = vector.shape_cast %160 : vector<8xf32> to vector<8x1xf32>
    %cst_94 = arith.constant 6.400000e+01 : f32
    %162 = vector.broadcast %cst_94 : f32 to vector<8x1xf32>
    %163 = arith.divf %161, %162 : vector<8x1xf32>
    %164 = vector.broadcast %163 : vector<8x1xf32> to vector<8x64xf32>
    %165 = arith.subf %155, %164 : vector<8x64xf32>
    %166 = arith.mulf %165, %165 : vector<8x64xf32>
    %cst_95 = arith.constant dense<0.000000e+00> : vector<8xf32>
    %167 = vector.multi_reduction <add>, %166, %cst_95 [1] : vector<8x64xf32> to vector<8xf32>
    %168 = vector.shape_cast %167 : vector<8xf32> to vector<8x1xf32>
    %cst_96 = arith.constant 6.400000e+01 : f32
    %169 = vector.broadcast %cst_96 : f32 to vector<8x1xf32>
    %170 = arith.divf %168, %169 : vector<8x1xf32>
    %cst_97 = arith.constant 9.99999974E-6 : f32
    %171 = vector.broadcast %cst_97 : f32 to vector<8x1xf32>
    %172 = arith.addf %170, %171 : vector<8x1xf32>
    %173 = math.rsqrt %172 : vector<8x1xf32>
    %174 = vector.broadcast %173 : vector<8x1xf32> to vector<8x64xf32>
    %175 = arith.mulf %165, %174 : vector<8x64xf32>
    %176 = vector.broadcast %157 : vector<1x64xf32> to vector<8x64xf32>
    %177 = arith.mulf %175, %176 : vector<8x64xf32>
    %178 = vector.broadcast %159 : vector<1x64xf32> to vector<8x64xf32>
    %179 = arith.addf %177, %178 : vector<8x64xf32>
    %180 = arith.truncf %179 : vector<8x64xf32> to vector<8x64xbf16>
    %c1_98 = arith.constant 1 : index
    %c0_99 = arith.constant 0 : index
    %c0_100 = arith.constant 0 : index
    %181 = vector.load %arg18[%c1_98, %c0_99, %c0_100] : memref<4x64x128xbf16, #tpu.memory_space<vmem>>, vector<1x64x128xbf16>
    %182 = vector.shape_cast %181 : vector<1x64x128xbf16> to vector<64x128xbf16>
    %cst_101 = arith.constant dense<0.000000e+00> : vector<8x128xf32>
    %183 = tpu.matmul %180, %182, %cst_101 {dimension_numbers = #tpu.dot_dimension_numbers<[1], [0], [0], [1], [0, 0, 1, 1], [], []>} : vector<8x64xbf16>, vector<64x128xbf16>, vector<8x128xf32> -> vector<8x128xf32>
    %c1_102 = arith.constant 1 : index
    %c0_103 = arith.constant 0 : index
    %c0_104 = arith.constant 0 : index
    %184 = vector.load %arg19[%c1_102, %c0_103, %c0_104] : memref<4x1x128xf32, #tpu.memory_space<vmem>>, vector<1x1x128xf32>
    %185 = vector.shape_cast %184 : vector<1x1x128xf32> to vector<1x128xf32>
    %186 = vector.broadcast %185 : vector<1x128xf32> to vector<8x128xf32>
    %187 = arith.addf %183, %186 : vector<8x128xf32>
    %cst_105 = arith.constant 0.000000e+00 : f32
    %188 = vector.broadcast %cst_105 : f32 to vector<8x128xf32>
    %189 = arith.maximumf %187, %188 : vector<8x128xf32>
    %190 = arith.truncf %189 : vector<8x128xf32> to vector<8x128xbf16>
    %c1_106 = arith.constant 1 : index
    %c0_107 = arith.constant 0 : index
    %c0_108 = arith.constant 0 : index
    %191 = vector.load %arg20[%c1_106, %c0_107, %c0_108] : memref<4x128x64xbf16, #tpu.memory_space<vmem>>, vector<1x128x64xbf16>
    %192 = vector.shape_cast %191 : vector<1x128x64xbf16> to vector<128x64xbf16>
    %cst_109 = arith.constant dense<0.000000e+00> : vector<8x64xf32>
    %193 = tpu.matmul %190, %192, %cst_109 {dimension_numbers = #tpu.dot_dimension_numbers<[1], [0], [0], [1], [0, 0, 1, 1], [], []>} : vector<8x128xbf16>, vector<128x64xbf16>, vector<8x64xf32> -> vector<8x64xf32>
    %c1_110 = arith.constant 1 : index
    %c0_111 = arith.constant 0 : index
    %c0_112 = arith.constant 0 : index
    %194 = vector.load %arg21[%c1_110, %c0_111, %c0_112] : memref<4x1x64xf32, #tpu.memory_space<vmem>>, vector<1x1x64xf32>
    %195 = vector.shape_cast %194 : vector<1x1x64xf32> to vector<1x64xf32>
    %196 = vector.broadcast %195 : vector<1x64xf32> to vector<8x64xf32>
    %197 = arith.addf %193, %196 : vector<8x64xf32>
    %198 = arith.addf %179, %197 : vector<8x64xf32>
    %c1_113 = arith.constant 1 : index
    %c0_114 = arith.constant 0 : index
    %c0_115 = arith.constant 0 : index
    %199 = vector.load %arg22[%c1_113, %c0_114, %c0_115] : memref<4x1x64xf32, #tpu.memory_space<vmem>>, vector<1x1x64xf32>
    %200 = vector.shape_cast %199 : vector<1x1x64xf32> to vector<1x64xf32>
    %c1_116 = arith.constant 1 : index
    %c0_117 = arith.constant 0 : index
    %c0_118 = arith.constant 0 : index
    %201 = vector.load %arg23[%c1_116, %c0_117, %c0_118] : memref<4x1x64xf32, #tpu.memory_space<vmem>>, vector<1x1x64xf32>
    %202 = vector.shape_cast %201 : vector<1x1x64xf32> to vector<1x64xf32>
    %cst_119 = arith.constant dense<0.000000e+00> : vector<8xf32>
    %203 = vector.multi_reduction <add>, %198, %cst_119 [1] : vector<8x64xf32> to vector<8xf32>
    %204 = vector.shape_cast %203 : vector<8xf32> to vector<8x1xf32>
    %cst_120 = arith.constant 6.400000e+01 : f32
    %205 = vector.broadcast %cst_120 : f32 to vector<8x1xf32>
    %206 = arith.divf %204, %205 : vector<8x1xf32>
    %207 = vector.broadcast %206 : vector<8x1xf32> to vector<8x64xf32>
    %208 = arith.subf %198, %207 : vector<8x64xf32>
    %209 = arith.mulf %208, %208 : vector<8x64xf32>
    %cst_121 = arith.constant dense<0.000000e+00> : vector<8xf32>
    %210 = vector.multi_reduction <add>, %209, %cst_121 [1] : vector<8x64xf32> to vector<8xf32>
    %211 = vector.shape_cast %210 : vector<8xf32> to vector<8x1xf32>
    %cst_122 = arith.constant 6.400000e+01 : f32
    %212 = vector.broadcast %cst_122 : f32 to vector<8x1xf32>
    %213 = arith.divf %211, %212 : vector<8x1xf32>
    %cst_123 = arith.constant 9.99999974E-6 : f32
    %214 = vector.broadcast %cst_123 : f32 to vector<8x1xf32>
    %215 = arith.addf %213, %214 : vector<8x1xf32>
    %216 = math.rsqrt %215 : vector<8x1xf32>
    %217 = vector.broadcast %216 : vector<8x1xf32> to vector<8x64xf32>
    %218 = arith.mulf %208, %217 : vector<8x64xf32>
    %219 = vector.broadcast %200 : vector<1x64xf32> to vector<8x64xf32>
    %220 = arith.mulf %218, %219 : vector<8x64xf32>
    %221 = vector.broadcast %202 : vector<1x64xf32> to vector<8x64xf32>
    %222 = arith.addf %220, %221 : vector<8x64xf32>
    %223 = arith.truncf %222 : vector<8x64xf32> to vector<8x64xbf16>
    %c2 = arith.constant 2 : index
    %c0_124 = arith.constant 0 : index
    %c0_125 = arith.constant 0 : index
    %224 = vector.load %arg12[%c2, %c0_124, %c0_125] : memref<4x64x192xbf16, #tpu.memory_space<vmem>>, vector<1x64x192xbf16>
    %225 = vector.shape_cast %224 : vector<1x64x192xbf16> to vector<64x192xbf16>
    %cst_126 = arith.constant dense<0.000000e+00> : vector<8x192xf32>
    %226 = tpu.matmul %223, %225, %cst_126 {dimension_numbers = #tpu.dot_dimension_numbers<[1], [0], [0], [1], [0, 0, 1, 1], [], []>} : vector<8x64xbf16>, vector<64x192xbf16>, vector<8x192xf32> -> vector<8x192xf32>
    %c2_127 = arith.constant 2 : index
    %c0_128 = arith.constant 0 : index
    %c0_129 = arith.constant 0 : index
    %227 = vector.load %arg13[%c2_127, %c0_128, %c0_129] : memref<4x1x192xf32, #tpu.memory_space<vmem>>, vector<1x1x192xf32>
    %228 = vector.shape_cast %227 : vector<1x1x192xf32> to vector<1x192xf32>
    %229 = vector.broadcast %228 : vector<1x192xf32> to vector<8x192xf32>
    %230 = arith.addf %226, %229 : vector<8x192xf32>
    %231 = vector.extract_strided_slice %230 {offsets = [0, 0], sizes = [8, 64], strides = [1, 1]} : vector<8x192xf32> to vector<8x64xf32>
    %cst_130 = arith.constant 0.353553385 : f32
    %232 = vector.broadcast %cst_130 : f32 to vector<8x64xf32>
    %233 = arith.mulf %231, %232 : vector<8x64xf32>
    %234 = vector.extract_strided_slice %230 {offsets = [0, 64], sizes = [8, 64], strides = [1, 1]} : vector<8x192xf32> to vector<8x64xf32>
    %235 = vector.extract_strided_slice %230 {offsets = [0, 128], sizes = [8, 64], strides = [1, 1]} : vector<8x192xf32> to vector<8x64xf32>
    %236 = tpu.concatenate %233, %233, %233, %233, %233, %233, %233, %233 in 0 : vector<8x64xf32>, vector<8x64xf32>, vector<8x64xf32>, vector<8x64xf32>, vector<8x64xf32>, vector<8x64xf32>, vector<8x64xf32>, vector<8x64xf32> -> vector<64x64xf32>
    %237 = arith.mulf %236, %12 : vector<64x64xf32>
    %cst_131 = arith.constant dense<0.000000e+00> : vector<64x8xf32>
    %238 = tpu.matmul %237, %234, %cst_131 {dimension_numbers = #tpu.dot_dimension_numbers<[1], [1], [0], [0], [0, 0, 1, 0], [], []>} : vector<64x64xf32>, vector<8x64xf32>, vector<64x8xf32> -> vector<64x8xf32>
    %cst_132 = arith.constant dense<0xFF800000> : vector<64xf32>
    %239 = vector.multi_reduction <maximumf>, %238, %cst_132 [1] : vector<64x8xf32> to vector<64xf32>
    %240 = vector.shape_cast %239 : vector<64xf32> to vector<64x1xf32>
    %241 = vector.broadcast %240 : vector<64x1xf32> to vector<64x8xf32>
    %242 = arith.subf %238, %241 : vector<64x8xf32>
    %243 = math.exp %242 : vector<64x8xf32>
    %cst_133 = arith.constant dense<0.000000e+00> : vector<64xf32>
    %244 = vector.multi_reduction <add>, %243, %cst_133 [1] : vector<64x8xf32> to vector<64xf32>
    %245 = vector.shape_cast %244 : vector<64xf32> to vector<64x1xf32>
    %246 = vector.broadcast %245 : vector<64x1xf32> to vector<64x8xf32>
    %247 = arith.divf %243, %246 : vector<64x8xf32>
    %cst_134 = arith.constant dense<0.000000e+00> : vector<64x64xf32>
    %248 = tpu.matmul %247, %235, %cst_134 {dimension_numbers = #tpu.dot_dimension_numbers<[1], [0], [0], [1], [0, 0, 1, 1], [], []>} : vector<64x8xf32>, vector<8x64xf32>, vector<64x64xf32> -> vector<64x64xf32>
    %249 = arith.mulf %248, %12 : vector<64x64xf32>
    %250 = vector.shape_cast %249 : vector<64x64xf32> to vector<8x8x64xf32>
    %cst_135 = arith.constant dense<0.000000e+00> : vector<8x64xf32>
    %251 = vector.multi_reduction <add>, %250, %cst_135 [0] : vector<8x8x64xf32> to vector<8x64xf32>
    %252 = arith.truncf %251 : vector<8x64xf32> to vector<8x64xbf16>
    %c2_136 = arith.constant 2 : index
    %c0_137 = arith.constant 0 : index
    %c0_138 = arith.constant 0 : index
    %253 = vector.load %arg14[%c2_136, %c0_137, %c0_138] : memref<4x64x64xbf16, #tpu.memory_space<vmem>>, vector<1x64x64xbf16>
    %254 = vector.shape_cast %253 : vector<1x64x64xbf16> to vector<64x64xbf16>
    %cst_139 = arith.constant dense<0.000000e+00> : vector<8x64xf32>
    %255 = tpu.matmul %252, %254, %cst_139 {dimension_numbers = #tpu.dot_dimension_numbers<[1], [0], [0], [1], [0, 0, 1, 1], [], []>} : vector<8x64xbf16>, vector<64x64xbf16>, vector<8x64xf32> -> vector<8x64xf32>
    %c2_140 = arith.constant 2 : index
    %c0_141 = arith.constant 0 : index
    %c0_142 = arith.constant 0 : index
    %256 = vector.load %arg15[%c2_140, %c0_141, %c0_142] : memref<4x1x64xf32, #tpu.memory_space<vmem>>, vector<1x1x64xf32>
    %257 = vector.shape_cast %256 : vector<1x1x64xf32> to vector<1x64xf32>
    %258 = vector.broadcast %257 : vector<1x64xf32> to vector<8x64xf32>
    %259 = arith.addf %255, %258 : vector<8x64xf32>
    %260 = arith.addf %222, %259 : vector<8x64xf32>
    %c2_143 = arith.constant 2 : index
    %c0_144 = arith.constant 0 : index
    %c0_145 = arith.constant 0 : index
    %261 = vector.load %arg16[%c2_143, %c0_144, %c0_145] : memref<4x1x64xf32, #tpu.memory_space<vmem>>, vector<1x1x64xf32>
    %262 = vector.shape_cast %261 : vector<1x1x64xf32> to vector<1x64xf32>
    %c2_146 = arith.constant 2 : index
    %c0_147 = arith.constant 0 : index
    %c0_148 = arith.constant 0 : index
    %263 = vector.load %arg17[%c2_146, %c0_147, %c0_148] : memref<4x1x64xf32, #tpu.memory_space<vmem>>, vector<1x1x64xf32>
    %264 = vector.shape_cast %263 : vector<1x1x64xf32> to vector<1x64xf32>
    %cst_149 = arith.constant dense<0.000000e+00> : vector<8xf32>
    %265 = vector.multi_reduction <add>, %260, %cst_149 [1] : vector<8x64xf32> to vector<8xf32>
    %266 = vector.shape_cast %265 : vector<8xf32> to vector<8x1xf32>
    %cst_150 = arith.constant 6.400000e+01 : f32
    %267 = vector.broadcast %cst_150 : f32 to vector<8x1xf32>
    %268 = arith.divf %266, %267 : vector<8x1xf32>
    %269 = vector.broadcast %268 : vector<8x1xf32> to vector<8x64xf32>
    %270 = arith.subf %260, %269 : vector<8x64xf32>
    %271 = arith.mulf %270, %270 : vector<8x64xf32>
    %cst_151 = arith.constant dense<0.000000e+00> : vector<8xf32>
    %272 = vector.multi_reduction <add>, %271, %cst_151 [1] : vector<8x64xf32> to vector<8xf32>
    %273 = vector.shape_cast %272 : vector<8xf32> to vector<8x1xf32>
    %cst_152 = arith.constant 6.400000e+01 : f32
    %274 = vector.broadcast %cst_152 : f32 to vector<8x1xf32>
    %275 = arith.divf %273, %274 : vector<8x1xf32>
    %cst_153 = arith.constant 9.99999974E-6 : f32
    %276 = vector.broadcast %cst_153 : f32 to vector<8x1xf32>
    %277 = arith.addf %275, %276 : vector<8x1xf32>
    %278 = math.rsqrt %277 : vector<8x1xf32>
    %279 = vector.broadcast %278 : vector<8x1xf32> to vector<8x64xf32>
    %280 = arith.mulf %270, %279 : vector<8x64xf32>
    %281 = vector.broadcast %262 : vector<1x64xf32> to vector<8x64xf32>
    %282 = arith.mulf %280, %281 : vector<8x64xf32>
    %283 = vector.broadcast %264 : vector<1x64xf32> to vector<8x64xf32>
    %284 = arith.addf %282, %283 : vector<8x64xf32>
    %285 = arith.truncf %284 : vector<8x64xf32> to vector<8x64xbf16>
    %c2_154 = arith.constant 2 : index
    %c0_155 = arith.constant 0 : index
    %c0_156 = arith.constant 0 : index
    %286 = vector.load %arg18[%c2_154, %c0_155, %c0_156] : memref<4x64x128xbf16, #tpu.memory_space<vmem>>, vector<1x64x128xbf16>
    %287 = vector.shape_cast %286 : vector<1x64x128xbf16> to vector<64x128xbf16>
    %cst_157 = arith.constant dense<0.000000e+00> : vector<8x128xf32>
    %288 = tpu.matmul %285, %287, %cst_157 {dimension_numbers = #tpu.dot_dimension_numbers<[1], [0], [0], [1], [0, 0, 1, 1], [], []>} : vector<8x64xbf16>, vector<64x128xbf16>, vector<8x128xf32> -> vector<8x128xf32>
    %c2_158 = arith.constant 2 : index
    %c0_159 = arith.constant 0 : index
    %c0_160 = arith.constant 0 : index
    %289 = vector.load %arg19[%c2_158, %c0_159, %c0_160] : memref<4x1x128xf32, #tpu.memory_space<vmem>>, vector<1x1x128xf32>
    %290 = vector.shape_cast %289 : vector<1x1x128xf32> to vector<1x128xf32>
    %291 = vector.broadcast %290 : vector<1x128xf32> to vector<8x128xf32>
    %292 = arith.addf %288, %291 : vector<8x128xf32>
    %cst_161 = arith.constant 0.000000e+00 : f32
    %293 = vector.broadcast %cst_161 : f32 to vector<8x128xf32>
    %294 = arith.maximumf %292, %293 : vector<8x128xf32>
    %295 = arith.truncf %294 : vector<8x128xf32> to vector<8x128xbf16>
    %c2_162 = arith.constant 2 : index
    %c0_163 = arith.constant 0 : index
    %c0_164 = arith.constant 0 : index
    %296 = vector.load %arg20[%c2_162, %c0_163, %c0_164] : memref<4x128x64xbf16, #tpu.memory_space<vmem>>, vector<1x128x64xbf16>
    %297 = vector.shape_cast %296 : vector<1x128x64xbf16> to vector<128x64xbf16>
    %cst_165 = arith.constant dense<0.000000e+00> : vector<8x64xf32>
    %298 = tpu.matmul %295, %297, %cst_165 {dimension_numbers = #tpu.dot_dimension_numbers<[1], [0], [0], [1], [0, 0, 1, 1], [], []>} : vector<8x128xbf16>, vector<128x64xbf16>, vector<8x64xf32> -> vector<8x64xf32>
    %c2_166 = arith.constant 2 : index
    %c0_167 = arith.constant 0 : index
    %c0_168 = arith.constant 0 : index
    %299 = vector.load %arg21[%c2_166, %c0_167, %c0_168] : memref<4x1x64xf32, #tpu.memory_space<vmem>>, vector<1x1x64xf32>
    %300 = vector.shape_cast %299 : vector<1x1x64xf32> to vector<1x64xf32>
    %301 = vector.broadcast %300 : vector<1x64xf32> to vector<8x64xf32>
    %302 = arith.addf %298, %301 : vector<8x64xf32>
    %303 = arith.addf %284, %302 : vector<8x64xf32>
    %c2_169 = arith.constant 2 : index
    %c0_170 = arith.constant 0 : index
    %c0_171 = arith.constant 0 : index
    %304 = vector.load %arg22[%c2_169, %c0_170, %c0_171] : memref<4x1x64xf32, #tpu.memory_space<vmem>>, vector<1x1x64xf32>
    %305 = vector.shape_cast %304 : vector<1x1x64xf32> to vector<1x64xf32>
    %c2_172 = arith.constant 2 : index
    %c0_173 = arith.constant 0 : index
    %c0_174 = arith.constant 0 : index
    %306 = vector.load %arg23[%c2_172, %c0_173, %c0_174] : memref<4x1x64xf32, #tpu.memory_space<vmem>>, vector<1x1x64xf32>
    %307 = vector.shape_cast %306 : vector<1x1x64xf32> to vector<1x64xf32>
    %cst_175 = arith.constant dense<0.000000e+00> : vector<8xf32>
    %308 = vector.multi_reduction <add>, %303, %cst_175 [1] : vector<8x64xf32> to vector<8xf32>
    %309 = vector.shape_cast %308 : vector<8xf32> to vector<8x1xf32>
    %cst_176 = arith.constant 6.400000e+01 : f32
    %310 = vector.broadcast %cst_176 : f32 to vector<8x1xf32>
    %311 = arith.divf %309, %310 : vector<8x1xf32>
    %312 = vector.broadcast %311 : vector<8x1xf32> to vector<8x64xf32>
    %313 = arith.subf %303, %312 : vector<8x64xf32>
    %314 = arith.mulf %313, %313 : vector<8x64xf32>
    %cst_177 = arith.constant dense<0.000000e+00> : vector<8xf32>
    %315 = vector.multi_reduction <add>, %314, %cst_177 [1] : vector<8x64xf32> to vector<8xf32>
    %316 = vector.shape_cast %315 : vector<8xf32> to vector<8x1xf32>
    %cst_178 = arith.constant 6.400000e+01 : f32
    %317 = vector.broadcast %cst_178 : f32 to vector<8x1xf32>
    %318 = arith.divf %316, %317 : vector<8x1xf32>
    %cst_179 = arith.constant 9.99999974E-6 : f32
    %319 = vector.broadcast %cst_179 : f32 to vector<8x1xf32>
    %320 = arith.addf %318, %319 : vector<8x1xf32>
    %321 = math.rsqrt %320 : vector<8x1xf32>
    %322 = vector.broadcast %321 : vector<8x1xf32> to vector<8x64xf32>
    %323 = arith.mulf %313, %322 : vector<8x64xf32>
    %324 = vector.broadcast %305 : vector<1x64xf32> to vector<8x64xf32>
    %325 = arith.mulf %323, %324 : vector<8x64xf32>
    %326 = vector.broadcast %307 : vector<1x64xf32> to vector<8x64xf32>
    %327 = arith.addf %325, %326 : vector<8x64xf32>
    %328 = arith.truncf %327 : vector<8x64xf32> to vector<8x64xbf16>
    %c3 = arith.constant 3 : index
    %c0_180 = arith.constant 0 : index
    %c0_181 = arith.constant 0 : index
    %329 = vector.load %arg12[%c3, %c0_180, %c0_181] : memref<4x64x192xbf16, #tpu.memory_space<vmem>>, vector<1x64x192xbf16>
    %330 = vector.shape_cast %329 : vector<1x64x192xbf16> to vector<64x192xbf16>
    %cst_182 = arith.constant dense<0.000000e+00> : vector<8x192xf32>
    %331 = tpu.matmul %328, %330, %cst_182 {dimension_numbers = #tpu.dot_dimension_numbers<[1], [0], [0], [1], [0, 0, 1, 1], [], []>} : vector<8x64xbf16>, vector<64x192xbf16>, vector<8x192xf32> -> vector<8x192xf32>
    %c3_183 = arith.constant 3 : index
    %c0_184 = arith.constant 0 : index
    %c0_185 = arith.constant 0 : index
    %332 = vector.load %arg13[%c3_183, %c0_184, %c0_185] : memref<4x1x192xf32, #tpu.memory_space<vmem>>, vector<1x1x192xf32>
    %333 = vector.shape_cast %332 : vector<1x1x192xf32> to vector<1x192xf32>
    %334 = vector.broadcast %333 : vector<1x192xf32> to vector<8x192xf32>
    %335 = arith.addf %331, %334 : vector<8x192xf32>
    %336 = vector.extract_strided_slice %335 {offsets = [0, 0], sizes = [8, 64], strides = [1, 1]} : vector<8x192xf32> to vector<8x64xf32>
    %cst_186 = arith.constant 0.353553385 : f32
    %337 = vector.broadcast %cst_186 : f32 to vector<8x64xf32>
    %338 = arith.mulf %336, %337 : vector<8x64xf32>
    %339 = vector.extract_strided_slice %335 {offsets = [0, 64], sizes = [8, 64], strides = [1, 1]} : vector<8x192xf32> to vector<8x64xf32>
    %340 = vector.extract_strided_slice %335 {offsets = [0, 128], sizes = [8, 64], strides = [1, 1]} : vector<8x192xf32> to vector<8x64xf32>
    %341 = tpu.concatenate %338, %338, %338, %338, %338, %338, %338, %338 in 0 : vector<8x64xf32>, vector<8x64xf32>, vector<8x64xf32>, vector<8x64xf32>, vector<8x64xf32>, vector<8x64xf32>, vector<8x64xf32>, vector<8x64xf32> -> vector<64x64xf32>
    %342 = arith.mulf %341, %12 : vector<64x64xf32>
    %cst_187 = arith.constant dense<0.000000e+00> : vector<64x8xf32>
    %343 = tpu.matmul %342, %339, %cst_187 {dimension_numbers = #tpu.dot_dimension_numbers<[1], [1], [0], [0], [0, 0, 1, 0], [], []>} : vector<64x64xf32>, vector<8x64xf32>, vector<64x8xf32> -> vector<64x8xf32>
    %cst_188 = arith.constant dense<0xFF800000> : vector<64xf32>
    %344 = vector.multi_reduction <maximumf>, %343, %cst_188 [1] : vector<64x8xf32> to vector<64xf32>
    %345 = vector.shape_cast %344 : vector<64xf32> to vector<64x1xf32>
    %346 = vector.broadcast %345 : vector<64x1xf32> to vector<64x8xf32>
    %347 = arith.subf %343, %346 : vector<64x8xf32>
    %348 = math.exp %347 : vector<64x8xf32>
    %cst_189 = arith.constant dense<0.000000e+00> : vector<64xf32>
    %349 = vector.multi_reduction <add>, %348, %cst_189 [1] : vector<64x8xf32> to vector<64xf32>
    %350 = vector.shape_cast %349 : vector<64xf32> to vector<64x1xf32>
    %351 = vector.broadcast %350 : vector<64x1xf32> to vector<64x8xf32>
    %352 = arith.divf %348, %351 : vector<64x8xf32>
    %cst_190 = arith.constant dense<0.000000e+00> : vector<64x64xf32>
    %353 = tpu.matmul %352, %340, %cst_190 {dimension_numbers = #tpu.dot_dimension_numbers<[1], [0], [0], [1], [0, 0, 1, 1], [], []>} : vector<64x8xf32>, vector<8x64xf32>, vector<64x64xf32> -> vector<64x64xf32>
    %354 = arith.mulf %353, %12 : vector<64x64xf32>
    %355 = vector.shape_cast %354 : vector<64x64xf32> to vector<8x8x64xf32>
    %cst_191 = arith.constant dense<0.000000e+00> : vector<8x64xf32>
    %356 = vector.multi_reduction <add>, %355, %cst_191 [0] : vector<8x8x64xf32> to vector<8x64xf32>
    %357 = arith.truncf %356 : vector<8x64xf32> to vector<8x64xbf16>
    %c3_192 = arith.constant 3 : index
    %c0_193 = arith.constant 0 : index
    %c0_194 = arith.constant 0 : index
    %358 = vector.load %arg14[%c3_192, %c0_193, %c0_194] : memref<4x64x64xbf16, #tpu.memory_space<vmem>>, vector<1x64x64xbf16>
    %359 = vector.shape_cast %358 : vector<1x64x64xbf16> to vector<64x64xbf16>
    %cst_195 = arith.constant dense<0.000000e+00> : vector<8x64xf32>
    %360 = tpu.matmul %357, %359, %cst_195 {dimension_numbers = #tpu.dot_dimension_numbers<[1], [0], [0], [1], [0, 0, 1, 1], [], []>} : vector<8x64xbf16>, vector<64x64xbf16>, vector<8x64xf32> -> vector<8x64xf32>
    %c3_196 = arith.constant 3 : index
    %c0_197 = arith.constant 0 : index
    %c0_198 = arith.constant 0 : index
    %361 = vector.load %arg15[%c3_196, %c0_197, %c0_198] : memref<4x1x64xf32, #tpu.memory_space<vmem>>, vector<1x1x64xf32>
    %362 = vector.shape_cast %361 : vector<1x1x64xf32> to vector<1x64xf32>
    %363 = vector.broadcast %362 : vector<1x64xf32> to vector<8x64xf32>
    %364 = arith.addf %360, %363 : vector<8x64xf32>
    %365 = arith.addf %327, %364 : vector<8x64xf32>
    %c3_199 = arith.constant 3 : index
    %c0_200 = arith.constant 0 : index
    %c0_201 = arith.constant 0 : index
    %366 = vector.load %arg16[%c3_199, %c0_200, %c0_201] : memref<4x1x64xf32, #tpu.memory_space<vmem>>, vector<1x1x64xf32>
    %367 = vector.shape_cast %366 : vector<1x1x64xf32> to vector<1x64xf32>
    %c3_202 = arith.constant 3 : index
    %c0_203 = arith.constant 0 : index
    %c0_204 = arith.constant 0 : index
    %368 = vector.load %arg17[%c3_202, %c0_203, %c0_204] : memref<4x1x64xf32, #tpu.memory_space<vmem>>, vector<1x1x64xf32>
    %369 = vector.shape_cast %368 : vector<1x1x64xf32> to vector<1x64xf32>
    %cst_205 = arith.constant dense<0.000000e+00> : vector<8xf32>
    %370 = vector.multi_reduction <add>, %365, %cst_205 [1] : vector<8x64xf32> to vector<8xf32>
    %371 = vector.shape_cast %370 : vector<8xf32> to vector<8x1xf32>
    %cst_206 = arith.constant 6.400000e+01 : f32
    %372 = vector.broadcast %cst_206 : f32 to vector<8x1xf32>
    %373 = arith.divf %371, %372 : vector<8x1xf32>
    %374 = vector.broadcast %373 : vector<8x1xf32> to vector<8x64xf32>
    %375 = arith.subf %365, %374 : vector<8x64xf32>
    %376 = arith.mulf %375, %375 : vector<8x64xf32>
    %cst_207 = arith.constant dense<0.000000e+00> : vector<8xf32>
    %377 = vector.multi_reduction <add>, %376, %cst_207 [1] : vector<8x64xf32> to vector<8xf32>
    %378 = vector.shape_cast %377 : vector<8xf32> to vector<8x1xf32>
    %cst_208 = arith.constant 6.400000e+01 : f32
    %379 = vector.broadcast %cst_208 : f32 to vector<8x1xf32>
    %380 = arith.divf %378, %379 : vector<8x1xf32>
    %cst_209 = arith.constant 9.99999974E-6 : f32
    %381 = vector.broadcast %cst_209 : f32 to vector<8x1xf32>
    %382 = arith.addf %380, %381 : vector<8x1xf32>
    %383 = math.rsqrt %382 : vector<8x1xf32>
    %384 = vector.broadcast %383 : vector<8x1xf32> to vector<8x64xf32>
    %385 = arith.mulf %375, %384 : vector<8x64xf32>
    %386 = vector.broadcast %367 : vector<1x64xf32> to vector<8x64xf32>
    %387 = arith.mulf %385, %386 : vector<8x64xf32>
    %388 = vector.broadcast %369 : vector<1x64xf32> to vector<8x64xf32>
    %389 = arith.addf %387, %388 : vector<8x64xf32>
    %390 = arith.truncf %389 : vector<8x64xf32> to vector<8x64xbf16>
    %c3_210 = arith.constant 3 : index
    %c0_211 = arith.constant 0 : index
    %c0_212 = arith.constant 0 : index
    %391 = vector.load %arg18[%c3_210, %c0_211, %c0_212] : memref<4x64x128xbf16, #tpu.memory_space<vmem>>, vector<1x64x128xbf16>
    %392 = vector.shape_cast %391 : vector<1x64x128xbf16> to vector<64x128xbf16>
    %cst_213 = arith.constant dense<0.000000e+00> : vector<8x128xf32>
    %393 = tpu.matmul %390, %392, %cst_213 {dimension_numbers = #tpu.dot_dimension_numbers<[1], [0], [0], [1], [0, 0, 1, 1], [], []>} : vector<8x64xbf16>, vector<64x128xbf16>, vector<8x128xf32> -> vector<8x128xf32>
    %c3_214 = arith.constant 3 : index
    %c0_215 = arith.constant 0 : index
    %c0_216 = arith.constant 0 : index
    %394 = vector.load %arg19[%c3_214, %c0_215, %c0_216] : memref<4x1x128xf32, #tpu.memory_space<vmem>>, vector<1x1x128xf32>
    %395 = vector.shape_cast %394 : vector<1x1x128xf32> to vector<1x128xf32>
    %396 = vector.broadcast %395 : vector<1x128xf32> to vector<8x128xf32>
    %397 = arith.addf %393, %396 : vector<8x128xf32>
    %cst_217 = arith.constant 0.000000e+00 : f32
    %398 = vector.broadcast %cst_217 : f32 to vector<8x128xf32>
    %399 = arith.maximumf %397, %398 : vector<8x128xf32>
    %400 = arith.truncf %399 : vector<8x128xf32> to vector<8x128xbf16>
    %c3_218 = arith.constant 3 : index
    %c0_219 = arith.constant 0 : index
    %c0_220 = arith.constant 0 : index
    %401 = vector.load %arg20[%c3_218, %c0_219, %c0_220] : memref<4x128x64xbf16, #tpu.memory_space<vmem>>, vector<1x128x64xbf16>
    %402 = vector.shape_cast %401 : vector<1x128x64xbf16> to vector<128x64xbf16>
    %cst_221 = arith.constant dense<0.000000e+00> : vector<8x64xf32>
    %403 = tpu.matmul %400, %402, %cst_221 {dimension_numbers = #tpu.dot_dimension_numbers<[1], [0], [0], [1], [0, 0, 1, 1], [], []>} : vector<8x128xbf16>, vector<128x64xbf16>, vector<8x64xf32> -> vector<8x64xf32>
    %c3_222 = arith.constant 3 : index
    %c0_223 = arith.constant 0 : index
    %c0_224 = arith.constant 0 : index
    %404 = vector.load %arg21[%c3_222, %c0_223, %c0_224] : memref<4x1x64xf32, #tpu.memory_space<vmem>>, vector<1x1x64xf32>
    %405 = vector.shape_cast %404 : vector<1x1x64xf32> to vector<1x64xf32>
    %406 = vector.broadcast %405 : vector<1x64xf32> to vector<8x64xf32>
    %407 = arith.addf %403, %406 : vector<8x64xf32>
    %408 = arith.addf %389, %407 : vector<8x64xf32>
    %c3_225 = arith.constant 3 : index
    %c0_226 = arith.constant 0 : index
    %c0_227 = arith.constant 0 : index
    %409 = vector.load %arg22[%c3_225, %c0_226, %c0_227] : memref<4x1x64xf32, #tpu.memory_space<vmem>>, vector<1x1x64xf32>
    %410 = vector.shape_cast %409 : vector<1x1x64xf32> to vector<1x64xf32>
    %c3_228 = arith.constant 3 : index
    %c0_229 = arith.constant 0 : index
    %c0_230 = arith.constant 0 : index
    %411 = vector.load %arg23[%c3_228, %c0_229, %c0_230] : memref<4x1x64xf32, #tpu.memory_space<vmem>>, vector<1x1x64xf32>
    %412 = vector.shape_cast %411 : vector<1x1x64xf32> to vector<1x64xf32>
    %cst_231 = arith.constant dense<0.000000e+00> : vector<8xf32>
    %413 = vector.multi_reduction <add>, %408, %cst_231 [1] : vector<8x64xf32> to vector<8xf32>
    %414 = vector.shape_cast %413 : vector<8xf32> to vector<8x1xf32>
    %cst_232 = arith.constant 6.400000e+01 : f32
    %415 = vector.broadcast %cst_232 : f32 to vector<8x1xf32>
    %416 = arith.divf %414, %415 : vector<8x1xf32>
    %417 = vector.broadcast %416 : vector<8x1xf32> to vector<8x64xf32>
    %418 = arith.subf %408, %417 : vector<8x64xf32>
    %419 = arith.mulf %418, %418 : vector<8x64xf32>
    %cst_233 = arith.constant dense<0.000000e+00> : vector<8xf32>
    %420 = vector.multi_reduction <add>, %419, %cst_233 [1] : vector<8x64xf32> to vector<8xf32>
    %421 = vector.shape_cast %420 : vector<8xf32> to vector<8x1xf32>
    %cst_234 = arith.constant 6.400000e+01 : f32
    %422 = vector.broadcast %cst_234 : f32 to vector<8x1xf32>
    %423 = arith.divf %421, %422 : vector<8x1xf32>
    %cst_235 = arith.constant 9.99999974E-6 : f32
    %424 = vector.broadcast %cst_235 : f32 to vector<8x1xf32>
    %425 = arith.addf %423, %424 : vector<8x1xf32>
    %426 = math.rsqrt %425 : vector<8x1xf32>
    %427 = vector.broadcast %426 : vector<8x1xf32> to vector<8x64xf32>
    %428 = arith.mulf %418, %427 : vector<8x64xf32>
    %429 = vector.broadcast %410 : vector<1x64xf32> to vector<8x64xf32>
    %430 = arith.mulf %428, %429 : vector<8x64xf32>
    %431 = vector.broadcast %412 : vector<1x64xf32> to vector<8x64xf32>
    %432 = arith.addf %430, %431 : vector<8x64xf32>
    %433 = arith.truncf %432 : vector<8x64xf32> to vector<8x64xbf16>
    %c0_236 = arith.constant 0 : index
    %c0_237 = arith.constant 0 : index
    %434 = vector.load %arg24[%c0_236, %c0_237] : memref<64x32xbf16, #tpu.memory_space<vmem>>, vector<64x32xbf16>
    %cst_238 = arith.constant dense<0.000000e+00> : vector<8x32xf32>
    %435 = tpu.matmul %433, %434, %cst_238 {dimension_numbers = #tpu.dot_dimension_numbers<[1], [0], [0], [1], [0, 0, 1, 1], [], []>} : vector<8x64xbf16>, vector<64x32xbf16>, vector<8x32xf32> -> vector<8x32xf32>
    %c0_239 = arith.constant 0 : index
    %c0_240 = arith.constant 0 : index
    %436 = vector.load %arg25[%c0_239, %c0_240] : memref<1x32xf32, #tpu.memory_space<vmem>>, vector<1x32xf32>
    %437 = vector.broadcast %436 : vector<1x32xf32> to vector<8x32xf32>
    %438 = arith.addf %435, %437 : vector<8x32xf32>
    %cst_241 = arith.constant 0.000000e+00 : f32
    %439 = vector.broadcast %cst_241 : f32 to vector<8x32xf32>
    %440 = arith.maximumf %438, %439 : vector<8x32xf32>
    %c0_242 = arith.constant 0 : index
    %c0_243 = arith.constant 0 : index
    %441 = vector.load %arg26[%c0_242, %c0_243] : memref<1x32xf32, #tpu.memory_space<vmem>>, vector<1x32xf32>
    %442 = vector.broadcast %441 : vector<1x32xf32> to vector<8x32xf32>
    %443 = arith.mulf %440, %442 : vector<8x32xf32>
    %cst_244 = arith.constant dense<0.000000e+00> : vector<8xf32>
    %444 = vector.multi_reduction <add>, %443, %cst_244 [1] : vector<8x32xf32> to vector<8xf32>
    %445 = vector.shape_cast %444 : vector<8xf32> to vector<8x1xf32>
    %c0_245 = arith.constant 0 : index
    %c0_246 = arith.constant 0 : index
    %446 = vector.load %arg27[%c0_245, %c0_246] : memref<1x1xf32, #tpu.memory_space<vmem>>, vector<1x1xf32>
    %447 = vector.broadcast %446 : vector<1x1xf32> to vector<8x1xf32>
    %448 = arith.addf %445, %447 : vector<8x1xf32>
    %449 = arith.negf %448 : vector<8x1xf32>
    %450 = math.exp %449 : vector<8x1xf32>
    %cst_247 = arith.constant 1.000000e+00 : f32
    %451 = vector.broadcast %cst_247 : f32 to vector<8x1xf32>
    %452 = arith.addf %451, %450 : vector<8x1xf32>
    %453 = arith.divf %451, %452 : vector<8x1xf32>
    %c0_248 = arith.constant 0 : index
    %c0_249 = arith.constant 0 : index
    %c0_250 = arith.constant 0 : index
    %454 = vector.load %arg28[%c0_248, %c0_249, %c0_250] : memref<1x8x1xf32, #tpu.memory_space<vmem>>, vector<1x8x1xf32>
    %455 = vector.shape_cast %454 : vector<1x8x1xf32> to vector<8x1xf32>
    %456 = vector.shape_cast %453 : vector<8x1xf32> to vector<1x8x1xf32>
    tpu.vector_store %arg28[%c0_248, %c0_249, %c0_250], %456 {strides = array<i32>} : memref<1x8x1xf32, #tpu.memory_space<vmem>>, vector<1x8x1xf32>,
    return
  }
  func.func @transform_0(%arg0: i32) -> (i32, i32, i32) {
    %c0_i32 = arith.constant 0 : i32
    %c0_i32_0 = arith.constant 0 : i32
    %c0_i32_1 = arith.constant 0 : i32
    return %arg0, %c0_i32, %c0_i32_0 : i32, i32, i32
  }
  func.func @transform_1(%arg0: i32) -> (i32, i32, i32) {
    %c0_i32 = arith.constant 0 : i32
    %c0_i32_0 = arith.constant 0 : i32
    %c0_i32_1 = arith.constant 0 : i32
    %c0_i32_2 = arith.constant 0 : i32
    return %c0_i32, %c0_i32_0, %c0_i32_1 : i32, i32, i32
  }
  func.func @transform_2(%arg0: i32) -> (i32, i32) {
    %c0_i32 = arith.constant 0 : i32
    %c0_i32_0 = arith.constant 0 : i32
    %c0_i32_1 = arith.constant 0 : i32
    return %c0_i32, %c0_i32_0 : i32, i32
  }
  func.func @transform_3(%arg0: i32) -> (i32, i32) {
    %c0_i32 = arith.constant 0 : i32
    %c0_i32_0 = arith.constant 0 : i32
    %c0_i32_1 = arith.constant 0 : i32
    return %c0_i32, %c0_i32_0 : i32, i32
  }
  func.func @transform_4(%arg0: i32) -> (i32, i32) {
    %c0_i32 = arith.constant 0 : i32
    %c0_i32_0 = arith.constant 0 : i32
    %c0_i32_1 = arith.constant 0 : i32
    return %c0_i32, %c0_i32_0 : i32, i32
  }
  func.func @transform_5(%arg0: i32) -> (i32, i32) {
    %c0_i32 = arith.constant 0 : i32
    %c0_i32_0 = arith.constant 0 : i32
    %c0_i32_1 = arith.constant 0 : i32
    return %c0_i32, %c0_i32_0 : i32, i32
  }
  func.func @transform_6(%arg0: i32) -> (i32, i32) {
    %c0_i32 = arith.constant 0 : i32
    %c0_i32_0 = arith.constant 0 : i32
    %c0_i32_1 = arith.constant 0 : i32
    return %c0_i32, %c0_i32_0 : i32, i32
  }
  func.func @transform_7(%arg0: i32) -> (i32, i32) {
    %c0_i32 = arith.constant 0 : i32
    %c0_i32_0 = arith.constant 0 : i32
    %c0_i32_1 = arith.constant 0 : i32
    return %c0_i32, %c0_i32_0 : i32, i32
  }
  func.func @transform_8(%arg0: i32) -> (i32, i32) {
    %c0_i32 = arith.constant 0 : i32
    %c0_i32_0 = arith.constant 0 : i32
    %c0_i32_1 = arith.constant 0 : i32
    return %c0_i32, %c0_i32_0 : i32, i32
  }
  func.func @transform_9(%arg0: i32) -> (i32, i32) {
    %c0_i32 = arith.constant 0 : i32
    %c0_i32_0 = arith.constant 0 : i32
    %c0_i32_1 = arith.constant 0 : i32
    return %c0_i32, %c0_i32_0 : i32, i32
  }
  func.func @transform_10(%arg0: i32) -> (i32, i32) {
    %c0_i32 = arith.constant 0 : i32
    %c0_i32_0 = arith.constant 0 : i32
    %c0_i32_1 = arith.constant 0 : i32
    return %c0_i32, %c0_i32_0 : i32, i32
  }
  func.func @transform_11(%arg0: i32) -> (i32, i32, i32) {
    %c0_i32 = arith.constant 0 : i32
    %c0_i32_0 = arith.constant 0 : i32
    %c0_i32_1 = arith.constant 0 : i32
    %c0_i32_2 = arith.constant 0 : i32
    return %c0_i32, %c0_i32_0, %c0_i32_1 : i32, i32, i32
  }
  func.func @transform_12(%arg0: i32) -> (i32, i32, i32) {
    %c0_i32 = arith.constant 0 : i32
    %c0_i32_0 = arith.constant 0 : i32
    %c0_i32_1 = arith.constant 0 : i32
    %c0_i32_2 = arith.constant 0 : i32
    return %c0_i32, %c0_i32_0, %c0_i32_1 : i32, i32, i32
  }
  func.func @transform_13(%arg0: i32) -> (i32, i32, i32) {
    %c0_i32 = arith.constant 0 : i32
    %c0_i32_0 = arith.constant 0 : i32
    %c0_i32_1 = arith.constant 0 : i32
    %c0_i32_2 = arith.constant 0 : i32
    return %c0_i32, %c0_i32_0, %c0_i32_1 : i32, i32, i32
  }
  func.func @transform_14(%arg0: i32) -> (i32, i32, i32) {
    %c0_i32 = arith.constant 0 : i32
    %c0_i32_0 = arith.constant 0 : i32
    %c0_i32_1 = arith.constant 0 : i32
    %c0_i32_2 = arith.constant 0 : i32
    return %c0_i32, %c0_i32_0, %c0_i32_1 : i32, i32, i32
  }
  func.func @transform_15(%arg0: i32) -> (i32, i32, i32) {
    %c0_i32 = arith.constant 0 : i32
    %c0_i32_0 = arith.constant 0 : i32
    %c0_i32_1 = arith.constant 0 : i32
    %c0_i32_2 = arith.constant 0 : i32
    return %c0_i32, %c0_i32_0, %c0_i32_1 : i32, i32, i32
  }
  func.func @transform_16(%arg0: i32) -> (i32, i32, i32) {
    %c0_i32 = arith.constant 0 : i32
    %c0_i32_0 = arith.constant 0 : i32
    %c0_i32_1 = arith.constant 0 : i32
    %c0_i32_2 = arith.constant 0 : i32
    return %c0_i32, %c0_i32_0, %c0_i32_1 : i32, i32, i32
  }
  func.func @transform_17(%arg0: i32) -> (i32, i32, i32) {
    %c0_i32 = arith.constant 0 : i32
    %c0_i32_0 = arith.constant 0 : i32
    %c0_i32_1 = arith.constant 0 : i32
    %c0_i32_2 = arith.constant 0 : i32
    return %c0_i32, %c0_i32_0, %c0_i32_1 : i32, i32, i32
  }
  func.func @transform_18(%arg0: i32) -> (i32, i32, i32) {
    %c0_i32 = arith.constant 0 : i32
    %c0_i32_0 = arith.constant 0 : i32
    %c0_i32_1 = arith.constant 0 : i32
    %c0_i32_2 = arith.constant 0 : i32
    return %c0_i32, %c0_i32_0, %c0_i32_1 : i32, i32, i32
  }
  func.func @transform_19(%arg0: i32) -> (i32, i32, i32) {
    %c0_i32 = arith.constant 0 : i32
    %c0_i32_0 = arith.constant 0 : i32
    %c0_i32_1 = arith.constant 0 : i32
    %c0_i32_2 = arith.constant 0 : i32
    return %c0_i32, %c0_i32_0, %c0_i32_1 : i32, i32, i32
  }
  func.func @transform_20(%arg0: i32) -> (i32, i32, i32) {
    %c0_i32 = arith.constant 0 : i32
    %c0_i32_0 = arith.constant 0 : i32
    %c0_i32_1 = arith.constant 0 : i32
    %c0_i32_2 = arith.constant 0 : i32
    return %c0_i32, %c0_i32_0, %c0_i32_1 : i32, i32, i32
  }
  func.func @transform_21(%arg0: i32) -> (i32, i32, i32) {
    %c0_i32 = arith.constant 0 : i32
    %c0_i32_0 = arith.constant 0 : i32
    %c0_i32_1 = arith.constant 0 : i32
    %c0_i32_2 = arith.constant 0 : i32
    return %c0_i32, %c0_i32_0, %c0_i32_1 : i32, i32, i32
  }
  func.func @transform_22(%arg0: i32) -> (i32, i32, i32) {
    %c0_i32 = arith.constant 0 : i32
    %c0_i32_0 = arith.constant 0 : i32
    %c0_i32_1 = arith.constant 0 : i32
    %c0_i32_2 = arith.constant 0 : i32
    return %c0_i32, %c0_i32_0, %c0_i32_1 : i32, i32, i32
  }
  func.func @transform_23(%arg0: i32) -> (i32, i32) {
    %c0_i32 = arith.constant 0 : i32
    %c0_i32_0 = arith.constant 0 : i32
    %c0_i32_1 = arith.constant 0 : i32
    return %c0_i32, %c0_i32_0 : i32, i32
  }
  func.func @transform_24(%arg0: i32) -> (i32, i32) {
    %c0_i32 = arith.constant 0 : i32
    %c0_i32_0 = arith.constant 0 : i32
    %c0_i32_1 = arith.constant 0 : i32
    return %c0_i32, %c0_i32_0 : i32, i32
  }
  func.func @transform_25(%arg0: i32) -> (i32, i32) {
    %c0_i32 = arith.constant 0 : i32
    %c0_i32_0 = arith.constant 0 : i32
    %c0_i32_1 = arith.constant 0 : i32
    return %c0_i32, %c0_i32_0 : i32, i32
  }
  func.func @transform_26(%arg0: i32) -> (i32, i32) {
    %c0_i32 = arith.constant 0 : i32
    %c0_i32_0 = arith.constant 0 : i32
    %c0_i32_1 = arith.constant 0 : i32
    return %c0_i32, %c0_i32_0 : i32, i32
  }
  func.func @transform_27(%arg0: i32) -> (i32, i32, i32) {
    %c0_i32 = arith.constant 0 : i32
    %c0_i32_0 = arith.constant 0 : i32
    %c0_i32_1 = arith.constant 0 : i32
    return %arg0, %c0_i32, %c0_i32_0 : i32, i32, i32
  }
}

</mosaic_0001>

<llo_original>
// kernel: tpu_custom_call.1
$region0: #{tpu_custom_call.1}
  #allocation0 [shape = 'u32[]', space=smem, size = 0x4, offset = 0x4, fixed_abs, tag = 'smem constant byte address 0x4 - core index']
  #allocation1 [shape = 'u32[144,128]{1,0:T(1,128)}', space=vmem, size = 0x12000, scoped, tag = 'internal scratch']
  #allocation2 [shape = 'f32[8,256]{1,0:T(8,128)}', space=vmem, size = 0x2000, scoped, tag = 'scratch operand']
  #allocation3 [shape = 'f32[1,1]{1,0:T(1,128)S(1)}', space=vmem, size = 0x200, scoped, tag = 'scoped memory for tpu_custom_call.1']
  %s0 = inlined_call_operand.hbm [shape: f32[2,8,256], index: 0, kind: input, shape index: {}]
  %s1 = inlined_call_operand.vmem [shape: f32[3,32,1], index: 1, kind: input, shape index: {}]
  %s2 = inlined_call_operand.vmem [shape: f32[32,1], index: 2, kind: input, shape index: {}]
  %s3 = inlined_call_operand.hbm [shape: bf16[64,224], index: 3, kind: input, shape index: {}]
  %s4 = inlined_call_operand.vmem [shape: f32[64,1], index: 4, kind: input, shape index: {}]
  %s5 = inlined_call_operand.vmem [shape: bf16[64,960], index: 5, kind: input, shape index: {}]
  %s6 = inlined_call_operand.vmem [shape: f32[64,1], index: 6, kind: input, shape index: {}]
  %s7 = inlined_call_operand.vmem [shape: bf16[256,64], index: 7, kind: input, shape index: {}]
  %s8 = inlined_call_operand.hbm [shape: f32[1,64], index: 8, kind: input, shape index: {}]
  %s9 = inlined_call_operand.vmem [shape: f32[8,64], index: 9, kind: input, shape index: {}]
  %s10 = inlined_call_operand.hbm [shape: f32[64,64], index: 10, kind: input, shape index: {}]
  %s11 = inlined_call_operand.vmem [shape: bf16[4,64,192], index: 11, kind: input, shape index: {}]
  %s12 = inlined_call_operand.vmem [shape: f32[4,1,192], index: 12, kind: input, shape index: {}]
  %s13 = inlined_call_operand.vmem [shape: bf16[4,64,64], index: 13, kind: input, shape index: {}]
  %s14 = inlined_call_operand.vmem [shape: f32[4,1,64], index: 14, kind: input, shape index: {}]
  %s15 = inlined_call_operand.vmem [shape: f32[4,1,64], index: 15, kind: input, shape index: {}]
  %s16 = inlined_call_operand.vmem [shape: f32[4,1,64], index: 16, kind: input, shape index: {}]
  %s17 = inlined_call_operand.vmem [shape: bf16[4,64,128], index: 17, kind: input, shape index: {}]
  %s18 = inlined_call_operand.vmem [shape: f32[4,1,128], index: 18, kind: input, shape index: {}]
  %s19 = inlined_call_operand.vmem [shape: bf16[4,128,64], index: 19, kind: input, shape index: {}]
  %s20 = inlined_call_operand.vmem [shape: f32[4,1,64], index: 20, kind: input, shape index: {}]
  %s21 = inlined_call_operand.vmem [shape: f32[4,1,64], index: 21, kind: input, shape index: {}]
  %s22 = inlined_call_operand.vmem [shape: f32[4,1,64], index: 22, kind: input, shape index: {}]
  %s23 = inlined_call_operand.vmem [shape: bf16[64,32], index: 23, kind: input, shape index: {}]
  %s24 = inlined_call_operand.vmem [shape: f32[1,32], index: 24, kind: input, shape index: {}]
  %s25 = inlined_call_operand.vmem [shape: f32[1,32], index: 25, kind: input, shape index: {}]
  %s26 = inlined_call_operand.<no memory space> [shape: f32[1,1], index: 26, kind: input, shape index: {}]
  %s27 = inlined_call_operand.vmem [shape: f32[2,8,1], index: 27, kind: output, shape index: {}]
  %s28 = sld [smem:[#allocation0]]
  $region164: #{tpu_custom_call.1} parent=0
    _
  %s30 = ssub.s32 1, %s28
  %s31 = scalar_select 0, %s30, %s28
  %v32 = vstv %s26
  %33 = vst [vmem:[#allocation3] sm:$0x1] %v32
  $region1: #{tpu_custom_call.1} parent=0
    #allocation4 [shape = 'u8[16384]{0}', space=vmem, size = 0x4000, scoped, tag = 'input window, operand 0']
    #allocation5 [shape = 's32[2]{0}', space=sflag, size = 0x8, scoped, tag = 'scoped memory for tpu_custom_call.1']
    #allocation6 [shape = 'u8[32768]{0}', space=vmem, size = 0x8000, scoped, tag = 'input window, operand 3, single buffered']
    #allocation7 [shape = 's32[1]{0}', space=sflag, size = 0x4, scoped, tag = 'scoped memory for tpu_custom_call.1']
    #allocation8 [shape = 'u8[512]{0}', space=vmem, size = 0x400, scoped, tag = 'input window, operand 8, single buffered']
    #allocation9 [shape = 'u8[32768]{0}', space=vmem, size = 0x8000, scoped, tag = 'input window, operand 10, single buffered']
    #allocation10 [shape = 's32[1]{0}', space=sflag, size = 0x4, scoped, tag = 'scoped memory for tpu_custom_call.1']
    %34 = vsyncpa [#allocation5], 0
    %s35 = scalar_lea.sflag [#allocation5], 1
    %36 = vsyncpa %s35, 0
    %37 = vsyncpa [#allocation7], 0
    %38 = vsyncpa [#allocation10], 0
    loop: start=0, step=1, limit=4
    $region2: #{tpu_custom_call.1} parent=1 // loop_pre_header
      _
    $region3: #{tpu_custom_call.1} parent=1 // loop_header
      %s40 = sphi 0, %s44
      %p41 = scmp.ge.s32.totalorder %s40, 4
      %s50 = sphi 0, %s52
      %s53 = sphi 0, %s50
      %s54 = sphi 0, %s53
      %s70 = sphi 0, %s54
      %s74 = sphi 0, %s74
      %s76 = sphi 0, %s74
      %s77 = sphi 0, %s76
      %s91 = sphi 0, %s77
      %s95 = sphi 0, %s95
      %s97 = sphi 0, %s95
      %s98 = sphi 0, %s97
      %s112 = sphi 0, %s98
      %s116 = sphi 0, %s116
      %s118 = sphi 0, %s116
      %s119 = sphi 0, %s118
      %s133 = sphi 0, %s119
      %s137 = sphi 0, %s137
      %s139 = sphi 0, %s137
      %s140 = sphi 0, %s139
      %s154 = sphi 0, %s140
      %s158 = sphi 0, %s158
      %s160 = sphi 0, %s158
      %s161 = sphi 0, %s160
      %s175 = sphi 0, %s161
      %s179 = sphi 0, %s179
      %s181 = sphi 0, %s179
      %s182 = sphi 0, %s181
      %s196 = sphi 0, %s182
      %s200 = sphi 0, %s200
      %s202 = sphi 0, %s200
      %s203 = sphi 0, %s202
      %s217 = sphi 0, %s203
      %s221 = sphi 0, %s221
      %s223 = sphi 0, %s221
      %s224 = sphi 0, %s223
      %s238 = sphi 0, %s224
      %s242 = sphi 0, %s242
      %s244 = sphi 0, %s242
      %s245 = sphi 0, %s244
      %s259 = sphi 0, %s245
      %s263 = sphi 0, %s263
      %s265 = sphi 0, %s263
      %s266 = sphi 0, %s265
      %s280 = sphi 0, %s266
      %s284 = sphi 0, %s284
      %s286 = sphi 0, %s284
      %s287 = sphi 0, %s286
      %s301 = sphi 0, %s287
      %s305 = sphi 0, %s305
      %s307 = sphi 0, %s305
      %s308 = sphi 0, %s307
      %s322 = sphi 0, %s308
      %s326 = sphi 0, %s326
      %s328 = sphi 0, %s326
      %s329 = sphi 0, %s328
      %s343 = sphi 0, %s329
      %s347 = sphi 0, %s347
      %s349 = sphi 0, %s347
      %s350 = sphi 0, %s349
      %s364 = sphi 0, %s350
      %s368 = sphi 0, %s368
      %s370 = sphi 0, %s368
      %s371 = sphi 0, %s370
      %s385 = sphi 0, %s371
      %s389 = sphi 0, %s389
      %s391 = sphi 0, %s389
      %s392 = sphi 0, %s391
      %s406 = sphi 0, %s392
      %s410 = sphi 0, %s410
      %s412 = sphi 0, %s410
      %s413 = sphi 0, %s412
      %s427 = sphi 0, %s413
      %s431 = sphi 0, %s431
      %s433 = sphi 0, %s431
      %s434 = sphi 0, %s433
      %s448 = sphi 0, %s434
      %s452 = sphi 0, %s452
      %s454 = sphi 0, %s452
      %s455 = sphi 0, %s454
      %s469 = sphi 0, %s455
      %s473 = sphi 0, %s473
      %s475 = sphi 0, %s473
      %s476 = sphi 0, %s475
      %s490 = sphi 0, %s476
      %s494 = sphi 0, %s494
      %s496 = sphi 0, %s494
      %s497 = sphi 0, %s496
      %s511 = sphi 0, %s497
      %s515 = sphi 0, %s515
      %s517 = sphi 0, %s515
      %s518 = sphi 0, %s517
      %s532 = sphi 0, %s518
      %s536 = sphi 0, %s536
      %s538 = sphi 0, %s536
      %s539 = sphi 0, %s538
      %s553 = sphi 0, %s539
      %s557 = sphi 0, %s557
      %s559 = sphi 0, %s557
      %s560 = sphi 0, %s559
      %s574 = sphi 0, %s560
      %s578 = sphi 0, %s578
      %s580 = sphi 0, %s578
      %s581 = sphi 0, %s580
      %s595 = sphi 0, %s581
      %s599 = sphi 0, %s599
      %s601 = sphi 0, %s599
      %s602 = sphi 0, %s601
      %s616 = sphi 0, %s602
      %s622 = sphi 0, %s624
      %s625 = sphi 0, %s622
      %s626 = sphi 0, %s625
      %s642 = sphi 0, %s626
    $region4: #{tpu_custom_call.1} parent=1 // loop_header_branch
      %43 = sbr.rel (%p41) target = $region8
    $region5: #{tpu_custom_call.1} parent=1 // loop_body
      %s45 = ssub.s32 %s40, 1
      %s46 = ssub.s32 %s40, 2
      %s47 = sadd.s32 %s40, 1
      %s48 = ssub.s32 %s40, %s47
      %p49 = scmp.eq.s32.totalorder %s48, 0
      %s51 = sadd.s32 %s50, 1
      %s52 = scalar_select %p49, %s50, %s51
      %p55 = pneg %p49
      %p56 = scmp.eq.s32.totalorder %s40, 1
      %p57 = por %p55, %p56
      %p58 = scmp.ne.s32.totalorder %s50, %s53
      %p59 = scmp.eq.s32.totalorder %s40, 0
      %p60 = por %p58, %p59
      %p61 = scmp.ne.s32.totalorder %s50, %s53
      %p62 = scmp.eq.s32.totalorder %s45, 1
      %p63 = por %p61, %p62
      %p64 = scmp.ne.s32.totalorder %s53, %s54
      %p65 = scmp.eq.s32.totalorder %s45, 0
      %p66 = por %p64, %p65
      %p67 = scmp.ne.s32.totalorder %s53, %s54
      %p68 = scmp.eq.s32.totalorder %s46, 1
      %p69 = por %p67, %p68
      %p71 = scmp.ne.s32.totalorder %s54, %s70
      %p72 = scmp.eq.s32.totalorder %s46, 0
      %p73 = por %p71, %p72
      %s75 = sadd.s32 %s74, 1
      %p78 = scmp.eq.s32.totalorder %s40, 1
      %p79 = scmp.ne.s32.totalorder %s74, %s76
      %p80 = scmp.eq.s32.totalorder %s40, 0
      %p81 = por %p79, %p80
      %p82 = scmp.ne.s32.totalorder %s74, %s76
      %p83 = scmp.eq.s32.totalorder %s45, 1
      %p84 = por %p82, %p83
      %p85 = scmp.ne.s32.totalorder %s76, %s77
      %p86 = scmp.eq.s32.totalorder %s45, 0
      %p87 = por %p85, %p86
      %p88 = scmp.ne.s32.totalorder %s76, %s77
      %p89 = scmp.eq.s32.totalorder %s46, 1
      %p90 = por %p88, %p89
      %p92 = scmp.ne.s32.totalorder %s77, %s91
      %p93 = scmp.eq.s32.totalorder %s46, 0
      %p94 = por %p92, %p93
      %s96 = sadd.s32 %s95, 1
      %p99 = scmp.eq.s32.totalorder %s40, 1
      %p100 = scmp.ne.s32.totalorder %s95, %s97
      %p101 = scmp.eq.s32.totalorder %s40, 0
      %p102 = por %p100, %p101
      %p103 = scmp.ne.s32.totalorder %s95, %s97
      %p104 = scmp.eq.s32.totalorder %s45, 1
      %p105 = por %p103, %p104
      %p106 = scmp.ne.s32.totalorder %s97, %s98
      %p107 = scmp.eq.s32.totalorder %s45, 0
      %p108 = por %p106, %p107
      %p109 = scmp.ne.s32.totalorder %s97, %s98
      %p110 = scmp.eq.s32.totalorder %s46, 1
      %p111 = por %p109, %p110
      %p113 = scmp.ne.s32.totalorder %s98, %s112
      %p114 = scmp.eq.s32.totalorder %s46, 0
      %p115 = por %p113, %p114
      %s117 = sadd.s32 %s116, 1
      %p120 = scmp.eq.s32.totalorder %s40, 1
      %p121 = scmp.ne.s32.totalorder %s116, %s118
      %p122 = scmp.eq.s32.totalorder %s40, 0
      %p123 = por %p121, %p122
      %p124 = scmp.ne.s32.totalorder %s116, %s118
      %p125 = scmp.eq.s32.totalorder %s45, 1
      %p126 = por %p124, %p125
      %p127 = scmp.ne.s32.totalorder %s118, %s119
      %p128 = scmp.eq.s32.totalorder %s45, 0
      %p129 = por %p127, %p128
      %p130 = scmp.ne.s32.totalorder %s118, %s119
      %p131 = scmp.eq.s32.totalorder %s46, 1
      %p132 = por %p130, %p131
      %p134 = scmp.ne.s32.totalorder %s119, %s133
      %p135 = scmp.eq.s32.totalorder %s46, 0
      %p136 = por %p134, %p135
      %s138 = sadd.s32 %s137, 1
      %p141 = scmp.eq.s32.totalorder %s40, 1
      %p142 = scmp.ne.s32.totalorder %s137, %s139
      %p143 = scmp.eq.s32.totalorder %s40, 0
      %p144 = por %p142, %p143
      %p145 = scmp.ne.s32.totalorder %s137, %s139
      %p146 = scmp.eq.s32.totalorder %s45, 1
      %p147 = por %p145, %p146
      %p148 = scmp.ne.s32.totalorder %s139, %s140
      %p149 = scmp.eq.s32.totalorder %s45, 0
      %p150 = por %p148, %p149
      %p151 = scmp.ne.s32.totalorder %s139, %s140
      %p152 = scmp.eq.s32.totalorder %s46, 1
      %p153 = por %p151, %p152
      %p155 = scmp.ne.s32.totalorder %s140, %s154
      %p156 = scmp.eq.s32.totalorder %s46, 0
      %p157 = por %p155, %p156
      %s159 = sadd.s32 %s158, 1
      %p162 = scmp.eq.s32.totalorder %s40, 1
      %p163 = scmp.ne.s32.totalorder %s158, %s160
      %p164 = scmp.eq.s32.totalorder %s40, 0
      %p165 = por %p163, %p164
      %p166 = scmp.ne.s32.totalorder %s158, %s160
      %p167 = scmp.eq.s32.totalorder %s45, 1
      %p168 = por %p166, %p167
      %p169 = scmp.ne.s32.totalorder %s160, %s161
      %p170 = scmp.eq.s32.totalorder %s45, 0
      %p171 = por %p169, %p170
      %p172 = scmp.ne.s32.totalorder %s160, %s161
      %p173 = scmp.eq.s32.totalorder %s46, 1
      %p174 = por %p172, %p173
      %p176 = scmp.ne.s32.totalorder %s161, %s175
      %p177 = scmp.eq.s32.totalorder %s46, 0
      %p178 = por %p176, %p177
      %s180 = sadd.s32 %s179, 1
      %p183 = scmp.eq.s32.totalorder %s40, 1
      %p184 = scmp.ne.s32.totalorder %s179, %s181
      %p185 = scmp.eq.s32.totalorder %s40, 0
      %p186 = por %p184, %p185
      %p187 = scmp.ne.s32.totalorder %s179, %s181
      %p188 = scmp.eq.s32.totalorder %s45, 1
      %p189 = por %p187, %p188
      %p190 = scmp.ne.s32.totalorder %s181, %s182
      %p191 = scmp.eq.s32.totalorder %s45, 0
      %p192 = por %p190, %p191
      %p193 = scmp.ne.s32.totalorder %s181, %s182
      %p194 = scmp.eq.s32.totalorder %s46, 1
      %p195 = por %p193, %p194
      %p197 = scmp.ne.s32.totalorder %s182, %s196
      %p198 = scmp.eq.s32.totalorder %s46, 0
      %p199 = por %p197, %p198
      %s201 = sadd.s32 %s200, 1
      %p204 = scmp.eq.s32.totalorder %s40, 1
      %p205 = scmp.ne.s32.totalorder %s200, %s202
      %p206 = scmp.eq.s32.totalorder %s40, 0
      %p207 = por %p205, %p206
      %p208 = scmp.ne.s32.totalorder %s200, %s202
      %p209 = scmp.eq.s32.totalorder %s45, 1
      %p210 = por %p208, %p209
      %p211 = scmp.ne.s32.totalorder %s202, %s203
      %p212 = scmp.eq.s32.totalorder %s45, 0
      %p213 = por %p211, %p212
      %p214 = scmp.ne.s32.totalorder %s202, %s203
      %p215 = scmp.eq.s32.totalorder %s46, 1
      %p216 = por %p214, %p215
      %p218 = scmp.ne.s32.totalorder %s203, %s217
      %p219 = scmp.eq.s32.totalorder %s46, 0
      %p220 = por %p218, %p219
      %s222 = sadd.s32 %s221, 1
      %p225 = scmp.eq.s32.totalorder %s40, 1
      %p226 = scmp.ne.s32.totalorder %s221, %s223
      %p227 = scmp.eq.s32.totalorder %s40, 0
      %p228 = por %p226, %p227
      %p229 = scmp.ne.s32.totalorder %s221, %s223
      %p230 = scmp.eq.s32.totalorder %s45, 1
      %p231 = por %p229, %p230
      %p232 = scmp.ne.s32.totalorder %s223, %s224
      %p233 = scmp.eq.s32.totalorder %s45, 0
      %p234 = por %p232, %p233
      %p235 = scmp.ne.s32.totalorder %s223, %s224
      %p236 = scmp.eq.s32.totalorder %s46, 1
      %p237 = por %p235, %p236
      %p239 = scmp.ne.s32.totalorder %s224, %s238
      %p240 = scmp.eq.s32.totalorder %s46, 0
      %p241 = por %p239, %p240
      %s243 = sadd.s32 %s242, 1
      %p246 = scmp.eq.s32.totalorder %s40, 1
      %p247 = scmp.ne.s32.totalorder %s242, %s244
      %p248 = scmp.eq.s32.totalorder %s40, 0
      %p249 = por %p247, %p248
      %p250 = scmp.ne.s32.totalorder %s242, %s244
      %p251 = scmp.eq.s32.totalorder %s45, 1
      %p252 = por %p250, %p251
      %p253 = scmp.ne.s32.totalorder %s244, %s245
      %p254 = scmp.eq.s32.totalorder %s45, 0
      %p255 = por %p253, %p254
      %p256 = scmp.ne.s32.totalorder %s244, %s245
      %p257 = scmp.eq.s32.totalorder %s46, 1
      %p258 = por %p256, %p257
      %p260 = scmp.ne.s32.totalorder %s245, %s259
      %p261 = scmp.eq.s32.totalorder %s46, 0
      %p262 = por %p260, %p261
      %s264 = sadd.s32 %s263, 1
      %p267 = scmp.eq.s32.totalorder %s40, 1
      %p268 = scmp.ne.s32.totalorder %s263, %s265
      %p269 = scmp.eq.s32.totalorder %s40, 0
      %p270 = por %p268, %p269
      %p271 = scmp.ne.s32.totalorder %s263, %s265
      %p272 = scmp.eq.s32.totalorder %s45, 1
      %p273 = por %p271, %p272
      %p274 = scmp.ne.s32.totalorder %s265, %s266
      %p275 = scmp.eq.s32.totalorder %s45, 0
      %p276 = por %p274, %p275
      %p277 = scmp.ne.s32.totalorder %s265, %s266
      %p278 = scmp.eq.s32.totalorder %s46, 1
      %p279 = por %p277, %p278
      %p281 = scmp.ne.s32.totalorder %s266, %s280
      %p282 = scmp.eq.s32.totalorder %s46, 0
      %p283 = por %p281, %p282
      %s285 = sadd.s32 %s284, 1
      %p288 = scmp.eq.s32.totalorder %s40, 1
      %p289 = scmp.ne.s32.totalorder %s284, %s286
      %p290 = scmp.eq.s32.totalorder %s40, 0
      %p291 = por %p289, %p290
      %p292 = scmp.ne.s32.totalorder %s284, %s286
      %p293 = scmp.eq.s32.totalorder %s45, 1
      %p294 = por %p292, %p293
      %p295 = scmp.ne.s32.totalorder %s286, %s287
      %p296 = scmp.eq.s32.totalorder %s45, 0
      %p297 = por %p295, %p296
      %p298 = scmp.ne.s32.totalorder %s286, %s287
      %p299 = scmp.eq.s32.totalorder %s46, 1
      %p300 = por %p298, %p299
      %p302 = scmp.ne.s32.totalorder %s287, %s301
      %p303 = scmp.eq.s32.totalorder %s46, 0
      %p304 = por %p302, %p303
      %s306 = sadd.s32 %s305, 1
      %p309 = scmp.eq.s32.totalorder %s40, 1
      %p310 = scmp.ne.s32.totalorder %s305, %s307
      %p311 = scmp.eq.s32.totalorder %s40, 0
      %p312 = por %p310, %p311
      %p313 = scmp.ne.s32.totalorder %s305, %s307
      %p314 = scmp.eq.s32.totalorder %s45, 1
      %p315 = por %p313, %p314
      %p316 = scmp.ne.s32.totalorder %s307, %s308
      %p317 = scmp.eq.s32.totalorder %s45, 0
      %p318 = por %p316, %p317
      %p319 = scmp.ne.s32.totalorder %s307, %s308
      %p320 = scmp.eq.s32.totalorder %s46, 1
      %p321 = por %p319, %p320
      %p323 = scmp.ne.s32.totalorder %s308, %s322
      %p324 = scmp.eq.s32.totalorder %s46, 0
      %p325 = por %p323, %p324
      %s327 = sadd.s32 %s326, 1
      %p330 = scmp.eq.s32.totalorder %s40, 1
      %p331 = scmp.ne.s32.totalorder %s326, %s328
      %p332 = scmp.eq.s32.totalorder %s40, 0
      %p333 = por %p331, %p332
      %p334 = scmp.ne.s32.totalorder %s326, %s328
      %p335 = scmp.eq.s32.totalorder %s45, 1
      %p336 = por %p334, %p335
      %p337 = scmp.ne.s32.totalorder %s328, %s329
      %p338 = scmp.eq.s32.totalorder %s45, 0
      %p339 = por %p337, %p338
      %p340 = scmp.ne.s32.totalorder %s328, %s329
      %p341 = scmp.eq.s32.totalorder %s46, 1
      %p342 = por %p340, %p341
      %p344 = scmp.ne.s32.totalorder %s329, %s343
      %p345 = scmp.eq.s32.totalorder %s46, 0
      %p346 = por %p344, %p345
      %s348 = sadd.s32 %s347, 1
      %p351 = scmp.eq.s32.totalorder %s40, 1
      %p352 = scmp.ne.s32.totalorder %s347, %s349
      %p353 = scmp.eq.s32.totalorder %s40, 0
      %p354 = por %p352, %p353
      %p355 = scmp.ne.s32.totalorder %s347, %s349
      %p356 = scmp.eq.s32.totalorder %s45, 1
      %p357 = por %p355, %p356
      %p358 = scmp.ne.s32.totalorder %s349, %s350
      %p359 = scmp.eq.s32.totalorder %s45, 0
      %p360 = por %p358, %p359
      %p361 = scmp.ne.s32.totalorder %s349, %s350
      %p362 = scmp.eq.s32.totalorder %s46, 1
      %p363 = por %p361, %p362
      %p365 = scmp.ne.s32.totalorder %s350, %s364
      %p366 = scmp.eq.s32.totalorder %s46, 0
      %p367 = por %p365, %p366
      %s369 = sadd.s32 %s368, 1
      %p372 = scmp.eq.s32.totalorder %s40, 1
      %p373 = scmp.ne.s32.totalorder %s368, %s370
      %p374 = scmp.eq.s32.totalorder %s40, 0
      %p375 = por %p373, %p374
      %p376 = scmp.ne.s32.totalorder %s368, %s370
      %p377 = scmp.eq.s32.totalorder %s45, 1
      %p378 = por %p376, %p377
      %p379 = scmp.ne.s32.totalorder %s370, %s371
      %p380 = scmp.eq.s32.totalorder %s45, 0
      %p381 = por %p379, %p380
      %p382 = scmp.ne.s32.totalorder %s370, %s371
      %p383 = scmp.eq.s32.totalorder %s46, 1
      %p384 = por %p382, %p383
      %p386 = scmp.ne.s32.totalorder %s371, %s385
      %p387 = scmp.eq.s32.totalorder %s46, 0
      %p388 = por %p386, %p387
      %s390 = sadd.s32 %s389, 1
      %p393 = scmp.eq.s32.totalorder %s40, 1
      %p394 = scmp.ne.s32.totalorder %s389, %s391
      %p395 = scmp.eq.s32.totalorder %s40, 0
      %p396 = por %p394, %p395
      %p397 = scmp.ne.s32.totalorder %s389, %s391
      %p398 = scmp.eq.s32.totalorder %s45, 1
      %p399 = por %p397, %p398
      %p400 = scmp.ne.s32.totalorder %s391, %s392
      %p401 = scmp.eq.s32.totalorder %s45, 0
      %p402 = por %p400, %p401
      %p403 = scmp.ne.s32.totalorder %s391, %s392
      %p404 = scmp.eq.s32.totalorder %s46, 1
      %p405 = por %p403, %p404
      %p407 = scmp.ne.s32.totalorder %s392, %s406
      %p408 = scmp.eq.s32.totalorder %s46, 0
      %p409 = por %p407, %p408
      %s411 = sadd.s32 %s410, 1
      %p414 = scmp.eq.s32.totalorder %s40, 1
      %p415 = scmp.ne.s32.totalorder %s410, %s412
      %p416 = scmp.eq.s32.totalorder %s40, 0
      %p417 = por %p415, %p416
      %p418 = scmp.ne.s32.totalorder %s410, %s412
      %p419 = scmp.eq.s32.totalorder %s45, 1
      %p420 = por %p418, %p419
      %p421 = scmp.ne.s32.totalorder %s412, %s413
      %p422 = scmp.eq.s32.totalorder %s45, 0
      %p423 = por %p421, %p422
      %p424 = scmp.ne.s32.totalorder %s412, %s413
      %p425 = scmp.eq.s32.totalorder %s46, 1
      %p426 = por %p424, %p425
      %p428 = scmp.ne.s32.totalorder %s413, %s427
      %p429 = scmp.eq.s32.totalorder %s46, 0
      %p430 = por %p428, %p429
      %s432 = sadd.s32 %s431, 1
      %p435 = scmp.eq.s32.totalorder %s40, 1
      %p436 = scmp.ne.s32.totalorder %s431, %s433
      %p437 = scmp.eq.s32.totalorder %s40, 0
      %p438 = por %p436, %p437
      %p439 = scmp.ne.s32.totalorder %s431, %s433
      %p440 = scmp.eq.s32.totalorder %s45, 1
      %p441 = por %p439, %p440
      %p442 = scmp.ne.s32.totalorder %s433, %s434
      %p443 = scmp.eq.s32.totalorder %s45, 0
      %p444 = por %p442, %p443
      %p445 = scmp.ne.s32.totalorder %s433, %s434
      %p446 = scmp.eq.s32.totalorder %s46, 1
      %p447 = por %p445, %p446
      %p449 = scmp.ne.s32.totalorder %s434, %s448
      %p450 = scmp.eq.s32.totalorder %s46, 0
      %p451 = por %p449, %p450
      %s453 = sadd.s32 %s452, 1
      %p456 = scmp.eq.s32.totalorder %s40, 1
      %p457 = scmp.ne.s32.totalorder %s452, %s454
      %p458 = scmp.eq.s32.totalorder %s40, 0
      %p459 = por %p457, %p458
      %p460 = scmp.ne.s32.totalorder %s452, %s454
      %p461 = scmp.eq.s32.totalorder %s45, 1
      %p462 = por %p460, %p461
      %p463 = scmp.ne.s32.totalorder %s454, %s455
      %p464 = scmp.eq.s32.totalorder %s45, 0
      %p465 = por %p463, %p464
      %p466 = scmp.ne.s32.totalorder %s454, %s455
      %p467 = scmp.eq.s32.totalorder %s46, 1
      %p468 = por %p466, %p467
      %p470 = scmp.ne.s32.totalorder %s455, %s469
      %p471 = scmp.eq.s32.totalorder %s46, 0
      %p472 = por %p470, %p471
      %s474 = sadd.s32 %s473, 1
      %p477 = scmp.eq.s32.totalorder %s40, 1
      %p478 = scmp.ne.s32.totalorder %s473, %s475
      %p479 = scmp.eq.s32.totalorder %s40, 0
      %p480 = por %p478, %p479
      %p481 = scmp.ne.s32.totalorder %s473, %s475
      %p482 = scmp.eq.s32.totalorder %s45, 1
      %p483 = por %p481, %p482
      %p484 = scmp.ne.s32.totalorder %s475, %s476
      %p485 = scmp.eq.s32.totalorder %s45, 0
      %p486 = por %p484, %p485
      %p487 = scmp.ne.s32.totalorder %s475, %s476
      %p488 = scmp.eq.s32.totalorder %s46, 1
      %p489 = por %p487, %p488
      %p491 = scmp.ne.s32.totalorder %s476, %s490
      %p492 = scmp.eq.s32.totalorder %s46, 0
      %p493 = por %p491, %p492
      %s495 = sadd.s32 %s494, 1
      %p498 = scmp.eq.s32.totalorder %s40, 1
      %p499 = scmp.ne.s32.totalorder %s494, %s496
      %p500 = scmp.eq.s32.totalorder %s40, 0
      %p501 = por %p499, %p500
      %p502 = scmp.ne.s32.totalorder %s494, %s496
      %p503 = scmp.eq.s32.totalorder %s45, 1
      %p504 = por %p502, %p503
      %p505 = scmp.ne.s32.totalorder %s496, %s497
      %p506 = scmp.eq.s32.totalorder %s45, 0
      %p507 = por %p505, %p506
      %p508 = scmp.ne.s32.totalorder %s496, %s497
      %p509 = scmp.eq.s32.totalorder %s46, 1
      %p510 = por %p508, %p509
      %p512 = scmp.ne.s32.totalorder %s497, %s511
      %p513 = scmp.eq.s32.totalorder %s46, 0
      %p514 = por %p512, %p513
      %s516 = sadd.s32 %s515, 1
      %p519 = scmp.eq.s32.totalorder %s40, 1
      %p520 = scmp.ne.s32.totalorder %s515, %s517
      %p521 = scmp.eq.s32.totalorder %s40, 0
      %p522 = por %p520, %p521
      %p523 = scmp.ne.s32.totalorder %s515, %s517
      %p524 = scmp.eq.s32.totalorder %s45, 1
      %p525 = por %p523, %p524
      %p526 = scmp.ne.s32.totalorder %s517, %s518
      %p527 = scmp.eq.s32.totalorder %s45, 0
      %p528 = por %p526, %p527
      %p529 = scmp.ne.s32.totalorder %s517, %s518
      %p530 = scmp.eq.s32.totalorder %s46, 1
      %p531 = por %p529, %p530
      %p533 = scmp.ne.s32.totalorder %s518, %s532
      %p534 = scmp.eq.s32.totalorder %s46, 0
      %p535 = por %p533, %p534
      %s537 = sadd.s32 %s536, 1
      %p540 = scmp.eq.s32.totalorder %s40, 1
      %p541 = scmp.ne.s32.totalorder %s536, %s538
      %p542 = scmp.eq.s32.totalorder %s40, 0
      %p543 = por %p541, %p542
      %p544 = scmp.ne.s32.totalorder %s536, %s538
      %p545 = scmp.eq.s32.totalorder %s45, 1
      %p546 = por %p544, %p545
      %p547 = scmp.ne.s32.totalorder %s538, %s539
      %p548 = scmp.eq.s32.totalorder %s45, 0
      %p549 = por %p547, %p548
      %p550 = scmp.ne.s32.totalorder %s538, %s539
      %p551 = scmp.eq.s32.totalorder %s46, 1
      %p552 = por %p550, %p551
      %p554 = scmp.ne.s32.totalorder %s539, %s553
      %p555 = scmp.eq.s32.totalorder %s46, 0
      %p556 = por %p554, %p555
      %s558 = sadd.s32 %s557, 1
      %p561 = scmp.eq.s32.totalorder %s40, 1
      %p562 = scmp.ne.s32.totalorder %s557, %s559
      %p563 = scmp.eq.s32.totalorder %s40, 0
      %p564 = por %p562, %p563
      %p565 = scmp.ne.s32.totalorder %s557, %s559
      %p566 = scmp.eq.s32.totalorder %s45, 1
      %p567 = por %p565, %p566
      %p568 = scmp.ne.s32.totalorder %s559, %s560
      %p569 = scmp.eq.s32.totalorder %s45, 0
      %p570 = por %p568, %p569
      %p571 = scmp.ne.s32.totalorder %s559, %s560
      %p572 = scmp.eq.s32.totalorder %s46, 1
      %p573 = por %p571, %p572
      %p575 = scmp.ne.s32.totalorder %s560, %s574
      %p576 = scmp.eq.s32.totalorder %s46, 0
      %p577 = por %p575, %p576
      %s579 = sadd.s32 %s578, 1
      %p582 = scmp.eq.s32.totalorder %s40, 1
      %p583 = scmp.ne.s32.totalorder %s578, %s580
      %p584 = scmp.eq.s32.totalorder %s40, 0
      %p585 = por %p583, %p584
      %p586 = scmp.ne.s32.totalorder %s578, %s580
      %p587 = scmp.eq.s32.totalorder %s45, 1
      %p588 = por %p586, %p587
      %p589 = scmp.ne.s32.totalorder %s580, %s581
      %p590 = scmp.eq.s32.totalorder %s45, 0
      %p591 = por %p589, %p590
      %p592 = scmp.ne.s32.totalorder %s580, %s581
      %p593 = scmp.eq.s32.totalorder %s46, 1
      %p594 = por %p592, %p593
      %p596 = scmp.ne.s32.totalorder %s581, %s595
      %p597 = scmp.eq.s32.totalorder %s46, 0
      %p598 = por %p596, %p597
      %s600 = sadd.s32 %s599, 1
      %p603 = scmp.eq.s32.totalorder %s40, 1
      %p604 = scmp.ne.s32.totalorder %s599, %s601
      %p605 = scmp.eq.s32.totalorder %s40, 0
      %p606 = por %p604, %p605
      %p607 = scmp.ne.s32.totalorder %s599, %s601
      %p608 = scmp.eq.s32.totalorder %s45, 1
      %p609 = por %p607, %p608
      %p610 = scmp.ne.s32.totalorder %s601, %s602
      %p611 = scmp.eq.s32.totalorder %s45, 0
      %p612 = por %p610, %p611
      %p613 = scmp.ne.s32.totalorder %s601, %s602
      %p614 = scmp.eq.s32.totalorder %s46, 1
      %p615 = por %p613, %p614
      %p617 = scmp.ne.s32.totalorder %s602, %s616
      %p618 = scmp.eq.s32.totalorder %s46, 0
      %p619 = por %p617, %p618
      %s620 = ssub.s32 %s40, %s47
      %p621 = scmp.eq.s32.totalorder %s620, 0
      %s623 = sadd.s32 %s622, 1
      %s624 = scalar_select %p621, %s622, %s623
      %p627 = pneg %p621
      %p628 = scmp.eq.s32.totalorder %s40, 1
      %p629 = por %p627, %p628
      %p630 = scmp.ne.s32.totalorder %s622, %s625
      %p631 = scmp.eq.s32.totalorder %s40, 0
      %p632 = por %p630, %p631
      %p633 = scmp.ne.s32.totalorder %s622, %s625
      %p634 = scmp.eq.s32.totalorder %s45, 1
      %p635 = por %p633, %p634
      %p636 = scmp.ne.s32.totalorder %s625, %s626
      %p637 = scmp.eq.s32.totalorder %s45, 0
      %p638 = por %p636, %p637
      %p639 = scmp.ne.s32.totalorder %s625, %s626
      %p640 = scmp.eq.s32.totalorder %s46, 1
      %p641 = por %p639, %p640
      %p643 = scmp.ne.s32.totalorder %s626, %s642
      %p644 = scmp.eq.s32.totalorder %s46, 0
      %p645 = por %p643, %p644
      %p646 = scmp.le.s32.totalorder 1, %s40
      %p647 = scmp.lt.s32.totalorder %s40, 3
      %p648 = pnand %p646, %p647
      %p649 = pneg %p648
      // Predicated region
      $region9: #{tpu_custom_call.1} parent=5 // pred_check
        _
      $region10: #{tpu_custom_call.1} parent=5 // pred_check_branch
        %651 = sbr.rel (%p648) target = $region12
      $region11: #{tpu_custom_call.1} parent=5 // pred_region
        %s652 = ssub.s32 %s40, 1
        // Predicated region
        $region13: #{tpu_custom_call.1} parent=11 // pred_check
          %p653 = pneg %p87
        $region14: #{tpu_custom_call.1} parent=11 // pred_check_branch
          %655 = sbr.rel (%p653) target = $region16
        $region15: #{tpu_custom_call.1} parent=11 // pred_region
          _
        $region16: #{tpu_custom_call.1} parent=11 // pred_fallthru
          _
        // Predicated region
        $region17: #{tpu_custom_call.1} parent=11 // pred_check
          %p656 = pneg %p108
        $region18: #{tpu_custom_call.1} parent=11 // pred_check_branch
          %658 = sbr.rel (%p656) target = $region20
        $region19: #{tpu_custom_call.1} parent=11 // pred_region
          _
        $region20: #{tpu_custom_call.1} parent=11 // pred_fallthru
          _
        // Predicated region
        $region21: #{tpu_custom_call.1} parent=11 // pred_check
          %p659 = pneg %p129
        $region22: #{tpu_custom_call.1} parent=11 // pred_check_branch
          %661 = sbr.rel (%p659) target = $region24
        $region23: #{tpu_custom_call.1} parent=11 // pred_region
          %s663 = ssub.s32 1024, 1024
          %664 = vsyncadd [#allocation7], %s663
          %s665 = sshll.u32 [#allocation6], 4
          %s666 = int_to_ptr.vmem [resolvable:$true] %s665
          %671 = dma.hbm_to_vmem [thread:$0]  %s3, 1024, %s666, [#allocation7], 128, 128, 8
        $region24: #{tpu_custom_call.1} parent=11 // pred_fallthru
          _
        // Predicated region
        $region25: #{tpu_custom_call.1} parent=11 // pred_check
          %p672 = pneg %p150
        $region26: #{tpu_custom_call.1} parent=11 // pred_check_branch
          %674 = sbr.rel (%p672) target = $region28
        $region27: #{tpu_custom_call.1} parent=11 // pred_region
          _
        $region28: #{tpu_custom_call.1} parent=11 // pred_fallthru
          _
        // Predicated region
        $region29: #{tpu_custom_call.1} parent=11 // pred_check
          %p675 = pneg %p171
        $region30: #{tpu_custom_call.1} parent=11 // pred_check_branch
          %677 = sbr.rel (%p675) target = $region32
        $region31: #{tpu_custom_call.1} parent=11 // pred_region
          _
        $region32: #{tpu_custom_call.1} parent=11 // pred_fallthru
          _
        // Predicated region
        $region33: #{tpu_custom_call.1} parent=11 // pred_check
          %p678 = pneg %p192
        $region34: #{tpu_custom_call.1} parent=11 // pred_check_branch
          %680 = sbr.rel (%p678) target = $region36
        $region35: #{tpu_custom_call.1} parent=11 // pred_region
          _
        $region36: #{tpu_custom_call.1} parent=11 // pred_fallthru
          _
        // Predicated region
        $region37: #{tpu_custom_call.1} parent=11 // pred_check
          %p681 = pneg %p213
        $region38: #{tpu_custom_call.1} parent=11 // pred_check_branch
          %683 = sbr.rel (%p681) target = $region40
        $region39: #{tpu_custom_call.1} parent=11 // pred_region
          _
        $region40: #{tpu_custom_call.1} parent=11 // pred_fallthru
          _
        // Predicated region
        $region41: #{tpu_custom_call.1} parent=11 // pred_check
          %p684 = pneg %p234
        $region42: #{tpu_custom_call.1} parent=11 // pred_check_branch
          %686 = sbr.rel (%p684) target = $region44
        $region43: #{tpu_custom_call.1} parent=11 // pred_region
          %s688 = ssub.s32 16, 16
          %689 = vsyncadd [#allocation7], %s688
          %s691 = sshll.u32 [#allocation8], 4
          %s692 = int_to_ptr.vmem [resolvable:$true] %s691
          %694 = dma.hbm_to_vmem [thread:$0]  %s8, 16, %s692, [#allocation7]
        $region44: #{tpu_custom_call.1} parent=11 // pred_fallthru
          _
        // Predicated region
        $region45: #{tpu_custom_call.1} parent=11 // pred_check
          %p695 = pneg %p255
        $region46: #{tpu_custom_call.1} parent=11 // pred_check_branch
          %697 = sbr.rel (%p695) target = $region48
        $region47: #{tpu_custom_call.1} parent=11 // pred_region
          _
        $region48: #{tpu_custom_call.1} parent=11 // pred_fallthru
          _
        // Predicated region
        $region49: #{tpu_custom_call.1} parent=11 // pred_check
          %p698 = pneg %p276
        $region50: #{tpu_custom_call.1} parent=11 // pred_check_branch
          %700 = sbr.rel (%p698) target = $region52
        $region51: #{tpu_custom_call.1} parent=11 // pred_region
          %s702 = ssub.s32 1024, 1024
          %703 = vsyncadd [#allocation10], %s702
          %s704 = sshll.u32 [#allocation9], 4
          %s705 = int_to_ptr.vmem [resolvable:$true] %s704
          %710 = dma.hbm_to_vmem [thread:$0]  %s10, 1024, %s705, [#allocation10], 128, 128, 8
        $region52: #{tpu_custom_call.1} parent=11 // pred_fallthru
          _
        // Predicated region
        $region53: #{tpu_custom_call.1} parent=11 // pred_check
          %p711 = pneg %p297
        $region54: #{tpu_custom_call.1} parent=11 // pred_check_branch
          %713 = sbr.rel (%p711) target = $region56
        $region55: #{tpu_custom_call.1} parent=11 // pred_region
          _
        $region56: #{tpu_custom_call.1} parent=11 // pred_fallthru
          _
        // Predicated region
        $region57: #{tpu_custom_call.1} parent=11 // pred_check
          %p714 = pneg %p318
        $region58: #{tpu_custom_call.1} parent=11 // pred_check_branch
          %716 = sbr.rel (%p714) target = $region60
        $region59: #{tpu_custom_call.1} parent=11 // pred_region
          _
        $region60: #{tpu_custom_call.1} parent=11 // pred_fallthru
          _
        // Predicated region
        $region61: #{tpu_custom_call.1} parent=11 // pred_check
          %p717 = pneg %p339
        $region62: #{tpu_custom_call.1} parent=11 // pred_check_branch
          %719 = sbr.rel (%p717) target = $region64
        $region63: #{tpu_custom_call.1} parent=11 // pred_region
          _
        $region64: #{tpu_custom_call.1} parent=11 // pred_fallthru
          _
        // Predicated region
        $region65: #{tpu_custom_call.1} parent=11 // pred_check
          %p720 = pneg %p360
        $region66: #{tpu_custom_call.1} parent=11 // pred_check_branch
          %722 = sbr.rel (%p720) target = $region68
        $region67: #{tpu_custom_call.1} parent=11 // pred_region
          _
        $region68: #{tpu_custom_call.1} parent=11 // pred_fallthru
          _
        // Predicated region
        $region69: #{tpu_custom_call.1} parent=11 // pred_check
          %p723 = pneg %p381
        $region70: #{tpu_custom_call.1} parent=11 // pred_check_branch
          %725 = sbr.rel (%p723) target = $region72
        $region71: #{tpu_custom_call.1} parent=11 // pred_region
          _
        $region72: #{tpu_custom_call.1} parent=11 // pred_fallthru
          _
        // Predicated region
        $region73: #{tpu_custom_call.1} parent=11 // pred_check
          %p726 = pneg %p402
        $region74: #{tpu_custom_call.1} parent=11 // pred_check_branch
          %728 = sbr.rel (%p726) target = $region76
        $region75: #{tpu_custom_call.1} parent=11 // pred_region
          _
        $region76: #{tpu_custom_call.1} parent=11 // pred_fallthru
          _
        // Predicated region
        $region77: #{tpu_custom_call.1} parent=11 // pred_check
          %p729 = pneg %p423
        $region78: #{tpu_custom_call.1} parent=11 // pred_check_branch
          %731 = sbr.rel (%p729) target = $region80
        $region79: #{tpu_custom_call.1} parent=11 // pred_region
          _
        $region80: #{tpu_custom_call.1} parent=11 // pred_fallthru
          _
        // Predicated region
        $region81: #{tpu_custom_call.1} parent=11 // pred_check
          %p732 = pneg %p444
        $region82: #{tpu_custom_call.1} parent=11 // pred_check_branch
          %734 = sbr.rel (%p732) target = $region84
        $region83: #{tpu_custom_call.1} parent=11 // pred_region
          _
        $region84: #{tpu_custom_call.1} parent=11 // pred_fallthru
          _
        // Predicated region
        $region85: #{tpu_custom_call.1} parent=11 // pred_check
          %p735 = pneg %p465
        $region86: #{tpu_custom_call.1} parent=11 // pred_check_branch
          %737 = sbr.rel (%p735) target = $region88
        $region87: #{tpu_custom_call.1} parent=11 // pred_region
          _
        $region88: #{tpu_custom_call.1} parent=11 // pred_fallthru
          _
        // Predicated region
        $region89: #{tpu_custom_call.1} parent=11 // pred_check
          %p738 = pneg %p486
        $region90: #{tpu_custom_call.1} parent=11 // pred_check_branch
          %740 = sbr.rel (%p738) target = $region92
        $region91: #{tpu_custom_call.1} parent=11 // pred_region
          _
        $region92: #{tpu_custom_call.1} parent=11 // pred_fallthru
          _
        // Predicated region
        $region93: #{tpu_custom_call.1} parent=11 // pred_check
          %p741 = pneg %p507
        $region94: #{tpu_custom_call.1} parent=11 // pred_check_branch
          %743 = sbr.rel (%p741) target = $region96
        $region95: #{tpu_custom_call.1} parent=11 // pred_region
          _
        $region96: #{tpu_custom_call.1} parent=11 // pred_fallthru
          _
        // Predicated region
        $region97: #{tpu_custom_call.1} parent=11 // pred_check
          %p744 = pneg %p528
        $region98: #{tpu_custom_call.1} parent=11 // pred_check_branch
          %746 = sbr.rel (%p744) target = $region100
        $region99: #{tpu_custom_call.1} parent=11 // pred_region
          _
        $region100: #{tpu_custom_call.1} parent=11 // pred_fallthru
          _
        // Predicated region
        $region101: #{tpu_custom_call.1} parent=11 // pred_check
          %p747 = pneg %p549
        $region102: #{tpu_custom_call.1} parent=11 // pred_check_branch
          %749 = sbr.rel (%p747) target = $region104
        $region103: #{tpu_custom_call.1} parent=11 // pred_region
          _
        $region104: #{tpu_custom_call.1} parent=11 // pred_fallthru
          _
        // Predicated region
        $region105: #{tpu_custom_call.1} parent=11 // pred_check
          %p750 = pneg %p570
        $region106: #{tpu_custom_call.1} parent=11 // pred_check_branch
          %752 = sbr.rel (%p750) target = $region108
        $region107: #{tpu_custom_call.1} parent=11 // pred_region
          _
        $region108: #{tpu_custom_call.1} parent=11 // pred_fallthru
          _
        // Predicated region
        $region109: #{tpu_custom_call.1} parent=11 // pred_check
          %p753 = pneg %p591
        $region110: #{tpu_custom_call.1} parent=11 // pred_check_branch
          %755 = sbr.rel (%p753) target = $region112
        $region111: #{tpu_custom_call.1} parent=11 // pred_region
          _
        $region112: #{tpu_custom_call.1} parent=11 // pred_fallthru
          _
        // Predicated region
        $region113: #{tpu_custom_call.1} parent=11 // pred_check
          %p756 = pneg %p612
        $region114: #{tpu_custom_call.1} parent=11 // pred_check_branch
          %758 = sbr.rel (%p756) target = $region116
        $region115: #{tpu_custom_call.1} parent=11 // pred_region
          _
        $region116: #{tpu_custom_call.1} parent=11 // pred_fallthru
          _
      $region12: #{tpu_custom_call.1} parent=5 // pred_fallthru
        _
      %p759 = scmp.lt.s32.totalorder %s40, 2
      // Predicated region
      $region117: #{tpu_custom_call.1} parent=5 // pred_check
        %p760 = pneg %p759
      $region118: #{tpu_custom_call.1} parent=5 // pred_check_branch
        %762 = sbr.rel (%p760) target = $region120
      $region119: #{tpu_custom_call.1} parent=5 // pred_region
        // Predicated region
        $region121: #{tpu_custom_call.1} parent=119 // pred_check
          %p763 = pneg %p60
        $region122: #{tpu_custom_call.1} parent=119 // pred_check_branch
          %765 = sbr.rel (%p763) target = $region124
        $region123: #{tpu_custom_call.1} parent=119 // pred_region
          %s766 = sand.u32 %s50, 1
          %s767 = scalar_lea.sflag [#allocation5], %s766
          %s768 = sand.u32 %s50, 1
          %s769 = smul.addr %s768, 16
          %s770 = scalar_lea.vmem [#allocation4], %s769
          %s772 = ssub.s32 256, 256
          %773 = vsyncadd %s767, %s772
          %s774 = smul.addr %s40, 2
          %s775 = smul.addr %s774, 128
          %s776 = scalar_lea.hbm %s0, %s775
          %s778 = sshll.u32 %s770, 4
          %s779 = int_to_ptr.vmem [resolvable:$true] %s778
          %781 = dma.hbm_to_vmem [thread:$0]  %s776, 256, %s779, %s767
        $region124: #{tpu_custom_call.1} parent=119 // pred_fallthru
          _
      $region120: #{tpu_custom_call.1} parent=5 // pred_fallthru
        _
      %p782 = scmp.le.s32.totalorder 1, %s40
      %p783 = scmp.lt.s32.totalorder %s40, 3
      %p784 = pnand %p782, %p783
      %p785 = pneg %p784
      // Predicated region
      $region125: #{tpu_custom_call.1} parent=5 // pred_check
        _
      $region126: #{tpu_custom_call.1} parent=5 // pred_check_branch
        %787 = sbr.rel (%p784) target = $region128
      $region127: #{tpu_custom_call.1} parent=5 // pred_region
        %s788 = ssub.s32 %s40, 1
        %s789 = sand.u32 %s53, 1
        %s790 = scalar_lea.sflag [#allocation5], %s789
        %s791 = sand.u32 %s53, 1
        %s792 = smul.addr %s791, 16
        %s793 = scalar_lea.vmem [#allocation4], %s792
        // Predicated region
        $region129: #{tpu_custom_call.1} parent=127 // pred_check
          %p794 = pneg %p66
        $region130: #{tpu_custom_call.1} parent=127 // pred_check_branch
          %796 = sbr.rel (%p794) target = $region132
        $region131: #{tpu_custom_call.1} parent=127 // pred_region
          %797 = dma.done %s790, 256
        $region132: #{tpu_custom_call.1} parent=127 // pred_fallthru
          _
        // Predicated region
        $region133: #{tpu_custom_call.1} parent=127 // pred_check
          %p798 = pneg %p129
        $region134: #{tpu_custom_call.1} parent=127 // pred_check_branch
          %800 = sbr.rel (%p798) target = $region136
        $region135: #{tpu_custom_call.1} parent=127 // pred_region
          %801 = dma.done [#allocation7], 1024
        $region136: #{tpu_custom_call.1} parent=127 // pred_fallthru
          _
        // Predicated region
        $region137: #{tpu_custom_call.1} parent=127 // pred_check
          %p802 = pneg %p234
        $region138: #{tpu_custom_call.1} parent=127 // pred_check_branch
          %804 = sbr.rel (%p802) target = $region140
        $region139: #{tpu_custom_call.1} parent=127 // pred_region
          %805 = dma.done [#allocation7], 16
        $region140: #{tpu_custom_call.1} parent=127 // pred_fallthru
          _
        // Predicated region
        $region141: #{tpu_custom_call.1} parent=127 // pred_check
          %p806 = pneg %p276
        $region142: #{tpu_custom_call.1} parent=127 // pred_check_branch
          %808 = sbr.rel (%p806) target = $region144
        $region143: #{tpu_custom_call.1} parent=127 // pred_region
          %809 = dma.done [#allocation10], 1024
        $region144: #{tpu_custom_call.1} parent=127 // pred_fallthru
          _
        %s810 = sand.u32 %s53, 1
        %s811 = scalar_lea.sflag [#allocation5], %s810
        %s812 = sand.u32 %s53, 1
        %s813 = smul.addr %s812, 16
        %s814 = scalar_lea.vmem [#allocation4], %s813
        %p815 = pneg %p66
        %p816 = pneg %p63
        %p817 = pneg %p87
        %p818 = pneg %p84
        %p819 = pneg %p108
        %p820 = pneg %p105
        %p821 = pneg %p129
        %p822 = pneg %p126
        %p823 = pneg %p150
        %p824 = pneg %p147
        %p825 = pneg %p171
        %p826 = pneg %p168
        %p827 = pneg %p192
        %p828 = pneg %p189
        %p829 = pneg %p213
        %p830 = pneg %p210
        %p831 = pneg %p234
        %p832 = pneg %p231
        %p833 = pneg %p255
        %p834 = pneg %p252
        %p835 = pneg %p276
        %p836 = pneg %p273
        %p837 = pneg %p297
        %p838 = pneg %p294
        %p839 = pneg %p318
        %p840 = pneg %p315
        %p841 = pneg %p339
        %p842 = pneg %p336
        %p843 = pneg %p360
        %p844 = pneg %p357
        %p845 = pneg %p381
        %p846 = pneg %p378
        %p847 = pneg %p402
        %p848 = pneg %p399
        %p849 = pneg %p423
        %p850 = pneg %p420
        %p851 = pneg %p444
        %p852 = pneg %p441
        %p853 = pneg %p465
        %p854 = pneg %p462
        %p855 = pneg %p486
        %p856 = pneg %p483
        %p857 = pneg %p507
        %p858 = pneg %p504
        %p859 = pneg %p528
        %p860 = pneg %p525
        %p861 = pneg %p549
        %p862 = pneg %p546
        %p863 = pneg %p570
        %p864 = pneg %p567
        %p865 = pneg %p591
        %p866 = pneg %p588
        %p867 = pneg %p612
        %p868 = pneg %p609
        %p869 = pneg %p638
        %p870 = pneg %p635
        %p871 = scmp.lt.s32.totalorder %s45, 1
        %s872 = scalar_select %p871, %s45, 1
        %s873 = smul.addr %s872, 8
        %s874 = scalar_lea.vmem %s27, %s873
        %p875 = scmp.lt.s32.totalorder %s45, 1
        %s876 = scalar_select %p875, %s45, 1
        %s877 = smul.addr %s876, 8
        %s878 = scalar_lea.vmem %s27, %s877
        loop: start=0, step=1, limit=8
        $region145: #{tpu_custom_call.1} parent=127 // loop_pre_header
          _
        $region146: #{tpu_custom_call.1} parent=127 // loop_header
          %s881 = sphi 0, %s885
          %p882 = scmp.ge.s32.totalorder %s881, 8
        $region147: #{tpu_custom_call.1} parent=127 // loop_header_branch
          %884 = sbr.rel (%p882) target = $region151
        $region148: #{tpu_custom_call.1} parent=127 // loop_body
          %s886 = sshra.s32 %s881, 3
          %s887 = sand.u32 %s881, 7
          %s888 = sshra.s32 %s881, 3
          %s889 = sand.u32 %s881, 7
          %s890 = smul.u32 %s886, 2
          %s891 = smul.u32 %s890, 8
          %s892 = sadd.s32 %s891, %s889
          %s893 = scalar_lea.vmem %s793, %s892 [#allocation4]
          %v894 = vld [vmem:[%s893] ss:$8 sm:$0x3]
          %v896 = vlaneseq
          %v897 = vshrl.u32 %v896, 7
          %v898 = vsub.s32 0, %v897
          %v899 = vrot.slane %v894, %v898
          %v900 = vlaneseq
          %v901 = vshrl.u32 %v900, 7
          %v902 = vsub.s32 1, %v901
          %v903 = vrot.slane %v894, %v902
          %904 = vrot.lane.b32.xlu0 %v899, 1
          %v905 = vpop.permute.xlu0 %904
          %906 = vrot.lane.b32.xlu0 %v903, 1
          %v907 = vpop.permute.xlu0 %906
          %vm908 = vcmask 7168
          %v909 = vsel %vm908, %v905, %v907
          %v913 = vsel %vm908, 0.0, %v905
          %v914 = vsel %vm908, %v907, 0.0
          %v915 = vld [vmem:[%s1] sm:$0xff]
          %v916 = vld [vmem:[%s1 + $0x8] sm:$0xff]
          %v917 = vld [vmem:[%s1 + $0x10] sm:$0xff]
          %v918 = vld [vmem:[%s1 + $0x18] sm:$0xff]
          %920 = vset.pattern.permute.xlu0 0
          %921 = vperm.xlu0 %920, %v915
          %v922 = vpop.permute.xlu0 %921
          %925 = vset.pattern.permute.xlu0 0
          %926 = vperm.xlu0 %925, %v916
          %v927 = vpop.permute.xlu0 %926
          %930 = vset.pattern.permute.xlu0 0
          %931 = vperm.xlu0 %930, %v917
          %v932 = vpop.permute.xlu0 %931
          %935 = vset.pattern.permute.xlu0 0
          %936 = vperm.xlu0 %935, %v918
          %v937 = vpop.permute.xlu0 %936
          %v939 = vlaneseq
          %v940 = vshrl.u32 %v939, 7
          %v941 = vsub.s32 0, %v940
          %v942 = vrot.slane %v913, %v941
          %v943 = vlaneseq
          %v944 = vshrl.u32 %v943, 7
          %v945 = vsub.s32 0, %v944
          %v946 = vrot.slane %v909, %v945
          %v947 = vmul.f32 %v922, %v942
          %v948 = vmul.f32 %v922, %v946
          %v949 = vmul.f32 %v927, %v942
          %v950 = vmul.f32 %v927, %v946
          %v951 = vmul.f32 %v932, %v942
          %v952 = vmul.f32 %v932, %v946
          %v953 = vmul.f32 %v937, %v942
          %v954 = vmul.f32 %v937, %v946
          %v955 = vadd.f32 %v947, 0.0
          %v956 = vadd.f32 %v948, 0.0
          %v957 = vadd.f32 %v949, 0.0
          %v958 = vadd.f32 %v950, 0.0
          %v959 = vadd.f32 %v951, 0.0
          %v960 = vadd.f32 %v952, 0.0
          %v961 = vadd.f32 %v953, 0.0
          %v962 = vadd.f32 %v954, 0.0
          %s963 = scalar_lea.vmem %s1, 32
          %v964 = vld [vmem:[%s963] sm:$0xff]
          %v965 = vld [vmem:[%s963 + $0x8] sm:$0xff]
          %v966 = vld [vmem:[%s963 + $0x10] sm:$0xff]
          %v967 = vld [vmem:[%s963 + $0x18] sm:$0xff]
          %969 = vset.pattern.permute.xlu0 0
          %970 = vperm.xlu0 %969, %v964
          %v971 = vpop.permute.xlu0 %970
          %974 = vset.pattern.permute.xlu0 0
          %975 = vperm.xlu0 %974, %v965
          %v976 = vpop.permute.xlu0 %975
          %979 = vset.pattern.permute.xlu0 0
          %980 = vperm.xlu0 %979, %v966
          %v981 = vpop.permute.xlu0 %980
          %984 = vset.pattern.permute.xlu0 0
          %985 = vperm.xlu0 %984, %v967
          %v986 = vpop.permute.xlu0 %985
          %v988 = vlaneseq
          %v989 = vshrl.u32 %v988, 7
          %v990 = vsub.s32 0, %v989
          %v991 = vrot.slane %v914, %v990
          %v992 = vmul.f32 %v971, %v942
          %v993 = vmul.f32 %v971, %v946
          %v994 = vmul.f32 %v971, %v991
          %v995 = vmul.f32 %v976, %v942
          %v996 = vmul.f32 %v976, %v946
          %v997 = vmul.f32 %v976, %v991
          %v998 = vmul.f32 %v981, %v942
          %v999 = vmul.f32 %v981, %v946
          %v1000 = vmul.f32 %v981, %v991
          %v1001 = vmul.f32 %v986, %v942
          %v1002 = vmul.f32 %v986, %v946
          %v1003 = vmul.f32 %v986, %v991
          %1016 = vrot.lane.b32.xlu0 %v992, 127
          %v1017 = vpop.permute.xlu0 %1016
          %1018 = vrot.lane.b32.xlu0 %v993, 127
          %v1019 = vpop.permute.xlu0 %1018
          %1020 = vrot.lane.b32.xlu0 %v994, 127
          %v1021 = vpop.permute.xlu0 %1020
          %1022 = vrot.lane.b32.xlu0 %v995, 127
          %v1023 = vpop.permute.xlu0 %1022
          %1024 = vrot.lane.b32.xlu0 %v996, 127
          %v1025 = vpop.permute.xlu0 %1024
          %1026 = vrot.lane.b32.xlu0 %v997, 127
          %v1027 = vpop.permute.xlu0 %1026
          %1028 = vrot.lane.b32.xlu0 %v998, 127
          %v1029 = vpop.permute.xlu0 %1028
          %1030 = vrot.lane.b32.xlu0 %v999, 127
          %v1031 = vpop.permute.xlu0 %1030
          %1032 = vrot.lane.b32.xlu0 %v1000, 127
          %v1033 = vpop.permute.xlu0 %1032
          %1034 = vrot.lane.b32.xlu0 %v1001, 127
          %v1035 = vpop.permute.xlu0 %1034
          %1036 = vrot.lane.b32.xlu0 %v1002, 127
          %v1037 = vpop.permute.xlu0 %1036
          %1038 = vrot.lane.b32.xlu0 %v1003, 127
          %v1039 = vpop.permute.xlu0 %1038
          %vm1040 = vcmask 1039360
          %v1041 = vsel %vm1040, %v1017, %v1019
          %v1042 = vsel %vm1040, %v1019, %v1021
          %v1043 = vsel %vm1040, %v1023, %v1025
          %v1044 = vsel %vm1040, %v1025, %v1027
          %v1045 = vsel %vm1040, %v1029, %v1031
          %v1046 = vsel %vm1040, %v1031, %v1033
          %v1047 = vsel %vm1040, %v1035, %v1037
          %v1048 = vsel %vm1040, %v1037, %v1039
          %v1057 = vadd.f32 %v955, %v1041
          %v1058 = vadd.f32 %v956, %v1042
          %v1059 = vadd.f32 %v957, %v1043
          %v1060 = vadd.f32 %v958, %v1044
          %v1061 = vadd.f32 %v959, %v1045
          %v1062 = vadd.f32 %v960, %v1046
          %v1063 = vadd.f32 %v961, %v1047
          %v1064 = vadd.f32 %v962, %v1048
          %s1065 = scalar_lea.vmem %s1, 64
          %v1066 = vld [vmem:[%s1065] sm:$0xff]
          %v1067 = vld [vmem:[%s1065 + $0x8] sm:$0xff]
          %v1068 = vld [vmem:[%s1065 + $0x10] sm:$0xff]
          %v1069 = vld [vmem:[%s1065 + $0x18] sm:$0xff]
          %1071 = vset.pattern.permute.xlu0 0
          %1072 = vperm.xlu0 %1071, %v1066
          %v1073 = vpop.permute.xlu0 %1072
          %1076 = vset.pattern.permute.xlu0 0
          %1077 = vperm.xlu0 %1076, %v1067
          %v1078 = vpop.permute.xlu0 %1077
          %1081 = vset.pattern.permute.xlu0 0
          %1082 = vperm.xlu0 %1081, %v1068
          %v1083 = vpop.permute.xlu0 %1082
          %1086 = vset.pattern.permute.xlu0 0
          %1087 = vperm.xlu0 %1086, %v1069
          %v1088 = vpop.permute.xlu0 %1087
          %v1090 = vmul.f32 %v1073, %v942
          %v1091 = vmul.f32 %v1073, %v946
          %v1092 = vmul.f32 %v1073, %v991
          %v1093 = vmul.f32 %v1078, %v942
          %v1094 = vmul.f32 %v1078, %v946
          %v1095 = vmul.f32 %v1078, %v991
          %v1096 = vmul.f32 %v1083, %v942
          %v1097 = vmul.f32 %v1083, %v946
          %v1098 = vmul.f32 %v1083, %v991
          %v1099 = vmul.f32 %v1088, %v942
          %v1100 = vmul.f32 %v1088, %v946
          %v1101 = vmul.f32 %v1088, %v991
          %1114 = vrot.lane.b32.xlu0 %v1090, 126
          %v1115 = vpop.permute.xlu0 %1114
          %1116 = vrot.lane.b32.xlu0 %v1091, 126
          %v1117 = vpop.permute.xlu0 %1116
          %1118 = vrot.lane.b32.xlu0 %v1092, 126
          %v1119 = vpop.permute.xlu0 %1118
          %1120 = vrot.lane.b32.xlu0 %v1093, 126
          %v1121 = vpop.permute.xlu0 %1120
          %1122 = vrot.lane.b32.xlu0 %v1094, 126
          %v1123 = vpop.permute.xlu0 %1122
          %1124 = vrot.lane.b32.xlu0 %v1095, 126
          %v1125 = vpop.permute.xlu0 %1124
          %1126 = vrot.lane.b32.xlu0 %v1096, 126
          %v1127 = vpop.permute.xlu0 %1126
          %1128 = vrot.lane.b32.xlu0 %v1097, 126
          %v1129 = vpop.permute.xlu0 %1128
          %1130 = vrot.lane.b32.xlu0 %v1098, 126
          %v1131 = vpop.permute.xlu0 %1130
          %1132 = vrot.lane.b32.xlu0 %v1099, 126
          %v1133 = vpop.permute.xlu0 %1132
          %1134 = vrot.lane.b32.xlu0 %v1100, 126
          %v1135 = vpop.permute.xlu0 %1134
          %1136 = vrot.lane.b32.xlu0 %v1101, 126
          %v1137 = vpop.permute.xlu0 %1136
          %vm1138 = vcmask 1031168
          %v1139 = vsel %vm1138, %v1115, %v1117
          %v1140 = vsel %vm1138, %v1117, %v1119
          %v1141 = vsel %vm1138, %v1121, %v1123
          %v1142 = vsel %vm1138, %v1123, %v1125
          %v1143 = vsel %vm1138, %v1127, %v1129
          %v1144 = vsel %vm1138, %v1129, %v1131
          %v1145 = vsel %vm1138, %v1133, %v1135
          %v1146 = vsel %vm1138, %v1135, %v1137
          %v1155 = vadd.f32 %v1057, %v1139
          %v1156 = vadd.f32 %v1058, %v1140
          %v1157 = vadd.f32 %v1059, %v1141
          %v1158 = vadd.f32 %v1060, %v1142
          %v1159 = vadd.f32 %v1061, %v1143
          %v1160 = vadd.f32 %v1062, %v1144
          %v1161 = vadd.f32 %v1063, %v1145
          %v1162 = vadd.f32 %v1064, %v1146
          %v1163 = vld [vmem:[%s2] sm:$0xff]
          %v1164 = vld [vmem:[%s2 + $0x8] sm:$0xff]
          %v1165 = vld [vmem:[%s2 + $0x10] sm:$0xff]
          %v1166 = vld [vmem:[%s2 + $0x18] sm:$0xff]
          %1168 = vset.pattern.permute.xlu0 0
          %1169 = vperm.xlu0 %1168, %v1163
          %v1170 = vpop.permute.xlu0 %1169
          %1173 = vset.pattern.permute.xlu0 0
          %1174 = vperm.xlu0 %1173, %v1164
          %v1175 = vpop.permute.xlu0 %1174
          %1178 = vset.pattern.permute.xlu0 0
          %1179 = vperm.xlu0 %1178, %v1165
          %v1180 = vpop.permute.xlu0 %1179
          %1183 = vset.pattern.permute.xlu0 0
          %1184 = vperm.xlu0 %1183, %v1166
          %v1185 = vpop.permute.xlu0 %1184
          %v1187 = vadd.f32 %v1155, %v1170
          %v1188 = vadd.f32 %v1156, %v1170
          %v1189 = vadd.f32 %v1157, %v1175
          %v1190 = vadd.f32 %v1158, %v1175
          %v1191 = vadd.f32 %v1159, %v1180
          %v1192 = vadd.f32 %v1160, %v1180
          %v1193 = vadd.f32 %v1161, %v1185
          %v1194 = vadd.f32 %v1162, %v1185
          %v1195 = vmax.f32 %v1187, 0.0
          %v1196 = vmax.f32 %v1188, 0.0
          %v1197 = vmax.f32 %v1189, 0.0
          %v1198 = vmax.f32 %v1190, 0.0
          %v1199 = vmax.f32 %v1191, 0.0
          %v1200 = vmax.f32 %v1192, 0.0
          %v1201 = vmax.f32 %v1193, 0.0
          %v1202 = vmax.f32 %v1194, 0.0
          %v1203 = vpack.c.bf16 %v1197, %v1195
          %v1204 = vpack.c.bf16 %v1198, %v1196
          %v1205 = vpack.c.bf16 %v1201, %v1199
          %v1206 = vpack.c.bf16 %v1202, %v1200
          %1211 = vrot.lane.b32.xlu0 %v1203, 3
          %v1212 = vpop.permute.xlu0 %1211
          %1213 = vrot.lane.b32.xlu0 %v1204, 3
          %v1214 = vpop.permute.xlu0 %1213
          %1215 = vrot.lane.b32.xlu0 %v1205, 3
          %v1216 = vpop.permute.xlu0 %1215
          %1217 = vrot.lane.b32.xlu0 %v1206, 3
          %v1218 = vpop.permute.xlu0 %1217
          %vm1219 = vcmask 23552
          %v1220 = vsel %vm1219, %v1212, %v1214
          %v1221 = vsel %vm1219, %v1216, %v1218
          %vm1224 = vcmask 23552
          %v1227 = vsel %vm1224, 0, %v1212
          %v1230 = vsel %vm1224, 0, %v1216
          %v1233 = vsel %vm1224, %v1214, 0
          %v1235 = vsel %vm1224, %v1218, 0
          %1240 = vrot.lane.b32.xlu0 %v1227, 127
          %v1241 = vpop.permute.xlu0 %1240
          %1242 = vrot.lane.b32.xlu0 %v1220, 127
          %v1243 = vpop.permute.xlu0 %1242
          %1244 = vrot.lane.b32.xlu0 %v1233, 127
          %v1245 = vpop.permute.xlu0 %1244
          %1246 = vrot.lane.b32.xlu0 %v1230, 127
          %v1247 = vpop.permute.xlu0 %1246
          %1248 = vrot.lane.b32.xlu0 %v1221, 127
          %v1249 = vpop.permute.xlu0 %1248
          %1250 = vrot.lane.b32.xlu0 %v1235, 127
          %v1251 = vpop.permute.xlu0 %1250
          %vm1252 = vcmask 1039360
          %v1253 = vsel %vm1252, %v1241, %v1243
          %v1254 = vsel %vm1252, %v1243, %v1245
          %v1255 = vsel %vm1252, %v1247, %v1249
          %v1256 = vsel %vm1252, %v1249, %v1251
          %1261 = vrot.lane.b32.xlu0 %v1227, 126
          %v1262 = vpop.permute.xlu0 %1261
          %1263 = vrot.lane.b32.xlu0 %v1220, 126
          %v1264 = vpop.permute.xlu0 %1263
          %1265 = vrot.lane.b32.xlu0 %v1233, 126
          %v1266 = vpop.permute.xlu0 %1265
          %1267 = vrot.lane.b32.xlu0 %v1230, 126
          %v1268 = vpop.permute.xlu0 %1267
          %1269 = vrot.lane.b32.xlu0 %v1221, 126
          %v1270 = vpop.permute.xlu0 %1269
          %1271 = vrot.lane.b32.xlu0 %v1235, 126
          %v1272 = vpop.permute.xlu0 %1271
          %vm1273 = vcmask 1031168
          %v1274 = vsel %vm1273, %v1262, %v1264
          %v1275 = vsel %vm1273, %v1264, %v1266
          %v1276 = vsel %vm1273, %v1268, %v1270
          %v1277 = vsel %vm1273, %v1270, %v1272
          %1282 = vrot.lane.b32.xlu0 %v1227, 125
          %v1283 = vpop.permute.xlu0 %1282
          %1284 = vrot.lane.b32.xlu0 %v1220, 125
          %v1285 = vpop.permute.xlu0 %1284
          %1286 = vrot.lane.b32.xlu0 %v1233, 125
          %v1287 = vpop.permute.xlu0 %1286
          %1288 = vrot.lane.b32.xlu0 %v1230, 125
          %v1289 = vpop.permute.xlu0 %1288
          %1290 = vrot.lane.b32.xlu0 %v1221, 125
          %v1291 = vpop.permute.xlu0 %1290
          %1292 = vrot.lane.b32.xlu0 %v1235, 125
          %v1293 = vpop.permute.xlu0 %1292
          %vm1294 = vcmask 1022976
          %v1295 = vsel %vm1294, %v1283, %v1285
          %v1296 = vsel %vm1294, %v1285, %v1287
          %v1297 = vsel %vm1294, %v1289, %v1291
          %v1298 = vsel %vm1294, %v1291, %v1293
          %1303 = vrot.lane.b32.xlu0 %v1227, 124
          %v1304 = vpop.permute.xlu0 %1303
          %1305 = vrot.lane.b32.xlu0 %v1220, 124
          %v1306 = vpop.permute.xlu0 %1305
          %1307 = vrot.lane.b32.xlu0 %v1233, 124
          %v1308 = vpop.permute.xlu0 %1307
          %1309 = vrot.lane.b32.xlu0 %v1230, 124
          %v1310 = vpop.permute.xlu0 %1309
          %1311 = vrot.lane.b32.xlu0 %v1221, 124
          %v1312 = vpop.permute.xlu0 %1311
          %1313 = vrot.lane.b32.xlu0 %v1235, 124
          %v1314 = vpop.permute.xlu0 %1313
          %vm1315 = vcmask 1014784
          %v1316 = vsel %vm1315, %v1304, %v1306
          %v1317 = vsel %vm1315, %v1306, %v1308
          %v1318 = vsel %vm1315, %v1310, %v1312
          %v1319 = vsel %vm1315, %v1312, %v1314
          %1324 = vrot.lane.b32.xlu0 %v1227, 123
          %v1325 = vpop.permute.xlu0 %1324
          %1326 = vrot.lane.b32.xlu0 %v1220, 123
          %v1327 = vpop.permute.xlu0 %1326
          %1328 = vrot.lane.b32.xlu0 %v1233, 123
          %v1329 = vpop.permute.xlu0 %1328
          %1330 = vrot.lane.b32.xlu0 %v1230, 123
          %v1331 = vpop.permute.xlu0 %1330
          %1332 = vrot.lane.b32.xlu0 %v1221, 123
          %v1333 = vpop.permute.xlu0 %1332
          %1334 = vrot.lane.b32.xlu0 %v1235, 123
          %v1335 = vpop.permute.xlu0 %1334
          %vm1336 = vcmask 1006592
          %v1337 = vsel %vm1336, %v1325, %v1327
          %v1338 = vsel %vm1336, %v1327, %v1329
          %v1339 = vsel %vm1336, %v1331, %v1333
          %v1340 = vsel %vm1336, %v1333, %v1335
          %1345 = vrot.lane.b32.xlu0 %v1227, 122
          %v1346 = vpop.permute.xlu0 %1345
          %1347 = vrot.lane.b32.xlu0 %v1220, 122
          %v1348 = vpop.permute.xlu0 %1347
          %1349 = vrot.lane.b32.xlu0 %v1233, 122
          %v1350 = vpop.permute.xlu0 %1349
          %1351 = vrot.lane.b32.xlu0 %v1230, 122
          %v1352 = vpop.permute.xlu0 %1351
          %1353 = vrot.lane.b32.xlu0 %v1221, 122
          %v1354 = vpop.permute.xlu0 %1353
          %1355 = vrot.lane.b32.xlu0 %v1235, 122
          %v1356 = vpop.permute.xlu0 %1355
          %vm1357 = vcmask 998400
          %v1358 = vsel %vm1357, %v1346, %v1348
          %v1359 = vsel %vm1357, %v1348, %v1350
          %v1360 = vsel %vm1357, %v1352, %v1354
          %v1361 = vsel %vm1357, %v1354, %v1356
          %v1366 = vld [vmem:[#allocation6] sm:$0xff]
          %v1367 = vld [vmem:[#allocation6 + $0x8] sm:$0xff]
          %v1368 = vld [vmem:[#allocation6 + $0x10] sm:$0xff]
          %v1369 = vld [vmem:[#allocation6 + $0x18] sm:$0xff]
          %v1370 = vld [vmem:[#allocation6 + $0x20] sm:$0xff]
          %v1371 = vld [vmem:[#allocation6 + $0x28] sm:$0xff]
          %v1372 = vld [vmem:[#allocation6 + $0x30] sm:$0xff]
          %v1373 = vld [vmem:[#allocation6 + $0x38] sm:$0xff]
          %v1374 = vld [vmem:[%s4] sm:$0xff]
          %v1375 = vld [vmem:[%s4 + $0x8] sm:$0xff]
          %v1376 = vld [vmem:[%s4 + $0x10] sm:$0xff]
          %v1377 = vld [vmem:[%s4 + $0x18] sm:$0xff]
          %v1378 = vld [vmem:[%s4 + $0x20] sm:$0xff]
          %v1379 = vld [vmem:[%s4 + $0x28] sm:$0xff]
          %v1380 = vld [vmem:[%s4 + $0x30] sm:$0xff]
          %v1381 = vld [vmem:[%s4 + $0x38] sm:$0xff]
          %1383 = vset.pattern.permute.xlu0 0
          %1384 = vperm.xlu0 %1383, %v1374
          %v1385 = vpop.permute.xlu0 %1384
          %1388 = vset.pattern.permute.xlu0 0
          %1389 = vperm.xlu0 %1388, %v1375
          %v1390 = vpop.permute.xlu0 %1389
          %1393 = vset.pattern.permute.xlu0 0
          %1394 = vperm.xlu0 %1393, %v1376
          %v1395 = vpop.permute.xlu0 %1394
          %1398 = vset.pattern.permute.xlu0 0
          %1399 = vperm.xlu0 %1398, %v1377
          %v1400 = vpop.permute.xlu0 %1399
          %1403 = vset.pattern.permute.xlu0 0
          %1404 = vperm.xlu0 %1403, %v1378
          %v1405 = vpop.permute.xlu0 %1404
          %1408 = vset.pattern.permute.xlu0 0
          %1409 = vperm.xlu0 %1408, %v1379
          %v1410 = vpop.permute.xlu0 %1409
          %1413 = vset.pattern.permute.xlu0 0
          %1414 = vperm.xlu0 %1413, %v1380
          %v1415 = vpop.permute.xlu0 %1414
          %1418 = vset.pattern.permute.xlu0 0
          %1419 = vperm.xlu0 %1418, %v1381
          %v1420 = vpop.permute.xlu0 %1419
          %v1430 = vunpack.c.l.b16 %v1366
          %v1431 = vunpack.c.h.b16 %v1366
          %v1432 = vunpack.c.l.b16 %v1367
          %v1433 = vunpack.c.h.b16 %v1367
          %v1434 = vunpack.c.l.b16 %v1368
          %v1435 = vunpack.c.h.b16 %v1368
          %v1436 = vunpack.c.l.b16 %v1369
          %v1437 = vunpack.c.h.b16 %v1369
          %v1438 = vunpack.c.l.b16 %v1370
          %v1439 = vunpack.c.h.b16 %v1370
          %v1440 = vunpack.c.l.b16 %v1371
          %v1441 = vunpack.c.h.b16 %v1371
          %v1442 = vunpack.c.l.b16 %v1372
          %v1443 = vunpack.c.h.b16 %v1372
          %v1444 = vunpack.c.l.b16 %v1373
          %v1445 = vunpack.c.h.b16 %v1373
          %v1446 = vpack.c.b16 %v1432, %v1430
          %v1447 = vpack.c.b16 %v1433, %v1431
          %v1448 = vpack.c.b16 %v1436, %v1434
          %v1449 = vpack.c.b16 %v1437, %v1435
          %v1450 = vpack.c.b16 %v1440, %v1438
          %v1451 = vpack.c.b16 %v1441, %v1439
          %v1452 = vpack.c.b16 %v1444, %v1442
          %v1453 = vpack.c.b16 %v1445, %v1443
          %vm1458 = vcmask 785408
          %v1460 = vsel %vm1458, %v1447, 0
          %v1463 = vsel %vm1458, %v1449, 0
          %v1466 = vsel %vm1458, %v1451, 0
          %v1469 = vsel %vm1458, %v1453, 0
          %1471 = vmatprep.subr.bf16.mxu0 %v1220
          %1472 = vmatpush1.bf16.msra.mxu0 %v1227
          %1473 = vmatprep.subr.bf16.mxu0 %v1221
          %1474 = vmatpush1.bf16.msra.mxu0 %v1230
          %1475 = vmatprep.subr.bf16.mxu0 %v1254
          %1476 = vmatpush1.bf16.msra.mxu0 %v1253
          %1477 = vmatprep.subr.bf16.mxu0 %v1256
          %1478 = vmatpush1.bf16.msra.mxu0 %v1255
          %1479 = vmatprep.subr.bf16.mxu0 %v1275
          %1480 = vmatpush1.bf16.msra.mxu0 %v1274
          %1481 = vmatprep.subr.bf16.mxu0 %v1277
          %1482 = vmatpush1.bf16.msra.mxu0 %v1276
          %1483 = vmatprep.subr.bf16.mxu0 %v1296
          %1484 = vmatpush1.bf16.msra.mxu0 %v1295
          %1485 = vmatprep.subr.bf16.mxu0 %v1298
          %1486 = vmatpush1.bf16.msra.mxu0 %v1297
          %1487 = vmatprep.subr.bf16.mxu0 %v1317
          %1488 = vmatpush1.bf16.msra.mxu0 %v1316
          %1489 = vmatprep.subr.bf16.mxu0 %v1319
          %1490 = vmatpush1.bf16.msra.mxu0 %v1318
          %1491 = vmatprep.subr.bf16.mxu0 %v1338
          %1492 = vmatpush1.bf16.msra.mxu0 %v1337
          %1493 = vmatprep.subr.bf16.mxu0 %v1340
          %1494 = vmatpush1.bf16.msra.mxu0 %v1339
          %1495 = vmatprep.subr.bf16.mxu0 %v1359
          %1496 = vmatpush1.bf16.msra.mxu0 %v1358
          %1497 = vmatprep.subr.bf16.mxu0 %v1361
          %1498 = vmatpush1.bf16.msra.mxu0 %v1360
          %1499 = vmatprep.subr.bf16.mxu0 0
          %1500 = vmatpush1.bf16.msra.mxu0 0
          %1501 = vmatprep.subr.bf16.mxu0 0
          %1502 = vmatpush1.bf16.msra.mxu0 0
          %1503 = vmatprep.mubr.bf16.mxu0 %v1460
          %1504 = vmatmul.mubr.bf16.gmra.mrb[0].mxu0 %v1446
          %v1505 = vpop.f32.mrb[0].mxu0
          %v1506 = vadd.f32 %v1385, %v1505
          %v1507 = vpop.f32.mrb[0].mxu0
          %v1508 = vadd.f32 %v1385, %v1507
          %v1509 = vpop.f32.mrb[0].mxu0
          %v1510 = vadd.f32 %v1390, %v1509
          %v1511 = vpop.f32.mrb[0].mxu0
          %v1512 = vadd.f32 %v1390, %v1511
          %1513 = vmatprep.mubr.bf16.mxu0 %v1463
          %1514 = vmatmul.mubr.bf16.gmra.mrb[0].mxu0 %v1448
          %v1515 = vpop.f32.mrb[0].mxu0
          %v1516 = vadd.f32 %v1395, %v1515
          %v1517 = vpop.f32.mrb[0].mxu0
          %v1518 = vadd.f32 %v1395, %v1517
          %v1519 = vpop.f32.mrb[0].mxu0
          %v1520 = vadd.f32 %v1400, %v1519
          %v1521 = vpop.f32.mrb[0].mxu0
          %v1522 = vadd.f32 %v1400, %v1521
          %1523 = vmatprep.mubr.bf16.mxu0 %v1466
          %1524 = vmatmul.mubr.bf16.gmra.mrb[0].mxu0 %v1450
          %v1525 = vpop.f32.mrb[0].mxu0
          %v1526 = vadd.f32 %v1405, %v1525
          %v1527 = vpop.f32.mrb[0].mxu0
          %v1528 = vadd.f32 %v1405, %v1527
          %v1529 = vpop.f32.mrb[0].mxu0
          %v1530 = vadd.f32 %v1410, %v1529
          %v1531 = vpop.f32.mrb[0].mxu0
          %v1532 = vadd.f32 %v1410, %v1531
          %1533 = vmatprep.mubr.bf16.mxu0 %v1469
          %1534 = vmatmul.mubr.bf16.gmra.mrb[0].mxu0 %v1452
          %v1535 = vpop.f32.mrb[0].mxu0
          %v1536 = vadd.f32 %v1415, %v1535
          %v1537 = vpop.f32.mrb[0].mxu0
          %v1538 = vadd.f32 %v1415, %v1537
          %v1539 = vpop.f32.mrb[0].mxu0
          %v1540 = vadd.f32 %v1420, %v1539
          %v1541 = vpop.f32.mrb[0].mxu0
          %v1542 = vadd.f32 %v1420, %v1541
          %1543 = vdwg.mxu0
          %v1544 = vmax.f32 %v1506, 0.0
          %v1545 = vmax.f32 %v1508, 0.0
          %v1546 = vmax.f32 %v1510, 0.0
          %v1547 = vmax.f32 %v1512, 0.0
          %v1548 = vmax.f32 %v1516, 0.0
          %v1549 = vmax.f32 %v1518, 0.0
          %v1550 = vmax.f32 %v1520, 0.0
          %v1551 = vmax.f32 %v1522, 0.0
          %v1552 = vmax.f32 %v1526, 0.0
          %v1553 = vmax.f32 %v1528, 0.0
          %v1554 = vmax.f32 %v1530, 0.0
          %v1555 = vmax.f32 %v1532, 0.0
          %v1556 = vmax.f32 %v1536, 0.0
          %v1557 = vmax.f32 %v1538, 0.0
          %v1558 = vmax.f32 %v1540, 0.0
          %v1559 = vmax.f32 %v1542, 0.0
          %v1560 = vpack.c.bf16 %v1546, %v1544
          %v1561 = vpack.c.bf16 %v1547, %v1545
          %v1562 = vpack.c.bf16 %v1550, %v1548
          %v1563 = vpack.c.bf16 %v1551, %v1549
          %v1564 = vpack.c.bf16 %v1554, %v1552
          %v1565 = vpack.c.bf16 %v1555, %v1553
          %v1566 = vpack.c.bf16 %v1558, %v1556
          %v1567 = vpack.c.bf16 %v1559, %v1557
          %1576 = vrot.lane.b32.xlu0 %v1560, 7
          %v1577 = vpop.permute.xlu0 %1576
          %1578 = vrot.lane.b32.xlu0 %v1561, 7
          %v1579 = vpop.permute.xlu0 %1578
          %1580 = vrot.lane.b32.xlu0 %v1562, 7
          %v1581 = vpop.permute.xlu0 %1580
          %1582 = vrot.lane.b32.xlu0 %v1563, 7
          %v1583 = vpop.permute.xlu0 %1582
          %1584 = vrot.lane.b32.xlu0 %v1564, 7
          %v1585 = vpop.permute.xlu0 %1584
          %1586 = vrot.lane.b32.xlu0 %v1565, 7
          %v1587 = vpop.permute.xlu0 %1586
          %1588 = vrot.lane.b32.xlu0 %v1566, 7
          %v1589 = vpop.permute.xlu0 %1588
          %1590 = vrot.lane.b32.xlu0 %v1567, 7
          %v1591 = vpop.permute.xlu0 %1590
          %vm1592 = vcmask 56320
          %v1593 = vsel %vm1592, %v1577, %v1579
          %v1594 = vsel %vm1592, %v1581, %v1583
          %v1595 = vsel %vm1592, %v1585, %v1587
          %v1596 = vsel %vm1592, %v1589, %v1591
          %vm1601 = vcmask 56320
          %v1603 = vsel %vm1601, 0, %v1577
          %v1606 = vsel %vm1601, 0, %v1581
          %v1609 = vsel %vm1601, 0, %v1585
          %v1612 = vsel %vm1601, 0, %v1589
          %v1615 = vsel %vm1601, %v1579, 0
          %v1617 = vsel %vm1601, %v1583, 0
          %v1619 = vsel %vm1601, %v1587, 0
          %v1621 = vsel %vm1601, %v1591, 0
          %1630 = vrot.lane.b32.xlu0 %v1603, 127
          %v1631 = vpop.permute.xlu0 %1630
          %1632 = vrot.lane.b32.xlu0 %v1593, 127
          %v1633 = vpop.permute.xlu0 %1632
          %1634 = vrot.lane.b32.xlu0 %v1615, 127
          %v1635 = vpop.permute.xlu0 %1634
          %1636 = vrot.lane.b32.xlu0 %v1606, 127
          %v1637 = vpop.permute.xlu0 %1636
          %1638 = vrot.lane.b32.xlu0 %v1594, 127
          %v1639 = vpop.permute.xlu0 %1638
          %1640 = vrot.lane.b32.xlu0 %v1617, 127
          %v1641 = vpop.permute.xlu0 %1640
          %1642 = vrot.lane.b32.xlu0 %v1609, 127
          %v1643 = vpop.permute.xlu0 %1642
          %1644 = vrot.lane.b32.xlu0 %v1595, 127
          %v1645 = vpop.permute.xlu0 %1644
          %1646 = vrot.lane.b32.xlu0 %v1619, 127
          %v1647 = vpop.permute.xlu0 %1646
          %1648 = vrot.lane.b32.xlu0 %v1612, 127
          %v1649 = vpop.permute.xlu0 %1648
          %1650 = vrot.lane.b32.xlu0 %v1596, 127
          %v1651 = vpop.permute.xlu0 %1650
          %1652 = vrot.lane.b32.xlu0 %v1621, 127
          %v1653 = vpop.permute.xlu0 %1652
          %v1654 = vsel %vm1252, %v1631, %v1633
          %v1655 = vsel %vm1252, %v1633, %v1635
          %v1656 = vsel %vm1252, %v1637, %v1639
          %v1657 = vsel %vm1252, %v1639, %v1641
          %v1658 = vsel %vm1252, %v1643, %v1645
          %v1659 = vsel %vm1252, %v1645, %v1647
          %v1660 = vsel %vm1252, %v1649, %v1651
          %v1661 = vsel %vm1252, %v1651, %v1653
          %1670 = vrot.lane.b32.xlu0 %v1603, 126
          %v1671 = vpop.permute.xlu0 %1670
          %1672 = vrot.lane.b32.xlu0 %v1593, 126
          %v1673 = vpop.permute.xlu0 %1672
          %1674 = vrot.lane.b32.xlu0 %v1615, 126
          %v1675 = vpop.permute.xlu0 %1674
          %1676 = vrot.lane.b32.xlu0 %v1606, 126
          %v1677 = vpop.permute.xlu0 %1676
          %1678 = vrot.lane.b32.xlu0 %v1594, 126
          %v1679 = vpop.permute.xlu0 %1678
          %1680 = vrot.lane.b32.xlu0 %v1617, 126
          %v1681 = vpop.permute.xlu0 %1680
          %1682 = vrot.lane.b32.xlu0 %v1609, 126
          %v1683 = vpop.permute.xlu0 %1682
          %1684 = vrot.lane.b32.xlu0 %v1595, 126
          %v1685 = vpop.permute.xlu0 %1684
          %1686 = vrot.lane.b32.xlu0 %v1619, 126
          %v1687 = vpop.permute.xlu0 %1686
          %1688 = vrot.lane.b32.xlu0 %v1612, 126
          %v1689 = vpop.permute.xlu0 %1688
          %1690 = vrot.lane.b32.xlu0 %v1596, 126
          %v1691 = vpop.permute.xlu0 %1690
          %1692 = vrot.lane.b32.xlu0 %v1621, 126
          %v1693 = vpop.permute.xlu0 %1692
          %v1694 = vsel %vm1273, %v1671, %v1673
          %v1695 = vsel %vm1273, %v1673, %v1675
          %v1696 = vsel %vm1273, %v1677, %v1679
          %v1697 = vsel %vm1273, %v1679, %v1681
          %v1698 = vsel %vm1273, %v1683, %v1685
          %v1699 = vsel %vm1273, %v1685, %v1687
          %v1700 = vsel %vm1273, %v1689, %v1691
          %v1701 = vsel %vm1273, %v1691, %v1693
          %1710 = vrot.lane.b32.xlu0 %v1603, 125
          %v1711 = vpop.permute.xlu0 %1710
          %1712 = vrot.lane.b32.xlu0 %v1593, 125
          %v1713 = vpop.permute.xlu0 %1712
          %1714 = vrot.lane.b32.xlu0 %v1615, 125
          %v1715 = vpop.permute.xlu0 %1714
          %1716 = vrot.lane.b32.xlu0 %v1606, 125
          %v1717 = vpop.permute.xlu0 %1716
          %1718 = vrot.lane.b32.xlu0 %v1594, 125
          %v1719 = vpop.permute.xlu0 %1718
          %1720 = vrot.lane.b32.xlu0 %v1617, 125
          %v1721 = vpop.permute.xlu0 %1720
          %1722 = vrot.lane.b32.xlu0 %v1609, 125
          %v1723 = vpop.permute.xlu0 %1722
          %1724 = vrot.lane.b32.xlu0 %v1595, 125
          %v1725 = vpop.permute.xlu0 %1724
          %1726 = vrot.lane.b32.xlu0 %v1619, 125
          %v1727 = vpop.permute.xlu0 %1726
          %1728 = vrot.lane.b32.xlu0 %v1612, 125
          %v1729 = vpop.permute.xlu0 %1728
          %1730 = vrot.lane.b32.xlu0 %v1596, 125
          %v1731 = vpop.permute.xlu0 %1730
          %1732 = vrot.lane.b32.xlu0 %v1621, 125
          %v1733 = vpop.permute.xlu0 %1732
          %v1734 = vsel %vm1294, %v1711, %v1713
          %v1735 = vsel %vm1294, %v1713, %v1715
          %v1736 = vsel %vm1294, %v1717, %v1719
          %v1737 = vsel %vm1294, %v1719, %v1721
          %v1738 = vsel %vm1294, %v1723, %v1725
          %v1739 = vsel %vm1294, %v1725, %v1727
          %v1740 = vsel %vm1294, %v1729, %v1731
          %v1741 = vsel %vm1294, %v1731, %v1733
          %1750 = vrot.lane.b32.xlu0 %v1603, 124
          %v1751 = vpop.permute.xlu0 %1750
          %1752 = vrot.lane.b32.xlu0 %v1593, 124
          %v1753 = vpop.permute.xlu0 %1752
          %1754 = vrot.lane.b32.xlu0 %v1615, 124
          %v1755 = vpop.permute.xlu0 %1754
          %1756 = vrot.lane.b32.xlu0 %v1606, 124
          %v1757 = vpop.permute.xlu0 %1756
          %1758 = vrot.lane.b32.xlu0 %v1594, 124
          %v1759 = vpop.permute.xlu0 %1758
          %1760 = vrot.lane.b32.xlu0 %v1617, 124
          %v1761 = vpop.permute.xlu0 %1760
          %1762 = vrot.lane.b32.xlu0 %v1609, 124
          %v1763 = vpop.permute.xlu0 %1762
          %1764 = vrot.lane.b32.xlu0 %v1595, 124
          %v1765 = vpop.permute.xlu0 %1764
          %1766 = vrot.lane.b32.xlu0 %v1619, 124
          %v1767 = vpop.permute.xlu0 %1766
          %1768 = vrot.lane.b32.xlu0 %v1612, 124
          %v1769 = vpop.permute.xlu0 %1768
          %1770 = vrot.lane.b32.xlu0 %v1596, 124
          %v1771 = vpop.permute.xlu0 %1770
          %1772 = vrot.lane.b32.xlu0 %v1621, 124
          %v1773 = vpop.permute.xlu0 %1772
          %v1774 = vsel %vm1315, %v1751, %v1753
          %v1775 = vsel %vm1315, %v1753, %v1755
          %v1776 = vsel %vm1315, %v1757, %v1759
          %v1777 = vsel %vm1315, %v1759, %v1761
          %v1778 = vsel %vm1315, %v1763, %v1765
          %v1779 = vsel %vm1315, %v1765, %v1767
          %v1780 = vsel %vm1315, %v1769, %v1771
          %v1781 = vsel %vm1315, %v1771, %v1773
          %1790 = vrot.lane.b32.xlu0 %v1603, 123
          %v1791 = vpop.permute.xlu0 %1790
          %1792 = vrot.lane.b32.xlu0 %v1593, 123
          %v1793 = vpop.permute.xlu0 %1792
          %1794 = vrot.lane.b32.xlu0 %v1615, 123
          %v1795 = vpop.permute.xlu0 %1794
          %1796 = vrot.lane.b32.xlu0 %v1606, 123
          %v1797 = vpop.permute.xlu0 %1796
          %1798 = vrot.lane.b32.xlu0 %v1594, 123
          %v1799 = vpop.permute.xlu0 %1798
          %1800 = vrot.lane.b32.xlu0 %v1617, 123
          %v1801 = vpop.permute.xlu0 %1800
          %1802 = vrot.lane.b32.xlu0 %v1609, 123
          %v1803 = vpop.permute.xlu0 %1802
          %1804 = vrot.lane.b32.xlu0 %v1595, 123
          %v1805 = vpop.permute.xlu0 %1804
          %1806 = vrot.lane.b32.xlu0 %v1619, 123
          %v1807 = vpop.permute.xlu0 %1806
          %1808 = vrot.lane.b32.xlu0 %v1612, 123
          %v1809 = vpop.permute.xlu0 %1808
          %1810 = vrot.lane.b32.xlu0 %v1596, 123
          %v1811 = vpop.permute.xlu0 %1810
          %1812 = vrot.lane.b32.xlu0 %v1621, 123
          %v1813 = vpop.permute.xlu0 %1812
          %v1814 = vsel %vm1336, %v1791, %v1793
          %v1815 = vsel %vm1336, %v1793, %v1795
          %v1816 = vsel %vm1336, %v1797, %v1799
          %v1817 = vsel %vm1336, %v1799, %v1801
          %v1818 = vsel %vm1336, %v1803, %v1805
          %v1819 = vsel %vm1336, %v1805, %v1807
          %v1820 = vsel %vm1336, %v1809, %v1811
          %v1821 = vsel %vm1336, %v1811, %v1813
          %1830 = vrot.lane.b32.xlu0 %v1603, 122
          %v1831 = vpop.permute.xlu0 %1830
          %1832 = vrot.lane.b32.xlu0 %v1593, 122
          %v1833 = vpop.permute.xlu0 %1832
          %1834 = vrot.lane.b32.xlu0 %v1615, 122
          %v1835 = vpop.permute.xlu0 %1834
          %1836 = vrot.lane.b32.xlu0 %v1606, 122
          %v1837 = vpop.permute.xlu0 %1836
          %1838 = vrot.lane.b32.xlu0 %v1594, 122
          %v1839 = vpop.permute.xlu0 %1838
          %1840 = vrot.lane.b32.xlu0 %v1617, 122
          %v1841 = vpop.permute.xlu0 %1840
          %1842 = vrot.lane.b32.xlu0 %v1609, 122
          %v1843 = vpop.permute.xlu0 %1842
          %1844 = vrot.lane.b32.xlu0 %v1595, 122
          %v1845 = vpop.permute.xlu0 %1844
          %1846 = vrot.lane.b32.xlu0 %v1619, 122
          %v1847 = vpop.permute.xlu0 %1846
          %1848 = vrot.lane.b32.xlu0 %v1612, 122
          %v1849 = vpop.permute.xlu0 %1848
          %1850 = vrot.lane.b32.xlu0 %v1596, 122
          %v1851 = vpop.permute.xlu0 %1850
          %1852 = vrot.lane.b32.xlu0 %v1621, 122
          %v1853 = vpop.permute.xlu0 %1852
          %v1854 = vsel %vm1357, %v1831, %v1833
          %v1855 = vsel %vm1357, %v1833, %v1835
          %v1856 = vsel %vm1357, %v1837, %v1839
          %v1857 = vsel %vm1357, %v1839, %v1841
          %v1858 = vsel %vm1357, %v1843, %v1845
          %v1859 = vsel %vm1357, %v1845, %v1847
          %v1860 = vsel %vm1357, %v1849, %v1851
          %v1861 = vsel %vm1357, %v1851, %v1853
          %1870 = vrot.lane.b32.xlu0 %v1603, 121
          %v1871 = vpop.permute.xlu0 %1870
          %1872 = vrot.lane.b32.xlu0 %v1593, 121
          %v1873 = vpop.permute.xlu0 %1872
          %1874 = vrot.lane.b32.xlu0 %v1615, 121
          %v1875 = vpop.permute.xlu0 %1874
          %1876 = vrot.lane.b32.xlu0 %v1606, 121
          %v1877 = vpop.permute.xlu0 %1876
          %1878 = vrot.lane.b32.xlu0 %v1594, 121
          %v1879 = vpop.permute.xlu0 %1878
          %1880 = vrot.lane.b32.xlu0 %v1617, 121
          %v1881 = vpop.permute.xlu0 %1880
          %1882 = vrot.lane.b32.xlu0 %v1609, 121
          %v1883 = vpop.permute.xlu0 %1882
          %1884 = vrot.lane.b32.xlu0 %v1595, 121
          %v1885 = vpop.permute.xlu0 %1884
          %1886 = vrot.lane.b32.xlu0 %v1619, 121
          %v1887 = vpop.permute.xlu0 %1886
          %1888 = vrot.lane.b32.xlu0 %v1612, 121
          %v1889 = vpop.permute.xlu0 %1888
          %1890 = vrot.lane.b32.xlu0 %v1596, 121
          %v1891 = vpop.permute.xlu0 %1890
          %1892 = vrot.lane.b32.xlu0 %v1621, 121
          %v1893 = vpop.permute.xlu0 %1892
          %vm1894 = vcmask 990208
          %v1895 = vsel %vm1894, %v1871, %v1873
          %v1896 = vsel %vm1894, %v1873, %v1875
          %v1897 = vsel %vm1894, %v1877, %v1879
          %v1898 = vsel %vm1894, %v1879, %v1881
          %v1899 = vsel %vm1894, %v1883, %v1885
          %v1900 = vsel %vm1894, %v1885, %v1887
          %v1901 = vsel %vm1894, %v1889, %v1891
          %v1902 = vsel %vm1894, %v1891, %v1893
          %1911 = vrot.lane.b32.xlu0 %v1603, 120
          %v1912 = vpop.permute.xlu0 %1911
          %1913 = vrot.lane.b32.xlu0 %v1593, 120
          %v1914 = vpop.permute.xlu0 %1913
          %1915 = vrot.lane.b32.xlu0 %v1615, 120
          %v1916 = vpop.permute.xlu0 %1915
          %1917 = vrot.lane.b32.xlu0 %v1606, 120
          %v1918 = vpop.permute.xlu0 %1917
          %1919 = vrot.lane.b32.xlu0 %v1594, 120
          %v1920 = vpop.permute.xlu0 %1919
          %1921 = vrot.lane.b32.xlu0 %v1617, 120
          %v1922 = vpop.permute.xlu0 %1921
          %1923 = vrot.lane.b32.xlu0 %v1609, 120
          %v1924 = vpop.permute.xlu0 %1923
          %1925 = vrot.lane.b32.xlu0 %v1595, 120
          %v1926 = vpop.permute.xlu0 %1925
          %1927 = vrot.lane.b32.xlu0 %v1619, 120
          %v1928 = vpop.permute.xlu0 %1927
          %1929 = vrot.lane.b32.xlu0 %v1612, 120
          %v1930 = vpop.permute.xlu0 %1929
          %1931 = vrot.lane.b32.xlu0 %v1596, 120
          %v1932 = vpop.permute.xlu0 %1931
          %1933 = vrot.lane.b32.xlu0 %v1621, 120
          %v1934 = vpop.permute.xlu0 %1933
          %vm1935 = vcmask 982016
          %v1936 = vsel %vm1935, %v1912, %v1914
          %v1937 = vsel %vm1935, %v1914, %v1916
          %v1938 = vsel %vm1935, %v1918, %v1920
          %v1939 = vsel %vm1935, %v1920, %v1922
          %v1940 = vsel %vm1935, %v1924, %v1926
          %v1941 = vsel %vm1935, %v1926, %v1928
          %v1942 = vsel %vm1935, %v1930, %v1932
          %v1943 = vsel %vm1935, %v1932, %v1934
          %1952 = vrot.lane.b32.xlu0 %v1603, 119
          %v1953 = vpop.permute.xlu0 %1952
          %1954 = vrot.lane.b32.xlu0 %v1593, 119
          %v1955 = vpop.permute.xlu0 %1954
          %1956 = vrot.lane.b32.xlu0 %v1615, 119
          %v1957 = vpop.permute.xlu0 %1956
          %1958 = vrot.lane.b32.xlu0 %v1606, 119
          %v1959 = vpop.permute.xlu0 %1958
          %1960 = vrot.lane.b32.xlu0 %v1594, 119
          %v1961 = vpop.permute.xlu0 %1960
          %1962 = vrot.lane.b32.xlu0 %v1617, 119
          %v1963 = vpop.permute.xlu0 %1962
          %1964 = vrot.lane.b32.xlu0 %v1609, 119
          %v1965 = vpop.permute.xlu0 %1964
          %1966 = vrot.lane.b32.xlu0 %v1595, 119
          %v1967 = vpop.permute.xlu0 %1966
          %1968 = vrot.lane.b32.xlu0 %v1619, 119
          %v1969 = vpop.permute.xlu0 %1968
          %1970 = vrot.lane.b32.xlu0 %v1612, 119
          %v1971 = vpop.permute.xlu0 %1970
          %1972 = vrot.lane.b32.xlu0 %v1596, 119
          %v1973 = vpop.permute.xlu0 %1972
          %1974 = vrot.lane.b32.xlu0 %v1621, 119
          %v1975 = vpop.permute.xlu0 %1974
          %vm1976 = vcmask 973824
          %v1977 = vsel %vm1976, %v1953, %v1955
          %v1978 = vsel %vm1976, %v1955, %v1957
          %v1979 = vsel %vm1976, %v1959, %v1961
          %v1980 = vsel %vm1976, %v1961, %v1963
          %v1981 = vsel %vm1976, %v1965, %v1967
          %v1982 = vsel %vm1976, %v1967, %v1969
          %v1983 = vsel %vm1976, %v1971, %v1973
          %v1984 = vsel %vm1976, %v1973, %v1975
          %1993 = vrot.lane.b32.xlu0 %v1603, 118
          %v1994 = vpop.permute.xlu0 %1993
          %1995 = vrot.lane.b32.xlu0 %v1593, 118
          %v1996 = vpop.permute.xlu0 %1995
          %1997 = vrot.lane.b32.xlu0 %v1615, 118
          %v1998 = vpop.permute.xlu0 %1997
          %1999 = vrot.lane.b32.xlu0 %v1606, 118
          %v2000 = vpop.permute.xlu0 %1999
          %2001 = vrot.lane.b32.xlu0 %v1594, 118
          %v2002 = vpop.permute.xlu0 %2001
          %2003 = vrot.lane.b32.xlu0 %v1617, 118
          %v2004 = vpop.permute.xlu0 %2003
          %2005 = vrot.lane.b32.xlu0 %v1609, 118
          %v2006 = vpop.permute.xlu0 %2005
          %2007 = vrot.lane.b32.xlu0 %v1595, 118
          %v2008 = vpop.permute.xlu0 %2007
          %2009 = vrot.lane.b32.xlu0 %v1619, 118
          %v2010 = vpop.permute.xlu0 %2009
          %2011 = vrot.lane.b32.xlu0 %v1612, 118
          %v2012 = vpop.permute.xlu0 %2011
          %2013 = vrot.lane.b32.xlu0 %v1596, 118
          %v2014 = vpop.permute.xlu0 %2013
          %2015 = vrot.lane.b32.xlu0 %v1621, 118
          %v2016 = vpop.permute.xlu0 %2015
          %vm2017 = vcmask 965632
          %v2018 = vsel %vm2017, %v1994, %v1996
          %v2019 = vsel %vm2017, %v1996, %v1998
          %v2020 = vsel %vm2017, %v2000, %v2002
          %v2021 = vsel %vm2017, %v2002, %v2004
          %v2022 = vsel %vm2017, %v2006, %v2008
          %v2023 = vsel %vm2017, %v2008, %v2010
          %v2024 = vsel %vm2017, %v2012, %v2014
          %v2025 = vsel %vm2017, %v2014, %v2016
          %2034 = vrot.lane.b32.xlu0 %v1603, 117
          %v2035 = vpop.permute.xlu0 %2034
          %2036 = vrot.lane.b32.xlu0 %v1593, 117
          %v2037 = vpop.permute.xlu0 %2036
          %2038 = vrot.lane.b32.xlu0 %v1615, 117
          %v2039 = vpop.permute.xlu0 %2038
          %2040 = vrot.lane.b32.xlu0 %v1606, 117
          %v2041 = vpop.permute.xlu0 %2040
          %2042 = vrot.lane.b32.xlu0 %v1594, 117
          %v2043 = vpop.permute.xlu0 %2042
          %2044 = vrot.lane.b32.xlu0 %v1617, 117
          %v2045 = vpop.permute.xlu0 %2044
          %2046 = vrot.lane.b32.xlu0 %v1609, 117
          %v2047 = vpop.permute.xlu0 %2046
          %2048 = vrot.lane.b32.xlu0 %v1595, 117
          %v2049 = vpop.permute.xlu0 %2048
          %2050 = vrot.lane.b32.xlu0 %v1619, 117
          %v2051 = vpop.permute.xlu0 %2050
          %2052 = vrot.lane.b32.xlu0 %v1612, 117
          %v2053 = vpop.permute.xlu0 %2052
          %2054 = vrot.lane.b32.xlu0 %v1596, 117
          %v2055 = vpop.permute.xlu0 %2054
          %2056 = vrot.lane.b32.xlu0 %v1621, 117
          %v2057 = vpop.permute.xlu0 %2056
          %vm2058 = vcmask 957440
          %v2059 = vsel %vm2058, %v2035, %v2037
          %v2060 = vsel %vm2058, %v2037, %v2039
          %v2061 = vsel %vm2058, %v2041, %v2043
          %v2062 = vsel %vm2058, %v2043, %v2045
          %v2063 = vsel %vm2058, %v2047, %v2049
          %v2064 = vsel %vm2058, %v2049, %v2051
          %v2065 = vsel %vm2058, %v2053, %v2055
          %v2066 = vsel %vm2058, %v2055, %v2057
          %2075 = vrot.lane.b32.xlu0 %v1603, 116
          %v2076 = vpop.permute.xlu0 %2075
          %2077 = vrot.lane.b32.xlu0 %v1593, 116
          %v2078 = vpop.permute.xlu0 %2077
          %2079 = vrot.lane.b32.xlu0 %v1615, 116
          %v2080 = vpop.permute.xlu0 %2079
          %2081 = vrot.lane.b32.xlu0 %v1606, 116
          %v2082 = vpop.permute.xlu0 %2081
          %2083 = vrot.lane.b32.xlu0 %v1594, 116
          %v2084 = vpop.permute.xlu0 %2083
          %2085 = vrot.lane.b32.xlu0 %v1617, 116
          %v2086 = vpop.permute.xlu0 %2085
          %2087 = vrot.lane.b32.xlu0 %v1609, 116
          %v2088 = vpop.permute.xlu0 %2087
          %2089 = vrot.lane.b32.xlu0 %v1595, 116
          %v2090 = vpop.permute.xlu0 %2089
          %2091 = vrot.lane.b32.xlu0 %v1619, 116
          %v2092 = vpop.permute.xlu0 %2091
          %2093 = vrot.lane.b32.xlu0 %v1612, 116
          %v2094 = vpop.permute.xlu0 %2093
          %2095 = vrot.lane.b32.xlu0 %v1596, 116
          %v2096 = vpop.permute.xlu0 %2095
          %2097 = vrot.lane.b32.xlu0 %v1621, 116
          %v2098 = vpop.permute.xlu0 %2097
          %vm2099 = vcmask 949248
          %v2100 = vsel %vm2099, %v2076, %v2078
          %v2101 = vsel %vm2099, %v2078, %v2080
          %v2102 = vsel %vm2099, %v2082, %v2084
          %v2103 = vsel %vm2099, %v2084, %v2086
          %v2104 = vsel %vm2099, %v2088, %v2090
          %v2105 = vsel %vm2099, %v2090, %v2092
          %v2106 = vsel %vm2099, %v2094, %v2096
          %v2107 = vsel %vm2099, %v2096, %v2098
          %2116 = vrot.lane.b32.xlu0 %v1603, 115
          %v2117 = vpop.permute.xlu0 %2116
          %2118 = vrot.lane.b32.xlu0 %v1593, 115
          %v2119 = vpop.permute.xlu0 %2118
          %2120 = vrot.lane.b32.xlu0 %v1615, 115
          %v2121 = vpop.permute.xlu0 %2120
          %2122 = vrot.lane.b32.xlu0 %v1606, 115
          %v2123 = vpop.permute.xlu0 %2122
          %2124 = vrot.lane.b32.xlu0 %v1594, 115
          %v2125 = vpop.permute.xlu0 %2124
          %2126 = vrot.lane.b32.xlu0 %v1617, 115
          %v2127 = vpop.permute.xlu0 %2126
          %2128 = vrot.lane.b32.xlu0 %v1609, 115
          %v2129 = vpop.permute.xlu0 %2128
          %2130 = vrot.lane.b32.xlu0 %v1595, 115
          %v2131 = vpop.permute.xlu0 %2130
          %2132 = vrot.lane.b32.xlu0 %v1619, 115
          %v2133 = vpop.permute.xlu0 %2132
          %2134 = vrot.lane.b32.xlu0 %v1612, 115
          %v2135 = vpop.permute.xlu0 %2134
          %2136 = vrot.lane.b32.xlu0 %v1596, 115
          %v2137 = vpop.permute.xlu0 %2136
          %2138 = vrot.lane.b32.xlu0 %v1621, 115
          %v2139 = vpop.permute.xlu0 %2138
          %vm2140 = vcmask 941056
          %v2141 = vsel %vm2140, %v2117, %v2119
          %v2142 = vsel %vm2140, %v2119, %v2121
          %v2143 = vsel %vm2140, %v2123, %v2125
          %v2144 = vsel %vm2140, %v2125, %v2127
          %v2145 = vsel %vm2140, %v2129, %v2131
          %v2146 = vsel %vm2140, %v2131, %v2133
          %v2147 = vsel %vm2140, %v2135, %v2137
          %v2148 = vsel %vm2140, %v2137, %v2139
          %2157 = vrot.lane.b32.xlu0 %v1603, 114
          %v2158 = vpop.permute.xlu0 %2157
          %2159 = vrot.lane.b32.xlu0 %v1593, 114
          %v2160 = vpop.permute.xlu0 %2159
          %2161 = vrot.lane.b32.xlu0 %v1615, 114
          %v2162 = vpop.permute.xlu0 %2161
          %2163 = vrot.lane.b32.xlu0 %v1606, 114
          %v2164 = vpop.permute.xlu0 %2163
          %2165 = vrot.lane.b32.xlu0 %v1594, 114
          %v2166 = vpop.permute.xlu0 %2165
          %2167 = vrot.lane.b32.xlu0 %v1617, 114
          %v2168 = vpop.permute.xlu0 %2167
          %2169 = vrot.lane.b32.xlu0 %v1609, 114
          %v2170 = vpop.permute.xlu0 %2169
          %2171 = vrot.lane.b32.xlu0 %v1595, 114
          %v2172 = vpop.permute.xlu0 %2171
          %2173 = vrot.lane.b32.xlu0 %v1619, 114
          %v2174 = vpop.permute.xlu0 %2173
          %2175 = vrot.lane.b32.xlu0 %v1612, 114
          %v2176 = vpop.permute.xlu0 %2175
          %2177 = vrot.lane.b32.xlu0 %v1596, 114
          %v2178 = vpop.permute.xlu0 %2177
          %2179 = vrot.lane.b32.xlu0 %v1621, 114
          %v2180 = vpop.permute.xlu0 %2179
          %vm2181 = vcmask 932864
          %v2182 = vsel %vm2181, %v2158, %v2160
          %v2183 = vsel %vm2181, %v2160, %v2162
          %v2184 = vsel %vm2181, %v2164, %v2166
          %v2185 = vsel %vm2181, %v2166, %v2168
          %v2186 = vsel %vm2181, %v2170, %v2172
          %v2187 = vsel %vm2181, %v2172, %v2174
          %v2188 = vsel %vm2181, %v2176, %v2178
          %v2189 = vsel %vm2181, %v2178, %v2180
          %v2198 = vld [vmem:[%s5] sm:$0xff]
          %v2199 = vld [vmem:[%s5 + $0x8] sm:$0xff]
          %v2200 = vld [vmem:[%s5 + $0x10] sm:$0xff]
          %v2201 = vld [vmem:[%s5 + $0x18] sm:$0xff]
          %v2202 = vld [vmem:[%s5 + $0x20] sm:$0xff]
          %v2203 = vld [vmem:[%s5 + $0x28] sm:$0xff]
          %v2204 = vld [vmem:[%s5 + $0x30] sm:$0xff]
          %v2205 = vld [vmem:[%s5 + $0x38] sm:$0xff]
          %v2206 = vld [vmem:[%s5 + $0x40] sm:$0xff]
          %v2207 = vld [vmem:[%s5 + $0x48] sm:$0xff]
          %v2208 = vld [vmem:[%s5 + $0x50] sm:$0xff]
          %v2209 = vld [vmem:[%s5 + $0x58] sm:$0xff]
          %v2210 = vld [vmem:[%s5 + $0x60] sm:$0xff]
          %v2211 = vld [vmem:[%s5 + $0x68] sm:$0xff]
          %v2212 = vld [vmem:[%s5 + $0x70] sm:$0xff]
          %v2213 = vld [vmem:[%s5 + $0x78] sm:$0xff]
          %v2214 = vld [vmem:[%s5 + $0x80] sm:$0xff]
          %v2215 = vld [vmem:[%s5 + $0x88] sm:$0xff]
          %v2216 = vld [vmem:[%s5 + $0x90] sm:$0xff]
          %v2217 = vld [vmem:[%s5 + $0x98] sm:$0xff]
          %v2218 = vld [vmem:[%s5 + $0xa0] sm:$0xff]
          %v2219 = vld [vmem:[%s5 + $0xa8] sm:$0xff]
          %v2220 = vld [vmem:[%s5 + $0xb0] sm:$0xff]
          %v2221 = vld [vmem:[%s5 + $0xb8] sm:$0xff]
          %v2222 = vld [vmem:[%s5 + $0xc0] sm:$0xff]
          %v2223 = vld [vmem:[%s5 + $0xc8] sm:$0xff]
          %v2224 = vld [vmem:[%s5 + $0xd0] sm:$0xff]
          %v2225 = vld [vmem:[%s5 + $0xd8] sm:$0xff]
          %v2226 = vld [vmem:[%s5 + $0xe0] sm:$0xff]
          %v2227 = vld [vmem:[%s5 + $0xe8] sm:$0xff]
          %v2228 = vld [vmem:[%s5 + $0xf0] sm:$0xff]
          %v2229 = vld [vmem:[%s5 + $0xf8] sm:$0xff]
          %v2230 = vld [vmem:[%s6] sm:$0xff]
          %v2231 = vld [vmem:[%s6 + $0x8] sm:$0xff]
          %v2232 = vld [vmem:[%s6 + $0x10] sm:$0xff]
          %v2233 = vld [vmem:[%s6 + $0x18] sm:$0xff]
          %v2234 = vld [vmem:[%s6 + $0x20] sm:$0xff]
          %v2235 = vld [vmem:[%s6 + $0x28] sm:$0xff]
          %v2236 = vld [vmem:[%s6 + $0x30] sm:$0xff]
          %v2237 = vld [vmem:[%s6 + $0x38] sm:$0xff]
          %2239 = vset.pattern.permute.xlu0 0
          %2240 = vperm.xlu0 %2239, %v2230
          %v2241 = vpop.permute.xlu0 %2240
          %2244 = vset.pattern.permute.xlu0 0
          %2245 = vperm.xlu0 %2244, %v2231
          %v2246 = vpop.permute.xlu0 %2245
          %2249 = vset.pattern.permute.xlu0 0
          %2250 = vperm.xlu0 %2249, %v2232
          %v2251 = vpop.permute.xlu0 %2250
          %2254 = vset.pattern.permute.xlu0 0
          %2255 = vperm.xlu0 %2254, %v2233
          %v2256 = vpop.permute.xlu0 %2255
          %2259 = vset.pattern.permute.xlu0 0
          %2260 = vperm.xlu0 %2259, %v2234
          %v2261 = vpop.permute.xlu0 %2260
          %2264 = vset.pattern.permute.xlu0 0
          %2265 = vperm.xlu0 %2264, %v2235
          %v2266 = vpop.permute.xlu0 %2265
          %2269 = vset.pattern.permute.xlu0 0
          %2270 = vperm.xlu0 %2269, %v2236
          %v2271 = vpop.permute.xlu0 %2270
          %2274 = vset.pattern.permute.xlu0 0
          %2275 = vperm.xlu0 %2274, %v2237
          %v2276 = vpop.permute.xlu0 %2275
          %v2310 = vunpack.c.l.b16 %v2198
          %v2311 = vunpack.c.h.b16 %v2198
          %v2312 = vunpack.c.l.b16 %v2199
          %v2313 = vunpack.c.h.b16 %v2199
          %v2314 = vunpack.c.l.b16 %v2200
          %v2315 = vunpack.c.h.b16 %v2200
          %v2316 = vunpack.c.l.b16 %v2201
          %v2317 = vunpack.c.h.b16 %v2201
          %v2318 = vunpack.c.l.b16 %v2202
          %v2319 = vunpack.c.h.b16 %v2202
          %v2320 = vunpack.c.l.b16 %v2203
          %v2321 = vunpack.c.h.b16 %v2203
          %v2322 = vunpack.c.l.b16 %v2204
          %v2323 = vunpack.c.h.b16 %v2204
          %v2324 = vunpack.c.l.b16 %v2205
          %v2325 = vunpack.c.h.b16 %v2205
          %v2326 = vunpack.c.l.b16 %v2206
          %v2327 = vunpack.c.h.b16 %v2206
          %v2328 = vunpack.c.l.b16 %v2207
          %v2329 = vunpack.c.h.b16 %v2207
          %v2330 = vunpack.c.l.b16 %v2208
          %v2331 = vunpack.c.h.b16 %v2208
          %v2332 = vunpack.c.l.b16 %v2209
          %v2333 = vunpack.c.h.b16 %v2209
          %v2334 = vunpack.c.l.b16 %v2210
          %v2335 = vunpack.c.h.b16 %v2210
          %v2336 = vunpack.c.l.b16 %v2211
          %v2337 = vunpack.c.h.b16 %v2211
          %v2338 = vunpack.c.l.b16 %v2212
          %v2339 = vunpack.c.h.b16 %v2212
          %v2340 = vunpack.c.l.b16 %v2213
          %v2341 = vunpack.c.h.b16 %v2213
          %v2342 = vunpack.c.l.b16 %v2214
          %v2343 = vunpack.c.h.b16 %v2214
          %v2344 = vunpack.c.l.b16 %v2215
          %v2345 = vunpack.c.h.b16 %v2215
          %v2346 = vunpack.c.l.b16 %v2216
          %v2347 = vunpack.c.h.b16 %v2216
          %v2348 = vunpack.c.l.b16 %v2217
          %v2349 = vunpack.c.h.b16 %v2217
          %v2350 = vunpack.c.l.b16 %v2218
          %v2351 = vunpack.c.h.b16 %v2218
          %v2352 = vunpack.c.l.b16 %v2219
          %v2353 = vunpack.c.h.b16 %v2219
          %v2354 = vunpack.c.l.b16 %v2220
          %v2355 = vunpack.c.h.b16 %v2220
          %v2356 = vunpack.c.l.b16 %v2221
          %v2357 = vunpack.c.h.b16 %v2221
          %v2358 = vunpack.c.l.b16 %v2222
          %v2359 = vunpack.c.h.b16 %v2222
          %v2360 = vunpack.c.l.b16 %v2223
          %v2361 = vunpack.c.h.b16 %v2223
          %v2362 = vunpack.c.l.b16 %v2224
          %v2363 = vunpack.c.h.b16 %v2224
          %v2364 = vunpack.c.l.b16 %v2225
          %v2365 = vunpack.c.h.b16 %v2225
          %v2366 = vunpack.c.l.b16 %v2226
          %v2367 = vunpack.c.h.b16 %v2226
          %v2368 = vunpack.c.l.b16 %v2227
          %v2369 = vunpack.c.h.b16 %v2227
          %v2370 = vunpack.c.l.b16 %v2228
          %v2371 = vunpack.c.h.b16 %v2228
          %v2372 = vunpack.c.l.b16 %v2229
          %v2373 = vunpack.c.h.b16 %v2229
          %v2374 = vpack.c.b16 %v2318, %v2310
          %v2375 = vpack.c.b16 %v2319, %v2311
          %v2376 = vpack.c.b16 %v2320, %v2312
          %v2377 = vpack.c.b16 %v2321, %v2313
          %v2378 = vpack.c.b16 %v2322, %v2314
          %v2379 = vpack.c.b16 %v2323, %v2315
          %v2380 = vpack.c.b16 %v2324, %v2316
          %v2381 = vpack.c.b16 %v2325, %v2317
          %v2382 = vpack.c.b16 %v2334, %v2326
          %v2383 = vpack.c.b16 %v2335, %v2327
          %v2384 = vpack.c.b16 %v2336, %v2328
          %v2385 = vpack.c.b16 %v2337, %v2329
          %v2386 = vpack.c.b16 %v2338, %v2330
          %v2387 = vpack.c.b16 %v2339, %v2331
          %v2388 = vpack.c.b16 %v2340, %v2332
          %v2389 = vpack.c.b16 %v2341, %v2333
          %v2390 = vpack.c.b16 %v2350, %v2342
          %v2391 = vpack.c.b16 %v2351, %v2343
          %v2392 = vpack.c.b16 %v2352, %v2344
          %v2393 = vpack.c.b16 %v2353, %v2345
          %v2394 = vpack.c.b16 %v2354, %v2346
          %v2395 = vpack.c.b16 %v2355, %v2347
          %v2396 = vpack.c.b16 %v2356, %v2348
          %v2397 = vpack.c.b16 %v2357, %v2349
          %v2398 = vpack.c.b16 %v2366, %v2358
          %v2399 = vpack.c.b16 %v2367, %v2359
          %v2400 = vpack.c.b16 %v2368, %v2360
          %v2401 = vpack.c.b16 %v2369, %v2361
          %v2402 = vpack.c.b16 %v2370, %v2362
          %v2403 = vpack.c.b16 %v2371, %v2363
          %v2404 = vpack.c.b16 %v2372, %v2364
          %v2405 = vpack.c.b16 %v2373, %v2365
          %vm2434 = vcmask 523264
          %v2436 = vsel %vm2434, %v2381, 0
          %v2439 = vsel %vm2434, %v2389, 0
          %v2442 = vsel %vm2434, %v2397, 0
          %v2445 = vsel %vm2434, %v2405, 0
          %2447 = vmatprep.subr.bf16.mxu0 %v1593
          %2448 = vmatpush1.bf16.msra.mxu0 %v1603
          %2449 = vmatprep.subr.bf16.mxu0 %v1594
          %2450 = vmatpush1.bf16.msra.mxu0 %v1606
          %2451 = vmatprep.subr.bf16.mxu0 %v1595
          %2452 = vmatpush1.bf16.msra.mxu0 %v1609
          %2453 = vmatprep.subr.bf16.mxu0 %v1596
          %2454 = vmatpush1.bf16.msra.mxu0 %v1612
          %2455 = vmatprep.subr.bf16.mxu0 %v1655
          %2456 = vmatpush1.bf16.msra.mxu0 %v1654
          %2457 = vmatprep.subr.bf16.mxu0 %v1657
          %2458 = vmatpush1.bf16.msra.mxu0 %v1656
          %2459 = vmatprep.subr.bf16.mxu0 %v1659
          %2460 = vmatpush1.bf16.msra.mxu0 %v1658
          %2461 = vmatprep.subr.bf16.mxu0 %v1661
          %2462 = vmatpush1.bf16.msra.mxu0 %v1660
          %2463 = vmatprep.subr.bf16.mxu0 %v1695
          %2464 = vmatpush1.bf16.msra.mxu0 %v1694
          %2465 = vmatprep.subr.bf16.mxu0 %v1697
          %2466 = vmatpush1.bf16.msra.mxu0 %v1696
          %2467 = vmatprep.subr.bf16.mxu0 %v1699
          %2468 = vmatpush1.bf16.msra.mxu0 %v1698
          %2469 = vmatprep.subr.bf16.mxu0 %v1701
          %2470 = vmatpush1.bf16.msra.mxu0 %v1700
          %2471 = vmatprep.subr.bf16.mxu0 %v1735
          %2472 = vmatpush1.bf16.msra.mxu0 %v1734
          %2473 = vmatprep.subr.bf16.mxu0 %v1737
          %2474 = vmatpush1.bf16.msra.mxu0 %v1736
          %2475 = vmatprep.subr.bf16.mxu0 %v1739
          %2476 = vmatpush1.bf16.msra.mxu0 %v1738
          %2477 = vmatprep.subr.bf16.mxu0 %v1741
          %2478 = vmatpush1.bf16.msra.mxu0 %v1740
          %2479 = vmatprep.mubr.bf16.mxu0 %v2375
          %2480 = vmatmul.mubr.bf16.gmra.mrb[0].mxu0 %v2374
          %v2481 = vpop.f32.mrb[0].mxu0
          %v2482 = vadd.f32 %v2241, %v2481
          %v2483 = vpop.f32.mrb[0].mxu0
          %v2484 = vadd.f32 %v2241, %v2483
          %v2485 = vpop.f32.mrb[0].mxu0
          %v2486 = vadd.f32 %v2246, %v2485
          %v2487 = vpop.f32.mrb[0].mxu0
          %v2488 = vadd.f32 %v2246, %v2487
          %2489 = vmatprep.mubr.bf16.mxu0 %v2383
          %2490 = vmatmul.mubr.bf16.gmra.mrb[0].mxu0 %v2382
          %v2491 = vpop.f32.mrb[0].mxu0
          %v2492 = vadd.f32 %v2251, %v2491
          %v2493 = vpop.f32.mrb[0].mxu0
          %v2494 = vadd.f32 %v2251, %v2493
          %v2495 = vpop.f32.mrb[0].mxu0
          %v2496 = vadd.f32 %v2256, %v2495
          %v2497 = vpop.f32.mrb[0].mxu0
          %v2498 = vadd.f32 %v2256, %v2497
          %2499 = vmatprep.mubr.bf16.mxu0 %v2391
          %2500 = vmatmul.mubr.bf16.gmra.mrb[0].mxu0 %v2390
          %v2501 = vpop.f32.mrb[0].mxu0
          %v2502 = vadd.f32 %v2261, %v2501
          %v2503 = vpop.f32.mrb[0].mxu0
          %v2504 = vadd.f32 %v2261, %v2503
          %v2505 = vpop.f32.mrb[0].mxu0
          %v2506 = vadd.f32 %v2266, %v2505
          %v2507 = vpop.f32.mrb[0].mxu0
          %v2508 = vadd.f32 %v2266, %v2507
          %2509 = vmatprep.mubr.bf16.mxu0 %v2399
          %2510 = vmatmul.mubr.bf16.gmra.mrb[0].mxu0 %v2398
          %v2511 = vpop.f32.mrb[0].mxu0
          %v2512 = vadd.f32 %v2271, %v2511
          %v2513 = vpop.f32.mrb[0].mxu0
          %v2514 = vadd.f32 %v2271, %v2513
          %v2515 = vpop.f32.mrb[0].mxu0
          %v2516 = vadd.f32 %v2276, %v2515
          %v2517 = vpop.f32.mrb[0].mxu0
          %v2518 = vadd.f32 %v2276, %v2517
          %2519 = vdwg.mxu0
          %2520 = vmatprep.subr.bf16.mxu0 %v1775
          %2521 = vmatpush1.bf16.msra.mxu0 %v1774
          %2522 = vmatprep.subr.bf16.mxu0 %v1777
          %2523 = vmatpush1.bf16.msra.mxu0 %v1776
          %2524 = vmatprep.subr.bf16.mxu0 %v1779
          %2525 = vmatpush1.bf16.msra.mxu0 %v1778
          %2526 = vmatprep.subr.bf16.mxu0 %v1781
          %2527 = vmatpush1.bf16.msra.mxu0 %v1780
          %2528 = vmatprep.subr.bf16.mxu0 %v1815
          %2529 = vmatpush1.bf16.msra.mxu0 %v1814
          %2530 = vmatprep.subr.bf16.mxu0 %v1817
          %2531 = vmatpush1.bf16.msra.mxu0 %v1816
          %2532 = vmatprep.subr.bf16.mxu0 %v1819
          %2533 = vmatpush1.bf16.msra.mxu0 %v1818
          %2534 = vmatprep.subr.bf16.mxu0 %v1821
          %2535 = vmatpush1.bf16.msra.mxu0 %v1820
          %2536 = vmatprep.subr.bf16.mxu0 %v1855
          %2537 = vmatpush1.bf16.msra.mxu0 %v1854
          %2538 = vmatprep.subr.bf16.mxu0 %v1857
          %2539 = vmatpush1.bf16.msra.mxu0 %v1856
          %2540 = vmatprep.subr.bf16.mxu0 %v1859
          %2541 = vmatpush1.bf16.msra.mxu0 %v1858
          %2542 = vmatprep.subr.bf16.mxu0 %v1861
          %2543 = vmatpush1.bf16.msra.mxu0 %v1860
          %2544 = vmatprep.subr.bf16.mxu0 %v1896
          %2545 = vmatpush1.bf16.msra.mxu0 %v1895
          %2546 = vmatprep.subr.bf16.mxu0 %v1898
          %2547 = vmatpush1.bf16.msra.mxu0 %v1897
          %2548 = vmatprep.subr.bf16.mxu0 %v1900
          %2549 = vmatpush1.bf16.msra.mxu0 %v1899
          %2550 = vmatprep.subr.bf16.mxu0 %v1902
          %2551 = vmatpush1.bf16.msra.mxu0 %v1901
          %2552 = vmatprep.mubr.bf16.mxu0 %v2377
          %2553 = vmatmul.mubr.bf16.gmra.mrb[0].mxu0 %v2376
          %v2554 = vpop.f32.mrb[0].mxu0
          %v2555 = vadd.f32 %v2482, %v2554
          %v2556 = vpop.f32.mrb[0].mxu0
          %v2557 = vadd.f32 %v2484, %v2556
          %v2558 = vpop.f32.mrb[0].mxu0
          %v2559 = vadd.f32 %v2486, %v2558
          %v2560 = vpop.f32.mrb[0].mxu0
          %v2561 = vadd.f32 %v2488, %v2560
          %2562 = vmatprep.mubr.bf16.mxu0 %v2385
          %2563 = vmatmul.mubr.bf16.gmra.mrb[0].mxu0 %v2384
          %v2564 = vpop.f32.mrb[0].mxu0
          %v2565 = vadd.f32 %v2492, %v2564
          %v2566 = vpop.f32.mrb[0].mxu0
          %v2567 = vadd.f32 %v2494, %v2566
          %v2568 = vpop.f32.mrb[0].mxu0
          %v2569 = vadd.f32 %v2496, %v2568
          %v2570 = vpop.f32.mrb[0].mxu0
          %v2571 = vadd.f32 %v2498, %v2570
          %2572 = vmatprep.mubr.bf16.mxu0 %v2393
          %2573 = vmatmul.mubr.bf16.gmra.mrb[0].mxu0 %v2392
          %v2574 = vpop.f32.mrb[0].mxu0
          %v2575 = vadd.f32 %v2502, %v2574
          %v2576 = vpop.f32.mrb[0].mxu0
          %v2577 = vadd.f32 %v2504, %v2576
          %v2578 = vpop.f32.mrb[0].mxu0
          %v2579 = vadd.f32 %v2506, %v2578
          %v2580 = vpop.f32.mrb[0].mxu0
          %v2581 = vadd.f32 %v2508, %v2580
          %2582 = vmatprep.mubr.bf16.mxu0 %v2401
          %2583 = vmatmul.mubr.bf16.gmra.mrb[0].mxu0 %v2400
          %v2584 = vpop.f32.mrb[0].mxu0
          %v2585 = vadd.f32 %v2512, %v2584
          %v2586 = vpop.f32.mrb[0].mxu0
          %v2587 = vadd.f32 %v2514, %v2586
          %v2588 = vpop.f32.mrb[0].mxu0
          %v2589 = vadd.f32 %v2516, %v2588
          %v2590 = vpop.f32.mrb[0].mxu0
          %v2591 = vadd.f32 %v2518, %v2590
          %2592 = vdwg.mxu0
          %2593 = vmatprep.subr.bf16.mxu0 %v1937
          %2594 = vmatpush1.bf16.msra.mxu0 %v1936
          %2595 = vmatprep.subr.bf16.mxu0 %v1939
          %2596 = vmatpush1.bf16.msra.mxu0 %v1938
          %2597 = vmatprep.subr.bf16.mxu0 %v1941
          %2598 = vmatpush1.bf16.msra.mxu0 %v1940
          %2599 = vmatprep.subr.bf16.mxu0 %v1943
          %2600 = vmatpush1.bf16.msra.mxu0 %v1942
          %2601 = vmatprep.subr.bf16.mxu0 %v1978
          %2602 = vmatpush1.bf16.msra.mxu0 %v1977
          %2603 = vmatprep.subr.bf16.mxu0 %v1980
          %2604 = vmatpush1.bf16.msra.mxu0 %v1979
          %2605 = vmatprep.subr.bf16.mxu0 %v1982
          %2606 = vmatpush1.bf16.msra.mxu0 %v1981
          %2607 = vmatprep.subr.bf16.mxu0 %v1984
          %2608 = vmatpush1.bf16.msra.mxu0 %v1983
          %2609 = vmatprep.subr.bf16.mxu0 %v2019
          %2610 = vmatpush1.bf16.msra.mxu0 %v2018
          %2611 = vmatprep.subr.bf16.mxu0 %v2021
          %2612 = vmatpush1.bf16.msra.mxu0 %v2020
          %2613 = vmatprep.subr.bf16.mxu0 %v2023
          %2614 = vmatpush1.bf16.msra.mxu0 %v2022
          %2615 = vmatprep.subr.bf16.mxu0 %v2025
          %2616 = vmatpush1.bf16.msra.mxu0 %v2024
          %2617 = vmatprep.subr.bf16.mxu0 %v2060
          %2618 = vmatpush1.bf16.msra.mxu0 %v2059
          %2619 = vmatprep.subr.bf16.mxu0 %v2062
          %2620 = vmatpush1.bf16.msra.mxu0 %v2061
          %2621 = vmatprep.subr.bf16.mxu0 %v2064
          %2622 = vmatpush1.bf16.msra.mxu0 %v2063
          %2623 = vmatprep.subr.bf16.mxu0 %v2066
          %2624 = vmatpush1.bf16.msra.mxu0 %v2065
          %2625 = vmatprep.mubr.bf16.mxu0 %v2379
          %2626 = vmatmul.mubr.bf16.gmra.mrb[0].mxu0 %v2378
          %v2627 = vpop.f32.mrb[0].mxu0
          %v2628 = vadd.f32 %v2555, %v2627
          %v2629 = vpop.f32.mrb[0].mxu0
          %v2630 = vadd.f32 %v2557, %v2629
          %v2631 = vpop.f32.mrb[0].mxu0
          %v2632 = vadd.f32 %v2559, %v2631
          %v2633 = vpop.f32.mrb[0].mxu0
          %v2634 = vadd.f32 %v2561, %v2633
          %2635 = vmatprep.mubr.bf16.mxu0 %v2387
          %2636 = vmatmul.mubr.bf16.gmra.mrb[0].mxu0 %v2386
          %v2637 = vpop.f32.mrb[0].mxu0
          %v2638 = vadd.f32 %v2565, %v2637
          %v2639 = vpop.f32.mrb[0].mxu0
          %v2640 = vadd.f32 %v2567, %v2639
          %v2641 = vpop.f32.mrb[0].mxu0
          %v2642 = vadd.f32 %v2569, %v2641
          %v2643 = vpop.f32.mrb[0].mxu0
          %v2644 = vadd.f32 %v2571, %v2643
          %2645 = vmatprep.mubr.bf16.mxu0 %v2395
          %2646 = vmatmul.mubr.bf16.gmra.mrb[0].mxu0 %v2394
          %v2647 = vpop.f32.mrb[0].mxu0
          %v2648 = vadd.f32 %v2575, %v2647
          %v2649 = vpop.f32.mrb[0].mxu0
          %v2650 = vadd.f32 %v2577, %v2649
          %v2651 = vpop.f32.mrb[0].mxu0
          %v2652 = vadd.f32 %v2579, %v2651
          %v2653 = vpop.f32.mrb[0].mxu0
          %v2654 = vadd.f32 %v2581, %v2653
          %2655 = vmatprep.mubr.bf16.mxu0 %v2403
          %2656 = vmatmul.mubr.bf16.gmra.mrb[0].mxu0 %v2402
          %v2657 = vpop.f32.mrb[0].mxu0
          %v2658 = vadd.f32 %v2585, %v2657
          %v2659 = vpop.f32.mrb[0].mxu0
          %v2660 = vadd.f32 %v2587, %v2659
          %v2661 = vpop.f32.mrb[0].mxu0
          %v2662 = vadd.f32 %v2589, %v2661
          %v2663 = vpop.f32.mrb[0].mxu0
          %v2664 = vadd.f32 %v2591, %v2663
          %2665 = vdwg.mxu0
          %2666 = vmatprep.subr.bf16.mxu0 %v2101
          %2667 = vmatpush1.bf16.msra.mxu0 %v2100
          %2668 = vmatprep.subr.bf16.mxu0 %v2103
          %2669 = vmatpush1.bf16.msra.mxu0 %v2102
          %2670 = vmatprep.subr.bf16.mxu0 %v2105
          %2671 = vmatpush1.bf16.msra.mxu0 %v2104
          %2672 = vmatprep.subr.bf16.mxu0 %v2107
          %2673 = vmatpush1.bf16.msra.mxu0 %v2106
          %2674 = vmatprep.subr.bf16.mxu0 %v2142
          %2675 = vmatpush1.bf16.msra.mxu0 %v2141
          %2676 = vmatprep.subr.bf16.mxu0 %v2144
          %2677 = vmatpush1.bf16.msra.mxu0 %v2143
          %2678 = vmatprep.subr.bf16.mxu0 %v2146
          %2679 = vmatpush1.bf16.msra.mxu0 %v2145
          %2680 = vmatprep.subr.bf16.mxu0 %v2148
          %2681 = vmatpush1.bf16.msra.mxu0 %v2147
          %2682 = vmatprep.subr.bf16.mxu0 %v2183
          %2683 = vmatpush1.bf16.msra.mxu0 %v2182
          %2684 = vmatprep.subr.bf16.mxu0 %v2185
          %2685 = vmatpush1.bf16.msra.mxu0 %v2184
          %2686 = vmatprep.subr.bf16.mxu0 %v2187
          %2687 = vmatpush1.bf16.msra.mxu0 %v2186
          %2688 = vmatprep.subr.bf16.mxu0 %v2189
          %2689 = vmatpush1.bf16.msra.mxu0 %v2188
          %2690 = vmatprep.subr.bf16.mxu0 0
          %2691 = vmatpush1.bf16.msra.mxu0 0
          %2692 = vmatprep.subr.bf16.mxu0 0
          %2693 = vmatpush1.bf16.msra.mxu0 0
          %2694 = vmatprep.subr.bf16.mxu0 0
          %2695 = vmatpush1.bf16.msra.mxu0 0
          %2696 = vmatprep.subr.bf16.mxu0 0
          %2697 = vmatpush1.bf16.msra.mxu0 0
          %2698 = vmatprep.mubr.bf16.mxu0 %v2436
          %2699 = vmatmul.mubr.bf16.gmra.mrb[0].mxu0 %v2380
          %v2700 = vpop.f32.mrb[0].mxu0
          %v2701 = vadd.f32 %v2628, %v2700
          %v2702 = vpop.f32.mrb[0].mxu0
          %v2703 = vadd.f32 %v2630, %v2702
          %v2704 = vpop.f32.mrb[0].mxu0
          %v2705 = vadd.f32 %v2632, %v2704
          %v2706 = vpop.f32.mrb[0].mxu0
          %v2707 = vadd.f32 %v2634, %v2706
          %2708 = vmatprep.mubr.bf16.mxu0 %v2439
          %2709 = vmatmul.mubr.bf16.gmra.mrb[0].mxu0 %v2388
          %v2710 = vpop.f32.mrb[0].mxu0
          %v2711 = vadd.f32 %v2638, %v2710
          %v2712 = vpop.f32.mrb[0].mxu0
          %v2713 = vadd.f32 %v2640, %v2712
          %v2714 = vpop.f32.mrb[0].mxu0
          %v2715 = vadd.f32 %v2642, %v2714
          %v2716 = vpop.f32.mrb[0].mxu0
          %v2717 = vadd.f32 %v2644, %v2716
          %2718 = vmatprep.mubr.bf16.mxu0 %v2442
          %2719 = vmatmul.mubr.bf16.gmra.mrb[0].mxu0 %v2396
          %v2720 = vpop.f32.mrb[0].mxu0
          %v2721 = vadd.f32 %v2648, %v2720
          %v2722 = vpop.f32.mrb[0].mxu0
          %v2723 = vadd.f32 %v2650, %v2722
          %v2724 = vpop.f32.mrb[0].mxu0
          %v2725 = vadd.f32 %v2652, %v2724
          %v2726 = vpop.f32.mrb[0].mxu0
          %v2727 = vadd.f32 %v2654, %v2726
          %2728 = vmatprep.mubr.bf16.mxu0 %v2445
          %2729 = vmatmul.mubr.bf16.gmra.mrb[0].mxu0 %v2404
          %v2730 = vpop.f32.mrb[0].mxu0
          %v2731 = vadd.f32 %v2658, %v2730
          %v2732 = vpop.f32.mrb[0].mxu0
          %v2733 = vadd.f32 %v2660, %v2732
          %v2734 = vpop.f32.mrb[0].mxu0
          %v2735 = vadd.f32 %v2662, %v2734
          %v2736 = vpop.f32.mrb[0].mxu0
          %v2737 = vadd.f32 %v2664, %v2736
          %2738 = vdwg.mxu0
          %v2739 = vmax.f32 %v2701, 0.0
          %v2740 = vmax.f32 %v2703, 0.0
          %v2741 = vmax.f32 %v2705, 0.0
          %v2742 = vmax.f32 %v2707, 0.0
          %v2743 = vmax.f32 %v2711, 0.0
          %v2744 = vmax.f32 %v2713, 0.0
          %v2745 = vmax.f32 %v2715, 0.0
          %v2746 = vmax.f32 %v2717, 0.0
          %v2747 = vmax.f32 %v2721, 0.0
          %v2748 = vmax.f32 %v2723, 0.0
          %v2749 = vmax.f32 %v2725, 0.0
          %v2750 = vmax.f32 %v2727, 0.0
          %v2751 = vmax.f32 %v2731, 0.0
          %v2752 = vmax.f32 %v2733, 0.0
          %v2753 = vmax.f32 %v2735, 0.0
          %v2754 = vmax.f32 %v2737, 0.0
          %v2755 = vadd.f32 %v2739, %v2741
          %v2756 = vadd.f32 %v2755, %v2743
          %v2757 = vadd.f32 %v2756, %v2745
          %v2758 = vadd.f32 %v2757, %v2747
          %v2759 = vadd.f32 %v2758, %v2749
          %v2760 = vadd.f32 %v2759, %v2751
          %v2761 = vadd.f32 %v2760, %v2753
          %v2762 = vrot.slane %v2761, 4
          %v2763 = vadd.f32 %v2761, %v2762
          %v2764 = vrot.slane %v2763, 2
          %v2765 = vadd.f32 %v2763, %v2764
          %v2766 = vrot.slane %v2765, 1
          %v2767 = vadd.f32 %v2765, %v2766
          %v2768 = vadd.f32 %v2740, %v2742
          %v2769 = vadd.f32 %v2768, %v2744
          %v2770 = vadd.f32 %v2769, %v2746
          %v2771 = vadd.f32 %v2770, %v2748
          %v2772 = vadd.f32 %v2771, %v2750
          %v2773 = vadd.f32 %v2772, %v2752
          %v2774 = vadd.f32 %v2773, %v2754
          %v2775 = vrot.slane %v2774, 4
          %v2776 = vadd.f32 %v2774, %v2775
          %v2777 = vrot.slane %v2776, 2
          %v2778 = vadd.f32 %v2776, %v2777
          %v2779 = vrot.slane %v2778, 1
          %v2780 = vadd.f32 %v2778, %v2779
          %v2781 = vrcp.pop 64.0
          %v2782 = vmul.f32 %v2767, %v2781
          %v2783 = vmul.f32 %v2780, %v2781
          %v2786 = vcombine.low %v2782, %v2783
          %v2788 = vunpack.c.l.s4 1966171168
          %v2789 = vunpack.c.0.s8 %v2788
          %v2790 = vlaneseq
          %v2791 = vshrl.u32 %v2790, 7
          %v2792 = vsub.s32 %v2789, %v2791
          %v2793 = vrot.slane %v2786, %v2792
          %v2795 = vunpack.c.l.s4 1966171168
          %v2796 = vunpack.c.0.s8 %v2795
          %v2797 = vlaneseq
          %v2798 = vshrl.u32 %v2797, 7
          %v2799 = vsub.s32 %v2796, %v2798
          %v2800 = vrot.slane %v2793, %v2799
          %v2802 = vlaneseq
          %vm2803 = vcmp.ge.s32.totalorder %v2802, 0
          %vm2804 = vcmp.lt.s32.totalorder %v2802, 256
          %vm2805 = vmand %vm2803, %vm2804
          %s2806 = scalar_lea.vmem [#allocation2], %s892
          %2807 = vst.msk [vmem:[%s2806] ss:$8 sm:$0x3] %vm2805, %v2800
          %2808 = vst.msk [vmem:[%s2806] ss:$8 sm:$0x0] %vm2805, %v2800
        $region149: #{tpu_custom_call.1} parent=127 // loop_footer
          %s885 = sadd.s32 1, %s881
        $region150: #{tpu_custom_call.1} parent=127 // loop_footer_branch
          %880 = sbr.rel target = $region146
        $region151: #{tpu_custom_call.1} parent=127 // loop_exit
          _
        %v2809 = vld [vmem:[#allocation2] sm:$0xff]
        %v2810 = vld [vmem:[#allocation2 + $0x8] sm:$0xff]
        %v2811 = vpack.c.bf16 %v2809, %v2809
        %v2812 = vpack.c.bf16 %v2810, %v2810
        %v2813 = vld [vmem:[%s7] sm:$0xf]
        %v2814 = vld [vmem:[%s7 + $0x4] sm:$0xf]
        %v2815 = vld [vmem:[%s7 + $0x8] sm:$0xf]
        %v2816 = vld [vmem:[%s7 + $0xc] sm:$0xf]
        %v2817 = vld [vmem:[%s7 + $0x10] sm:$0xf]
        %v2818 = vld [vmem:[%s7 + $0x14] sm:$0xf]
        %v2819 = vld [vmem:[%s7 + $0x18] sm:$0xf]
        %v2820 = vld [vmem:[%s7 + $0x1c] sm:$0xf]
        %v2821 = vld [vmem:[%s7 + $0x20] sm:$0xf]
        %v2822 = vld [vmem:[%s7 + $0x24] sm:$0xf]
        %v2823 = vld [vmem:[%s7 + $0x28] sm:$0xf]
        %v2824 = vld [vmem:[%s7 + $0x2c] sm:$0xf]
        %v2825 = vld [vmem:[%s7 + $0x30] sm:$0xf]
        %v2826 = vld [vmem:[%s7 + $0x34] sm:$0xf]
        %v2827 = vld [vmem:[%s7 + $0x38] sm:$0xf]
        %v2828 = vld [vmem:[%s7 + $0x3c] sm:$0xf]
        %v2829 = vld [vmem:[%s7 + $0x40] sm:$0xf]
        %v2830 = vld [vmem:[%s7 + $0x44] sm:$0xf]
        %v2831 = vld [vmem:[%s7 + $0x48] sm:$0xf]
        %v2832 = vld [vmem:[%s7 + $0x4c] sm:$0xf]
        %v2833 = vld [vmem:[%s7 + $0x50] sm:$0xf]
        %v2834 = vld [vmem:[%s7 + $0x54] sm:$0xf]
        %v2835 = vld [vmem:[%s7 + $0x58] sm:$0xf]
        %v2836 = vld [vmem:[%s7 + $0x5c] sm:$0xf]
        %v2837 = vld [vmem:[%s7 + $0x60] sm:$0xf]
        %v2838 = vld [vmem:[%s7 + $0x64] sm:$0xf]
        %v2839 = vld [vmem:[%s7 + $0x68] sm:$0xf]
        %v2840 = vld [vmem:[%s7 + $0x6c] sm:$0xf]
        %v2841 = vld [vmem:[%s7 + $0x70] sm:$0xf]
        %v2842 = vld [vmem:[%s7 + $0x74] sm:$0xf]
        %v2843 = vld [vmem:[%s7 + $0x78] sm:$0xf]
        %v2844 = vld [vmem:[%s7 + $0x7c] sm:$0xf]
        %v2845 = vld [vmem:[#allocation8] sm:$0x1]
        %v2847 = vlaneseq
        %v2848 = vshrl.u32 %v2847, 7
        %v2849 = vsub.s32 0, %v2848
        %v2850 = vrot.slane %v2845, %v2849
        %v2884 = vunpack.c.l.b16 %v2813
        %v2885 = vunpack.c.l.b16 %v2814
        %v2886 = vunpack.c.l.b16 %v2815
        %v2887 = vunpack.c.l.b16 %v2816
        %v2888 = vunpack.c.l.b16 %v2817
        %v2889 = vunpack.c.l.b16 %v2818
        %v2890 = vunpack.c.l.b16 %v2819
        %v2891 = vunpack.c.l.b16 %v2820
        %v2892 = vunpack.c.l.b16 %v2821
        %v2893 = vunpack.c.l.b16 %v2822
        %v2894 = vunpack.c.l.b16 %v2823
        %v2895 = vunpack.c.l.b16 %v2824
        %v2896 = vunpack.c.l.b16 %v2825
        %v2897 = vunpack.c.l.b16 %v2826
        %v2898 = vunpack.c.l.b16 %v2827
        %v2899 = vunpack.c.l.b16 %v2828
        %v2900 = vunpack.c.l.b16 %v2829
        %v2901 = vunpack.c.l.b16 %v2830
        %v2902 = vunpack.c.l.b16 %v2831
        %v2903 = vunpack.c.l.b16 %v2832
        %v2904 = vunpack.c.l.b16 %v2833
        %v2905 = vunpack.c.l.b16 %v2834
        %v2906 = vunpack.c.l.b16 %v2835
        %v2907 = vunpack.c.l.b16 %v2836
        %v2908 = vunpack.c.l.b16 %v2837
        %v2909 = vunpack.c.l.b16 %v2838
        %v2910 = vunpack.c.l.b16 %v2839
        %v2911 = vunpack.c.l.b16 %v2840
        %v2912 = vunpack.c.l.b16 %v2841
        %v2913 = vunpack.c.l.b16 %v2842
        %v2914 = vunpack.c.l.b16 %v2843
        %v2915 = vunpack.c.l.b16 %v2844
        %v2916 = vpack.c.b16 %v2885, %v2884
        %v2917 = vpack.c.b16 %v2887, %v2886
        %v2918 = vpack.c.b16 %v2889, %v2888
        %v2919 = vpack.c.b16 %v2891, %v2890
        %v2920 = vpack.c.b16 %v2893, %v2892
        %v2921 = vpack.c.b16 %v2895, %v2894
        %v2922 = vpack.c.b16 %v2897, %v2896
        %v2923 = vpack.c.b16 %v2899, %v2898
        %v2924 = vpack.c.b16 %v2901, %v2900
        %v2925 = vpack.c.b16 %v2903, %v2902
        %v2926 = vpack.c.b16 %v2905, %v2904
        %v2927 = vpack.c.b16 %v2907, %v2906
        %v2928 = vpack.c.b16 %v2909, %v2908
        %v2929 = vpack.c.b16 %v2911, %v2910
        %v2930 = vpack.c.b16 %v2913, %v2912
        %v2931 = vpack.c.b16 %v2915, %v2914
        %2948 = vmatprep.subr.bf16.mxu0 0
        %2949 = vmatpush1.bf16.msra.mxu0 %v2916
        %2950 = vmatprep.subr.bf16.mxu0 0
        %2951 = vmatpush1.bf16.msra.mxu0 %v2917
        %2952 = vmatprep.subr.bf16.mxu0 0
        %2953 = vmatpush1.bf16.msra.mxu0 %v2918
        %2954 = vmatprep.subr.bf16.mxu0 0
        %2955 = vmatpush1.bf16.msra.mxu0 %v2919
        %2956 = vmatprep.subr.bf16.mxu0 0
        %2957 = vmatpush1.bf16.msra.mxu0 %v2920
        %2958 = vmatprep.subr.bf16.mxu0 0
        %2959 = vmatpush1.bf16.msra.mxu0 %v2921
        %2960 = vmatprep.subr.bf16.mxu0 0
        %2961 = vmatpush1.bf16.msra.mxu0 %v2922
        %2962 = vmatprep.subr.bf16.mxu0 0
        %2963 = vmatpush1.bf16.msra.mxu0 %v2923
        %2964 = vmatprep.subr.bf16.mxu0 0
        %2965 = vmatpush1.bf16.msra.mxu0 %v2924
        %2966 = vmatprep.subr.bf16.mxu0 0
        %2967 = vmatpush1.bf16.msra.mxu0 %v2925
        %2968 = vmatprep.subr.bf16.mxu0 0
        %2969 = vmatpush1.bf16.msra.mxu0 %v2926
        %2970 = vmatprep.subr.bf16.mxu0 0
        %2971 = vmatpush1.bf16.msra.mxu0 %v2927
        %2972 = vmatprep.subr.bf16.mxu0 0
        %2973 = vmatpush1.bf16.msra.mxu0 %v2928
        %2974 = vmatprep.subr.bf16.mxu0 0
        %2975 = vmatpush1.bf16.msra.mxu0 %v2929
        %2976 = vmatprep.subr.bf16.mxu0 0
        %2977 = vmatpush1.bf16.msra.mxu0 %v2930
        %2978 = vmatprep.subr.bf16.mxu0 0
        %2979 = vmatpush1.bf16.msra.mxu0 %v2931
        %2980 = vmatprep.mubr.bf16.mxu0 %v2812
        %2981 = vmatmul.mubr.bf16.gmra.mrb[0].mxu0 %v2811
        %v2982 = vpop.f32.mrb[0].mxu0
        %v2983 = vadd.f32 %v2850, %v2982
        %v2984 = vpop.f32.mrb[0].mxu0
        %v2985 = vpop.f32.mrb[0].mxu0
        %v2986 = vpop.f32.mrb[0].mxu0
        %2987 = vdwg.mxu0
        %v2988 = vmax.f32 %v2983, 0.0
        %v2989 = vld [vmem:[%s9] sm:$0xff]
        %v2990 = vadd.f32 %v2988, %v2989
        %v2991 = vld [vmem:[#allocation9] sm:$0xff]
        %v2992 = vld [vmem:[#allocation9 + $0x8] sm:$0xff]
        %v2993 = vld [vmem:[#allocation9 + $0x10] sm:$0xff]
        %v2994 = vld [vmem:[#allocation9 + $0x18] sm:$0xff]
        %v2995 = vld [vmem:[#allocation9 + $0x20] sm:$0xff]
        %v2996 = vld [vmem:[#allocation9 + $0x28] sm:$0xff]
        %v2997 = vld [vmem:[#allocation9 + $0x30] sm:$0xff]
        %v2998 = vld [vmem:[#allocation9 + $0x38] sm:$0xff]
        %v2999 = vpack.c.bf16 %v2990, %v2990
        %v3000 = vld [vmem:[%s11] sm:$0xff]
        %v3001 = vld [vmem:[%s11 + $0x8] sm:$0xff]
        %v3002 = vld [vmem:[%s11 + $0x10] sm:$0xff]
        %v3003 = vld [vmem:[%s11 + $0x18] sm:$0xff]
        %v3004 = vld [vmem:[%s11 + $0x20] sm:$0xff]
        %v3005 = vld [vmem:[%s11 + $0x28] sm:$0xff]
        %v3006 = vld [vmem:[%s11 + $0x30] sm:$0xff]
        %v3007 = vld [vmem:[%s11 + $0x38] sm:$0xff]
        %v3008 = vld [vmem:[%s12] sm:$0x3]
        %v3010 = vlaneseq
        %v3011 = vshrl.u32 %v3010, 7
        %v3012 = vsub.s32 0, %v3011
        %v3013 = vrot.slane %v3008, %v3012
        %v3014 = vlaneseq
        %v3015 = vshrl.u32 %v3014, 7
        %v3016 = vsub.s32 1, %v3015
        %v3017 = vrot.slane %v3008, %v3016
        %v3028 = vunpack.c.l.b16 %v3000
        %v3029 = vunpack.c.h.b16 %v3000
        %v3030 = vunpack.c.l.b16 %v3001
        %v3031 = vunpack.c.h.b16 %v3001
        %v3032 = vunpack.c.l.b16 %v3002
        %v3033 = vunpack.c.h.b16 %v3002
        %v3034 = vunpack.c.l.b16 %v3003
        %v3035 = vunpack.c.h.b16 %v3003
        %v3036 = vunpack.c.l.b16 %v3004
        %v3037 = vunpack.c.h.b16 %v3004
        %v3038 = vunpack.c.l.b16 %v3005
        %v3039 = vunpack.c.h.b16 %v3005
        %v3040 = vunpack.c.l.b16 %v3006
        %v3041 = vunpack.c.h.b16 %v3006
        %v3042 = vunpack.c.l.b16 %v3007
        %v3043 = vunpack.c.h.b16 %v3007
        %v3044 = vpack.c.b16 %v3030, %v3028
        %v3045 = vpack.c.b16 %v3031, %v3029
        %v3046 = vpack.c.b16 %v3034, %v3032
        %v3047 = vpack.c.b16 %v3035, %v3033
        %v3048 = vpack.c.b16 %v3038, %v3036
        %v3049 = vpack.c.b16 %v3039, %v3037
        %v3050 = vpack.c.b16 %v3042, %v3040
        %v3051 = vpack.c.b16 %v3043, %v3041
        %vm3060 = vcmask 523264
        %v3062 = vsel %vm3060, %v2999, 0
        %3064 = vmatprep.subr.bf16.mxu0 %v3045
        %3065 = vmatpush1.bf16.msra.mxu0 %v3044
        %3066 = vmatprep.subr.bf16.mxu0 %v3047
        %3067 = vmatpush1.bf16.msra.mxu0 %v3046
        %3068 = vmatprep.subr.bf16.mxu0 %v3049
        %3069 = vmatpush1.bf16.msra.mxu0 %v3048
        %3070 = vmatprep.subr.bf16.mxu0 %v3051
        %3071 = vmatpush1.bf16.msra.mxu0 %v3050
        %3072 = vmatprep.subr.bf16.mxu0 0
        %3073 = vmatpush1.bf16.msra.mxu0 0
        %3074 = vmatprep.subr.bf16.mxu0 0
        %3075 = vmatpush1.bf16.msra.mxu0 0
        %3076 = vmatprep.subr.bf16.mxu0 0
        %3077 = vmatpush1.bf16.msra.mxu0 0
        %3078 = vmatprep.subr.bf16.mxu0 0
        %3079 = vmatpush1.bf16.msra.mxu0 0
        %3080 = vmatprep.subr.bf16.mxu0 0
        %3081 = vmatpush1.bf16.msra.mxu0 0
        %3082 = vmatprep.subr.bf16.mxu0 0
        %3083 = vmatpush1.bf16.msra.mxu0 0
        %3084 = vmatprep.subr.bf16.mxu0 0
        %3085 = vmatpush1.bf16.msra.mxu0 0
        %3086 = vmatprep.subr.bf16.mxu0 0
        %3087 = vmatpush1.bf16.msra.mxu0 0
        %3088 = vmatprep.subr.bf16.mxu0 0
        %3089 = vmatpush1.bf16.msra.mxu0 0
        %3090 = vmatprep.subr.bf16.mxu0 0
        %3091 = vmatpush1.bf16.msra.mxu0 0
        %3092 = vmatprep.subr.bf16.mxu0 0
        %3093 = vmatpush1.bf16.msra.mxu0 0
        %3094 = vmatprep.subr.bf16.mxu0 0
        %3095 = vmatpush1.bf16.msra.mxu0 0
        %3096 = vmatprep.mubr.bf16.mxu0 0
        %3097 = vmatmul.mubr.bf16.gmra.mrb[0].mxu0 %v3062
        %v3098 = vpop.f32.mrb[0].mxu0
        %v3099 = vadd.f32 %v3013, %v3098
        %v3100 = vpop.f32.mrb[0].mxu0
        %v3101 = vadd.f32 %v3017, %v3100
        %v3102 = vpop.f32.mrb[0].mxu0
        %v3103 = vpop.f32.mrb[0].mxu0
        %3104 = vdwg.mxu0
        %v3105 = vmul.f32 %v3099, 0.35355338
        %v3106 = vmul.f32 %v3105, %v2991
        %v3107 = vmul.f32 %v3105, %v2992
        %v3108 = vmul.f32 %v3105, %v2993
        %v3109 = vmul.f32 %v3105, %v2994
        %v3110 = vmul.f32 %v3105, %v2995
        %v3111 = vmul.f32 %v3105, %v2996
        %v3112 = vmul.f32 %v3105, %v2997
        %v3113 = vmul.f32 %v3105, %v2998
        %3115 = vrot.lane.b32.xlu0 %v3099, 64
        %v3116 = vpop.permute.xlu0 %3115
        %v3118 = vsel %vm3060, %v3106, 0
        %v3121 = vsel %vm3060, %v3107, 0
        %v3124 = vsel %vm3060, %v3108, 0
        %v3127 = vsel %vm3060, %v3109, 0
        %v3130 = vsel %vm3060, %v3110, 0
        %v3133 = vsel %vm3060, %v3111, 0
        %v3136 = vsel %vm3060, %v3112, 0
        %v3139 = vsel %vm3060, %v3113, 0
        %v3141 = vsel %vm3060, %v3116, 0
        %3143 = vmatprep.subr.mxu0 0.0
        %3144 = vmatpush1.xpose.msra.mxu0 %v3141
        %3145 = vmatprep.subr.mxu0 0.0
        %3146 = vmatpush1.xpose.msra.mxu0 0.0
        %3147 = vmatprep.subr.mxu0 0.0
        %3148 = vmatpush1.xpose.msra.mxu0 0.0
        %3149 = vmatprep.subr.mxu0 0.0
        %3150 = vmatpush1.xpose.msra.mxu0 0.0
        %3151 = vmatprep.subr.mxu0 0.0
        %3152 = vmatpush1.xpose.msra.mxu0 0.0
        %3153 = vmatprep.subr.mxu0 0.0
        %3154 = vmatpush1.xpose.msra.mxu0 0.0
        %3155 = vmatprep.subr.mxu0 0.0
        %3156 = vmatpush1.xpose.msra.mxu0 0.0
        %3157 = vmatprep.subr.mxu0 0.0
        %3158 = vmatpush1.xpose.msra.mxu0 0.0
        %3159 = vmatprep.subr.mxu0 0.0
        %3160 = vmatpush1.xpose.msra.mxu0 0.0
        %3161 = vmatprep.subr.mxu0 0.0
        %3162 = vmatpush1.xpose.msra.mxu0 0.0
        %3163 = vmatprep.subr.mxu0 0.0
        %3164 = vmatpush1.xpose.msra.mxu0 0.0
        %3165 = vmatprep.subr.mxu0 0.0
        %3166 = vmatpush1.xpose.msra.mxu0 0.0
        %3167 = vmatprep.subr.mxu0 0.0
        %3168 = vmatpush1.xpose.msra.mxu0 0.0
        %3169 = vmatprep.subr.mxu0 0.0
        %3170 = vmatpush1.xpose.msra.mxu0 0.0
        %3171 = vmatprep.subr.mxu0 0.0
        %3172 = vmatpush1.xpose.msra.mxu0 0.0
        %3173 = vmatprep.subr.mxu0 0.0
        %3174 = vmatpush1.xpose.msra.mxu0 0.0
        %3175 = vmatprep.subr.mxu0 0.0
        %3176 = vmatpush1.xpose.msra.mxu0 0.0
        %3177 = vmatprep.subr.mxu0 0.0
        %3178 = vmatpush1.xpose.msra.mxu0 0.0
        %3179 = vmatprep.subr.mxu0 0.0
        %3180 = vmatpush1.xpose.msra.mxu0 0.0
        %3181 = vmatprep.subr.mxu0 0.0
        %3182 = vmatpush1.xpose.msra.mxu0 0.0
        %3183 = vmatprep.subr.mxu0 0.0
        %3184 = vmatpush1.xpose.msra.mxu0 0.0
        %3185 = vmatprep.subr.mxu0 0.0
        %3186 = vmatpush1.xpose.msra.mxu0 0.0
        %3187 = vmatprep.subr.mxu0 0.0
        %3188 = vmatpush1.xpose.msra.mxu0 0.0
        %3189 = vmatprep.subr.mxu0 0.0
        %3190 = vmatpush1.xpose.msra.mxu0 0.0
        %3191 = vmatprep.subr.mxu0 0.0
        %3192 = vmatpush1.xpose.msra.mxu0 0.0
        %3193 = vmatprep.subr.mxu0 0.0
        %3194 = vmatpush1.xpose.msra.mxu0 0.0
        %3195 = vmatprep.subr.mxu0 0.0
        %3196 = vmatpush1.xpose.msra.mxu0 0.0
        %3197 = vmatprep.subr.mxu0 0.0
        %3198 = vmatpush1.xpose.msra.mxu0 0.0
        %3199 = vmatprep.subr.mxu0 0.0
        %3200 = vmatpush1.xpose.msra.mxu0 0.0
        %3201 = vmatprep.subr.mxu0 0.0
        %3202 = vmatpush1.xpose.msra.mxu0 0.0
        %3203 = vmatprep.subr.mxu0 0.0
        %3204 = vmatpush1.xpose.msra.mxu0 0.0
        %3205 = vmatprep.subr.mxu0 0.0
        %3206 = vmatpush1.xpose.msra.mxu0 0.0
        %3207 = vmatprep.mubr.f32.mxu0 0.0
        %3208 = vmatmul.mubr.f32.gmra.mrb[0].mxu0 %v3118
        %v3209 = vpop.f32.mrb[0].mxu0
        %v3210 = vadd.f32 0.0, %v3209
        %v3211 = vpop.f32.mrb[0].mxu0
        %3212 = vmatprep.mubr.f32.mxu0 0.0
        %3213 = vmatmul.mubr.f32.gmra.mrb[0].mxu0 %v3121
        %v3214 = vpop.f32.mrb[0].mxu0
        %v3215 = vadd.f32 0.0, %v3214
        %v3216 = vpop.f32.mrb[0].mxu0
        %3217 = vmatprep.mubr.f32.mxu0 0.0
        %3218 = vmatmul.mubr.f32.gmra.mrb[0].mxu0 %v3124
        %v3219 = vpop.f32.mrb[0].mxu0
        %v3220 = vadd.f32 0.0, %v3219
        %v3221 = vpop.f32.mrb[0].mxu0
        %3222 = vmatprep.mubr.f32.mxu0 0.0
        %3223 = vmatmul.mubr.f32.gmra.mrb[0].mxu0 %v3127
        %v3224 = vpop.f32.mrb[0].mxu0
        %v3225 = vadd.f32 0.0, %v3224
        %v3226 = vpop.f32.mrb[0].mxu0
        %3227 = vmatprep.mubr.f32.mxu0 0.0
        %3228 = vmatmul.mubr.f32.gmra.mrb[0].mxu0 %v3130
        %v3229 = vpop.f32.mrb[0].mxu0
        %v3230 = vadd.f32 0.0, %v3229
        %v3231 = vpop.f32.mrb[0].mxu0
        %3232 = vmatprep.mubr.f32.mxu0 0.0
        %3233 = vmatmul.mubr.f32.gmra.mrb[0].mxu0 %v3133
        %v3234 = vpop.f32.mrb[0].mxu0
        %v3235 = vadd.f32 0.0, %v3234
        %v3236 = vpop.f32.mrb[0].mxu0
        %3237 = vmatprep.mubr.f32.mxu0 0.0
        %3238 = vmatmul.mubr.f32.gmra.mrb[0].mxu0 %v3136
        %v3239 = vpop.f32.mrb[0].mxu0
        %v3240 = vadd.f32 0.0, %v3239
        %v3241 = vpop.f32.mrb[0].mxu0
        %3242 = vmatprep.mubr.f32.mxu0 0.0
        %3243 = vmatmul.mubr.f32.gmra.mrb[0].mxu0 %v3139
        %v3244 = vpop.f32.mrb[0].mxu0
        %v3245 = vadd.f32 0.0, %v3244
        %v3246 = vpop.f32.mrb[0].mxu0
        %3247 = vdwg.mxu0
        %vm3248 = vcmask 64512
        %v3249 = vsel %vm3248, %v3210, -inf
        %3250 = vmax.xlane.f32.xlu0 %v3249
        %v3251 = vpop.xlane.xlu0 %3250
        %v3252 = vsel %vm3248, %v3215, -inf
        %3253 = vmax.xlane.f32.xlu0 %v3252
        %v3254 = vpop.xlane.xlu0 %3253
        %v3255 = vsel %vm3248, %v3220, -inf
        %3256 = vmax.xlane.f32.xlu0 %v3255
        %v3257 = vpop.xlane.xlu0 %3256
        %v3258 = vsel %vm3248, %v3225, -inf
        %3259 = vmax.xlane.f32.xlu0 %v3258
        %v3260 = vpop.xlane.xlu0 %3259
        %v3261 = vsel %vm3248, %v3230, -inf
        %3262 = vmax.xlane.f32.xlu0 %v3261
        %v3263 = vpop.xlane.xlu0 %3262
        %v3264 = vsel %vm3248, %v3235, -inf
        %3265 = vmax.xlane.f32.xlu0 %v3264
        %v3266 = vpop.xlane.xlu0 %3265
        %v3267 = vsel %vm3248, %v3240, -inf
        %3268 = vmax.xlane.f32.xlu0 %v3267
        %v3269 = vpop.xlane.xlu0 %3268
        %v3270 = vsel %vm3248, %v3245, -inf
        %3271 = vmax.xlane.f32.xlu0 %v3270
        %v3272 = vpop.xlane.xlu0 %3271
        %v3273 = vsub.f32 %v3210, %v3251
        %v3274 = vsub.f32 %v3215, %v3254
        %v3275 = vsub.f32 %v3220, %v3257
        %v3276 = vsub.f32 %v3225, %v3260
        %v3277 = vsub.f32 %v3230, %v3263
        %v3278 = vsub.f32 %v3235, %v3266
        %v3279 = vsub.f32 %v3240, %v3269
        %v3280 = vsub.f32 %v3245, %v3272
        %v3281 = vmul.f32 %v3273, 1.442695
        %v3282 = vpow.pop %v3281
        %v3283 = vmul.f32 %v3274, 1.442695
        %v3284 = vpow.pop %v3283
        %v3285 = vmul.f32 %v3275, 1.442695
        %v3286 = vpow.pop %v3285
        %v3287 = vmul.f32 %v3276, 1.442695
        %v3288 = vpow.pop %v3287
        %v3289 = vmul.f32 %v3277, 1.442695
        %v3290 = vpow.pop %v3289
        %v3291 = vmul.f32 %v3278, 1.442695
        %v3292 = vpow.pop %v3291
        %v3293 = vmul.f32 %v3279, 1.442695
        %v3294 = vpow.pop %v3293
        %v3295 = vmul.f32 %v3280, 1.442695
        %v3296 = vpow.pop %v3295
        %v3297 = vsel %vm3248, %v3282, 0.0
        %3298 = vadd.xlane.f32.xlu0 %v3297
        %v3299 = vpop.xlane.xlu0 %3298
        %v3300 = vsel %vm3248, %v3284, 0.0
        %3301 = vadd.xlane.f32.xlu0 %v3300
        %v3302 = vpop.xlane.xlu0 %3301
        %v3303 = vsel %vm3248, %v3286, 0.0
        %3304 = vadd.xlane.f32.xlu0 %v3303
        %v3305 = vpop.xlane.xlu0 %3304
        %v3306 = vsel %vm3248, %v3288, 0.0
        %3307 = vadd.xlane.f32.xlu0 %v3306
        %v3308 = vpop.xlane.xlu0 %3307
        %v3309 = vsel %vm3248, %v3290, 0.0
        %3310 = vadd.xlane.f32.xlu0 %v3309
        %v3311 = vpop.xlane.xlu0 %3310
        %v3312 = vsel %vm3248, %v3292, 0.0
        %3313 = vadd.xlane.f32.xlu0 %v3312
        %v3314 = vpop.xlane.xlu0 %3313
        %v3315 = vsel %vm3248, %v3294, 0.0
        %3316 = vadd.xlane.f32.xlu0 %v3315
        %v3317 = vpop.xlane.xlu0 %3316
        %v3318 = vsel %vm3248, %v3296, 0.0
        %3319 = vadd.xlane.f32.xlu0 %v3318
        %v3320 = vpop.xlane.xlu0 %3319
        %v3321 = vrcp.pop %v3299
        %v3322 = vmul.f32 %v3282, %v3321
        %v3323 = vrcp.pop %v3302
        %v3324 = vmul.f32 %v3284, %v3323
        %v3325 = vrcp.pop %v3305
        %v3326 = vmul.f32 %v3286, %v3325
        %v3327 = vrcp.pop %v3308
        %v3328 = vmul.f32 %v3288, %v3327
        %v3329 = vrcp.pop %v3311
        %v3330 = vmul.f32 %v3290, %v3329
        %v3331 = vrcp.pop %v3314
        %v3332 = vmul.f32 %v3292, %v3331
        %v3333 = vrcp.pop %v3317
        %v3334 = vmul.f32 %v3294, %v3333
        %v3335 = vrcp.pop %v3320
        %v3336 = vmul.f32 %v3296, %v3335
        %v3338 = vsel %vm3248, %v3322, 0
        %v3341 = vsel %vm3248, %v3324, 0
        %v3344 = vsel %vm3248, %v3326, 0
        %v3347 = vsel %vm3248, %v3328, 0
        %v3350 = vsel %vm3248, %v3330, 0
        %v3353 = vsel %vm3248, %v3332, 0
        %v3356 = vsel %vm3248, %v3334, 0
        %v3359 = vsel %vm3248, %v3336, 0
        %3361 = vmatprep.subr.mxu0 0.0
        %3362 = vmatpush1.msra.mxu0 %v3101
        %3363 = vmatprep.subr.mxu0 0.0
        %3364 = vmatpush1.msra.mxu0 0.0
        %3365 = vmatprep.subr.mxu0 0.0
        %3366 = vmatpush1.msra.mxu0 0.0
        %3367 = vmatprep.subr.mxu0 0.0
        %3368 = vmatpush1.msra.mxu0 0.0
        %3369 = vmatprep.subr.mxu0 0.0
        %3370 = vmatpush1.msra.mxu0 0.0
        %3371 = vmatprep.subr.mxu0 0.0
        %3372 = vmatpush1.msra.mxu0 0.0
        %3373 = vmatprep.subr.mxu0 0.0
        %3374 = vmatpush1.msra.mxu0 0.0
        %3375 = vmatprep.subr.mxu0 0.0
        %3376 = vmatpush1.msra.mxu0 0.0
        %3377 = vmatprep.subr.mxu0 0.0
        %3378 = vmatpush1.msra.mxu0 0.0
        %3379 = vmatprep.subr.mxu0 0.0
        %3380 = vmatpush1.msra.mxu0 0.0
        %3381 = vmatprep.subr.mxu0 0.0
        %3382 = vmatpush1.msra.mxu0 0.0
        %3383 = vmatprep.subr.mxu0 0.0
        %3384 = vmatpush1.msra.mxu0 0.0
        %3385 = vmatprep.subr.mxu0 0.0
        %3386 = vmatpush1.msra.mxu0 0.0
        %3387 = vmatprep.subr.mxu0 0.0
        %3388 = vmatpush1.msra.mxu0 0.0
        %3389 = vmatprep.subr.mxu0 0.0
        %3390 = vmatpush1.msra.mxu0 0.0
        %3391 = vmatprep.subr.mxu0 0.0
        %3392 = vmatpush1.msra.mxu0 0.0
        %3393 = vmatprep.subr.mxu0 0.0
        %3394 = vmatpush1.msra.mxu0 0.0
        %3395 = vmatprep.subr.mxu0 0.0
        %3396 = vmatpush1.msra.mxu0 0.0
        %3397 = vmatprep.subr.mxu0 0.0
        %3398 = vmatpush1.msra.mxu0 0.0
        %3399 = vmatprep.subr.mxu0 0.0
        %3400 = vmatpush1.msra.mxu0 0.0
        %3401 = vmatprep.subr.mxu0 0.0
        %3402 = vmatpush1.msra.mxu0 0.0
        %3403 = vmatprep.subr.mxu0 0.0
        %3404 = vmatpush1.msra.mxu0 0.0
        %3405 = vmatprep.subr.mxu0 0.0
        %3406 = vmatpush1.msra.mxu0 0.0
        %3407 = vmatprep.subr.mxu0 0.0
        %3408 = vmatpush1.msra.mxu0 0.0
        %3409 = vmatprep.subr.mxu0 0.0
        %3410 = vmatpush1.msra.mxu0 0.0
        %3411 = vmatprep.subr.mxu0 0.0
        %3412 = vmatpush1.msra.mxu0 0.0
        %3413 = vmatprep.subr.mxu0 0.0
        %3414 = vmatpush1.msra.mxu0 0.0
        %3415 = vmatprep.subr.mxu0 0.0
        %3416 = vmatpush1.msra.mxu0 0.0
        %3417 = vmatprep.subr.mxu0 0.0
        %3418 = vmatpush1.msra.mxu0 0.0
        %3419 = vmatprep.subr.mxu0 0.0
        %3420 = vmatpush1.msra.mxu0 0.0
        %3421 = vmatprep.subr.mxu0 0.0
        %3422 = vmatpush1.msra.mxu0 0.0
        %3423 = vmatprep.subr.mxu0 0.0
        %3424 = vmatpush1.msra.mxu0 0.0
        %3425 = vmatprep.mubr.f32.mxu0 0.0
        %3426 = vmatmul.mubr.f32.gmra.mrb[0].mxu0 %v3338
        %v3427 = vpop.f32.mrb[0].mxu0
        %v3428 = vadd.f32 0.0, %v3427
        %v3429 = vpop.f32.mrb[0].mxu0
        %3430 = vmatprep.mubr.f32.mxu0 0.0
        %3431 = vmatmul.mubr.f32.gmra.mrb[0].mxu0 %v3341
        %v3432 = vpop.f32.mrb[0].mxu0
        %v3433 = vadd.f32 0.0, %v3432
        %v3434 = vpop.f32.mrb[0].mxu0
        %3435 = vmatprep.mubr.f32.mxu0 0.0
        %3436 = vmatmul.mubr.f32.gmra.mrb[0].mxu0 %v3344
        %v3437 = vpop.f32.mrb[0].mxu0
        %v3438 = vadd.f32 0.0, %v3437
        %v3439 = vpop.f32.mrb[0].mxu0
        %3440 = vmatprep.mubr.f32.mxu0 0.0
        %3441 = vmatmul.mubr.f32.gmra.mrb[0].mxu0 %v3347
        %v3442 = vpop.f32.mrb[0].mxu0
        %v3443 = vadd.f32 0.0, %v3442
        %v3444 = vpop.f32.mrb[0].mxu0
        %3445 = vmatprep.mubr.f32.mxu0 0.0
        %3446 = vmatmul.mubr.f32.gmra.mrb[0].mxu0 %v3350
        %v3447 = vpop.f32.mrb[0].mxu0
        %v3448 = vadd.f32 0.0, %v3447
        %v3449 = vpop.f32.mrb[0].mxu0
        %3450 = vmatprep.mubr.f32.mxu0 0.0
        %3451 = vmatmul.mubr.f32.gmra.mrb[0].mxu0 %v3353
        %v3452 = vpop.f32.mrb[0].mxu0
        %v3453 = vadd.f32 0.0, %v3452
        %v3454 = vpop.f32.mrb[0].mxu0
        %3455 = vmatprep.mubr.f32.mxu0 0.0
        %3456 = vmatmul.mubr.f32.gmra.mrb[0].mxu0 %v3356
        %v3457 = vpop.f32.mrb[0].mxu0
        %v3458 = vadd.f32 0.0, %v3457
        %v3459 = vpop.f32.mrb[0].mxu0
        %3460 = vmatprep.mubr.f32.mxu0 0.0
        %3461 = vmatmul.mubr.f32.gmra.mrb[0].mxu0 %v3359
        %v3462 = vpop.f32.mrb[0].mxu0
        %v3463 = vadd.f32 0.0, %v3462
        %v3464 = vpop.f32.mrb[0].mxu0
        %3465 = vdwg.mxu0
        %v3466 = vmul.f32 %v3428, %v2991
        %v3467 = vmul.f32 %v3433, %v2992
        %v3468 = vmul.f32 %v3438, %v2993
        %v3469 = vmul.f32 %v3443, %v2994
        %v3470 = vmul.f32 %v3448, %v2995
        %v3471 = vmul.f32 %v3453, %v2996
        %v3472 = vmul.f32 %v3458, %v2997
        %v3473 = vmul.f32 %v3463, %v2998
        %v3474 = vsel %vm3060, %v3466, 0.0
        %v3475 = vsel %vm3060, %v3467, 0.0
        %v3476 = vadd.f32 %v3474, %v3475
        %v3477 = vsel %vm3060, %v3468, 0.0
        %v3478 = vadd.f32 %v3476, %v3477
        %v3479 = vsel %vm3060, %v3469, 0.0
        %v3480 = vadd.f32 %v3478, %v3479
        %v3481 = vsel %vm3060, %v3470, 0.0
        %v3482 = vadd.f32 %v3480, %v3481
        %v3483 = vsel %vm3060, %v3471, 0.0
        %v3484 = vadd.f32 %v3482, %v3483
        %v3485 = vsel %vm3060, %v3472, 0.0
        %v3486 = vadd.f32 %v3484, %v3485
        %v3487 = vsel %vm3060, %v3473, 0.0
        %v3488 = vadd.f32 %v3486, %v3487
        %v3489 = vpack.c.bf16 %v3488, %v3488
        %v3490 = vld [vmem:[%s13] sm:$0xf]
        %v3491 = vld [vmem:[%s13 + $0x4] sm:$0xf]
        %v3492 = vld [vmem:[%s13 + $0x8] sm:$0xf]
        %v3493 = vld [vmem:[%s13 + $0xc] sm:$0xf]
        %v3494 = vld [vmem:[%s13 + $0x10] sm:$0xf]
        %v3495 = vld [vmem:[%s13 + $0x14] sm:$0xf]
        %v3496 = vld [vmem:[%s13 + $0x18] sm:$0xf]
        %v3497 = vld [vmem:[%s13 + $0x1c] sm:$0xf]
        %v3498 = vld [vmem:[%s14] sm:$0x1]
        %v3500 = vlaneseq
        %v3501 = vshrl.u32 %v3500, 7
        %v3502 = vsub.s32 0, %v3501
        %v3503 = vrot.slane %v3498, %v3502
        %v3513 = vunpack.c.l.b16 %v3490
        %v3514 = vunpack.c.l.b16 %v3491
        %v3515 = vunpack.c.l.b16 %v3492
        %v3516 = vunpack.c.l.b16 %v3493
        %v3517 = vunpack.c.l.b16 %v3494
        %v3518 = vunpack.c.l.b16 %v3495
        %v3519 = vunpack.c.l.b16 %v3496
        %v3520 = vunpack.c.l.b16 %v3497
        %v3521 = vpack.c.b16 %v3514, %v3513
        %v3522 = vpack.c.b16 %v3516, %v3515
        %v3523 = vpack.c.b16 %v3518, %v3517
        %v3524 = vpack.c.b16 %v3520, %v3519
        %v3530 = vsel %vm3060, %v3489, 0
        %3532 = vmatprep.subr.bf16.mxu0 0
        %3533 = vmatpush1.bf16.msra.mxu0 %v3521
        %3534 = vmatprep.subr.bf16.mxu0 0
        %3535 = vmatpush1.bf16.msra.mxu0 %v3522
        %3536 = vmatprep.subr.bf16.mxu0 0
        %3537 = vmatpush1.bf16.msra.mxu0 %v3523
        %3538 = vmatprep.subr.bf16.mxu0 0
        %3539 = vmatpush1.bf16.msra.mxu0 %v3524
        %3540 = vmatprep.subr.bf16.mxu0 0
        %3541 = vmatpush1.bf16.msra.mxu0 0
        %3542 = vmatprep.subr.bf16.mxu0 0
        %3543 = vmatpush1.bf16.msra.mxu0 0
        %3544 = vmatprep.subr.bf16.mxu0 0
        %3545 = vmatpush1.bf16.msra.mxu0 0
        %3546 = vmatprep.subr.bf16.mxu0 0
        %3547 = vmatpush1.bf16.msra.mxu0 0
        %3548 = vmatprep.subr.bf16.mxu0 0
        %3549 = vmatpush1.bf16.msra.mxu0 0
        %3550 = vmatprep.subr.bf16.mxu0 0
        %3551 = vmatpush1.bf16.msra.mxu0 0
        %3552 = vmatprep.subr.bf16.mxu0 0
        %3553 = vmatpush1.bf16.msra.mxu0 0
        %3554 = vmatprep.subr.bf16.mxu0 0
        %3555 = vmatpush1.bf16.msra.mxu0 0
        %3556 = vmatprep.subr.bf16.mxu0 0
        %3557 = vmatpush1.bf16.msra.mxu0 0
        %3558 = vmatprep.subr.bf16.mxu0 0
        %3559 = vmatpush1.bf16.msra.mxu0 0
        %3560 = vmatprep.subr.bf16.mxu0 0
        %3561 = vmatpush1.bf16.msra.mxu0 0
        %3562 = vmatprep.subr.bf16.mxu0 0
        %3563 = vmatpush1.bf16.msra.mxu0 0
        %3564 = vmatprep.mubr.bf16.mxu0 0
        %3565 = vmatmul.mubr.bf16.gmra.mrb[0].mxu0 %v3530
        %v3566 = vpop.f32.mrb[0].mxu0
        %v3567 = vadd.f32 %v3503, %v3566
        %v3568 = vpop.f32.mrb[0].mxu0
        %v3569 = vpop.f32.mrb[0].mxu0
        %v3570 = vpop.f32.mrb[0].mxu0
        %3571 = vdwg.mxu0
        %v3572 = vadd.f32 %v2990, %v3567
        %v3573 = vld [vmem:[%s15] sm:$0x1]
        %v3574 = vld [vmem:[%s16] sm:$0x1]
        %v3575 = vsel %vm3060, %v3572, 0.0
        %3576 = vadd.xlane.f32.xlu0 %v3575
        %v3577 = vpop.xlane.xlu0 %3576
        %v3578 = vrcp.pop 64.0
        %v3579 = vmul.f32 %v3577, %v3578
        %v3580 = vsub.f32 %v3572, %v3579
        %v3581 = vmul.f32 %v3580, %v3580
        %v3582 = vsel %vm3060, %v3581, 0.0
        %3583 = vadd.xlane.f32.xlu0 %v3582
        %v3584 = vpop.xlane.xlu0 %3583
        %v3585 = vmul.f32 %v3584, %v3578
        %v3586 = vadd.f32 %v3585, 1e-05
        %v3587 = vrsqrt.pop %v3586
        %v3588 = vmul.f32 %v3580, %v3587
        %v3590 = vlaneseq
        %v3591 = vshrl.u32 %v3590, 7
        %v3592 = vsub.s32 0, %v3591
        %v3593 = vrot.slane %v3573, %v3592
        %v3595 = vmul.f32 %v3588, %v3593
        %v3597 = vlaneseq
        %v3598 = vshrl.u32 %v3597, 7
        %v3599 = vsub.s32 0, %v3598
        %v3600 = vrot.slane %v3574, %v3599
        %v3602 = vadd.f32 %v3595, %v3600
        %v3603 = vpack.c.bf16 %v3602, %v3602
        %v3604 = vld [vmem:[%s17] sm:$0xf]
        %v3605 = vld [vmem:[%s17 + $0x4] sm:$0xf]
        %v3606 = vld [vmem:[%s17 + $0x8] sm:$0xf]
        %v3607 = vld [vmem:[%s17 + $0xc] sm:$0xf]
        %v3608 = vld [vmem:[%s17 + $0x10] sm:$0xf]
        %v3609 = vld [vmem:[%s17 + $0x14] sm:$0xf]
        %v3610 = vld [vmem:[%s17 + $0x18] sm:$0xf]
        %v3611 = vld [vmem:[%s17 + $0x1c] sm:$0xf]
        %v3612 = vld [vmem:[%s18] sm:$0x1]
        %v3614 = vlaneseq
        %v3615 = vshrl.u32 %v3614, 7
        %v3616 = vsub.s32 0, %v3615
        %v3617 = vrot.slane %v3612, %v3616
        %v3627 = vunpack.c.l.b16 %v3604
        %v3628 = vunpack.c.l.b16 %v3605
        %v3629 = vunpack.c.l.b16 %v3606
        %v3630 = vunpack.c.l.b16 %v3607
        %v3631 = vunpack.c.l.b16 %v3608
        %v3632 = vunpack.c.l.b16 %v3609
        %v3633 = vunpack.c.l.b16 %v3610
        %v3634 = vunpack.c.l.b16 %v3611
        %v3635 = vpack.c.b16 %v3628, %v3627
        %v3636 = vpack.c.b16 %v3630, %v3629
        %v3637 = vpack.c.b16 %v3632, %v3631
        %v3638 = vpack.c.b16 %v3634, %v3633
        %v3644 = vsel %vm3060, %v3603, 0
        %3646 = vmatprep.subr.bf16.mxu0 0
        %3647 = vmatpush1.bf16.msra.mxu0 %v3635
        %3648 = vmatprep.subr.bf16.mxu0 0
        %3649 = vmatpush1.bf16.msra.mxu0 %v3636
        %3650 = vmatprep.subr.bf16.mxu0 0
        %3651 = vmatpush1.bf16.msra.mxu0 %v3637
        %3652 = vmatprep.subr.bf16.mxu0 0
        %3653 = vmatpush1.bf16.msra.mxu0 %v3638
        %3654 = vmatprep.subr.bf16.mxu0 0
        %3655 = vmatpush1.bf16.msra.mxu0 0
        %3656 = vmatprep.subr.bf16.mxu0 0
        %3657 = vmatpush1.bf16.msra.mxu0 0
        %3658 = vmatprep.subr.bf16.mxu0 0
        %3659 = vmatpush1.bf16.msra.mxu0 0
        %3660 = vmatprep.subr.bf16.mxu0 0
        %3661 = vmatpush1.bf16.msra.mxu0 0
        %3662 = vmatprep.subr.bf16.mxu0 0
        %3663 = vmatpush1.bf16.msra.mxu0 0
        %3664 = vmatprep.subr.bf16.mxu0 0
        %3665 = vmatpush1.bf16.msra.mxu0 0
        %3666 = vmatprep.subr.bf16.mxu0 0
        %3667 = vmatpush1.bf16.msra.mxu0 0
        %3668 = vmatprep.subr.bf16.mxu0 0
        %3669 = vmatpush1.bf16.msra.mxu0 0
        %3670 = vmatprep.subr.bf16.mxu0 0
        %3671 = vmatpush1.bf16.msra.mxu0 0
        %3672 = vmatprep.subr.bf16.mxu0 0
        %3673 = vmatpush1.bf16.msra.mxu0 0
        %3674 = vmatprep.subr.bf16.mxu0 0
        %3675 = vmatpush1.bf16.msra.mxu0 0
        %3676 = vmatprep.subr.bf16.mxu0 0
        %3677 = vmatpush1.bf16.msra.mxu0 0
        %3678 = vmatprep.mubr.bf16.mxu0 0
        %3679 = vmatmul.mubr.bf16.gmra.mrb[0].mxu0 %v3644
        %v3680 = vpop.f32.mrb[0].mxu0
        %v3681 = vadd.f32 %v3617, %v3680
        %v3682 = vpop.f32.mrb[0].mxu0
        %v3683 = vpop.f32.mrb[0].mxu0
        %v3684 = vpop.f32.mrb[0].mxu0
        %3685 = vdwg.mxu0
        %v3686 = vmax.f32 %v3681, 0.0
        %v3687 = vpack.c.bf16 %v3686, %v3686
        %v3688 = vld [vmem:[%s19] sm:$0xf]
        %v3689 = vld [vmem:[%s19 + $0x4] sm:$0xf]
        %v3690 = vld [vmem:[%s19 + $0x8] sm:$0xf]
        %v3691 = vld [vmem:[%s19 + $0xc] sm:$0xf]
        %v3692 = vld [vmem:[%s19 + $0x10] sm:$0xf]
        %v3693 = vld [vmem:[%s19 + $0x14] sm:$0xf]
        %v3694 = vld [vmem:[%s19 + $0x18] sm:$0xf]
        %v3695 = vld [vmem:[%s19 + $0x1c] sm:$0xf]
        %v3696 = vld [vmem:[%s19 + $0x20] sm:$0xf]
        %v3697 = vld [vmem:[%s19 + $0x24] sm:$0xf]
        %v3698 = vld [vmem:[%s19 + $0x28] sm:$0xf]
        %v3699 = vld [vmem:[%s19 + $0x2c] sm:$0xf]
        %v3700 = vld [vmem:[%s19 + $0x30] sm:$0xf]
        %v3701 = vld [vmem:[%s19 + $0x34] sm:$0xf]
        %v3702 = vld [vmem:[%s19 + $0x38] sm:$0xf]
        %v3703 = vld [vmem:[%s19 + $0x3c] sm:$0xf]
        %v3704 = vld [vmem:[%s20] sm:$0x1]
        %v3706 = vlaneseq
        %v3707 = vshrl.u32 %v3706, 7
        %v3708 = vsub.s32 0, %v3707
        %v3709 = vrot.slane %v3704, %v3708
        %v3727 = vunpack.c.l.b16 %v3688
        %v3728 = vunpack.c.l.b16 %v3689
        %v3729 = vunpack.c.l.b16 %v3690
        %v3730 = vunpack.c.l.b16 %v3691
        %v3731 = vunpack.c.l.b16 %v3692
        %v3732 = vunpack.c.l.b16 %v3693
        %v3733 = vunpack.c.l.b16 %v3694
        %v3734 = vunpack.c.l.b16 %v3695
        %v3735 = vunpack.c.l.b16 %v3696
        %v3736 = vunpack.c.l.b16 %v3697
        %v3737 = vunpack.c.l.b16 %v3698
        %v3738 = vunpack.c.l.b16 %v3699
        %v3739 = vunpack.c.l.b16 %v3700
        %v3740 = vunpack.c.l.b16 %v3701
        %v3741 = vunpack.c.l.b16 %v3702
        %v3742 = vunpack.c.l.b16 %v3703
        %v3743 = vpack.c.b16 %v3728, %v3727
        %v3744 = vpack.c.b16 %v3730, %v3729
        %v3745 = vpack.c.b16 %v3732, %v3731
        %v3746 = vpack.c.b16 %v3734, %v3733
        %v3747 = vpack.c.b16 %v3736, %v3735
        %v3748 = vpack.c.b16 %v3738, %v3737
        %v3749 = vpack.c.b16 %v3740, %v3739
        %v3750 = vpack.c.b16 %v3742, %v3741
        %3759 = vmatprep.subr.bf16.mxu0 0
        %3760 = vmatpush1.bf16.msra.mxu0 %v3743
        %3761 = vmatprep.subr.bf16.mxu0 0
        %3762 = vmatpush1.bf16.msra.mxu0 %v3744
        %3763 = vmatprep.subr.bf16.mxu0 0
        %3764 = vmatpush1.bf16.msra.mxu0 %v3745
        %3765 = vmatprep.subr.bf16.mxu0 0
        %3766 = vmatpush1.bf16.msra.mxu0 %v3746
        %3767 = vmatprep.subr.bf16.mxu0 0
        %3768 = vmatpush1.bf16.msra.mxu0 %v3747
        %3769 = vmatprep.subr.bf16.mxu0 0
        %3770 = vmatpush1.bf16.msra.mxu0 %v3748
        %3771 = vmatprep.subr.bf16.mxu0 0
        %3772 = vmatpush1.bf16.msra.mxu0 %v3749
        %3773 = vmatprep.subr.bf16.mxu0 0
        %3774 = vmatpush1.bf16.msra.mxu0 %v3750
        %3775 = vmatprep.subr.bf16.mxu0 0
        %3776 = vmatpush1.bf16.msra.mxu0 0
        %3777 = vmatprep.subr.bf16.mxu0 0
        %3778 = vmatpush1.bf16.msra.mxu0 0
        %3779 = vmatprep.subr.bf16.mxu0 0
        %3780 = vmatpush1.bf16.msra.mxu0 0
        %3781 = vmatprep.subr.bf16.mxu0 0
        %3782 = vmatpush1.bf16.msra.mxu0 0
        %3783 = vmatprep.subr.bf16.mxu0 0
        %3784 = vmatpush1.bf16.msra.mxu0 0
        %3785 = vmatprep.subr.bf16.mxu0 0
        %3786 = vmatpush1.bf16.msra.mxu0 0
        %3787 = vmatprep.subr.bf16.mxu0 0
        %3788 = vmatpush1.bf16.msra.mxu0 0
        %3789 = vmatprep.subr.bf16.mxu0 0
        %3790 = vmatpush1.bf16.msra.mxu0 0
        %3791 = vmatprep.mubr.bf16.mxu0 0
        %3792 = vmatmul.mubr.bf16.gmra.mrb[0].mxu0 %v3687
        %v3793 = vpop.f32.mrb[0].mxu0
        %v3794 = vadd.f32 %v3709, %v3793
        %v3795 = vpop.f32.mrb[0].mxu0
        %v3796 = vpop.f32.mrb[0].mxu0
        %v3797 = vpop.f32.mrb[0].mxu0
        %3798 = vdwg.mxu0
        %v3799 = vadd.f32 %v3602, %v3794
        %v3800 = vld [vmem:[%s21] sm:$0x1]
        %v3801 = vld [vmem:[%s22] sm:$0x1]
        %v3802 = vsel %vm3060, %v3799, 0.0
        %3803 = vadd.xlane.f32.xlu0 %v3802
        %v3804 = vpop.xlane.xlu0 %3803
        %v3805 = vmul.f32 %v3804, %v3578
        %v3806 = vsub.f32 %v3799, %v3805
        %v3807 = vmul.f32 %v3806, %v3806
        %v3808 = vsel %vm3060, %v3807, 0.0
        %3809 = vadd.xlane.f32.xlu0 %v3808
        %v3810 = vpop.xlane.xlu0 %3809
        %v3811 = vmul.f32 %v3810, %v3578
        %v3812 = vadd.f32 %v3811, 1e-05
        %v3813 = vrsqrt.pop %v3812
        %v3814 = vmul.f32 %v3806, %v3813
        %v3816 = vlaneseq
        %v3817 = vshrl.u32 %v3816, 7
        %v3818 = vsub.s32 0, %v3817
        %v3819 = vrot.slane %v3800, %v3818
        %v3821 = vmul.f32 %v3814, %v3819
        %v3823 = vlaneseq
        %v3824 = vshrl.u32 %v3823, 7
        %v3825 = vsub.s32 0, %v3824
        %v3826 = vrot.slane %v3801, %v3825
        %v3828 = vadd.f32 %v3821, %v3826
        %v3829 = vpack.c.bf16 %v3828, %v3828
        %s3830 = scalar_lea.vmem %s11, 64
        %v3831 = vld [vmem:[%s3830] sm:$0xff]
        %v3832 = vld [vmem:[%s3830 + $0x8] sm:$0xff]
        %v3833 = vld [vmem:[%s3830 + $0x10] sm:$0xff]
        %v3834 = vld [vmem:[%s3830 + $0x18] sm:$0xff]
        %v3835 = vld [vmem:[%s3830 + $0x20] sm:$0xff]
        %v3836 = vld [vmem:[%s3830 + $0x28] sm:$0xff]
        %v3837 = vld [vmem:[%s3830 + $0x30] sm:$0xff]
        %v3838 = vld [vmem:[%s3830 + $0x38] sm:$0xff]
        %s3839 = scalar_lea.vmem %s12, 2
        %v3840 = vld [vmem:[%s3839] sm:$0x3]
        %v3842 = vlaneseq
        %v3843 = vshrl.u32 %v3842, 7
        %v3844 = vsub.s32 0, %v3843
        %v3845 = vrot.slane %v3840, %v3844
        %v3846 = vlaneseq
        %v3847 = vshrl.u32 %v3846, 7
        %v3848 = vsub.s32 1, %v3847
        %v3849 = vrot.slane %v3840, %v3848
        %v3860 = vunpack.c.l.b16 %v3831
        %v3861 = vunpack.c.h.b16 %v3831
        %v3862 = vunpack.c.l.b16 %v3832
        %v3863 = vunpack.c.h.b16 %v3832
        %v3864 = vunpack.c.l.b16 %v3833
        %v3865 = vunpack.c.h.b16 %v3833
        %v3866 = vunpack.c.l.b16 %v3834
        %v3867 = vunpack.c.h.b16 %v3834
        %v3868 = vunpack.c.l.b16 %v3835
        %v3869 = vunpack.c.h.b16 %v3835
        %v3870 = vunpack.c.l.b16 %v3836
        %v3871 = vunpack.c.h.b16 %v3836
        %v3872 = vunpack.c.l.b16 %v3837
        %v3873 = vunpack.c.h.b16 %v3837
        %v3874 = vunpack.c.l.b16 %v3838
        %v3875 = vunpack.c.h.b16 %v3838
        %v3876 = vpack.c.b16 %v3862, %v3860
        %v3877 = vpack.c.b16 %v3863, %v3861
        %v3878 = vpack.c.b16 %v3866, %v3864
        %v3879 = vpack.c.b16 %v3867, %v3865
        %v3880 = vpack.c.b16 %v3870, %v3868
        %v3881 = vpack.c.b16 %v3871, %v3869
        %v3882 = vpack.c.b16 %v3874, %v3872
        %v3883 = vpack.c.b16 %v3875, %v3873
        %v3893 = vsel %vm3060, %v3829, 0
        %3895 = vmatprep.subr.bf16.mxu0 %v3877
        %3896 = vmatpush1.bf16.msra.mxu0 %v3876
        %3897 = vmatprep.subr.bf16.mxu0 %v3879
        %3898 = vmatpush1.bf16.msra.mxu0 %v3878
        %3899 = vmatprep.subr.bf16.mxu0 %v3881
        %3900 = vmatpush1.bf16.msra.mxu0 %v3880
        %3901 = vmatprep.subr.bf16.mxu0 %v3883
        %3902 = vmatpush1.bf16.msra.mxu0 %v3882
        %3903 = vmatprep.subr.bf16.mxu0 0
        %3904 = vmatpush1.bf16.msra.mxu0 0
        %3905 = vmatprep.subr.bf16.mxu0 0
        %3906 = vmatpush1.bf16.msra.mxu0 0
        %3907 = vmatprep.subr.bf16.mxu0 0
        %3908 = vmatpush1.bf16.msra.mxu0 0
        %3909 = vmatprep.subr.bf16.mxu0 0
        %3910 = vmatpush1.bf16.msra.mxu0 0
        %3911 = vmatprep.subr.bf16.mxu0 0
        %3912 = vmatpush1.bf16.msra.mxu0 0
        %3913 = vmatprep.subr.bf16.mxu0 0
        %3914 = vmatpush1.bf16.msra.mxu0 0
        %3915 = vmatprep.subr.bf16.mxu0 0
        %3916 = vmatpush1.bf16.msra.mxu0 0
        %3917 = vmatprep.subr.bf16.mxu0 0
        %3918 = vmatpush1.bf16.msra.mxu0 0
        %3919 = vmatprep.subr.bf16.mxu0 0
        %3920 = vmatpush1.bf16.msra.mxu0 0
        %3921 = vmatprep.subr.bf16.mxu0 0
        %3922 = vmatpush1.bf16.msra.mxu0 0
        %3923 = vmatprep.subr.bf16.mxu0 0
        %3924 = vmatpush1.bf16.msra.mxu0 0
        %3925 = vmatprep.subr.bf16.mxu0 0
        %3926 = vmatpush1.bf16.msra.mxu0 0
        %3927 = vmatprep.mubr.bf16.mxu0 0
        %3928 = vmatmul.mubr.bf16.gmra.mrb[0].mxu0 %v3893
        %v3929 = vpop.f32.mrb[0].mxu0
        %v3930 = vadd.f32 %v3845, %v3929
        %v3931 = vpop.f32.mrb[0].mxu0
        %v3932 = vadd.f32 %v3849, %v3931
        %v3933 = vpop.f32.mrb[0].mxu0
        %v3934 = vpop.f32.mrb[0].mxu0
        %3935 = vdwg.mxu0
        %v3936 = vmul.f32 %v3930, 0.35355338
        %v3937 = vmul.f32 %v3936, %v2991
        %v3938 = vmul.f32 %v3936, %v2992
        %v3939 = vmul.f32 %v3936, %v2993
        %v3940 = vmul.f32 %v3936, %v2994
        %v3941 = vmul.f32 %v3936, %v2995
        %v3942 = vmul.f32 %v3936, %v2996
        %v3943 = vmul.f32 %v3936, %v2997
        %v3944 = vmul.f32 %v3936, %v2998
        %3946 = vrot.lane.b32.xlu0 %v3930, 64
        %v3947 = vpop.permute.xlu0 %3946
        %v3949 = vsel %vm3060, %v3937, 0
        %v3952 = vsel %vm3060, %v3938, 0
        %v3955 = vsel %vm3060, %v3939, 0
        %v3958 = vsel %vm3060, %v3940, 0
        %v3961 = vsel %vm3060, %v3941, 0
        %v3964 = vsel %vm3060, %v3942, 0
        %v3967 = vsel %vm3060, %v3943, 0
        %v3970 = vsel %vm3060, %v3944, 0
        %v3972 = vsel %vm3060, %v3947, 0
        %3974 = vmatprep.subr.mxu0 0.0
        %3975 = vmatpush1.xpose.msra.mxu0 %v3972
        %3976 = vmatprep.subr.mxu0 0.0
        %3977 = vmatpush1.xpose.msra.mxu0 0.0
        %3978 = vmatprep.subr.mxu0 0.0
        %3979 = vmatpush1.xpose.msra.mxu0 0.0
        %3980 = vmatprep.subr.mxu0 0.0
        %3981 = vmatpush1.xpose.msra.mxu0 0.0
        %3982 = vmatprep.subr.mxu0 0.0
        %3983 = vmatpush1.xpose.msra.mxu0 0.0
        %3984 = vmatprep.subr.mxu0 0.0
        %3985 = vmatpush1.xpose.msra.mxu0 0.0
        %3986 = vmatprep.subr.mxu0 0.0
        %3987 = vmatpush1.xpose.msra.mxu0 0.0
        %3988 = vmatprep.subr.mxu0 0.0
        %3989 = vmatpush1.xpose.msra.mxu0 0.0
        %3990 = vmatprep.subr.mxu0 0.0
        %3991 = vmatpush1.xpose.msra.mxu0 0.0
        %3992 = vmatprep.subr.mxu0 0.0
        %3993 = vmatpush1.xpose.msra.mxu0 0.0
        %3994 = vmatprep.subr.mxu0 0.0
        %3995 = vmatpush1.xpose.msra.mxu0 0.0
        %3996 = vmatprep.subr.mxu0 0.0
        %3997 = vmatpush1.xpose.msra.mxu0 0.0
        %3998 = vmatprep.subr.mxu0 0.0
        %3999 = vmatpush1.xpose.msra.mxu0 0.0
        %4000 = vmatprep.subr.mxu0 0.0
        %4001 = vmatpush1.xpose.msra.mxu0 0.0
        %4002 = vmatprep.subr.mxu0 0.0
        %4003 = vmatpush1.xpose.msra.mxu0 0.0
        %4004 = vmatprep.subr.mxu0 0.0
        %4005 = vmatpush1.xpose.msra.mxu0 0.0
        %4006 = vmatprep.subr.mxu0 0.0
        %4007 = vmatpush1.xpose.msra.mxu0 0.0
        %4008 = vmatprep.subr.mxu0 0.0
        %4009 = vmatpush1.xpose.msra.mxu0 0.0
        %4010 = vmatprep.subr.mxu0 0.0
        %4011 = vmatpush1.xpose.msra.mxu0 0.0
        %4012 = vmatprep.subr.mxu0 0.0
        %4013 = vmatpush1.xpose.msra.mxu0 0.0
        %4014 = vmatprep.subr.mxu0 0.0
        %4015 = vmatpush1.xpose.msra.mxu0 0.0
        %4016 = vmatprep.subr.mxu0 0.0
        %4017 = vmatpush1.xpose.msra.mxu0 0.0
        %4018 = vmatprep.subr.mxu0 0.0
        %4019 = vmatpush1.xpose.msra.mxu0 0.0
        %4020 = vmatprep.subr.mxu0 0.0
        %4021 = vmatpush1.xpose.msra.mxu0 0.0
        %4022 = vmatprep.subr.mxu0 0.0
        %4023 = vmatpush1.xpose.msra.mxu0 0.0
        %4024 = vmatprep.subr.mxu0 0.0
        %4025 = vmatpush1.xpose.msra.mxu0 0.0
        %4026 = vmatprep.subr.mxu0 0.0
        %4027 = vmatpush1.xpose.msra.mxu0 0.0
        %4028 = vmatprep.subr.mxu0 0.0
        %4029 = vmatpush1.xpose.msra.mxu0 0.0
        %4030 = vmatprep.subr.mxu0 0.0
        %4031 = vmatpush1.xpose.msra.mxu0 0.0
        %4032 = vmatprep.subr.mxu0 0.0
        %4033 = vmatpush1.xpose.msra.mxu0 0.0
        %4034 = vmatprep.subr.mxu0 0.0
        %4035 = vmatpush1.xpose.msra.mxu0 0.0
        %4036 = vmatprep.subr.mxu0 0.0
        %4037 = vmatpush1.xpose.msra.mxu0 0.0
        %4038 = vmatprep.mubr.f32.mxu0 0.0
        %4039 = vmatmul.mubr.f32.gmra.mrb[0].mxu0 %v3949
        %v4040 = vpop.f32.mrb[0].mxu0
        %v4041 = vadd.f32 0.0, %v4040
        %v4042 = vpop.f32.mrb[0].mxu0
        %4043 = vmatprep.mubr.f32.mxu0 0.0
        %4044 = vmatmul.mubr.f32.gmra.mrb[0].mxu0 %v3952
        %v4045 = vpop.f32.mrb[0].mxu0
        %v4046 = vadd.f32 0.0, %v4045
        %v4047 = vpop.f32.mrb[0].mxu0
        %4048 = vmatprep.mubr.f32.mxu0 0.0
        %4049 = vmatmul.mubr.f32.gmra.mrb[0].mxu0 %v3955
        %v4050 = vpop.f32.mrb[0].mxu0
        %v4051 = vadd.f32 0.0, %v4050
        %v4052 = vpop.f32.mrb[0].mxu0
        %4053 = vmatprep.mubr.f32.mxu0 0.0
        %4054 = vmatmul.mubr.f32.gmra.mrb[0].mxu0 %v3958
        %v4055 = vpop.f32.mrb[0].mxu0
        %v4056 = vadd.f32 0.0, %v4055
        %v4057 = vpop.f32.mrb[0].mxu0
        %4058 = vmatprep.mubr.f32.mxu0 0.0
        %4059 = vmatmul.mubr.f32.gmra.mrb[0].mxu0 %v3961
        %v4060 = vpop.f32.mrb[0].mxu0
        %v4061 = vadd.f32 0.0, %v4060
        %v4062 = vpop.f32.mrb[0].mxu0
        %4063 = vmatprep.mubr.f32.mxu0 0.0
        %4064 = vmatmul.mubr.f32.gmra.mrb[0].mxu0 %v3964
        %v4065 = vpop.f32.mrb[0].mxu0
        %v4066 = vadd.f32 0.0, %v4065
        %v4067 = vpop.f32.mrb[0].mxu0
        %4068 = vmatprep.mubr.f32.mxu0 0.0
        %4069 = vmatmul.mubr.f32.gmra.mrb[0].mxu0 %v3967
        %v4070 = vpop.f32.mrb[0].mxu0
        %v4071 = vadd.f32 0.0, %v4070
        %v4072 = vpop.f32.mrb[0].mxu0
        %4073 = vmatprep.mubr.f32.mxu0 0.0
        %4074 = vmatmul.mubr.f32.gmra.mrb[0].mxu0 %v3970
        %v4075 = vpop.f32.mrb[0].mxu0
        %v4076 = vadd.f32 0.0, %v4075
        %v4077 = vpop.f32.mrb[0].mxu0
        %4078 = vdwg.mxu0
        %v4079 = vsel %vm3248, %v4041, -inf
        %4080 = vmax.xlane.f32.xlu0 %v4079
        %v4081 = vpop.xlane.xlu0 %4080
        %v4082 = vsel %vm3248, %v4046, -inf
        %4083 = vmax.xlane.f32.xlu0 %v4082
        %v4084 = vpop.xlane.xlu0 %4083
        %v4085 = vsel %vm3248, %v4051, -inf
        %4086 = vmax.xlane.f32.xlu0 %v4085
        %v4087 = vpop.xlane.xlu0 %4086
        %v4088 = vsel %vm3248, %v4056, -inf
        %4089 = vmax.xlane.f32.xlu0 %v4088
        %v4090 = vpop.xlane.xlu0 %4089
        %v4091 = vsel %vm3248, %v4061, -inf
        %4092 = vmax.xlane.f32.xlu0 %v4091
        %v4093 = vpop.xlane.xlu0 %4092
        %v4094 = vsel %vm3248, %v4066, -inf
        %4095 = vmax.xlane.f32.xlu0 %v4094
        %v4096 = vpop.xlane.xlu0 %4095
        %v4097 = vsel %vm3248, %v4071, -inf
        %4098 = vmax.xlane.f32.xlu0 %v4097
        %v4099 = vpop.xlane.xlu0 %4098
        %v4100 = vsel %vm3248, %v4076, -inf
        %4101 = vmax.xlane.f32.xlu0 %v4100
        %v4102 = vpop.xlane.xlu0 %4101
        %v4103 = vsub.f32 %v4041, %v4081
        %v4104 = vsub.f32 %v4046, %v4084
        %v4105 = vsub.f32 %v4051, %v4087
        %v4106 = vsub.f32 %v4056, %v4090
        %v4107 = vsub.f32 %v4061, %v4093
        %v4108 = vsub.f32 %v4066, %v4096
        %v4109 = vsub.f32 %v4071, %v4099
        %v4110 = vsub.f32 %v4076, %v4102
        %v4111 = vmul.f32 %v4103, 1.442695
        %v4112 = vpow.pop %v4111
        %v4113 = vmul.f32 %v4104, 1.442695
        %v4114 = vpow.pop %v4113
        %v4115 = vmul.f32 %v4105, 1.442695
        %v4116 = vpow.pop %v4115
        %v4117 = vmul.f32 %v4106, 1.442695
        %v4118 = vpow.pop %v4117
        %v4119 = vmul.f32 %v4107, 1.442695
        %v4120 = vpow.pop %v4119
        %v4121 = vmul.f32 %v4108, 1.442695
        %v4122 = vpow.pop %v4121
        %v4123 = vmul.f32 %v4109, 1.442695
        %v4124 = vpow.pop %v4123
        %v4125 = vmul.f32 %v4110, 1.442695
        %v4126 = vpow.pop %v4125
        %v4127 = vsel %vm3248, %v4112, 0.0
        %4128 = vadd.xlane.f32.xlu0 %v4127
        %v4129 = vpop.xlane.xlu0 %4128
        %v4130 = vsel %vm3248, %v4114, 0.0
        %4131 = vadd.xlane.f32.xlu0 %v4130
        %v4132 = vpop.xlane.xlu0 %4131
        %v4133 = vsel %vm3248, %v4116, 0.0
        %4134 = vadd.xlane.f32.xlu0 %v4133
        %v4135 = vpop.xlane.xlu0 %4134
        %v4136 = vsel %vm3248, %v4118, 0.0
        %4137 = vadd.xlane.f32.xlu0 %v4136
        %v4138 = vpop.xlane.xlu0 %4137
        %v4139 = vsel %vm3248, %v4120, 0.0
        %4140 = vadd.xlane.f32.xlu0 %v4139
        %v4141 = vpop.xlane.xlu0 %4140
        %v4142 = vsel %vm3248, %v4122, 0.0
        %4143 = vadd.xlane.f32.xlu0 %v4142
        %v4144 = vpop.xlane.xlu0 %4143
        %v4145 = vsel %vm3248, %v4124, 0.0
        %4146 = vadd.xlane.f32.xlu0 %v4145
        %v4147 = vpop.xlane.xlu0 %4146
        %v4148 = vsel %vm3248, %v4126, 0.0
        %4149 = vadd.xlane.f32.xlu0 %v4148
        %v4150 = vpop.xlane.xlu0 %4149
        %v4151 = vrcp.pop %v4129
        %v4152 = vmul.f32 %v4112, %v4151
        %v4153 = vrcp.pop %v4132
        %v4154 = vmul.f32 %v4114, %v4153
        %v4155 = vrcp.pop %v4135
        %v4156 = vmul.f32 %v4116, %v4155
        %v4157 = vrcp.pop %v4138
        %v4158 = vmul.f32 %v4118, %v4157
        %v4159 = vrcp.pop %v4141
        %v4160 = vmul.f32 %v4120, %v4159
        %v4161 = vrcp.pop %v4144
        %v4162 = vmul.f32 %v4122, %v4161
        %v4163 = vrcp.pop %v4147
        %v4164 = vmul.f32 %v4124, %v4163
        %v4165 = vrcp.pop %v4150
        %v4166 = vmul.f32 %v4126, %v4165
        %v4168 = vsel %vm3248, %v4152, 0
        %v4171 = vsel %vm3248, %v4154, 0
        %v4174 = vsel %vm3248, %v4156, 0
        %v4177 = vsel %vm3248, %v4158, 0
        %v4180 = vsel %vm3248, %v4160, 0
        %v4183 = vsel %vm3248, %v4162, 0
        %v4186 = vsel %vm3248, %v4164, 0
        %v4189 = vsel %vm3248, %v4166, 0
        %4191 = vmatprep.subr.mxu0 0.0
        %4192 = vmatpush1.msra.mxu0 %v3932
        %4193 = vmatprep.subr.mxu0 0.0
        %4194 = vmatpush1.msra.mxu0 0.0
        %4195 = vmatprep.subr.mxu0 0.0
        %4196 = vmatpush1.msra.mxu0 0.0
        %4197 = vmatprep.subr.mxu0 0.0
        %4198 = vmatpush1.msra.mxu0 0.0
        %4199 = vmatprep.subr.mxu0 0.0
        %4200 = vmatpush1.msra.mxu0 0.0
        %4201 = vmatprep.subr.mxu0 0.0
        %4202 = vmatpush1.msra.mxu0 0.0
        %4203 = vmatprep.subr.mxu0 0.0
        %4204 = vmatpush1.msra.mxu0 0.0
        %4205 = vmatprep.subr.mxu0 0.0
        %4206 = vmatpush1.msra.mxu0 0.0
        %4207 = vmatprep.subr.mxu0 0.0
        %4208 = vmatpush1.msra.mxu0 0.0
        %4209 = vmatprep.subr.mxu0 0.0
        %4210 = vmatpush1.msra.mxu0 0.0
        %4211 = vmatprep.subr.mxu0 0.0
        %4212 = vmatpush1.msra.mxu0 0.0
        %4213 = vmatprep.subr.mxu0 0.0
        %4214 = vmatpush1.msra.mxu0 0.0
        %4215 = vmatprep.subr.mxu0 0.0
        %4216 = vmatpush1.msra.mxu0 0.0
        %4217 = vmatprep.subr.mxu0 0.0
        %4218 = vmatpush1.msra.mxu0 0.0
        %4219 = vmatprep.subr.mxu0 0.0
        %4220 = vmatpush1.msra.mxu0 0.0
        %4221 = vmatprep.subr.mxu0 0.0
        %4222 = vmatpush1.msra.mxu0 0.0
        %4223 = vmatprep.subr.mxu0 0.0
        %4224 = vmatpush1.msra.mxu0 0.0
        %4225 = vmatprep.subr.mxu0 0.0
        %4226 = vmatpush1.msra.mxu0 0.0
        %4227 = vmatprep.subr.mxu0 0.0
        %4228 = vmatpush1.msra.mxu0 0.0
        %4229 = vmatprep.subr.mxu0 0.0
        %4230 = vmatpush1.msra.mxu0 0.0
        %4231 = vmatprep.subr.mxu0 0.0
        %4232 = vmatpush1.msra.mxu0 0.0
        %4233 = vmatprep.subr.mxu0 0.0
        %4234 = vmatpush1.msra.mxu0 0.0
        %4235 = vmatprep.subr.mxu0 0.0
        %4236 = vmatpush1.msra.mxu0 0.0
        %4237 = vmatprep.subr.mxu0 0.0
        %4238 = vmatpush1.msra.mxu0 0.0
        %4239 = vmatprep.subr.mxu0 0.0
        %4240 = vmatpush1.msra.mxu0 0.0
        %4241 = vmatprep.subr.mxu0 0.0
        %4242 = vmatpush1.msra.mxu0 0.0
        %4243 = vmatprep.subr.mxu0 0.0
        %4244 = vmatpush1.msra.mxu0 0.0
        %4245 = vmatprep.subr.mxu0 0.0
        %4246 = vmatpush1.msra.mxu0 0.0
        %4247 = vmatprep.subr.mxu0 0.0
        %4248 = vmatpush1.msra.mxu0 0.0
        %4249 = vmatprep.subr.mxu0 0.0
        %4250 = vmatpush1.msra.mxu0 0.0
        %4251 = vmatprep.subr.mxu0 0.0
        %4252 = vmatpush1.msra.mxu0 0.0
        %4253 = vmatprep.subr.mxu0 0.0
        %4254 = vmatpush1.msra.mxu0 0.0
        %4255 = vmatprep.mubr.f32.mxu0 0.0
        %4256 = vmatmul.mubr.f32.gmra.mrb[0].mxu0 %v4168
        %v4257 = vpop.f32.mrb[0].mxu0
        %v4258 = vadd.f32 0.0, %v4257
        %v4259 = vpop.f32.mrb[0].mxu0
        %4260 = vmatprep.mubr.f32.mxu0 0.0
        %4261 = vmatmul.mubr.f32.gmra.mrb[0].mxu0 %v4171
        %v4262 = vpop.f32.mrb[0].mxu0
        %v4263 = vadd.f32 0.0, %v4262
        %v4264 = vpop.f32.mrb[0].mxu0
        %4265 = vmatprep.mubr.f32.mxu0 0.0
        %4266 = vmatmul.mubr.f32.gmra.mrb[0].mxu0 %v4174
        %v4267 = vpop.f32.mrb[0].mxu0
        %v4268 = vadd.f32 0.0, %v4267
        %v4269 = vpop.f32.mrb[0].mxu0
        %4270 = vmatprep.mubr.f32.mxu0 0.0
        %4271 = vmatmul.mubr.f32.gmra.mrb[0].mxu0 %v4177
        %v4272 = vpop.f32.mrb[0].mxu0
        %v4273 = vadd.f32 0.0, %v4272
        %v4274 = vpop.f32.mrb[0].mxu0
        %4275 = vmatprep.mubr.f32.mxu0 0.0
        %4276 = vmatmul.mubr.f32.gmra.mrb[0].mxu0 %v4180
        %v4277 = vpop.f32.mrb[0].mxu0
        %v4278 = vadd.f32 0.0, %v4277
        %v4279 = vpop.f32.mrb[0].mxu0
        %4280 = vmatprep.mubr.f32.mxu0 0.0
        %4281 = vmatmul.mubr.f32.gmra.mrb[0].mxu0 %v4183
        %v4282 = vpop.f32.mrb[0].mxu0
        %v4283 = vadd.f32 0.0, %v4282
        %v4284 = vpop.f32.mrb[0].mxu0
        %4285 = vmatprep.mubr.f32.mxu0 0.0
        %4286 = vmatmul.mubr.f32.gmra.mrb[0].mxu0 %v4186
        %v4287 = vpop.f32.mrb[0].mxu0
        %v4288 = vadd.f32 0.0, %v4287
        %v4289 = vpop.f32.mrb[0].mxu0
        %4290 = vmatprep.mubr.f32.mxu0 0.0
        %4291 = vmatmul.mubr.f32.gmra.mrb[0].mxu0 %v4189
        %v4292 = vpop.f32.mrb[0].mxu0
        %v4293 = vadd.f32 0.0, %v4292
        %v4294 = vpop.f32.mrb[0].mxu0
        %4295 = vdwg.mxu0
        %v4296 = vmul.f32 %v4258, %v2991
        %v4297 = vmul.f32 %v4263, %v2992
        %v4298 = vmul.f32 %v4268, %v2993
        %v4299 = vmul.f32 %v4273, %v2994
        %v4300 = vmul.f32 %v4278, %v2995
        %v4301 = vmul.f32 %v4283, %v2996
        %v4302 = vmul.f32 %v4288, %v2997
        %v4303 = vmul.f32 %v4293, %v2998
        %v4304 = vsel %vm3060, %v4296, 0.0
        %v4305 = vsel %vm3060, %v4297, 0.0
        %v4306 = vadd.f32 %v4304, %v4305
        %v4307 = vsel %vm3060, %v4298, 0.0
        %v4308 = vadd.f32 %v4306, %v4307
        %v4309 = vsel %vm3060, %v4299, 0.0
        %v4310 = vadd.f32 %v4308, %v4309
        %v4311 = vsel %vm3060, %v4300, 0.0
        %v4312 = vadd.f32 %v4310, %v4311
        %v4313 = vsel %vm3060, %v4301, 0.0
        %v4314 = vadd.f32 %v4312, %v4313
        %v4315 = vsel %vm3060, %v4302, 0.0
        %v4316 = vadd.f32 %v4314, %v4315
        %v4317 = vsel %vm3060, %v4303, 0.0
        %v4318 = vadd.f32 %v4316, %v4317
        %v4319 = vpack.c.bf16 %v4318, %v4318
        %s4320 = scalar_lea.vmem %s13, 32
        %v4321 = vld [vmem:[%s4320] sm:$0xf]
        %v4322 = vld [vmem:[%s4320 + $0x4] sm:$0xf]
        %v4323 = vld [vmem:[%s4320 + $0x8] sm:$0xf]
        %v4324 = vld [vmem:[%s4320 + $0xc] sm:$0xf]
        %v4325 = vld [vmem:[%s4320 + $0x10] sm:$0xf]
        %v4326 = vld [vmem:[%s4320 + $0x14] sm:$0xf]
        %v4327 = vld [vmem:[%s4320 + $0x18] sm:$0xf]
        %v4328 = vld [vmem:[%s4320 + $0x1c] sm:$0xf]
        %s4329 = scalar_lea.vmem %s14, 1
        %v4330 = vld [vmem:[%s4329] sm:$0x1]
        %v4332 = vlaneseq
        %v4333 = vshrl.u32 %v4332, 7
        %v4334 = vsub.s32 0, %v4333
        %v4335 = vrot.slane %v4330, %v4334
        %v4345 = vunpack.c.l.b16 %v4321
        %v4346 = vunpack.c.l.b16 %v4322
        %v4347 = vunpack.c.l.b16 %v4323
        %v4348 = vunpack.c.l.b16 %v4324
        %v4349 = vunpack.c.l.b16 %v4325
        %v4350 = vunpack.c.l.b16 %v4326
        %v4351 = vunpack.c.l.b16 %v4327
        %v4352 = vunpack.c.l.b16 %v4328
        %v4353 = vpack.c.b16 %v4346, %v4345
        %v4354 = vpack.c.b16 %v4348, %v4347
        %v4355 = vpack.c.b16 %v4350, %v4349
        %v4356 = vpack.c.b16 %v4352, %v4351
        %v4362 = vsel %vm3060, %v4319, 0
        %4364 = vmatprep.subr.bf16.mxu0 0
        %4365 = vmatpush1.bf16.msra.mxu0 %v4353
        %4366 = vmatprep.subr.bf16.mxu0 0
        %4367 = vmatpush1.bf16.msra.mxu0 %v4354
        %4368 = vmatprep.subr.bf16.mxu0 0
        %4369 = vmatpush1.bf16.msra.mxu0 %v4355
        %4370 = vmatprep.subr.bf16.mxu0 0
        %4371 = vmatpush1.bf16.msra.mxu0 %v4356
        %4372 = vmatprep.subr.bf16.mxu0 0
        %4373 = vmatpush1.bf16.msra.mxu0 0
        %4374 = vmatprep.subr.bf16.mxu0 0
        %4375 = vmatpush1.bf16.msra.mxu0 0
        %4376 = vmatprep.subr.bf16.mxu0 0
        %4377 = vmatpush1.bf16.msra.mxu0 0
        %4378 = vmatprep.subr.bf16.mxu0 0
        %4379 = vmatpush1.bf16.msra.mxu0 0
        %4380 = vmatprep.subr.bf16.mxu0 0
        %4381 = vmatpush1.bf16.msra.mxu0 0
        %4382 = vmatprep.subr.bf16.mxu0 0
        %4383 = vmatpush1.bf16.msra.mxu0 0
        %4384 = vmatprep.subr.bf16.mxu0 0
        %4385 = vmatpush1.bf16.msra.mxu0 0
        %4386 = vmatprep.subr.bf16.mxu0 0
        %4387 = vmatpush1.bf16.msra.mxu0 0
        %4388 = vmatprep.subr.bf16.mxu0 0
        %4389 = vmatpush1.bf16.msra.mxu0 0
        %4390 = vmatprep.subr.bf16.mxu0 0
        %4391 = vmatpush1.bf16.msra.mxu0 0
        %4392 = vmatprep.subr.bf16.mxu0 0
        %4393 = vmatpush1.bf16.msra.mxu0 0
        %4394 = vmatprep.subr.bf16.mxu0 0
        %4395 = vmatpush1.bf16.msra.mxu0 0
        %4396 = vmatprep.mubr.bf16.mxu0 0
        %4397 = vmatmul.mubr.bf16.gmra.mrb[0].mxu0 %v4362
        %v4398 = vpop.f32.mrb[0].mxu0
        %v4399 = vadd.f32 %v4335, %v4398
        %v4400 = vpop.f32.mrb[0].mxu0
        %v4401 = vpop.f32.mrb[0].mxu0
        %v4402 = vpop.f32.mrb[0].mxu0
        %4403 = vdwg.mxu0
        %v4404 = vadd.f32 %v3828, %v4399
        %s4405 = scalar_lea.vmem %s15, 1
        %v4406 = vld [vmem:[%s4405] sm:$0x1]
        %s4407 = scalar_lea.vmem %s16, 1
        %v4408 = vld [vmem:[%s4407] sm:$0x1]
        %v4409 = vsel %vm3060, %v4404, 0.0
        %4410 = vadd.xlane.f32.xlu0 %v4409
        %v4411 = vpop.xlane.xlu0 %4410
        %v4412 = vmul.f32 %v4411, %v3578
        %v4413 = vsub.f32 %v4404, %v4412
        %v4414 = vmul.f32 %v4413, %v4413
        %v4415 = vsel %vm3060, %v4414, 0.0
        %4416 = vadd.xlane.f32.xlu0 %v4415
        %v4417 = vpop.xlane.xlu0 %4416
        %v4418 = vmul.f32 %v4417, %v3578
        %v4419 = vadd.f32 %v4418, 1e-05
        %v4420 = vrsqrt.pop %v4419
        %v4421 = vmul.f32 %v4413, %v4420
        %v4423 = vlaneseq
        %v4424 = vshrl.u32 %v4423, 7
        %v4425 = vsub.s32 0, %v4424
        %v4426 = vrot.slane %v4406, %v4425
        %v4428 = vmul.f32 %v4421, %v4426
        %v4430 = vlaneseq
        %v4431 = vshrl.u32 %v4430, 7
        %v4432 = vsub.s32 0, %v4431
        %v4433 = vrot.slane %v4408, %v4432
        %v4435 = vadd.f32 %v4428, %v4433
        %v4436 = vpack.c.bf16 %v4435, %v4435
        %s4437 = scalar_lea.vmem %s17, 32
        %v4438 = vld [vmem:[%s4437] sm:$0xf]
        %v4439 = vld [vmem:[%s4437 + $0x4] sm:$0xf]
        %v4440 = vld [vmem:[%s4437 + $0x8] sm:$0xf]
        %v4441 = vld [vmem:[%s4437 + $0xc] sm:$0xf]
        %v4442 = vld [vmem:[%s4437 + $0x10] sm:$0xf]
        %v4443 = vld [vmem:[%s4437 + $0x14] sm:$0xf]
        %v4444 = vld [vmem:[%s4437 + $0x18] sm:$0xf]
        %v4445 = vld [vmem:[%s4437 + $0x1c] sm:$0xf]
        %s4446 = scalar_lea.vmem %s18, 1
        %v4447 = vld [vmem:[%s4446] sm:$0x1]
        %v4449 = vlaneseq
        %v4450 = vshrl.u32 %v4449, 7
        %v4451 = vsub.s32 0, %v4450
        %v4452 = vrot.slane %v4447, %v4451
        %v4462 = vunpack.c.l.b16 %v4438
        %v4463 = vunpack.c.l.b16 %v4439
        %v4464 = vunpack.c.l.b16 %v4440
        %v4465 = vunpack.c.l.b16 %v4441
        %v4466 = vunpack.c.l.b16 %v4442
        %v4467 = vunpack.c.l.b16 %v4443
        %v4468 = vunpack.c.l.b16 %v4444
        %v4469 = vunpack.c.l.b16 %v4445
        %v4470 = vpack.c.b16 %v4463, %v4462
        %v4471 = vpack.c.b16 %v4465, %v4464
        %v4472 = vpack.c.b16 %v4467, %v4466
        %v4473 = vpack.c.b16 %v4469, %v4468
        %v4479 = vsel %vm3060, %v4436, 0
        %4481 = vmatprep.subr.bf16.mxu0 0
        %4482 = vmatpush1.bf16.msra.mxu0 %v4470
        %4483 = vmatprep.subr.bf16.mxu0 0
        %4484 = vmatpush1.bf16.msra.mxu0 %v4471
        %4485 = vmatprep.subr.bf16.mxu0 0
        %4486 = vmatpush1.bf16.msra.mxu0 %v4472
        %4487 = vmatprep.subr.bf16.mxu0 0
        %4488 = vmatpush1.bf16.msra.mxu0 %v4473
        %4489 = vmatprep.subr.bf16.mxu0 0
        %4490 = vmatpush1.bf16.msra.mxu0 0
        %4491 = vmatprep.subr.bf16.mxu0 0
        %4492 = vmatpush1.bf16.msra.mxu0 0
        %4493 = vmatprep.subr.bf16.mxu0 0
        %4494 = vmatpush1.bf16.msra.mxu0 0
        %4495 = vmatprep.subr.bf16.mxu0 0
        %4496 = vmatpush1.bf16.msra.mxu0 0
        %4497 = vmatprep.subr.bf16.mxu0 0
        %4498 = vmatpush1.bf16.msra.mxu0 0
        %4499 = vmatprep.subr.bf16.mxu0 0
        %4500 = vmatpush1.bf16.msra.mxu0 0
        %4501 = vmatprep.subr.bf16.mxu0 0
        %4502 = vmatpush1.bf16.msra.mxu0 0
        %4503 = vmatprep.subr.bf16.mxu0 0
        %4504 = vmatpush1.bf16.msra.mxu0 0
        %4505 = vmatprep.subr.bf16.mxu0 0
        %4506 = vmatpush1.bf16.msra.mxu0 0
        %4507 = vmatprep.subr.bf16.mxu0 0
        %4508 = vmatpush1.bf16.msra.mxu0 0
        %4509 = vmatprep.subr.bf16.mxu0 0
        %4510 = vmatpush1.bf16.msra.mxu0 0
        %4511 = vmatprep.subr.bf16.mxu0 0
        %4512 = vmatpush1.bf16.msra.mxu0 0
        %4513 = vmatprep.mubr.bf16.mxu0 0
        %4514 = vmatmul.mubr.bf16.gmra.mrb[0].mxu0 %v4479
        %v4515 = vpop.f32.mrb[0].mxu0
        %v4516 = vadd.f32 %v4452, %v4515
        %v4517 = vpop.f32.mrb[0].mxu0
        %v4518 = vpop.f32.mrb[0].mxu0
        %v4519 = vpop.f32.mrb[0].mxu0
        %4520 = vdwg.mxu0
        %v4521 = vmax.f32 %v4516, 0.0
        %v4522 = vpack.c.bf16 %v4521, %v4521
        %s4523 = scalar_lea.vmem %s19, 64
        %v4524 = vld [vmem:[%s4523] sm:$0xf]
        %v4525 = vld [vmem:[%s4523 + $0x4] sm:$0xf]
        %v4526 = vld [vmem:[%s4523 + $0x8] sm:$0xf]
        %v4527 = vld [vmem:[%s4523 + $0xc] sm:$0xf]
        %v4528 = vld [vmem:[%s4523 + $0x10] sm:$0xf]
        %v4529 = vld [vmem:[%s4523 + $0x14] sm:$0xf]
        %v4530 = vld [vmem:[%s4523 + $0x18] sm:$0xf]
        %v4531 = vld [vmem:[%s4523 + $0x1c] sm:$0xf]
        %v4532 = vld [vmem:[%s4523 + $0x20] sm:$0xf]
        %v4533 = vld [vmem:[%s4523 + $0x24] sm:$0xf]
        %v4534 = vld [vmem:[%s4523 + $0x28] sm:$0xf]
        %v4535 = vld [vmem:[%s4523 + $0x2c] sm:$0xf]
        %v4536 = vld [vmem:[%s4523 + $0x30] sm:$0xf]
        %v4537 = vld [vmem:[%s4523 + $0x34] sm:$0xf]
        %v4538 = vld [vmem:[%s4523 + $0x38] sm:$0xf]
        %v4539 = vld [vmem:[%s4523 + $0x3c] sm:$0xf]
        %s4540 = scalar_lea.vmem %s20, 1
        %v4541 = vld [vmem:[%s4540] sm:$0x1]
        %v4543 = vlaneseq
        %v4544 = vshrl.u32 %v4543, 7
        %v4545 = vsub.s32 0, %v4544
        %v4546 = vrot.slane %v4541, %v4545
        %v4564 = vunpack.c.l.b16 %v4524
        %v4565 = vunpack.c.l.b16 %v4525
        %v4566 = vunpack.c.l.b16 %v4526
        %v4567 = vunpack.c.l.b16 %v4527
        %v4568 = vunpack.c.l.b16 %v4528
        %v4569 = vunpack.c.l.b16 %v4529
        %v4570 = vunpack.c.l.b16 %v4530
        %v4571 = vunpack.c.l.b16 %v4531
        %v4572 = vunpack.c.l.b16 %v4532
        %v4573 = vunpack.c.l.b16 %v4533
        %v4574 = vunpack.c.l.b16 %v4534
        %v4575 = vunpack.c.l.b16 %v4535
        %v4576 = vunpack.c.l.b16 %v4536
        %v4577 = vunpack.c.l.b16 %v4537
        %v4578 = vunpack.c.l.b16 %v4538
        %v4579 = vunpack.c.l.b16 %v4539
        %v4580 = vpack.c.b16 %v4565, %v4564
        %v4581 = vpack.c.b16 %v4567, %v4566
        %v4582 = vpack.c.b16 %v4569, %v4568
        %v4583 = vpack.c.b16 %v4571, %v4570
        %v4584 = vpack.c.b16 %v4573, %v4572
        %v4585 = vpack.c.b16 %v4575, %v4574
        %v4586 = vpack.c.b16 %v4577, %v4576
        %v4587 = vpack.c.b16 %v4579, %v4578
        %4596 = vmatprep.subr.bf16.mxu0 0
        %4597 = vmatpush1.bf16.msra.mxu0 %v4580
        %4598 = vmatprep.subr.bf16.mxu0 0
        %4599 = vmatpush1.bf16.msra.mxu0 %v4581
        %4600 = vmatprep.subr.bf16.mxu0 0
        %4601 = vmatpush1.bf16.msra.mxu0 %v4582
        %4602 = vmatprep.subr.bf16.mxu0 0
        %4603 = vmatpush1.bf16.msra.mxu0 %v4583
        %4604 = vmatprep.subr.bf16.mxu0 0
        %4605 = vmatpush1.bf16.msra.mxu0 %v4584
        %4606 = vmatprep.subr.bf16.mxu0 0
        %4607 = vmatpush1.bf16.msra.mxu0 %v4585
        %4608 = vmatprep.subr.bf16.mxu0 0
        %4609 = vmatpush1.bf16.msra.mxu0 %v4586
        %4610 = vmatprep.subr.bf16.mxu0 0
        %4611 = vmatpush1.bf16.msra.mxu0 %v4587
        %4612 = vmatprep.subr.bf16.mxu0 0
        %4613 = vmatpush1.bf16.msra.mxu0 0
        %4614 = vmatprep.subr.bf16.mxu0 0
        %4615 = vmatpush1.bf16.msra.mxu0 0
        %4616 = vmatprep.subr.bf16.mxu0 0
        %4617 = vmatpush1.bf16.msra.mxu0 0
        %4618 = vmatprep.subr.bf16.mxu0 0
        %4619 = vmatpush1.bf16.msra.mxu0 0
        %4620 = vmatprep.subr.bf16.mxu0 0
        %4621 = vmatpush1.bf16.msra.mxu0 0
        %4622 = vmatprep.subr.bf16.mxu0 0
        %4623 = vmatpush1.bf16.msra.mxu0 0
        %4624 = vmatprep.subr.bf16.mxu0 0
        %4625 = vmatpush1.bf16.msra.mxu0 0
        %4626 = vmatprep.subr.bf16.mxu0 0
        %4627 = vmatpush1.bf16.msra.mxu0 0
        %4628 = vmatprep.mubr.bf16.mxu0 0
        %4629 = vmatmul.mubr.bf16.gmra.mrb[0].mxu0 %v4522
        %v4630 = vpop.f32.mrb[0].mxu0
        %v4631 = vadd.f32 %v4546, %v4630
        %v4632 = vpop.f32.mrb[0].mxu0
        %v4633 = vpop.f32.mrb[0].mxu0
        %v4634 = vpop.f32.mrb[0].mxu0
        %4635 = vdwg.mxu0
        %v4636 = vadd.f32 %v4435, %v4631
        %s4637 = scalar_lea.vmem %s21, 1
        %v4638 = vld [vmem:[%s4637] sm:$0x1]
        %s4639 = scalar_lea.vmem %s22, 1
        %v4640 = vld [vmem:[%s4639] sm:$0x1]
        %v4641 = vsel %vm3060, %v4636, 0.0
        %4642 = vadd.xlane.f32.xlu0 %v4641
        %v4643 = vpop.xlane.xlu0 %4642
        %v4644 = vmul.f32 %v4643, %v3578
        %v4645 = vsub.f32 %v4636, %v4644
        %v4646 = vmul.f32 %v4645, %v4645
        %v4647 = vsel %vm3060, %v4646, 0.0
        %4648 = vadd.xlane.f32.xlu0 %v4647
        %v4649 = vpop.xlane.xlu0 %4648
        %v4650 = vmul.f32 %v4649, %v3578
        %v4651 = vadd.f32 %v4650, 1e-05
        %v4652 = vrsqrt.pop %v4651
        %v4653 = vmul.f32 %v4645, %v4652
        %v4655 = vlaneseq
        %v4656 = vshrl.u32 %v4655, 7
        %v4657 = vsub.s32 0, %v4656
        %v4658 = vrot.slane %v4638, %v4657
        %v4660 = vmul.f32 %v4653, %v4658
        %v4662 = vlaneseq
        %v4663 = vshrl.u32 %v4662, 7
        %v4664 = vsub.s32 0, %v4663
        %v4665 = vrot.slane %v4640, %v4664
        %v4667 = vadd.f32 %v4660, %v4665
        %v4668 = vpack.c.bf16 %v4667, %v4667
        %s4669 = scalar_lea.vmem %s11, 128
        %v4670 = vld [vmem:[%s4669] sm:$0xff]
        %v4671 = vld [vmem:[%s4669 + $0x8] sm:$0xff]
        %v4672 = vld [vmem:[%s4669 + $0x10] sm:$0xff]
        %v4673 = vld [vmem:[%s4669 + $0x18] sm:$0xff]
        %v4674 = vld [vmem:[%s4669 + $0x20] sm:$0xff]
        %v4675 = vld [vmem:[%s4669 + $0x28] sm:$0xff]
        %v4676 = vld [vmem:[%s4669 + $0x30] sm:$0xff]
        %v4677 = vld [vmem:[%s4669 + $0x38] sm:$0xff]
        %s4678 = scalar_lea.vmem %s12, 4
        %v4679 = vld [vmem:[%s4678] sm:$0x3]
        %v4681 = vlaneseq
        %v4682 = vshrl.u32 %v4681, 7
        %v4683 = vsub.s32 0, %v4682
        %v4684 = vrot.slane %v4679, %v4683
        %v4685 = vlaneseq
        %v4686 = vshrl.u32 %v4685, 7
        %v4687 = vsub.s32 1, %v4686
        %v4688 = vrot.slane %v4679, %v4687
        %v4699 = vunpack.c.l.b16 %v4670
        %v4700 = vunpack.c.h.b16 %v4670
        %v4701 = vunpack.c.l.b16 %v4671
        %v4702 = vunpack.c.h.b16 %v4671
        %v4703 = vunpack.c.l.b16 %v4672
        %v4704 = vunpack.c.h.b16 %v4672
        %v4705 = vunpack.c.l.b16 %v4673
        %v4706 = vunpack.c.h.b16 %v4673
        %v4707 = vunpack.c.l.b16 %v4674
        %v4708 = vunpack.c.h.b16 %v4674
        %v4709 = vunpack.c.l.b16 %v4675
        %v4710 = vunpack.c.h.b16 %v4675
        %v4711 = vunpack.c.l.b16 %v4676
        %v4712 = vunpack.c.h.b16 %v4676
        %v4713 = vunpack.c.l.b16 %v4677
        %v4714 = vunpack.c.h.b16 %v4677
        %v4715 = vpack.c.b16 %v4701, %v4699
        %v4716 = vpack.c.b16 %v4702, %v4700
        %v4717 = vpack.c.b16 %v4705, %v4703
        %v4718 = vpack.c.b16 %v4706, %v4704
        %v4719 = vpack.c.b16 %v4709, %v4707
        %v4720 = vpack.c.b16 %v4710, %v4708
        %v4721 = vpack.c.b16 %v4713, %v4711
        %v4722 = vpack.c.b16 %v4714, %v4712
        %v4732 = vsel %vm3060, %v4668, 0
        %4734 = vmatprep.subr.bf16.mxu0 %v4716
        %4735 = vmatpush1.bf16.msra.mxu0 %v4715
        %4736 = vmatprep.subr.bf16.mxu0 %v4718
        %4737 = vmatpush1.bf16.msra.mxu0 %v4717
        %4738 = vmatprep.subr.bf16.mxu0 %v4720
        %4739 = vmatpush1.bf16.msra.mxu0 %v4719
        %4740 = vmatprep.subr.bf16.mxu0 %v4722
        %4741 = vmatpush1.bf16.msra.mxu0 %v4721
        %4742 = vmatprep.subr.bf16.mxu0 0
        %4743 = vmatpush1.bf16.msra.mxu0 0
        %4744 = vmatprep.subr.bf16.mxu0 0
        %4745 = vmatpush1.bf16.msra.mxu0 0
        %4746 = vmatprep.subr.bf16.mxu0 0
        %4747 = vmatpush1.bf16.msra.mxu0 0
        %4748 = vmatprep.subr.bf16.mxu0 0
        %4749 = vmatpush1.bf16.msra.mxu0 0
        %4750 = vmatprep.subr.bf16.mxu0 0
        %4751 = vmatpush1.bf16.msra.mxu0 0
        %4752 = vmatprep.subr.bf16.mxu0 0
        %4753 = vmatpush1.bf16.msra.mxu0 0
        %4754 = vmatprep.subr.bf16.mxu0 0
        %4755 = vmatpush1.bf16.msra.mxu0 0
        %4756 = vmatprep.subr.bf16.mxu0 0
        %4757 = vmatpush1.bf16.msra.mxu0 0
        %4758 = vmatprep.subr.bf16.mxu0 0
        %4759 = vmatpush1.bf16.msra.mxu0 0
        %4760 = vmatprep.subr.bf16.mxu0 0
        %4761 = vmatpush1.bf16.msra.mxu0 0
        %4762 = vmatprep.subr.bf16.mxu0 0
        %4763 = vmatpush1.bf16.msra.mxu0 0
        %4764 = vmatprep.subr.bf16.mxu0 0
        %4765 = vmatpush1.bf16.msra.mxu0 0
        %4766 = vmatprep.mubr.bf16.mxu0 0
        %4767 = vmatmul.mubr.bf16.gmra.mrb[0].mxu0 %v4732
        %v4768 = vpop.f32.mrb[0].mxu0
        %v4769 = vadd.f32 %v4684, %v4768
        %v4770 = vpop.f32.mrb[0].mxu0
        %v4771 = vadd.f32 %v4688, %v4770
        %v4772 = vpop.f32.mrb[0].mxu0
        %v4773 = vpop.f32.mrb[0].mxu0
        %4774 = vdwg.mxu0
        %v4775 = vmul.f32 %v4769, 0.35355338
        %v4776 = vmul.f32 %v4775, %v2991
        %v4777 = vmul.f32 %v4775, %v2992
        %v4778 = vmul.f32 %v4775, %v2993
        %v4779 = vmul.f32 %v4775, %v2994
        %v4780 = vmul.f32 %v4775, %v2995
        %v4781 = vmul.f32 %v4775, %v2996
        %v4782 = vmul.f32 %v4775, %v2997
        %v4783 = vmul.f32 %v4775, %v2998
        %4785 = vrot.lane.b32.xlu0 %v4769, 64
        %v4786 = vpop.permute.xlu0 %4785
        %v4788 = vsel %vm3060, %v4776, 0
        %v4791 = vsel %vm3060, %v4777, 0
        %v4794 = vsel %vm3060, %v4778, 0
        %v4797 = vsel %vm3060, %v4779, 0
        %v4800 = vsel %vm3060, %v4780, 0
        %v4803 = vsel %vm3060, %v4781, 0
        %v4806 = vsel %vm3060, %v4782, 0
        %v4809 = vsel %vm3060, %v4783, 0
        %v4811 = vsel %vm3060, %v4786, 0
        %4813 = vmatprep.subr.mxu0 0.0
        %4814 = vmatpush1.xpose.msra.mxu0 %v4811
        %4815 = vmatprep.subr.mxu0 0.0
        %4816 = vmatpush1.xpose.msra.mxu0 0.0
        %4817 = vmatprep.subr.mxu0 0.0
        %4818 = vmatpush1.xpose.msra.mxu0 0.0
        %4819 = vmatprep.subr.mxu0 0.0
        %4820 = vmatpush1.xpose.msra.mxu0 0.0
        %4821 = vmatprep.subr.mxu0 0.0
        %4822 = vmatpush1.xpose.msra.mxu0 0.0
        %4823 = vmatprep.subr.mxu0 0.0
        %4824 = vmatpush1.xpose.msra.mxu0 0.0
        %4825 = vmatprep.subr.mxu0 0.0
        %4826 = vmatpush1.xpose.msra.mxu0 0.0
        %4827 = vmatprep.subr.mxu0 0.0
        %4828 = vmatpush1.xpose.msra.mxu0 0.0
        %4829 = vmatprep.subr.mxu0 0.0
        %4830 = vmatpush1.xpose.msra.mxu0 0.0
        %4831 = vmatprep.subr.mxu0 0.0
        %4832 = vmatpush1.xpose.msra.mxu0 0.0
        %4833 = vmatprep.subr.mxu0 0.0
        %4834 = vmatpush1.xpose.msra.mxu0 0.0
        %4835 = vmatprep.subr.mxu0 0.0
        %4836 = vmatpush1.xpose.msra.mxu0 0.0
        %4837 = vmatprep.subr.mxu0 0.0
        %4838 = vmatpush1.xpose.msra.mxu0 0.0
        %4839 = vmatprep.subr.mxu0 0.0
        %4840 = vmatpush1.xpose.msra.mxu0 0.0
        %4841 = vmatprep.subr.mxu0 0.0
        %4842 = vmatpush1.xpose.msra.mxu0 0.0
        %4843 = vmatprep.subr.mxu0 0.0
        %4844 = vmatpush1.xpose.msra.mxu0 0.0
        %4845 = vmatprep.subr.mxu0 0.0
        %4846 = vmatpush1.xpose.msra.mxu0 0.0
        %4847 = vmatprep.subr.mxu0 0.0
        %4848 = vmatpush1.xpose.msra.mxu0 0.0
        %4849 = vmatprep.subr.mxu0 0.0
        %4850 = vmatpush1.xpose.msra.mxu0 0.0
        %4851 = vmatprep.subr.mxu0 0.0
        %4852 = vmatpush1.xpose.msra.mxu0 0.0
        %4853 = vmatprep.subr.mxu0 0.0
        %4854 = vmatpush1.xpose.msra.mxu0 0.0
        %4855 = vmatprep.subr.mxu0 0.0
        %4856 = vmatpush1.xpose.msra.mxu0 0.0
        %4857 = vmatprep.subr.mxu0 0.0
        %4858 = vmatpush1.xpose.msra.mxu0 0.0
        %4859 = vmatprep.subr.mxu0 0.0
        %4860 = vmatpush1.xpose.msra.mxu0 0.0
        %4861 = vmatprep.subr.mxu0 0.0
        %4862 = vmatpush1.xpose.msra.mxu0 0.0
        %4863 = vmatprep.subr.mxu0 0.0
        %4864 = vmatpush1.xpose.msra.mxu0 0.0
        %4865 = vmatprep.subr.mxu0 0.0
        %4866 = vmatpush1.xpose.msra.mxu0 0.0
        %4867 = vmatprep.subr.mxu0 0.0
        %4868 = vmatpush1.xpose.msra.mxu0 0.0
        %4869 = vmatprep.subr.mxu0 0.0
        %4870 = vmatpush1.xpose.msra.mxu0 0.0
        %4871 = vmatprep.subr.mxu0 0.0
        %4872 = vmatpush1.xpose.msra.mxu0 0.0
        %4873 = vmatprep.subr.mxu0 0.0
        %4874 = vmatpush1.xpose.msra.mxu0 0.0
        %4875 = vmatprep.subr.mxu0 0.0
        %4876 = vmatpush1.xpose.msra.mxu0 0.0
        %4877 = vmatprep.mubr.f32.mxu0 0.0
        %4878 = vmatmul.mubr.f32.gmra.mrb[0].mxu0 %v4788
        %v4879 = vpop.f32.mrb[0].mxu0
        %v4880 = vadd.f32 0.0, %v4879
        %v4881 = vpop.f32.mrb[0].mxu0
        %4882 = vmatprep.mubr.f32.mxu0 0.0
        %4883 = vmatmul.mubr.f32.gmra.mrb[0].mxu0 %v4791
        %v4884 = vpop.f32.mrb[0].mxu0
        %v4885 = vadd.f32 0.0, %v4884
        %v4886 = vpop.f32.mrb[0].mxu0
        %4887 = vmatprep.mubr.f32.mxu0 0.0
        %4888 = vmatmul.mubr.f32.gmra.mrb[0].mxu0 %v4794
        %v4889 = vpop.f32.mrb[0].mxu0
        %v4890 = vadd.f32 0.0, %v4889
        %v4891 = vpop.f32.mrb[0].mxu0
        %4892 = vmatprep.mubr.f32.mxu0 0.0
        %4893 = vmatmul.mubr.f32.gmra.mrb[0].mxu0 %v4797
        %v4894 = vpop.f32.mrb[0].mxu0
        %v4895 = vadd.f32 0.0, %v4894
        %v4896 = vpop.f32.mrb[0].mxu0
        %4897 = vmatprep.mubr.f32.mxu0 0.0
        %4898 = vmatmul.mubr.f32.gmra.mrb[0].mxu0 %v4800
        %v4899 = vpop.f32.mrb[0].mxu0
        %v4900 = vadd.f32 0.0, %v4899
        %v4901 = vpop.f32.mrb[0].mxu0
        %4902 = vmatprep.mubr.f32.mxu0 0.0
        %4903 = vmatmul.mubr.f32.gmra.mrb[0].mxu0 %v4803
        %v4904 = vpop.f32.mrb[0].mxu0
        %v4905 = vadd.f32 0.0, %v4904
        %v4906 = vpop.f32.mrb[0].mxu0
        %4907 = vmatprep.mubr.f32.mxu0 0.0
        %4908 = vmatmul.mubr.f32.gmra.mrb[0].mxu0 %v4806
        %v4909 = vpop.f32.mrb[0].mxu0
        %v4910 = vadd.f32 0.0, %v4909
        %v4911 = vpop.f32.mrb[0].mxu0
        %4912 = vmatprep.mubr.f32.mxu0 0.0
        %4913 = vmatmul.mubr.f32.gmra.mrb[0].mxu0 %v4809
        %v4914 = vpop.f32.mrb[0].mxu0
        %v4915 = vadd.f32 0.0, %v4914
        %v4916 = vpop.f32.mrb[0].mxu0
        %4917 = vdwg.mxu0
        %v4918 = vsel %vm3248, %v4880, -inf
        %4919 = vmax.xlane.f32.xlu0 %v4918
        %v4920 = vpop.xlane.xlu0 %4919
        %v4921 = vsel %vm3248, %v4885, -inf
        %4922 = vmax.xlane.f32.xlu0 %v4921
        %v4923 = vpop.xlane.xlu0 %4922
        %v4924 = vsel %vm3248, %v4890, -inf
        %4925 = vmax.xlane.f32.xlu0 %v4924
        %v4926 = vpop.xlane.xlu0 %4925
        %v4927 = vsel %vm3248, %v4895, -inf
        %4928 = vmax.xlane.f32.xlu0 %v4927
        %v4929 = vpop.xlane.xlu0 %4928
        %v4930 = vsel %vm3248, %v4900, -inf
        %4931 = vmax.xlane.f32.xlu0 %v4930
        %v4932 = vpop.xlane.xlu0 %4931
        %v4933 = vsel %vm3248, %v4905, -inf
        %4934 = vmax.xlane.f32.xlu0 %v4933
        %v4935 = vpop.xlane.xlu0 %4934
        %v4936 = vsel %vm3248, %v4910, -inf
        %4937 = vmax.xlane.f32.xlu0 %v4936
        %v4938 = vpop.xlane.xlu0 %4937
        %v4939 = vsel %vm3248, %v4915, -inf
        %4940 = vmax.xlane.f32.xlu0 %v4939
        %v4941 = vpop.xlane.xlu0 %4940
        %v4942 = vsub.f32 %v4880, %v4920
        %v4943 = vsub.f32 %v4885, %v4923
        %v4944 = vsub.f32 %v4890, %v4926
        %v4945 = vsub.f32 %v4895, %v4929
        %v4946 = vsub.f32 %v4900, %v4932
        %v4947 = vsub.f32 %v4905, %v4935
        %v4948 = vsub.f32 %v4910, %v4938
        %v4949 = vsub.f32 %v4915, %v4941
        %v4950 = vmul.f32 %v4942, 1.442695
        %v4951 = vpow.pop %v4950
        %v4952 = vmul.f32 %v4943, 1.442695
        %v4953 = vpow.pop %v4952
        %v4954 = vmul.f32 %v4944, 1.442695
        %v4955 = vpow.pop %v4954
        %v4956 = vmul.f32 %v4945, 1.442695
        %v4957 = vpow.pop %v4956
        %v4958 = vmul.f32 %v4946, 1.442695
        %v4959 = vpow.pop %v4958
        %v4960 = vmul.f32 %v4947, 1.442695
        %v4961 = vpow.pop %v4960
        %v4962 = vmul.f32 %v4948, 1.442695
        %v4963 = vpow.pop %v4962
        %v4964 = vmul.f32 %v4949, 1.442695
        %v4965 = vpow.pop %v4964
        %v4966 = vsel %vm3248, %v4951, 0.0
        %4967 = vadd.xlane.f32.xlu0 %v4966
        %v4968 = vpop.xlane.xlu0 %4967
        %v4969 = vsel %vm3248, %v4953, 0.0
        %4970 = vadd.xlane.f32.xlu0 %v4969
        %v4971 = vpop.xlane.xlu0 %4970
        %v4972 = vsel %vm3248, %v4955, 0.0
        %4973 = vadd.xlane.f32.xlu0 %v4972
        %v4974 = vpop.xlane.xlu0 %4973
        %v4975 = vsel %vm3248, %v4957, 0.0
        %4976 = vadd.xlane.f32.xlu0 %v4975
        %v4977 = vpop.xlane.xlu0 %4976
        %v4978 = vsel %vm3248, %v4959, 0.0
        %4979 = vadd.xlane.f32.xlu0 %v4978
        %v4980 = vpop.xlane.xlu0 %4979
        %v4981 = vsel %vm3248, %v4961, 0.0
        %4982 = vadd.xlane.f32.xlu0 %v4981
        %v4983 = vpop.xlane.xlu0 %4982
        %v4984 = vsel %vm3248, %v4963, 0.0
        %4985 = vadd.xlane.f32.xlu0 %v4984
        %v4986 = vpop.xlane.xlu0 %4985
        %v4987 = vsel %vm3248, %v4965, 0.0
        %4988 = vadd.xlane.f32.xlu0 %v4987
        %v4989 = vpop.xlane.xlu0 %4988
        %v4990 = vrcp.pop %v4968
        %v4991 = vmul.f32 %v4951, %v4990
        %v4992 = vrcp.pop %v4971
        %v4993 = vmul.f32 %v4953, %v4992
        %v4994 = vrcp.pop %v4974
        %v4995 = vmul.f32 %v4955, %v4994
        %v4996 = vrcp.pop %v4977
        %v4997 = vmul.f32 %v4957, %v4996
        %v4998 = vrcp.pop %v4980
        %v4999 = vmul.f32 %v4959, %v4998
        %v5000 = vrcp.pop %v4983
        %v5001 = vmul.f32 %v4961, %v5000
        %v5002 = vrcp.pop %v4986
        %v5003 = vmul.f32 %v4963, %v5002
        %v5004 = vrcp.pop %v4989
        %v5005 = vmul.f32 %v4965, %v5004
        %v5007 = vsel %vm3248, %v4991, 0
        %v5010 = vsel %vm3248, %v4993, 0
        %v5013 = vsel %vm3248, %v4995, 0
        %v5016 = vsel %vm3248, %v4997, 0
        %v5019 = vsel %vm3248, %v4999, 0
        %v5022 = vsel %vm3248, %v5001, 0
        %v5025 = vsel %vm3248, %v5003, 0
        %v5028 = vsel %vm3248, %v5005, 0
        %5030 = vmatprep.subr.mxu0 0.0
        %5031 = vmatpush1.msra.mxu0 %v4771
        %5032 = vmatprep.subr.mxu0 0.0
        %5033 = vmatpush1.msra.mxu0 0.0
        %5034 = vmatprep.subr.mxu0 0.0
        %5035 = vmatpush1.msra.mxu0 0.0
        %5036 = vmatprep.subr.mxu0 0.0
        %5037 = vmatpush1.msra.mxu0 0.0
        %5038 = vmatprep.subr.mxu0 0.0
        %5039 = vmatpush1.msra.mxu0 0.0
        %5040 = vmatprep.subr.mxu0 0.0
        %5041 = vmatpush1.msra.mxu0 0.0
        %5042 = vmatprep.subr.mxu0 0.0
        %5043 = vmatpush1.msra.mxu0 0.0
        %5044 = vmatprep.subr.mxu0 0.0
        %5045 = vmatpush1.msra.mxu0 0.0
        %5046 = vmatprep.subr.mxu0 0.0
        %5047 = vmatpush1.msra.mxu0 0.0
        %5048 = vmatprep.subr.mxu0 0.0
        %5049 = vmatpush1.msra.mxu0 0.0
        %5050 = vmatprep.subr.mxu0 0.0
        %5051 = vmatpush1.msra.mxu0 0.0
        %5052 = vmatprep.subr.mxu0 0.0
        %5053 = vmatpush1.msra.mxu0 0.0
        %5054 = vmatprep.subr.mxu0 0.0
        %5055 = vmatpush1.msra.mxu0 0.0
        %5056 = vmatprep.subr.mxu0 0.0
        %5057 = vmatpush1.msra.mxu0 0.0
        %5058 = vmatprep.subr.mxu0 0.0
        %5059 = vmatpush1.msra.mxu0 0.0
        %5060 = vmatprep.subr.mxu0 0.0
        %5061 = vmatpush1.msra.mxu0 0.0
        %5062 = vmatprep.subr.mxu0 0.0
        %5063 = vmatpush1.msra.mxu0 0.0
        %5064 = vmatprep.subr.mxu0 0.0
        %5065 = vmatpush1.msra.mxu0 0.0
        %5066 = vmatprep.subr.mxu0 0.0
        %5067 = vmatpush1.msra.mxu0 0.0
        %5068 = vmatprep.subr.mxu0 0.0
        %5069 = vmatpush1.msra.mxu0 0.0
        %5070 = vmatprep.subr.mxu0 0.0
        %5071 = vmatpush1.msra.mxu0 0.0
        %5072 = vmatprep.subr.mxu0 0.0
        %5073 = vmatpush1.msra.mxu0 0.0
        %5074 = vmatprep.subr.mxu0 0.0
        %5075 = vmatpush1.msra.mxu0 0.0
        %5076 = vmatprep.subr.mxu0 0.0
        %5077 = vmatpush1.msra.mxu0 0.0
        %5078 = vmatprep.subr.mxu0 0.0
        %5079 = vmatpush1.msra.mxu0 0.0
        %5080 = vmatprep.subr.mxu0 0.0
        %5081 = vmatpush1.msra.mxu0 0.0
        %5082 = vmatprep.subr.mxu0 0.0
        %5083 = vmatpush1.msra.mxu0 0.0
        %5084 = vmatprep.subr.mxu0 0.0
        %5085 = vmatpush1.msra.mxu0 0.0
        %5086 = vmatprep.subr.mxu0 0.0
        %5087 = vmatpush1.msra.mxu0 0.0
        %5088 = vmatprep.subr.mxu0 0.0
        %5089 = vmatpush1.msra.mxu0 0.0
        %5090 = vmatprep.subr.mxu0 0.0
        %5091 = vmatpush1.msra.mxu0 0.0
        %5092 = vmatprep.subr.mxu0 0.0
        %5093 = vmatpush1.msra.mxu0 0.0
        %5094 = vmatprep.mubr.f32.mxu0 0.0
        %5095 = vmatmul.mubr.f32.gmra.mrb[0].mxu0 %v5007
        %v5096 = vpop.f32.mrb[0].mxu0
        %v5097 = vadd.f32 0.0, %v5096
        %v5098 = vpop.f32.mrb[0].mxu0
        %5099 = vmatprep.mubr.f32.mxu0 0.0
        %5100 = vmatmul.mubr.f32.gmra.mrb[0].mxu0 %v5010
        %v5101 = vpop.f32.mrb[0].mxu0
        %v5102 = vadd.f32 0.0, %v5101
        %v5103 = vpop.f32.mrb[0].mxu0
        %5104 = vmatprep.mubr.f32.mxu0 0.0
        %5105 = vmatmul.mubr.f32.gmra.mrb[0].mxu0 %v5013
        %v5106 = vpop.f32.mrb[0].mxu0
        %v5107 = vadd.f32 0.0, %v5106
        %v5108 = vpop.f32.mrb[0].mxu0
        %5109 = vmatprep.mubr.f32.mxu0 0.0
        %5110 = vmatmul.mubr.f32.gmra.mrb[0].mxu0 %v5016
        %v5111 = vpop.f32.mrb[0].mxu0
        %v5112 = vadd.f32 0.0, %v5111
        %v5113 = vpop.f32.mrb[0].mxu0
        %5114 = vmatprep.mubr.f32.mxu0 0.0
        %5115 = vmatmul.mubr.f32.gmra.mrb[0].mxu0 %v5019
        %v5116 = vpop.f32.mrb[0].mxu0
        %v5117 = vadd.f32 0.0, %v5116
        %v5118 = vpop.f32.mrb[0].mxu0
        %5119 = vmatprep.mubr.f32.mxu0 0.0
        %5120 = vmatmul.mubr.f32.gmra.mrb[0].mxu0 %v5022
        %v5121 = vpop.f32.mrb[0].mxu0
        %v5122 = vadd.f32 0.0, %v5121
        %v5123 = vpop.f32.mrb[0].mxu0
        %5124 = vmatprep.mubr.f32.mxu0 0.0
        %5125 = vmatmul.mubr.f32.gmra.mrb[0].mxu0 %v5025
        %v5126 = vpop.f32.mrb[0].mxu0
        %v5127 = vadd.f32 0.0, %v5126
        %v5128 = vpop.f32.mrb[0].mxu0
        %5129 = vmatprep.mubr.f32.mxu0 0.0
        %5130 = vmatmul.mubr.f32.gmra.mrb[0].mxu0 %v5028
        %v5131 = vpop.f32.mrb[0].mxu0
        %v5132 = vadd.f32 0.0, %v5131
        %v5133 = vpop.f32.mrb[0].mxu0
        %5134 = vdwg.mxu0
        %v5135 = vmul.f32 %v5097, %v2991
        %v5136 = vmul.f32 %v5102, %v2992
        %v5137 = vmul.f32 %v5107, %v2993
        %v5138 = vmul.f32 %v5112, %v2994
        %v5139 = vmul.f32 %v5117, %v2995
        %v5140 = vmul.f32 %v5122, %v2996
        %v5141 = vmul.f32 %v5127, %v2997
        %v5142 = vmul.f32 %v5132, %v2998
        %v5143 = vsel %vm3060, %v5135, 0.0
        %v5144 = vsel %vm3060, %v5136, 0.0
        %v5145 = vadd.f32 %v5143, %v5144
        %v5146 = vsel %vm3060, %v5137, 0.0
        %v5147 = vadd.f32 %v5145, %v5146
        %v5148 = vsel %vm3060, %v5138, 0.0
        %v5149 = vadd.f32 %v5147, %v5148
        %v5150 = vsel %vm3060, %v5139, 0.0
        %v5151 = vadd.f32 %v5149, %v5150
        %v5152 = vsel %vm3060, %v5140, 0.0
        %v5153 = vadd.f32 %v5151, %v5152
        %v5154 = vsel %vm3060, %v5141, 0.0
        %v5155 = vadd.f32 %v5153, %v5154
        %v5156 = vsel %vm3060, %v5142, 0.0
        %v5157 = vadd.f32 %v5155, %v5156
        %v5158 = vpack.c.bf16 %v5157, %v5157
        %s5159 = scalar_lea.vmem %s13, 64
        %v5160 = vld [vmem:[%s5159] sm:$0xf]
        %v5161 = vld [vmem:[%s5159 + $0x4] sm:$0xf]
        %v5162 = vld [vmem:[%s5159 + $0x8] sm:$0xf]
        %v5163 = vld [vmem:[%s5159 + $0xc] sm:$0xf]
        %v5164 = vld [vmem:[%s5159 + $0x10] sm:$0xf]
        %v5165 = vld [vmem:[%s5159 + $0x14] sm:$0xf]
        %v5166 = vld [vmem:[%s5159 + $0x18] sm:$0xf]
        %v5167 = vld [vmem:[%s5159 + $0x1c] sm:$0xf]
        %s5168 = scalar_lea.vmem %s14, 2
        %v5169 = vld [vmem:[%s5168] sm:$0x1]
        %v5171 = vlaneseq
        %v5172 = vshrl.u32 %v5171, 7
        %v5173 = vsub.s32 0, %v5172
        %v5174 = vrot.slane %v5169, %v5173
        %v5184 = vunpack.c.l.b16 %v5160
        %v5185 = vunpack.c.l.b16 %v5161
        %v5186 = vunpack.c.l.b16 %v5162
        %v5187 = vunpack.c.l.b16 %v5163
        %v5188 = vunpack.c.l.b16 %v5164
        %v5189 = vunpack.c.l.b16 %v5165
        %v5190 = vunpack.c.l.b16 %v5166
        %v5191 = vunpack.c.l.b16 %v5167
        %v5192 = vpack.c.b16 %v5185, %v5184
        %v5193 = vpack.c.b16 %v5187, %v5186
        %v5194 = vpack.c.b16 %v5189, %v5188
        %v5195 = vpack.c.b16 %v5191, %v5190
        %v5201 = vsel %vm3060, %v5158, 0
        %5203 = vmatprep.subr.bf16.mxu0 0
        %5204 = vmatpush1.bf16.msra.mxu0 %v5192
        %5205 = vmatprep.subr.bf16.mxu0 0
        %5206 = vmatpush1.bf16.msra.mxu0 %v5193
        %5207 = vmatprep.subr.bf16.mxu0 0
        %5208 = vmatpush1.bf16.msra.mxu0 %v5194
        %5209 = vmatprep.subr.bf16.mxu0 0
        %5210 = vmatpush1.bf16.msra.mxu0 %v5195
        %5211 = vmatprep.subr.bf16.mxu0 0
        %5212 = vmatpush1.bf16.msra.mxu0 0
        %5213 = vmatprep.subr.bf16.mxu0 0
        %5214 = vmatpush1.bf16.msra.mxu0 0
        %5215 = vmatprep.subr.bf16.mxu0 0
        %5216 = vmatpush1.bf16.msra.mxu0 0
        %5217 = vmatprep.subr.bf16.mxu0 0
        %5218 = vmatpush1.bf16.msra.mxu0 0
        %5219 = vmatprep.subr.bf16.mxu0 0
        %5220 = vmatpush1.bf16.msra.mxu0 0
        %5221 = vmatprep.subr.bf16.mxu0 0
        %5222 = vmatpush1.bf16.msra.mxu0 0
        %5223 = vmatprep.subr.bf16.mxu0 0
        %5224 = vmatpush1.bf16.msra.mxu0 0
        %5225 = vmatprep.subr.bf16.mxu0 0
        %5226 = vmatpush1.bf16.msra.mxu0 0
        %5227 = vmatprep.subr.bf16.mxu0 0
        %5228 = vmatpush1.bf16.msra.mxu0 0
        %5229 = vmatprep.subr.bf16.mxu0 0
        %5230 = vmatpush1.bf16.msra.mxu0 0
        %5231 = vmatprep.subr.bf16.mxu0 0
        %5232 = vmatpush1.bf16.msra.mxu0 0
        %5233 = vmatprep.subr.bf16.mxu0 0
        %5234 = vmatpush1.bf16.msra.mxu0 0
        %5235 = vmatprep.mubr.bf16.mxu0 0
        %5236 = vmatmul.mubr.bf16.gmra.mrb[0].mxu0 %v5201
        %v5237 = vpop.f32.mrb[0].mxu0
        %v5238 = vadd.f32 %v5174, %v5237
        %v5239 = vpop.f32.mrb[0].mxu0
        %v5240 = vpop.f32.mrb[0].mxu0
        %v5241 = vpop.f32.mrb[0].mxu0
        %5242 = vdwg.mxu0
        %v5243 = vadd.f32 %v4667, %v5238
        %s5244 = scalar_lea.vmem %s15, 2
        %v5245 = vld [vmem:[%s5244] sm:$0x1]
        %s5246 = scalar_lea.vmem %s16, 2
        %v5247 = vld [vmem:[%s5246] sm:$0x1]
        %v5248 = vsel %vm3060, %v5243, 0.0
        %5249 = vadd.xlane.f32.xlu0 %v5248
        %v5250 = vpop.xlane.xlu0 %5249
        %v5251 = vmul.f32 %v5250, %v3578
        %v5252 = vsub.f32 %v5243, %v5251
        %v5253 = vmul.f32 %v5252, %v5252
        %v5254 = vsel %vm3060, %v5253, 0.0
        %5255 = vadd.xlane.f32.xlu0 %v5254
        %v5256 = vpop.xlane.xlu0 %5255
        %v5257 = vmul.f32 %v5256, %v3578
        %v5258 = vadd.f32 %v5257, 1e-05
        %v5259 = vrsqrt.pop %v5258
        %v5260 = vmul.f32 %v5252, %v5259
        %v5262 = vlaneseq
        %v5263 = vshrl.u32 %v5262, 7
        %v5264 = vsub.s32 0, %v5263
        %v5265 = vrot.slane %v5245, %v5264
        %v5267 = vmul.f32 %v5260, %v5265
        %v5269 = vlaneseq
        %v5270 = vshrl.u32 %v5269, 7
        %v5271 = vsub.s32 0, %v5270
        %v5272 = vrot.slane %v5247, %v5271
        %v5274 = vadd.f32 %v5267, %v5272
        %v5275 = vpack.c.bf16 %v5274, %v5274
        %s5276 = scalar_lea.vmem %s17, 64
        %v5277 = vld [vmem:[%s5276] sm:$0xf]
        %v5278 = vld [vmem:[%s5276 + $0x4] sm:$0xf]
        %v5279 = vld [vmem:[%s5276 + $0x8] sm:$0xf]
        %v5280 = vld [vmem:[%s5276 + $0xc] sm:$0xf]
        %v5281 = vld [vmem:[%s5276 + $0x10] sm:$0xf]
        %v5282 = vld [vmem:[%s5276 + $0x14] sm:$0xf]
        %v5283 = vld [vmem:[%s5276 + $0x18] sm:$0xf]
        %v5284 = vld [vmem:[%s5276 + $0x1c] sm:$0xf]
        %s5285 = scalar_lea.vmem %s18, 2
        %v5286 = vld [vmem:[%s5285] sm:$0x1]
        %v5288 = vlaneseq
        %v5289 = vshrl.u32 %v5288, 7
        %v5290 = vsub.s32 0, %v5289
        %v5291 = vrot.slane %v5286, %v5290
        %v5301 = vunpack.c.l.b16 %v5277
        %v5302 = vunpack.c.l.b16 %v5278
        %v5303 = vunpack.c.l.b16 %v5279
        %v5304 = vunpack.c.l.b16 %v5280
        %v5305 = vunpack.c.l.b16 %v5281
        %v5306 = vunpack.c.l.b16 %v5282
        %v5307 = vunpack.c.l.b16 %v5283
        %v5308 = vunpack.c.l.b16 %v5284
        %v5309 = vpack.c.b16 %v5302, %v5301
        %v5310 = vpack.c.b16 %v5304, %v5303
        %v5311 = vpack.c.b16 %v5306, %v5305
        %v5312 = vpack.c.b16 %v5308, %v5307
        %v5318 = vsel %vm3060, %v5275, 0
        %5320 = vmatprep.subr.bf16.mxu0 0
        %5321 = vmatpush1.bf16.msra.mxu0 %v5309
        %5322 = vmatprep.subr.bf16.mxu0 0
        %5323 = vmatpush1.bf16.msra.mxu0 %v5310
        %5324 = vmatprep.subr.bf16.mxu0 0
        %5325 = vmatpush1.bf16.msra.mxu0 %v5311
        %5326 = vmatprep.subr.bf16.mxu0 0
        %5327 = vmatpush1.bf16.msra.mxu0 %v5312
        %5328 = vmatprep.subr.bf16.mxu0 0
        %5329 = vmatpush1.bf16.msra.mxu0 0
        %5330 = vmatprep.subr.bf16.mxu0 0
        %5331 = vmatpush1.bf16.msra.mxu0 0
        %5332 = vmatprep.subr.bf16.mxu0 0
        %5333 = vmatpush1.bf16.msra.mxu0 0
        %5334 = vmatprep.subr.bf16.mxu0 0
        %5335 = vmatpush1.bf16.msra.mxu0 0
        %5336 = vmatprep.subr.bf16.mxu0 0
        %5337 = vmatpush1.bf16.msra.mxu0 0
        %5338 = vmatprep.subr.bf16.mxu0 0
        %5339 = vmatpush1.bf16.msra.mxu0 0
        %5340 = vmatprep.subr.bf16.mxu0 0
        %5341 = vmatpush1.bf16.msra.mxu0 0
        %5342 = vmatprep.subr.bf16.mxu0 0
        %5343 = vmatpush1.bf16.msra.mxu0 0
        %5344 = vmatprep.subr.bf16.mxu0 0
        %5345 = vmatpush1.bf16.msra.mxu0 0
        %5346 = vmatprep.subr.bf16.mxu0 0
        %5347 = vmatpush1.bf16.msra.mxu0 0
        %5348 = vmatprep.subr.bf16.mxu0 0
        %5349 = vmatpush1.bf16.msra.mxu0 0
        %5350 = vmatprep.subr.bf16.mxu0 0
        %5351 = vmatpush1.bf16.msra.mxu0 0
        %5352 = vmatprep.mubr.bf16.mxu0 0
        %5353 = vmatmul.mubr.bf16.gmra.mrb[0].mxu0 %v5318
        %v5354 = vpop.f32.mrb[0].mxu0
        %v5355 = vadd.f32 %v5291, %v5354
        %v5356 = vpop.f32.mrb[0].mxu0
        %v5357 = vpop.f32.mrb[0].mxu0
        %v5358 = vpop.f32.mrb[0].mxu0
        %5359 = vdwg.mxu0
        %v5360 = vmax.f32 %v5355, 0.0
        %v5361 = vpack.c.bf16 %v5360, %v5360
        %s5362 = scalar_lea.vmem %s19, 128
        %v5363 = vld [vmem:[%s5362] sm:$0xf]
        %v5364 = vld [vmem:[%s5362 + $0x4] sm:$0xf]
        %v5365 = vld [vmem:[%s5362 + $0x8] sm:$0xf]
        %v5366 = vld [vmem:[%s5362 + $0xc] sm:$0xf]
        %v5367 = vld [vmem:[%s5362 + $0x10] sm:$0xf]
        %v5368 = vld [vmem:[%s5362 + $0x14] sm:$0xf]
        %v5369 = vld [vmem:[%s5362 + $0x18] sm:$0xf]
        %v5370 = vld [vmem:[%s5362 + $0x1c] sm:$0xf]
        %v5371 = vld [vmem:[%s5362 + $0x20] sm:$0xf]
        %v5372 = vld [vmem:[%s5362 + $0x24] sm:$0xf]
        %v5373 = vld [vmem:[%s5362 + $0x28] sm:$0xf]
        %v5374 = vld [vmem:[%s5362 + $0x2c] sm:$0xf]
        %v5375 = vld [vmem:[%s5362 + $0x30] sm:$0xf]
        %v5376 = vld [vmem:[%s5362 + $0x34] sm:$0xf]
        %v5377 = vld [vmem:[%s5362 + $0x38] sm:$0xf]
        %v5378 = vld [vmem:[%s5362 + $0x3c] sm:$0xf]
        %s5379 = scalar_lea.vmem %s20, 2
        %v5380 = vld [vmem:[%s5379] sm:$0x1]
        %v5382 = vlaneseq
        %v5383 = vshrl.u32 %v5382, 7
        %v5384 = vsub.s32 0, %v5383
        %v5385 = vrot.slane %v5380, %v5384
        %v5403 = vunpack.c.l.b16 %v5363
        %v5404 = vunpack.c.l.b16 %v5364
        %v5405 = vunpack.c.l.b16 %v5365
        %v5406 = vunpack.c.l.b16 %v5366
        %v5407 = vunpack.c.l.b16 %v5367
        %v5408 = vunpack.c.l.b16 %v5368
        %v5409 = vunpack.c.l.b16 %v5369
        %v5410 = vunpack.c.l.b16 %v5370
        %v5411 = vunpack.c.l.b16 %v5371
        %v5412 = vunpack.c.l.b16 %v5372
        %v5413 = vunpack.c.l.b16 %v5373
        %v5414 = vunpack.c.l.b16 %v5374
        %v5415 = vunpack.c.l.b16 %v5375
        %v5416 = vunpack.c.l.b16 %v5376
        %v5417 = vunpack.c.l.b16 %v5377
        %v5418 = vunpack.c.l.b16 %v5378
        %v5419 = vpack.c.b16 %v5404, %v5403
        %v5420 = vpack.c.b16 %v5406, %v5405
        %v5421 = vpack.c.b16 %v5408, %v5407
        %v5422 = vpack.c.b16 %v5410, %v5409
        %v5423 = vpack.c.b16 %v5412, %v5411
        %v5424 = vpack.c.b16 %v5414, %v5413
        %v5425 = vpack.c.b16 %v5416, %v5415
        %v5426 = vpack.c.b16 %v5418, %v5417
        %5435 = vmatprep.subr.bf16.mxu0 0
        %5436 = vmatpush1.bf16.msra.mxu0 %v5419
        %5437 = vmatprep.subr.bf16.mxu0 0
        %5438 = vmatpush1.bf16.msra.mxu0 %v5420
        %5439 = vmatprep.subr.bf16.mxu0 0
        %5440 = vmatpush1.bf16.msra.mxu0 %v5421
        %5441 = vmatprep.subr.bf16.mxu0 0
        %5442 = vmatpush1.bf16.msra.mxu0 %v5422
        %5443 = vmatprep.subr.bf16.mxu0 0
        %5444 = vmatpush1.bf16.msra.mxu0 %v5423
        %5445 = vmatprep.subr.bf16.mxu0 0
        %5446 = vmatpush1.bf16.msra.mxu0 %v5424
        %5447 = vmatprep.subr.bf16.mxu0 0
        %5448 = vmatpush1.bf16.msra.mxu0 %v5425
        %5449 = vmatprep.subr.bf16.mxu0 0
        %5450 = vmatpush1.bf16.msra.mxu0 %v5426
        %5451 = vmatprep.subr.bf16.mxu0 0
        %5452 = vmatpush1.bf16.msra.mxu0 0
        %5453 = vmatprep.subr.bf16.mxu0 0
        %5454 = vmatpush1.bf16.msra.mxu0 0
        %5455 = vmatprep.subr.bf16.mxu0 0
        %5456 = vmatpush1.bf16.msra.mxu0 0
        %5457 = vmatprep.subr.bf16.mxu0 0
        %5458 = vmatpush1.bf16.msra.mxu0 0
        %5459 = vmatprep.subr.bf16.mxu0 0
        %5460 = vmatpush1.bf16.msra.mxu0 0
        %5461 = vmatprep.subr.bf16.mxu0 0
        %5462 = vmatpush1.bf16.msra.mxu0 0
        %5463 = vmatprep.subr.bf16.mxu0 0
        %5464 = vmatpush1.bf16.msra.mxu0 0
        %5465 = vmatprep.subr.bf16.mxu0 0
        %5466 = vmatpush1.bf16.msra.mxu0 0
        %5467 = vmatprep.mubr.bf16.mxu0 0
        %5468 = vmatmul.mubr.bf16.gmra.mrb[0].mxu0 %v5361
        %v5469 = vpop.f32.mrb[0].mxu0
        %v5470 = vadd.f32 %v5385, %v5469
        %v5471 = vpop.f32.mrb[0].mxu0
        %v5472 = vpop.f32.mrb[0].mxu0
        %v5473 = vpop.f32.mrb[0].mxu0
        %5474 = vdwg.mxu0
        %v5475 = vadd.f32 %v5274, %v5470
        %s5476 = scalar_lea.vmem %s21, 2
        %v5477 = vld [vmem:[%s5476] sm:$0x1]
        %s5478 = scalar_lea.vmem %s22, 2
        %v5479 = vld [vmem:[%s5478] sm:$0x1]
        %v5480 = vsel %vm3060, %v5475, 0.0
        %5481 = vadd.xlane.f32.xlu0 %v5480
        %v5482 = vpop.xlane.xlu0 %5481
        %v5483 = vmul.f32 %v5482, %v3578
        %v5484 = vsub.f32 %v5475, %v5483
        %v5485 = vmul.f32 %v5484, %v5484
        %v5486 = vsel %vm3060, %v5485, 0.0
        %5487 = vadd.xlane.f32.xlu0 %v5486
        %v5488 = vpop.xlane.xlu0 %5487
        %v5489 = vmul.f32 %v5488, %v3578
        %v5490 = vadd.f32 %v5489, 1e-05
        %v5491 = vrsqrt.pop %v5490
        %v5492 = vmul.f32 %v5484, %v5491
        %v5494 = vlaneseq
        %v5495 = vshrl.u32 %v5494, 7
        %v5496 = vsub.s32 0, %v5495
        %v5497 = vrot.slane %v5477, %v5496
        %v5499 = vmul.f32 %v5492, %v5497
        %v5501 = vlaneseq
        %v5502 = vshrl.u32 %v5501, 7
        %v5503 = vsub.s32 0, %v5502
        %v5504 = vrot.slane %v5479, %v5503
        %v5506 = vadd.f32 %v5499, %v5504
        %v5507 = vpack.c.bf16 %v5506, %v5506
        %s5508 = scalar_lea.vmem %s11, 192
        %v5509 = vld [vmem:[%s5508] sm:$0xff]
        %v5510 = vld [vmem:[%s5508 + $0x8] sm:$0xff]
        %v5511 = vld [vmem:[%s5508 + $0x10] sm:$0xff]
        %v5512 = vld [vmem:[%s5508 + $0x18] sm:$0xff]
        %v5513 = vld [vmem:[%s5508 + $0x20] sm:$0xff]
        %v5514 = vld [vmem:[%s5508 + $0x28] sm:$0xff]
        %v5515 = vld [vmem:[%s5508 + $0x30] sm:$0xff]
        %v5516 = vld [vmem:[%s5508 + $0x38] sm:$0xff]
        %s5517 = scalar_lea.vmem %s12, 6
        %v5518 = vld [vmem:[%s5517] sm:$0x3]
        %v5520 = vlaneseq
        %v5521 = vshrl.u32 %v5520, 7
        %v5522 = vsub.s32 0, %v5521
        %v5523 = vrot.slane %v5518, %v5522
        %v5524 = vlaneseq
        %v5525 = vshrl.u32 %v5524, 7
        %v5526 = vsub.s32 1, %v5525
        %v5527 = vrot.slane %v5518, %v5526
        %v5538 = vunpack.c.l.b16 %v5509
        %v5539 = vunpack.c.h.b16 %v5509
        %v5540 = vunpack.c.l.b16 %v5510
        %v5541 = vunpack.c.h.b16 %v5510
        %v5542 = vunpack.c.l.b16 %v5511
        %v5543 = vunpack.c.h.b16 %v5511
        %v5544 = vunpack.c.l.b16 %v5512
        %v5545 = vunpack.c.h.b16 %v5512
        %v5546 = vunpack.c.l.b16 %v5513
        %v5547 = vunpack.c.h.b16 %v5513
        %v5548 = vunpack.c.l.b16 %v5514
        %v5549 = vunpack.c.h.b16 %v5514
        %v5550 = vunpack.c.l.b16 %v5515
        %v5551 = vunpack.c.h.b16 %v5515
        %v5552 = vunpack.c.l.b16 %v5516
        %v5553 = vunpack.c.h.b16 %v5516
        %v5554 = vpack.c.b16 %v5540, %v5538
        %v5555 = vpack.c.b16 %v5541, %v5539
        %v5556 = vpack.c.b16 %v5544, %v5542
        %v5557 = vpack.c.b16 %v5545, %v5543
        %v5558 = vpack.c.b16 %v5548, %v5546
        %v5559 = vpack.c.b16 %v5549, %v5547
        %v5560 = vpack.c.b16 %v5552, %v5550
        %v5561 = vpack.c.b16 %v5553, %v5551
        %v5571 = vsel %vm3060, %v5507, 0
        %5573 = vmatprep.subr.bf16.mxu0 %v5555
        %5574 = vmatpush1.bf16.msra.mxu0 %v5554
        %5575 = vmatprep.subr.bf16.mxu0 %v5557
        %5576 = vmatpush1.bf16.msra.mxu0 %v5556
        %5577 = vmatprep.subr.bf16.mxu0 %v5559
        %5578 = vmatpush1.bf16.msra.mxu0 %v5558
        %5579 = vmatprep.subr.bf16.mxu0 %v5561
        %5580 = vmatpush1.bf16.msra.mxu0 %v5560
        %5581 = vmatprep.subr.bf16.mxu0 0
        %5582 = vmatpush1.bf16.msra.mxu0 0
        %5583 = vmatprep.subr.bf16.mxu0 0
        %5584 = vmatpush1.bf16.msra.mxu0 0
        %5585 = vmatprep.subr.bf16.mxu0 0
        %5586 = vmatpush1.bf16.msra.mxu0 0
        %5587 = vmatprep.subr.bf16.mxu0 0
        %5588 = vmatpush1.bf16.msra.mxu0 0
        %5589 = vmatprep.subr.bf16.mxu0 0
        %5590 = vmatpush1.bf16.msra.mxu0 0
        %5591 = vmatprep.subr.bf16.mxu0 0
        %5592 = vmatpush1.bf16.msra.mxu0 0
        %5593 = vmatprep.subr.bf16.mxu0 0
        %5594 = vmatpush1.bf16.msra.mxu0 0
        %5595 = vmatprep.subr.bf16.mxu0 0
        %5596 = vmatpush1.bf16.msra.mxu0 0
        %5597 = vmatprep.subr.bf16.mxu0 0
        %5598 = vmatpush1.bf16.msra.mxu0 0
        %5599 = vmatprep.subr.bf16.mxu0 0
        %5600 = vmatpush1.bf16.msra.mxu0 0
        %5601 = vmatprep.subr.bf16.mxu0 0
        %5602 = vmatpush1.bf16.msra.mxu0 0
        %5603 = vmatprep.subr.bf16.mxu0 0
        %5604 = vmatpush1.bf16.msra.mxu0 0
        %5605 = vmatprep.mubr.bf16.mxu0 0
        %5606 = vmatmul.mubr.bf16.gmra.mrb[0].mxu0 %v5571
        %v5607 = vpop.f32.mrb[0].mxu0
        %v5608 = vadd.f32 %v5523, %v5607
        %v5609 = vpop.f32.mrb[0].mxu0
        %v5610 = vadd.f32 %v5527, %v5609
        %v5611 = vpop.f32.mrb[0].mxu0
        %v5612 = vpop.f32.mrb[0].mxu0
        %5613 = vdwg.mxu0
        %v5614 = vmul.f32 %v5608, 0.35355338
        %v5615 = vmul.f32 %v5614, %v2991
        %v5616 = vmul.f32 %v5614, %v2992
        %v5617 = vmul.f32 %v5614, %v2993
        %v5618 = vmul.f32 %v5614, %v2994
        %v5619 = vmul.f32 %v5614, %v2995
        %v5620 = vmul.f32 %v5614, %v2996
        %v5621 = vmul.f32 %v5614, %v2997
        %v5622 = vmul.f32 %v5614, %v2998
        %5624 = vrot.lane.b32.xlu0 %v5608, 64
        %v5625 = vpop.permute.xlu0 %5624
        %v5627 = vsel %vm3060, %v5615, 0
        %v5630 = vsel %vm3060, %v5616, 0
        %v5633 = vsel %vm3060, %v5617, 0
        %v5636 = vsel %vm3060, %v5618, 0
        %v5639 = vsel %vm3060, %v5619, 0
        %v5642 = vsel %vm3060, %v5620, 0
        %v5645 = vsel %vm3060, %v5621, 0
        %v5648 = vsel %vm3060, %v5622, 0
        %v5650 = vsel %vm3060, %v5625, 0
        %5652 = vmatprep.subr.mxu0 0.0
        %5653 = vmatpush1.xpose.msra.mxu0 %v5650
        %5654 = vmatprep.subr.mxu0 0.0
        %5655 = vmatpush1.xpose.msra.mxu0 0.0
        %5656 = vmatprep.subr.mxu0 0.0
        %5657 = vmatpush1.xpose.msra.mxu0 0.0
        %5658 = vmatprep.subr.mxu0 0.0
        %5659 = vmatpush1.xpose.msra.mxu0 0.0
        %5660 = vmatprep.subr.mxu0 0.0
        %5661 = vmatpush1.xpose.msra.mxu0 0.0
        %5662 = vmatprep.subr.mxu0 0.0
        %5663 = vmatpush1.xpose.msra.mxu0 0.0
        %5664 = vmatprep.subr.mxu0 0.0
        %5665 = vmatpush1.xpose.msra.mxu0 0.0
        %5666 = vmatprep.subr.mxu0 0.0
        %5667 = vmatpush1.xpose.msra.mxu0 0.0
        %5668 = vmatprep.subr.mxu0 0.0
        %5669 = vmatpush1.xpose.msra.mxu0 0.0
        %5670 = vmatprep.subr.mxu0 0.0
        %5671 = vmatpush1.xpose.msra.mxu0 0.0
        %5672 = vmatprep.subr.mxu0 0.0
        %5673 = vmatpush1.xpose.msra.mxu0 0.0
        %5674 = vmatprep.subr.mxu0 0.0
        %5675 = vmatpush1.xpose.msra.mxu0 0.0
        %5676 = vmatprep.subr.mxu0 0.0
        %5677 = vmatpush1.xpose.msra.mxu0 0.0
        %5678 = vmatprep.subr.mxu0 0.0
        %5679 = vmatpush1.xpose.msra.mxu0 0.0
        %5680 = vmatprep.subr.mxu0 0.0
        %5681 = vmatpush1.xpose.msra.mxu0 0.0
        %5682 = vmatprep.subr.mxu0 0.0
        %5683 = vmatpush1.xpose.msra.mxu0 0.0
        %5684 = vmatprep.subr.mxu0 0.0
        %5685 = vmatpush1.xpose.msra.mxu0 0.0
        %5686 = vmatprep.subr.mxu0 0.0
        %5687 = vmatpush1.xpose.msra.mxu0 0.0
        %5688 = vmatprep.subr.mxu0 0.0
        %5689 = vmatpush1.xpose.msra.mxu0 0.0
        %5690 = vmatprep.subr.mxu0 0.0
        %5691 = vmatpush1.xpose.msra.mxu0 0.0
        %5692 = vmatprep.subr.mxu0 0.0
        %5693 = vmatpush1.xpose.msra.mxu0 0.0
        %5694 = vmatprep.subr.mxu0 0.0
        %5695 = vmatpush1.xpose.msra.mxu0 0.0
        %5696 = vmatprep.subr.mxu0 0.0
        %5697 = vmatpush1.xpose.msra.mxu0 0.0
        %5698 = vmatprep.subr.mxu0 0.0
        %5699 = vmatpush1.xpose.msra.mxu0 0.0
        %5700 = vmatprep.subr.mxu0 0.0
        %5701 = vmatpush1.xpose.msra.mxu0 0.0
        %5702 = vmatprep.subr.mxu0 0.0
        %5703 = vmatpush1.xpose.msra.mxu0 0.0
        %5704 = vmatprep.subr.mxu0 0.0
        %5705 = vmatpush1.xpose.msra.mxu0 0.0
        %5706 = vmatprep.subr.mxu0 0.0
        %5707 = vmatpush1.xpose.msra.mxu0 0.0
        %5708 = vmatprep.subr.mxu0 0.0
        %5709 = vmatpush1.xpose.msra.mxu0 0.0
        %5710 = vmatprep.subr.mxu0 0.0
        %5711 = vmatpush1.xpose.msra.mxu0 0.0
        %5712 = vmatprep.subr.mxu0 0.0
        %5713 = vmatpush1.xpose.msra.mxu0 0.0
        %5714 = vmatprep.subr.mxu0 0.0
        %5715 = vmatpush1.xpose.msra.mxu0 0.0
        %5716 = vmatprep.mubr.f32.mxu0 0.0
        %5717 = vmatmul.mubr.f32.gmra.mrb[0].mxu0 %v5627
        %v5718 = vpop.f32.mrb[0].mxu0
        %v5719 = vadd.f32 0.0, %v5718
        %v5720 = vpop.f32.mrb[0].mxu0
        %5721 = vmatprep.mubr.f32.mxu0 0.0
        %5722 = vmatmul.mubr.f32.gmra.mrb[0].mxu0 %v5630
        %v5723 = vpop.f32.mrb[0].mxu0
        %v5724 = vadd.f32 0.0, %v5723
        %v5725 = vpop.f32.mrb[0].mxu0
        %5726 = vmatprep.mubr.f32.mxu0 0.0
        %5727 = vmatmul.mubr.f32.gmra.mrb[0].mxu0 %v5633
        %v5728 = vpop.f32.mrb[0].mxu0
        %v5729 = vadd.f32 0.0, %v5728
        %v5730 = vpop.f32.mrb[0].mxu0
        %5731 = vmatprep.mubr.f32.mxu0 0.0
        %5732 = vmatmul.mubr.f32.gmra.mrb[0].mxu0 %v5636
        %v5733 = vpop.f32.mrb[0].mxu0
        %v5734 = vadd.f32 0.0, %v5733
        %v5735 = vpop.f32.mrb[0].mxu0
        %5736 = vmatprep.mubr.f32.mxu0 0.0
        %5737 = vmatmul.mubr.f32.gmra.mrb[0].mxu0 %v5639
        %v5738 = vpop.f32.mrb[0].mxu0
        %v5739 = vadd.f32 0.0, %v5738
        %v5740 = vpop.f32.mrb[0].mxu0
        %5741 = vmatprep.mubr.f32.mxu0 0.0
        %5742 = vmatmul.mubr.f32.gmra.mrb[0].mxu0 %v5642
        %v5743 = vpop.f32.mrb[0].mxu0
        %v5744 = vadd.f32 0.0, %v5743
        %v5745 = vpop.f32.mrb[0].mxu0
        %5746 = vmatprep.mubr.f32.mxu0 0.0
        %5747 = vmatmul.mubr.f32.gmra.mrb[0].mxu0 %v5645
        %v5748 = vpop.f32.mrb[0].mxu0
        %v5749 = vadd.f32 0.0, %v5748
        %v5750 = vpop.f32.mrb[0].mxu0
        %5751 = vmatprep.mubr.f32.mxu0 0.0
        %5752 = vmatmul.mubr.f32.gmra.mrb[0].mxu0 %v5648
        %v5753 = vpop.f32.mrb[0].mxu0
        %v5754 = vadd.f32 0.0, %v5753
        %v5755 = vpop.f32.mrb[0].mxu0
        %5756 = vdwg.mxu0
        %v5757 = vsel %vm3248, %v5719, -inf
        %5758 = vmax.xlane.f32.xlu0 %v5757
        %v5759 = vpop.xlane.xlu0 %5758
        %v5760 = vsel %vm3248, %v5724, -inf
        %5761 = vmax.xlane.f32.xlu0 %v5760
        %v5762 = vpop.xlane.xlu0 %5761
        %v5763 = vsel %vm3248, %v5729, -inf
        %5764 = vmax.xlane.f32.xlu0 %v5763
        %v5765 = vpop.xlane.xlu0 %5764
        %v5766 = vsel %vm3248, %v5734, -inf
        %5767 = vmax.xlane.f32.xlu0 %v5766
        %v5768 = vpop.xlane.xlu0 %5767
        %v5769 = vsel %vm3248, %v5739, -inf
        %5770 = vmax.xlane.f32.xlu0 %v5769
        %v5771 = vpop.xlane.xlu0 %5770
        %v5772 = vsel %vm3248, %v5744, -inf
        %5773 = vmax.xlane.f32.xlu0 %v5772
        %v5774 = vpop.xlane.xlu0 %5773
        %v5775 = vsel %vm3248, %v5749, -inf
        %5776 = vmax.xlane.f32.xlu0 %v5775
        %v5777 = vpop.xlane.xlu0 %5776
        %v5778 = vsel %vm3248, %v5754, -inf
        %5779 = vmax.xlane.f32.xlu0 %v5778
        %v5780 = vpop.xlane.xlu0 %5779
        %v5781 = vsub.f32 %v5719, %v5759
        %v5782 = vsub.f32 %v5724, %v5762
        %v5783 = vsub.f32 %v5729, %v5765
        %v5784 = vsub.f32 %v5734, %v5768
        %v5785 = vsub.f32 %v5739, %v5771
        %v5786 = vsub.f32 %v5744, %v5774
        %v5787 = vsub.f32 %v5749, %v5777
        %v5788 = vsub.f32 %v5754, %v5780
        %v5789 = vmul.f32 %v5781, 1.442695
        %v5790 = vpow.pop %v5789
        %v5791 = vmul.f32 %v5782, 1.442695
        %v5792 = vpow.pop %v5791
        %v5793 = vmul.f32 %v5783, 1.442695
        %v5794 = vpow.pop %v5793
        %v5795 = vmul.f32 %v5784, 1.442695
        %v5796 = vpow.pop %v5795
        %v5797 = vmul.f32 %v5785, 1.442695
        %v5798 = vpow.pop %v5797
        %v5799 = vmul.f32 %v5786, 1.442695
        %v5800 = vpow.pop %v5799
        %v5801 = vmul.f32 %v5787, 1.442695
        %v5802 = vpow.pop %v5801
        %v5803 = vmul.f32 %v5788, 1.442695
        %v5804 = vpow.pop %v5803
        %v5805 = vsel %vm3248, %v5790, 0.0
        %5806 = vadd.xlane.f32.xlu0 %v5805
        %v5807 = vpop.xlane.xlu0 %5806
        %v5808 = vsel %vm3248, %v5792, 0.0
        %5809 = vadd.xlane.f32.xlu0 %v5808
        %v5810 = vpop.xlane.xlu0 %5809
        %v5811 = vsel %vm3248, %v5794, 0.0
        %5812 = vadd.xlane.f32.xlu0 %v5811
        %v5813 = vpop.xlane.xlu0 %5812
        %v5814 = vsel %vm3248, %v5796, 0.0
        %5815 = vadd.xlane.f32.xlu0 %v5814
        %v5816 = vpop.xlane.xlu0 %5815
        %v5817 = vsel %vm3248, %v5798, 0.0
        %5818 = vadd.xlane.f32.xlu0 %v5817
        %v5819 = vpop.xlane.xlu0 %5818
        %v5820 = vsel %vm3248, %v5800, 0.0
        %5821 = vadd.xlane.f32.xlu0 %v5820
        %v5822 = vpop.xlane.xlu0 %5821
        %v5823 = vsel %vm3248, %v5802, 0.0
        %5824 = vadd.xlane.f32.xlu0 %v5823
        %v5825 = vpop.xlane.xlu0 %5824
        %v5826 = vsel %vm3248, %v5804, 0.0
        %5827 = vadd.xlane.f32.xlu0 %v5826
        %v5828 = vpop.xlane.xlu0 %5827
        %v5829 = vrcp.pop %v5807
        %v5830 = vmul.f32 %v5790, %v5829
        %v5831 = vrcp.pop %v5810
        %v5832 = vmul.f32 %v5792, %v5831
        %v5833 = vrcp.pop %v5813
        %v5834 = vmul.f32 %v5794, %v5833
        %v5835 = vrcp.pop %v5816
        %v5836 = vmul.f32 %v5796, %v5835
        %v5837 = vrcp.pop %v5819
        %v5838 = vmul.f32 %v5798, %v5837
        %v5839 = vrcp.pop %v5822
        %v5840 = vmul.f32 %v5800, %v5839
        %v5841 = vrcp.pop %v5825
        %v5842 = vmul.f32 %v5802, %v5841
        %v5843 = vrcp.pop %v5828
        %v5844 = vmul.f32 %v5804, %v5843
        %v5846 = vsel %vm3248, %v5830, 0
        %v5849 = vsel %vm3248, %v5832, 0
        %v5852 = vsel %vm3248, %v5834, 0
        %v5855 = vsel %vm3248, %v5836, 0
        %v5858 = vsel %vm3248, %v5838, 0
        %v5861 = vsel %vm3248, %v5840, 0
        %v5864 = vsel %vm3248, %v5842, 0
        %v5867 = vsel %vm3248, %v5844, 0
        %5869 = vmatprep.subr.mxu0 0.0
        %5870 = vmatpush1.msra.mxu0 %v5610
        %5871 = vmatprep.subr.mxu0 0.0
        %5872 = vmatpush1.msra.mxu0 0.0
        %5873 = vmatprep.subr.mxu0 0.0
        %5874 = vmatpush1.msra.mxu0 0.0
        %5875 = vmatprep.subr.mxu0 0.0
        %5876 = vmatpush1.msra.mxu0 0.0
        %5877 = vmatprep.subr.mxu0 0.0
        %5878 = vmatpush1.msra.mxu0 0.0
        %5879 = vmatprep.subr.mxu0 0.0
        %5880 = vmatpush1.msra.mxu0 0.0
        %5881 = vmatprep.subr.mxu0 0.0
        %5882 = vmatpush1.msra.mxu0 0.0
        %5883 = vmatprep.subr.mxu0 0.0
        %5884 = vmatpush1.msra.mxu0 0.0
        %5885 = vmatprep.subr.mxu0 0.0
        %5886 = vmatpush1.msra.mxu0 0.0
        %5887 = vmatprep.subr.mxu0 0.0
        %5888 = vmatpush1.msra.mxu0 0.0
        %5889 = vmatprep.subr.mxu0 0.0
        %5890 = vmatpush1.msra.mxu0 0.0
        %5891 = vmatprep.subr.mxu0 0.0
        %5892 = vmatpush1.msra.mxu0 0.0
        %5893 = vmatprep.subr.mxu0 0.0
        %5894 = vmatpush1.msra.mxu0 0.0
        %5895 = vmatprep.subr.mxu0 0.0
        %5896 = vmatpush1.msra.mxu0 0.0
        %5897 = vmatprep.subr.mxu0 0.0
        %5898 = vmatpush1.msra.mxu0 0.0
        %5899 = vmatprep.subr.mxu0 0.0
        %5900 = vmatpush1.msra.mxu0 0.0
        %5901 = vmatprep.subr.mxu0 0.0
        %5902 = vmatpush1.msra.mxu0 0.0
        %5903 = vmatprep.subr.mxu0 0.0
        %5904 = vmatpush1.msra.mxu0 0.0
        %5905 = vmatprep.subr.mxu0 0.0
        %5906 = vmatpush1.msra.mxu0 0.0
        %5907 = vmatprep.subr.mxu0 0.0
        %5908 = vmatpush1.msra.mxu0 0.0
        %5909 = vmatprep.subr.mxu0 0.0
        %5910 = vmatpush1.msra.mxu0 0.0
        %5911 = vmatprep.subr.mxu0 0.0
        %5912 = vmatpush1.msra.mxu0 0.0
        %5913 = vmatprep.subr.mxu0 0.0
        %5914 = vmatpush1.msra.mxu0 0.0
        %5915 = vmatprep.subr.mxu0 0.0
        %5916 = vmatpush1.msra.mxu0 0.0
        %5917 = vmatprep.subr.mxu0 0.0
        %5918 = vmatpush1.msra.mxu0 0.0
        %5919 = vmatprep.subr.mxu0 0.0
        %5920 = vmatpush1.msra.mxu0 0.0
        %5921 = vmatprep.subr.mxu0 0.0
        %5922 = vmatpush1.msra.mxu0 0.0
        %5923 = vmatprep.subr.mxu0 0.0
        %5924 = vmatpush1.msra.mxu0 0.0
        %5925 = vmatprep.subr.mxu0 0.0
        %5926 = vmatpush1.msra.mxu0 0.0
        %5927 = vmatprep.subr.mxu0 0.0
        %5928 = vmatpush1.msra.mxu0 0.0
        %5929 = vmatprep.subr.mxu0 0.0
        %5930 = vmatpush1.msra.mxu0 0.0
        %5931 = vmatprep.subr.mxu0 0.0
        %5932 = vmatpush1.msra.mxu0 0.0
        %5933 = vmatprep.mubr.f32.mxu0 0.0
        %5934 = vmatmul.mubr.f32.gmra.mrb[0].mxu0 %v5846
        %v5935 = vpop.f32.mrb[0].mxu0
        %v5936 = vadd.f32 0.0, %v5935
        %v5937 = vpop.f32.mrb[0].mxu0
        %5938 = vmatprep.mubr.f32.mxu0 0.0
        %5939 = vmatmul.mubr.f32.gmra.mrb[0].mxu0 %v5849
        %v5940 = vpop.f32.mrb[0].mxu0
        %v5941 = vadd.f32 0.0, %v5940
        %v5942 = vpop.f32.mrb[0].mxu0
        %5943 = vmatprep.mubr.f32.mxu0 0.0
        %5944 = vmatmul.mubr.f32.gmra.mrb[0].mxu0 %v5852
        %v5945 = vpop.f32.mrb[0].mxu0
        %v5946 = vadd.f32 0.0, %v5945
        %v5947 = vpop.f32.mrb[0].mxu0
        %5948 = vmatprep.mubr.f32.mxu0 0.0
        %5949 = vmatmul.mubr.f32.gmra.mrb[0].mxu0 %v5855
        %v5950 = vpop.f32.mrb[0].mxu0
        %v5951 = vadd.f32 0.0, %v5950
        %v5952 = vpop.f32.mrb[0].mxu0
        %5953 = vmatprep.mubr.f32.mxu0 0.0
        %5954 = vmatmul.mubr.f32.gmra.mrb[0].mxu0 %v5858
        %v5955 = vpop.f32.mrb[0].mxu0
        %v5956 = vadd.f32 0.0, %v5955
        %v5957 = vpop.f32.mrb[0].mxu0
        %5958 = vmatprep.mubr.f32.mxu0 0.0
        %5959 = vmatmul.mubr.f32.gmra.mrb[0].mxu0 %v5861
        %v5960 = vpop.f32.mrb[0].mxu0
        %v5961 = vadd.f32 0.0, %v5960
        %v5962 = vpop.f32.mrb[0].mxu0
        %5963 = vmatprep.mubr.f32.mxu0 0.0
        %5964 = vmatmul.mubr.f32.gmra.mrb[0].mxu0 %v5864
        %v5965 = vpop.f32.mrb[0].mxu0
        %v5966 = vadd.f32 0.0, %v5965
        %v5967 = vpop.f32.mrb[0].mxu0
        %5968 = vmatprep.mubr.f32.mxu0 0.0
        %5969 = vmatmul.mubr.f32.gmra.mrb[0].mxu0 %v5867
        %v5970 = vpop.f32.mrb[0].mxu0
        %v5971 = vadd.f32 0.0, %v5970
        %v5972 = vpop.f32.mrb[0].mxu0
        %5973 = vdwg.mxu0
        %v5974 = vmul.f32 %v5936, %v2991
        %v5975 = vmul.f32 %v5941, %v2992
        %v5976 = vmul.f32 %v5946, %v2993
        %v5977 = vmul.f32 %v5951, %v2994
        %v5978 = vmul.f32 %v5956, %v2995
        %v5979 = vmul.f32 %v5961, %v2996
        %v5980 = vmul.f32 %v5966, %v2997
        %v5981 = vmul.f32 %v5971, %v2998
        %v5982 = vsel %vm3060, %v5974, 0.0
        %v5983 = vsel %vm3060, %v5975, 0.0
        %v5984 = vadd.f32 %v5982, %v5983
        %v5985 = vsel %vm3060, %v5976, 0.0
        %v5986 = vadd.f32 %v5984, %v5985
        %v5987 = vsel %vm3060, %v5977, 0.0
        %v5988 = vadd.f32 %v5986, %v5987
        %v5989 = vsel %vm3060, %v5978, 0.0
        %v5990 = vadd.f32 %v5988, %v5989
        %v5991 = vsel %vm3060, %v5979, 0.0
        %v5992 = vadd.f32 %v5990, %v5991
        %v5993 = vsel %vm3060, %v5980, 0.0
        %v5994 = vadd.f32 %v5992, %v5993
        %v5995 = vsel %vm3060, %v5981, 0.0
        %v5996 = vadd.f32 %v5994, %v5995
        %v5997 = vpack.c.bf16 %v5996, %v5996
        %s5998 = scalar_lea.vmem %s13, 96
        %v5999 = vld [vmem:[%s5998] sm:$0xf]
        %v6000 = vld [vmem:[%s5998 + $0x4] sm:$0xf]
        %v6001 = vld [vmem:[%s5998 + $0x8] sm:$0xf]
        %v6002 = vld [vmem:[%s5998 + $0xc] sm:$0xf]
        %v6003 = vld [vmem:[%s5998 + $0x10] sm:$0xf]
        %v6004 = vld [vmem:[%s5998 + $0x14] sm:$0xf]
        %v6005 = vld [vmem:[%s5998 + $0x18] sm:$0xf]
        %v6006 = vld [vmem:[%s5998 + $0x1c] sm:$0xf]
        %s6007 = scalar_lea.vmem %s14, 3
        %v6008 = vld [vmem:[%s6007] sm:$0x1]
        %v6010 = vlaneseq
        %v6011 = vshrl.u32 %v6010, 7
        %v6012 = vsub.s32 0, %v6011
        %v6013 = vrot.slane %v6008, %v6012
        %v6023 = vunpack.c.l.b16 %v5999
        %v6024 = vunpack.c.l.b16 %v6000
        %v6025 = vunpack.c.l.b16 %v6001
        %v6026 = vunpack.c.l.b16 %v6002
        %v6027 = vunpack.c.l.b16 %v6003
        %v6028 = vunpack.c.l.b16 %v6004
        %v6029 = vunpack.c.l.b16 %v6005
        %v6030 = vunpack.c.l.b16 %v6006
        %v6031 = vpack.c.b16 %v6024, %v6023
        %v6032 = vpack.c.b16 %v6026, %v6025
        %v6033 = vpack.c.b16 %v6028, %v6027
        %v6034 = vpack.c.b16 %v6030, %v6029
        %v6040 = vsel %vm3060, %v5997, 0
        %6042 = vmatprep.subr.bf16.mxu0 0
        %6043 = vmatpush1.bf16.msra.mxu0 %v6031
        %6044 = vmatprep.subr.bf16.mxu0 0
        %6045 = vmatpush1.bf16.msra.mxu0 %v6032
        %6046 = vmatprep.subr.bf16.mxu0 0
        %6047 = vmatpush1.bf16.msra.mxu0 %v6033
        %6048 = vmatprep.subr.bf16.mxu0 0
        %6049 = vmatpush1.bf16.msra.mxu0 %v6034
        %6050 = vmatprep.subr.bf16.mxu0 0
        %6051 = vmatpush1.bf16.msra.mxu0 0
        %6052 = vmatprep.subr.bf16.mxu0 0
        %6053 = vmatpush1.bf16.msra.mxu0 0
        %6054 = vmatprep.subr.bf16.mxu0 0
        %6055 = vmatpush1.bf16.msra.mxu0 0
        %6056 = vmatprep.subr.bf16.mxu0 0
        %6057 = vmatpush1.bf16.msra.mxu0 0
        %6058 = vmatprep.subr.bf16.mxu0 0
        %6059 = vmatpush1.bf16.msra.mxu0 0
        %6060 = vmatprep.subr.bf16.mxu0 0
        %6061 = vmatpush1.bf16.msra.mxu0 0
        %6062 = vmatprep.subr.bf16.mxu0 0
        %6063 = vmatpush1.bf16.msra.mxu0 0
        %6064 = vmatprep.subr.bf16.mxu0 0
        %6065 = vmatpush1.bf16.msra.mxu0 0
        %6066 = vmatprep.subr.bf16.mxu0 0
        %6067 = vmatpush1.bf16.msra.mxu0 0
        %6068 = vmatprep.subr.bf16.mxu0 0
        %6069 = vmatpush1.bf16.msra.mxu0 0
        %6070 = vmatprep.subr.bf16.mxu0 0
        %6071 = vmatpush1.bf16.msra.mxu0 0
        %6072 = vmatprep.subr.bf16.mxu0 0
        %6073 = vmatpush1.bf16.msra.mxu0 0
        %6074 = vmatprep.mubr.bf16.mxu0 0
        %6075 = vmatmul.mubr.bf16.gmra.mrb[0].mxu0 %v6040
        %v6076 = vpop.f32.mrb[0].mxu0
        %v6077 = vadd.f32 %v6013, %v6076
        %v6078 = vpop.f32.mrb[0].mxu0
        %v6079 = vpop.f32.mrb[0].mxu0
        %v6080 = vpop.f32.mrb[0].mxu0
        %6081 = vdwg.mxu0
        %v6082 = vadd.f32 %v5506, %v6077
        %s6083 = scalar_lea.vmem %s15, 3
        %v6084 = vld [vmem:[%s6083] sm:$0x1]
        %s6085 = scalar_lea.vmem %s16, 3
        %v6086 = vld [vmem:[%s6085] sm:$0x1]
        %v6087 = vsel %vm3060, %v6082, 0.0
        %6088 = vadd.xlane.f32.xlu0 %v6087
        %v6089 = vpop.xlane.xlu0 %6088
        %v6090 = vmul.f32 %v6089, %v3578
        %v6091 = vsub.f32 %v6082, %v6090
        %v6092 = vmul.f32 %v6091, %v6091
        %v6093 = vsel %vm3060, %v6092, 0.0
        %6094 = vadd.xlane.f32.xlu0 %v6093
        %v6095 = vpop.xlane.xlu0 %6094
        %v6096 = vmul.f32 %v6095, %v3578
        %v6097 = vadd.f32 %v6096, 1e-05
        %v6098 = vrsqrt.pop %v6097
        %v6099 = vmul.f32 %v6091, %v6098
        %v6101 = vlaneseq
        %v6102 = vshrl.u32 %v6101, 7
        %v6103 = vsub.s32 0, %v6102
        %v6104 = vrot.slane %v6084, %v6103
        %v6106 = vmul.f32 %v6099, %v6104
        %v6108 = vlaneseq
        %v6109 = vshrl.u32 %v6108, 7
        %v6110 = vsub.s32 0, %v6109
        %v6111 = vrot.slane %v6086, %v6110
        %v6113 = vadd.f32 %v6106, %v6111
        %v6114 = vpack.c.bf16 %v6113, %v6113
        %s6115 = scalar_lea.vmem %s17, 96
        %v6116 = vld [vmem:[%s6115] sm:$0xf]
        %v6117 = vld [vmem:[%s6115 + $0x4] sm:$0xf]
        %v6118 = vld [vmem:[%s6115 + $0x8] sm:$0xf]
        %v6119 = vld [vmem:[%s6115 + $0xc] sm:$0xf]
        %v6120 = vld [vmem:[%s6115 + $0x10] sm:$0xf]
        %v6121 = vld [vmem:[%s6115 + $0x14] sm:$0xf]
        %v6122 = vld [vmem:[%s6115 + $0x18] sm:$0xf]
        %v6123 = vld [vmem:[%s6115 + $0x1c] sm:$0xf]
        %s6124 = scalar_lea.vmem %s18, 3
        %v6125 = vld [vmem:[%s6124] sm:$0x1]
        %v6127 = vlaneseq
        %v6128 = vshrl.u32 %v6127, 7
        %v6129 = vsub.s32 0, %v6128
        %v6130 = vrot.slane %v6125, %v6129
        %v6140 = vunpack.c.l.b16 %v6116
        %v6141 = vunpack.c.l.b16 %v6117
        %v6142 = vunpack.c.l.b16 %v6118
        %v6143 = vunpack.c.l.b16 %v6119
        %v6144 = vunpack.c.l.b16 %v6120
        %v6145 = vunpack.c.l.b16 %v6121
        %v6146 = vunpack.c.l.b16 %v6122
        %v6147 = vunpack.c.l.b16 %v6123
        %v6148 = vpack.c.b16 %v6141, %v6140
        %v6149 = vpack.c.b16 %v6143, %v6142
        %v6150 = vpack.c.b16 %v6145, %v6144
        %v6151 = vpack.c.b16 %v6147, %v6146
        %v6157 = vsel %vm3060, %v6114, 0
        %6159 = vmatprep.subr.bf16.mxu0 0
        %6160 = vmatpush1.bf16.msra.mxu0 %v6148
        %6161 = vmatprep.subr.bf16.mxu0 0
        %6162 = vmatpush1.bf16.msra.mxu0 %v6149
        %6163 = vmatprep.subr.bf16.mxu0 0
        %6164 = vmatpush1.bf16.msra.mxu0 %v6150
        %6165 = vmatprep.subr.bf16.mxu0 0
        %6166 = vmatpush1.bf16.msra.mxu0 %v6151
        %6167 = vmatprep.subr.bf16.mxu0 0
        %6168 = vmatpush1.bf16.msra.mxu0 0
        %6169 = vmatprep.subr.bf16.mxu0 0
        %6170 = vmatpush1.bf16.msra.mxu0 0
        %6171 = vmatprep.subr.bf16.mxu0 0
        %6172 = vmatpush1.bf16.msra.mxu0 0
        %6173 = vmatprep.subr.bf16.mxu0 0
        %6174 = vmatpush1.bf16.msra.mxu0 0
        %6175 = vmatprep.subr.bf16.mxu0 0
        %6176 = vmatpush1.bf16.msra.mxu0 0
        %6177 = vmatprep.subr.bf16.mxu0 0
        %6178 = vmatpush1.bf16.msra.mxu0 0
        %6179 = vmatprep.subr.bf16.mxu0 0
        %6180 = vmatpush1.bf16.msra.mxu0 0
        %6181 = vmatprep.subr.bf16.mxu0 0
        %6182 = vmatpush1.bf16.msra.mxu0 0
        %6183 = vmatprep.subr.bf16.mxu0 0
        %6184 = vmatpush1.bf16.msra.mxu0 0
        %6185 = vmatprep.subr.bf16.mxu0 0
        %6186 = vmatpush1.bf16.msra.mxu0 0
        %6187 = vmatprep.subr.bf16.mxu0 0
        %6188 = vmatpush1.bf16.msra.mxu0 0
        %6189 = vmatprep.subr.bf16.mxu0 0
        %6190 = vmatpush1.bf16.msra.mxu0 0
        %6191 = vmatprep.mubr.bf16.mxu0 0
        %6192 = vmatmul.mubr.bf16.gmra.mrb[0].mxu0 %v6157
        %v6193 = vpop.f32.mrb[0].mxu0
        %v6194 = vadd.f32 %v6130, %v6193
        %v6195 = vpop.f32.mrb[0].mxu0
        %v6196 = vpop.f32.mrb[0].mxu0
        %v6197 = vpop.f32.mrb[0].mxu0
        %6198 = vdwg.mxu0
        %v6199 = vmax.f32 %v6194, 0.0
        %v6200 = vpack.c.bf16 %v6199, %v6199
        %s6201 = scalar_lea.vmem %s19, 192
        %v6202 = vld [vmem:[%s6201] sm:$0xf]
        %v6203 = vld [vmem:[%s6201 + $0x4] sm:$0xf]
        %v6204 = vld [vmem:[%s6201 + $0x8] sm:$0xf]
        %v6205 = vld [vmem:[%s6201 + $0xc] sm:$0xf]
        %v6206 = vld [vmem:[%s6201 + $0x10] sm:$0xf]
        %v6207 = vld [vmem:[%s6201 + $0x14] sm:$0xf]
        %v6208 = vld [vmem:[%s6201 + $0x18] sm:$0xf]
        %v6209 = vld [vmem:[%s6201 + $0x1c] sm:$0xf]
        %v6210 = vld [vmem:[%s6201 + $0x20] sm:$0xf]
        %v6211 = vld [vmem:[%s6201 + $0x24] sm:$0xf]
        %v6212 = vld [vmem:[%s6201 + $0x28] sm:$0xf]
        %v6213 = vld [vmem:[%s6201 + $0x2c] sm:$0xf]
        %v6214 = vld [vmem:[%s6201 + $0x30] sm:$0xf]
        %v6215 = vld [vmem:[%s6201 + $0x34] sm:$0xf]
        %v6216 = vld [vmem:[%s6201 + $0x38] sm:$0xf]
        %v6217 = vld [vmem:[%s6201 + $0x3c] sm:$0xf]
        %s6218 = scalar_lea.vmem %s20, 3
        %v6219 = vld [vmem:[%s6218] sm:$0x1]
        %v6221 = vlaneseq
        %v6222 = vshrl.u32 %v6221, 7
        %v6223 = vsub.s32 0, %v6222
        %v6224 = vrot.slane %v6219, %v6223
        %v6242 = vunpack.c.l.b16 %v6202
        %v6243 = vunpack.c.l.b16 %v6203
        %v6244 = vunpack.c.l.b16 %v6204
        %v6245 = vunpack.c.l.b16 %v6205
        %v6246 = vunpack.c.l.b16 %v6206
        %v6247 = vunpack.c.l.b16 %v6207
        %v6248 = vunpack.c.l.b16 %v6208
        %v6249 = vunpack.c.l.b16 %v6209
        %v6250 = vunpack.c.l.b16 %v6210
        %v6251 = vunpack.c.l.b16 %v6211
        %v6252 = vunpack.c.l.b16 %v6212
        %v6253 = vunpack.c.l.b16 %v6213
        %v6254 = vunpack.c.l.b16 %v6214
        %v6255 = vunpack.c.l.b16 %v6215
        %v6256 = vunpack.c.l.b16 %v6216
        %v6257 = vunpack.c.l.b16 %v6217
        %v6258 = vpack.c.b16 %v6243, %v6242
        %v6259 = vpack.c.b16 %v6245, %v6244
        %v6260 = vpack.c.b16 %v6247, %v6246
        %v6261 = vpack.c.b16 %v6249, %v6248
        %v6262 = vpack.c.b16 %v6251, %v6250
        %v6263 = vpack.c.b16 %v6253, %v6252
        %v6264 = vpack.c.b16 %v6255, %v6254
        %v6265 = vpack.c.b16 %v6257, %v6256
        %6274 = vmatprep.subr.bf16.mxu0 0
        %6275 = vmatpush1.bf16.msra.mxu0 %v6258
        %6276 = vmatprep.subr.bf16.mxu0 0
        %6277 = vmatpush1.bf16.msra.mxu0 %v6259
        %6278 = vmatprep.subr.bf16.mxu0 0
        %6279 = vmatpush1.bf16.msra.mxu0 %v6260
        %6280 = vmatprep.subr.bf16.mxu0 0
        %6281 = vmatpush1.bf16.msra.mxu0 %v6261
        %6282 = vmatprep.subr.bf16.mxu0 0
        %6283 = vmatpush1.bf16.msra.mxu0 %v6262
        %6284 = vmatprep.subr.bf16.mxu0 0
        %6285 = vmatpush1.bf16.msra.mxu0 %v6263
        %6286 = vmatprep.subr.bf16.mxu0 0
        %6287 = vmatpush1.bf16.msra.mxu0 %v6264
        %6288 = vmatprep.subr.bf16.mxu0 0
        %6289 = vmatpush1.bf16.msra.mxu0 %v6265
        %6290 = vmatprep.subr.bf16.mxu0 0
        %6291 = vmatpush1.bf16.msra.mxu0 0
        %6292 = vmatprep.subr.bf16.mxu0 0
        %6293 = vmatpush1.bf16.msra.mxu0 0
        %6294 = vmatprep.subr.bf16.mxu0 0
        %6295 = vmatpush1.bf16.msra.mxu0 0
        %6296 = vmatprep.subr.bf16.mxu0 0
        %6297 = vmatpush1.bf16.msra.mxu0 0
        %6298 = vmatprep.subr.bf16.mxu0 0
        %6299 = vmatpush1.bf16.msra.mxu0 0
        %6300 = vmatprep.subr.bf16.mxu0 0
        %6301 = vmatpush1.bf16.msra.mxu0 0
        %6302 = vmatprep.subr.bf16.mxu0 0
        %6303 = vmatpush1.bf16.msra.mxu0 0
        %6304 = vmatprep.subr.bf16.mxu0 0
        %6305 = vmatpush1.bf16.msra.mxu0 0
        %6306 = vmatprep.mubr.bf16.mxu0 0
        %6307 = vmatmul.mubr.bf16.gmra.mrb[0].mxu0 %v6200
        %v6308 = vpop.f32.mrb[0].mxu0
        %v6309 = vadd.f32 %v6224, %v6308
        %v6310 = vpop.f32.mrb[0].mxu0
        %v6311 = vpop.f32.mrb[0].mxu0
        %v6312 = vpop.f32.mrb[0].mxu0
        %6313 = vdwg.mxu0
        %v6314 = vadd.f32 %v6113, %v6309
        %s6315 = scalar_lea.vmem %s21, 3
        %v6316 = vld [vmem:[%s6315] sm:$0x1]
        %s6317 = scalar_lea.vmem %s22, 3
        %v6318 = vld [vmem:[%s6317] sm:$0x1]
        %v6319 = vsel %vm3060, %v6314, 0.0
        %6320 = vadd.xlane.f32.xlu0 %v6319
        %v6321 = vpop.xlane.xlu0 %6320
        %v6322 = vmul.f32 %v6321, %v3578
        %v6323 = vsub.f32 %v6314, %v6322
        %v6324 = vmul.f32 %v6323, %v6323
        %v6325 = vsel %vm3060, %v6324, 0.0
        %6326 = vadd.xlane.f32.xlu0 %v6325
        %v6327 = vpop.xlane.xlu0 %6326
        %v6328 = vmul.f32 %v6327, %v3578
        %v6329 = vadd.f32 %v6328, 1e-05
        %v6330 = vrsqrt.pop %v6329
        %v6331 = vmul.f32 %v6323, %v6330
        %v6333 = vlaneseq
        %v6334 = vshrl.u32 %v6333, 7
        %v6335 = vsub.s32 0, %v6334
        %v6336 = vrot.slane %v6316, %v6335
        %v6338 = vmul.f32 %v6331, %v6336
        %v6340 = vlaneseq
        %v6341 = vshrl.u32 %v6340, 7
        %v6342 = vsub.s32 0, %v6341
        %v6343 = vrot.slane %v6318, %v6342
        %v6345 = vadd.f32 %v6338, %v6343
        %v6346 = vpack.c.bf16 %v6345, %v6345
        %v6347 = vld [vmem:[%s23] sm:$0xf]
        %v6348 = vld [vmem:[%s23 + $0x4] sm:$0xf]
        %v6349 = vld [vmem:[%s23 + $0x8] sm:$0xf]
        %v6350 = vld [vmem:[%s23 + $0xc] sm:$0xf]
        %v6351 = vld [vmem:[%s23 + $0x10] sm:$0xf]
        %v6352 = vld [vmem:[%s23 + $0x14] sm:$0xf]
        %v6353 = vld [vmem:[%s23 + $0x18] sm:$0xf]
        %v6354 = vld [vmem:[%s23 + $0x1c] sm:$0xf]
        %v6355 = vld [vmem:[%s24] sm:$0x1]
        %v6357 = vlaneseq
        %v6358 = vshrl.u32 %v6357, 7
        %v6359 = vsub.s32 0, %v6358
        %v6360 = vrot.slane %v6355, %v6359
        %v6370 = vunpack.c.l.b16 %v6347
        %v6371 = vunpack.c.l.b16 %v6348
        %v6372 = vunpack.c.l.b16 %v6349
        %v6373 = vunpack.c.l.b16 %v6350
        %v6374 = vunpack.c.l.b16 %v6351
        %v6375 = vunpack.c.l.b16 %v6352
        %v6376 = vunpack.c.l.b16 %v6353
        %v6377 = vunpack.c.l.b16 %v6354
        %v6378 = vpack.c.b16 %v6371, %v6370
        %v6379 = vpack.c.b16 %v6373, %v6372
        %v6380 = vpack.c.b16 %v6375, %v6374
        %v6381 = vpack.c.b16 %v6377, %v6376
        %v6387 = vsel %vm3060, %v6346, 0
        %6389 = vmatprep.subr.bf16.mxu0 0
        %6390 = vmatpush1.bf16.msra.mxu0 %v6378
        %6391 = vmatprep.subr.bf16.mxu0 0
        %6392 = vmatpush1.bf16.msra.mxu0 %v6379
        %6393 = vmatprep.subr.bf16.mxu0 0
        %6394 = vmatpush1.bf16.msra.mxu0 %v6380
        %6395 = vmatprep.subr.bf16.mxu0 0
        %6396 = vmatpush1.bf16.msra.mxu0 %v6381
        %6397 = vmatprep.subr.bf16.mxu0 0
        %6398 = vmatpush1.bf16.msra.mxu0 0
        %6399 = vmatprep.subr.bf16.mxu0 0
        %6400 = vmatpush1.bf16.msra.mxu0 0
        %6401 = vmatprep.subr.bf16.mxu0 0
        %6402 = vmatpush1.bf16.msra.mxu0 0
        %6403 = vmatprep.subr.bf16.mxu0 0
        %6404 = vmatpush1.bf16.msra.mxu0 0
        %6405 = vmatprep.subr.bf16.mxu0 0
        %6406 = vmatpush1.bf16.msra.mxu0 0
        %6407 = vmatprep.subr.bf16.mxu0 0
        %6408 = vmatpush1.bf16.msra.mxu0 0
        %6409 = vmatprep.subr.bf16.mxu0 0
        %6410 = vmatpush1.bf16.msra.mxu0 0
        %6411 = vmatprep.subr.bf16.mxu0 0
        %6412 = vmatpush1.bf16.msra.mxu0 0
        %6413 = vmatprep.subr.bf16.mxu0 0
        %6414 = vmatpush1.bf16.msra.mxu0 0
        %6415 = vmatprep.subr.bf16.mxu0 0
        %6416 = vmatpush1.bf16.msra.mxu0 0
        %6417 = vmatprep.subr.bf16.mxu0 0
        %6418 = vmatpush1.bf16.msra.mxu0 0
        %6419 = vmatprep.subr.bf16.mxu0 0
        %6420 = vmatpush1.bf16.msra.mxu0 0
        %6421 = vmatprep.mubr.bf16.mxu0 0
        %6422 = vmatmul.mubr.bf16.gmra.mrb[0].mxu0 %v6387
        %v6423 = vpop.f32.mrb[0].mxu0
        %v6424 = vadd.f32 %v6360, %v6423
        %v6425 = vpop.f32.mrb[0].mxu0
        %v6426 = vpop.f32.mrb[0].mxu0
        %v6427 = vpop.f32.mrb[0].mxu0
        %6428 = vdwg.mxu0
        %v6429 = vmax.f32 %v6424, 0.0
        %v6430 = vld [vmem:[%s25] sm:$0x1]
        %v6432 = vlaneseq
        %v6433 = vshrl.u32 %v6432, 7
        %v6434 = vsub.s32 0, %v6433
        %v6435 = vrot.slane %v6430, %v6434
        %v6437 = vmul.f32 %v6429, %v6435
        %vm6438 = vcmask 261120
        %v6439 = vsel %vm6438, %v6437, 0.0
        %6440 = vadd.xlane.f32.xlu0 %v6439
        %v6441 = vpop.xlane.xlu0 %6440
        %v6442 = vld [vmem:[#allocation3] sm:$0x1]
        %v6444 = vlaneseq
        %v6445 = vshrl.u32 %v6444, 7
        %v6446 = vsub.s32 0, %v6445
        %v6447 = vrot.slane %v6442, %v6446
        %v6449 = vadd.f32 %v6441, %v6447
        %v6450 = vxor.u32 %v6449, 2147483648
        %v6451 = vmul.f32 %v6450, 1.442695
        %v6452 = vpow.pop %v6451
        %v6453 = vadd.f32 %v6452, 1.0
        %v6454 = vrcp.pop %v6453
        %v6455 = vmul.f32 1.0, %v6454
        %vm6456 = vcmask 7168
        %6457 = vst.msk [vmem:[%s878] sm:$0xff] %vm6456, %v6455
        %p6458 = scmp.lt.s32.totalorder %s45, 1
        %s6459 = scalar_select %p6458, %s45, 1
        %s6460 = smul.addr %s6459, 8
        %s6461 = scalar_lea.vmem %s27, %s6460
        // Predicated region
        $region152: #{tpu_custom_call.1} parent=127 // pred_check
          %p6462 = pneg %p635
        $region153: #{tpu_custom_call.1} parent=127 // pred_check_branch
          %6464 = sbr.rel (%p6462) target = $region155
        $region154: #{tpu_custom_call.1} parent=127 // pred_region
          _
        $region155: #{tpu_custom_call.1} parent=127 // pred_fallthru
          _
      $region128: #{tpu_custom_call.1} parent=5 // pred_fallthru
        _
      %p6465 = scmp.le.s32.totalorder 2, %s40
      // Predicated region
      $region156: #{tpu_custom_call.1} parent=5 // pred_check
        %p6466 = pneg %p6465
      $region157: #{tpu_custom_call.1} parent=5 // pred_check_branch
        %6468 = sbr.rel (%p6466) target = $region159
      $region158: #{tpu_custom_call.1} parent=5 // pred_region
        %s6469 = ssub.s32 %s40, 2
        // Predicated region
        $region160: #{tpu_custom_call.1} parent=158 // pred_check
          %p6470 = pneg %p641
        $region161: #{tpu_custom_call.1} parent=158 // pred_check_branch
          %6472 = sbr.rel (%p6470) target = $region163
        $region162: #{tpu_custom_call.1} parent=158 // pred_region
          %p6473 = scmp.lt.s32.totalorder %s46, 1
          %s6474 = scalar_select %p6473, %s46, 1
          %s6475 = smul.addr %s6474, 8
          %s6476 = scalar_lea.vmem %s27, %s6475
        $region163: #{tpu_custom_call.1} parent=158 // pred_fallthru
          _
      $region159: #{tpu_custom_call.1} parent=5 // pred_fallthru
        _
    $region6: #{tpu_custom_call.1} parent=1 // loop_footer
      %s44 = sadd.s32 1, %s40
    $region7: #{tpu_custom_call.1} parent=1 // loop_footer_branch
      %39 = sbr.rel target = $region3
    $region8: #{tpu_custom_call.1} parent=1 // loop_exit
      _
    %6477 = vsyncpa [#allocation5], 1
    %s6478 = scalar_lea.sflag [#allocation5], 1
    %6479 = vsyncpa %s6478, 1
    %6480 = vsyncpa [#allocation7], 1
    %6481 = vsyncpa [#allocation10], 1

</llo_original>
